<compile_context>
chip_gen: v7x
topology: tpu7x:2x2x1
jax: 0.10.0
libtpu: 0.0.40
codegen_flags: <defaults>
</compile_context>

<pallas_src>
import functools
import math

import jax
import jax.numpy as jnp
from jax.experimental import pallas as pl
from jax.experimental.pallas import tpu as pltpu


def decoder_layer_kernel(x_ref, g1_ref, wqkv_ref, wo_ref, g2_ref, wgu_ref,
                         wd_ref, o_ref, *, num_heads, head_dim):
    """Fused transformer decoder layer for a block of batch elements.

    x_ref    : (Bblk, S, D) f32 activations for this grid step
    g1/g2    : (1, D)       f32 RMSNorm gains
    wqkv_ref : (D, 3*H*Dh)  bf16 fused [Wq*scale | Wk | Wv]
    wo_ref   : (H*Dh, D)    bf16 output projection
    wgu_ref  : (D, 2*F)     bf16 fused [Wgate | Wup]
    wd_ref   : (F, D)       bf16 down projection
    o_ref    : (Bblk, S, D) f32
    """
    eps = 1e-6
    H, Dh = num_heads, head_dim
    HDh = H * Dh
    Bblk, S, D = x_ref.shape
    F = wd_ref.shape[0]
    M = Bblk * S

    x = x_ref[...].reshape(M, D)                                # (M, D) f32

    # ---- RMSNorm 1 (f32 VPU math) ------------------------------------------
    var = jnp.mean(x * x, axis=-1, keepdims=True)
    xn = x * jax.lax.rsqrt(var + eps) * g1_ref[...]             # (M, D) f32
    xn16 = xn.astype(jnp.bfloat16)

    # ---- fused QKV projection: ONE (M,D)x(D,3*HDh) MXU matmul --------------
    qkv = jnp.dot(xn16, wqkv_ref[...],
                  preferred_element_type=jnp.float32)           # (M, 3*HDh) f32

    def split_heads(col0):
        # 128-lane-aligned static column slices + sublane-aligned row slices,
        # stacked along a new leading (batch*head) axis: vreg placement only.
        blocks = [qkv[b * S:(b + 1) * S, col0 + h * Dh: col0 + (h + 1) * Dh]
                  for b in range(Bblk) for h in range(H)]
        return jnp.stack(blocks, axis=0).astype(jnp.bfloat16)   # (Bblk*H, S, Dh)

    q = split_heads(0 * HDh)        # 1/sqrt(Dh) pre-folded into Wq columns
    k = split_heads(1 * HDh)
    v = split_heads(2 * HDh)

    # ---- causal attention, batched over (batch*heads) ----------------------
    s = jnp.einsum("hqd,hkd->hqk", q, k,
                   preferred_element_type=jnp.float32)          # (BH, S, S) f32
    row = jax.lax.broadcasted_iota(jnp.int32, (S, S), 0)
    col = jax.lax.broadcasted_iota(jnp.int32, (S, S), 1)
    s = jnp.where((row >= col)[None, :, :], s, -1e30)           # mask bcast over BH

    m = jnp.max(s, axis=-1, keepdims=True)
    e = jnp.exp(s - m)
    denom = jnp.sum(e, axis=-1, keepdims=True)
    p = (e * pl.reciprocal(denom, approx=True)).astype(jnp.bfloat16)
    attn = jnp.einsum("hqk,hkd->hqd", p, v,
                      preferred_element_type=jnp.float32)       # (BH, S, Dh) f32

    # ---- output projection: ONE (M,HDh)x(HDh,D) matmul ---------------------
    attn16 = attn.astype(jnp.bfloat16)
    rows = [jnp.concatenate([attn16[b * H + h] for h in range(H)], axis=-1)
            for b in range(Bblk)]                               # (S, HDh) each
    attn_flat = jnp.concatenate(rows, axis=0) if Bblk > 1 else rows[0]
    h1 = x + jnp.dot(attn_flat, wo_ref[...],
                     preferred_element_type=jnp.float32)        # residual

    # ---- RMSNorm 2 + fused SwiGLU MLP + residual ----------------------------
    var2 = jnp.mean(h1 * h1, axis=-1, keepdims=True)
    hn = (h1 * jax.lax.rsqrt(var2 + eps) * g2_ref[...]).astype(jnp.bfloat16)
    gu = jnp.dot(hn, wgu_ref[...], preferred_element_type=jnp.float32)  # (M, 2F)
    gate = gu[:, :F]
    up = gu[:, F:]
    act = (gate * jax.lax.logistic(gate) * up).astype(jnp.bfloat16)     # SiLU*up
    mlp = jnp.dot(act, wd_ref[...], preferred_element_type=jnp.float32)

    o_ref[...] = (h1 + mlp).reshape(Bblk, S, D)


def prepare_params(raw, *, num_heads):
    """Fuse/reshape/cast raw f32 weights into the kernel layout (host, once)."""
    D = raw["wq"].shape[0]
    Dh = D // num_heads
    scale = 1.0 / math.sqrt(Dh)
    # attention scale folded into Wq columns; QKV / gate-up fused; all bf16.
    w_qkv = jnp.concatenate([raw["wq"] * scale, raw["wk"], raw["wv"]],
                            axis=-1).astype(jnp.bfloat16)        # (D, 3*H*Dh)
    wo = raw["wo"].astype(jnp.bfloat16)                          # (H*Dh, D)
    w_gu = jnp.concatenate([raw["wg"], raw["wu"]],
                           axis=-1).astype(jnp.bfloat16)         # (D, 2F)
    wd = raw["wd"].astype(jnp.bfloat16)                          # (F, D)
    return {"g1": raw["g1"], "g2": raw["g2"],
            "w_qkv": w_qkv, "wo": wo, "w_gu": w_gu, "wd": wd}


def _default_batch_block(batch):
    try:
        kind = jax.devices()[0].device_kind.lower()
    except Exception:
        kind = ""
    # v7x has 2 TensorCores/chip: keep one batch element per grid step so the
    # "parallel" grid axis shards across cores.  v5e/v6e have a single TC:
    # fold the whole batch into one step (M=B*S rows, no per-step overhead).
    if "v7" in kind and batch > 1:
        return 1
    return batch


def decoder_layer(x, params, *, num_heads, batch_block=None):
    """x: (B, S, D) f32; params: output of prepare_params. Returns (B, S, D)."""
    B, S, D = x.shape
    H = num_heads
    Dh = D // H
    HDh = H * Dh
    F = params["wd"].shape[0]
    if batch_block is None:
        batch_block = _default_batch_block(B)
    assert B % batch_block == 0
    grid = (B // batch_block,)

    kernel = functools.partial(decoder_layer_kernel,
                               num_heads=H, head_dim=Dh)

    return pl.pallas_call(
        kernel,
        out_shape=jax.ShapeDtypeStruct((B, S, D), jnp.float32),
        grid_spec=pltpu.PrefetchScalarGridSpec(
            num_scalar_prefetch=0,
            grid=grid,
            in_specs=[
                pl.BlockSpec((batch_block, S, D), lambda b: (b, 0, 0)),  # x
                pl.BlockSpec((1, D), lambda b: (0, 0)),                  # g1
                pl.BlockSpec((D, 3 * HDh), lambda b: (0, 0)),            # fused QKV
                pl.BlockSpec((HDh, D), lambda b: (0, 0)),                # Wo
                pl.BlockSpec((1, D), lambda b: (0, 0)),                  # g2
                pl.BlockSpec((D, 2 * F), lambda b: (0, 0)),              # gate/up
                pl.BlockSpec((F, D), lambda b: (0, 0)),                  # Wdown
            ],
            out_specs=pl.BlockSpec((batch_block, S, D), lambda b: (b, 0, 0)),
        ),
        compiler_params=pltpu.CompilerParams(
            dimension_semantics=("parallel",)),
    )(x, params["g1"], params["w_qkv"], params["wo"], params["g2"],
      params["w_gu"], params["wd"])


def _reference(x, raw, num_heads):
    """Pure-JAX reference mirroring the kernel's bf16-in / f32-accumulate math."""
    eps = 1e-6
    B, S, D = x.shape
    H = num_heads
    Dh = D // H
    bf16, f32 = jnp.bfloat16, jnp.float32
    wq, wk, wv, wo, wg, wu, wd = (raw[k].astype(bf16)
                                  for k in ("wq", "wk", "wv", "wo", "wg", "wu", "wd"))

    xn = x * jax.lax.rsqrt(jnp.mean(x * x, -1, keepdims=True) + eps) * raw["g1"]
    xn16 = xn.astype(bf16)
    q = jnp.einsum("bsd,de->bse", xn16, wq, preferred_element_type=f32)
    k = jnp.einsum("bsd,de->bse", xn16, wk, preferred_element_type=f32)
    v = jnp.einsum("bsd,de->bse", xn16, wv, preferred_element_type=f32)
    q = (q * (1.0 / math.sqrt(Dh))).reshape(B, S, H, Dh).astype(bf16)
    k = k.reshape(B, S, H, Dh).astype(bf16)
    v = v.reshape(B, S, H, Dh).astype(bf16)
    s = jnp.einsum("bqhd,bkhd->bhqk", q, k, preferred_element_type=f32)
    mask = jnp.tril(jnp.ones((S, S), bool))
    s = jnp.where(mask, s, -1e30)
    p = jax.nn.softmax(s, axis=-1).astype(bf16)
    attn = jnp.einsum("bhqk,bkhd->bqhd", p, v, preferred_element_type=f32)
    attn = attn.reshape(B, S, D).astype(bf16)
    h1 = x + jnp.einsum("bsd,de->bse", attn, wo, preferred_element_type=f32)
    hn = (h1 * jax.lax.rsqrt(jnp.mean(h1 * h1, -1, keepdims=True) + eps)
          * raw["g2"]).astype(bf16)
    gate = jnp.einsum("bsd,df->bsf", hn, wg, preferred_element_type=f32)
    up = jnp.einsum("bsd,df->bsf", hn, wu, preferred_element_type=f32)
    act = (jax.nn.silu(gate) * up).astype(bf16)
    return h1 + jnp.einsum("bsf,fd->bsd", act, wd, preferred_element_type=f32)


if __name__ == "__main__":
    # small but lane-dense synthetic decoder-layer shapes (head_dim = 128 like
    # the real Qwen2-VL attention; hidden / MLP dims are multiples of 128).
    B, S, D, H, F = 2, 128, 256, 2, 512

    key = jax.random.PRNGKey(0)
    ks = jax.random.split(key, 8)
    sd = 0.05
    raw = {
        "g1": jnp.ones((1, D), jnp.float32),
        "g2": jnp.ones((1, D), jnp.float32),
        "wq": sd * jax.random.normal(ks[0], (D, D), jnp.float32),
        "wk": sd * jax.random.normal(ks[1], (D, D), jnp.float32),
        "wv": sd * jax.random.normal(ks[2], (D, D), jnp.float32),
        "wo": sd * jax.random.normal(ks[3], (D, D), jnp.float32),
        "wg": sd * jax.random.normal(ks[4], (D, F), jnp.float32),
        "wu": sd * jax.random.normal(ks[5], (D, F), jnp.float32),
        "wd": sd * jax.random.normal(ks[6], (F, D), jnp.float32),
    }
    x = jax.random.normal(ks[7], (B, S, D), jnp.float32)

    params = prepare_params(raw, num_heads=H)
    out = decoder_layer(x, params, num_heads=H)
    out = jax.block_until_ready(out)

    ref = _reference(x, raw, H)
    assert out.shape == (B, S, D)
    max_err = float(jnp.max(jnp.abs(out - ref)))
    assert jnp.allclose(out, ref, atol=2e-2, rtol=2e-2), \
        f"mismatch vs reference (max abs err {max_err})"

    print("KERNEL_OK")
</pallas_src>

<mosaic_0001>
module attributes {stable_mosaic.version = 11 : i64} {
  func.func @decoder_layer_kernel(%arg0: i32, %arg1: memref<2x128x256xf32, #tpu.memory_space<vmem>>, %arg2: memref<1x256xf32, #tpu.memory_space<vmem>>, %arg3: memref<256x768xbf16, #tpu.memory_space<vmem>>, %arg4: memref<256x256xbf16, #tpu.memory_space<vmem>>, %arg5: memref<1x256xf32, #tpu.memory_space<vmem>>, %arg6: memref<256x1024xbf16, #tpu.memory_space<vmem>>, %arg7: memref<512x256xbf16, #tpu.memory_space<vmem>>, %arg8: memref<2x128x256xf32, #tpu.memory_space<vmem>>) attributes {dimension_semantics = [#tpu.dimension_semantics<parallel>], iteration_bounds = array<i64: 1>, scalar_prefetch = 0 : i64, scratch_operands = 0 : i64, tpu.core_type = #tpu.core_type<tc>, window_params = [{transform_indices = @transform_0, window_bounds = array<i64: 2, 128, 256>}, {pipeline_mode = #tpu.pipeline_mode<synchronous>, transform_indices = @transform_1, window_bounds = array<i64: 1, 256>}, {pipeline_mode = #tpu.pipeline_mode<synchronous>, transform_indices = @transform_2, window_bounds = array<i64: 256, 768>}, {pipeline_mode = #tpu.pipeline_mode<synchronous>, transform_indices = @transform_3, window_bounds = array<i64: 256, 256>}, {pipeline_mode = #tpu.pipeline_mode<synchronous>, transform_indices = @transform_4, window_bounds = array<i64: 1, 256>}, {pipeline_mode = #tpu.pipeline_mode<synchronous>, transform_indices = @transform_5, window_bounds = array<i64: 256, 1024>}, {pipeline_mode = #tpu.pipeline_mode<synchronous>, transform_indices = @transform_6, window_bounds = array<i64: 512, 256>}, {transform_indices = @transform_7, window_bounds = array<i64: 2, 128, 256>}]} {
    %c0 = arith.constant 0 : index
    %c0_0 = arith.constant 0 : index
    %c0_1 = arith.constant 0 : index
    %0 = vector.load %arg1[%c0, %c0_0, %c0_1] : memref<2x128x256xf32, #tpu.memory_space<vmem>>, vector<2x128x256xf32>
    %1 = vector.shape_cast %0 : vector<2x128x256xf32> to vector<256x256xf32>
    %2 = arith.mulf %1, %1 : vector<256x256xf32>
    %cst = arith.constant dense<0.000000e+00> : vector<256xf32>
    %3 = vector.multi_reduction <add>, %2, %cst [1] : vector<256x256xf32> to vector<256xf32>
    %4 = vector.shape_cast %3 : vector<256xf32> to vector<256x1xf32>
    %cst_2 = arith.constant 2.560000e+02 : f32
    %5 = vector.broadcast %cst_2 : f32 to vector<256x1xf32>
    %6 = arith.divf %4, %5 : vector<256x1xf32>
    %cst_3 = arith.constant 9.99999997E-7 : f32
    %7 = vector.broadcast %cst_3 : f32 to vector<256x1xf32>
    %8 = arith.addf %6, %7 : vector<256x1xf32>
    %9 = math.rsqrt %8 : vector<256x1xf32>
    %10 = vector.broadcast %9 : vector<256x1xf32> to vector<256x256xf32>
    %11 = arith.mulf %1, %10 : vector<256x256xf32>
    %c0_4 = arith.constant 0 : index
    %c0_5 = arith.constant 0 : index
    %12 = vector.load %arg2[%c0_4, %c0_5] : memref<1x256xf32, #tpu.memory_space<vmem>>, vector<1x256xf32>
    %13 = vector.broadcast %12 : vector<1x256xf32> to vector<256x256xf32>
    %14 = arith.mulf %11, %13 : vector<256x256xf32>
    %15 = arith.truncf %14 : vector<256x256xf32> to vector<256x256xbf16>
    %c0_6 = arith.constant 0 : index
    %c0_7 = arith.constant 0 : index
    %16 = vector.load %arg3[%c0_6, %c0_7] : memref<256x768xbf16, #tpu.memory_space<vmem>>, vector<256x768xbf16>
    %cst_8 = arith.constant dense<0.000000e+00> : vector<256x768xf32>
    %17 = tpu.matmul %15, %16, %cst_8 {dimension_numbers = #tpu.dot_dimension_numbers<[1], [0], [0], [1], [0, 0, 1, 1], [], []>} : vector<256x256xbf16>, vector<256x768xbf16>, vector<256x768xf32> -> vector<256x768xf32>
    %18 = vector.extract_strided_slice %17 {offsets = [0, 0], sizes = [128, 128], strides = [1, 1]} : vector<256x768xf32> to vector<128x128xf32>
    %19 = vector.extract_strided_slice %17 {offsets = [0, 128], sizes = [128, 128], strides = [1, 1]} : vector<256x768xf32> to vector<128x128xf32>
    %20 = vector.extract_strided_slice %17 {offsets = [128, 0], sizes = [128, 128], strides = [1, 1]} : vector<256x768xf32> to vector<128x128xf32>
    %21 = vector.extract_strided_slice %17 {offsets = [128, 128], sizes = [128, 128], strides = [1, 1]} : vector<256x768xf32> to vector<128x128xf32>
    %22 = vector.shape_cast %18 : vector<128x128xf32> to vector<1x128x128xf32>
    %23 = vector.shape_cast %19 : vector<128x128xf32> to vector<1x128x128xf32>
    %24 = vector.shape_cast %20 : vector<128x128xf32> to vector<1x128x128xf32>
    %25 = vector.shape_cast %21 : vector<128x128xf32> to vector<1x128x128xf32>
    %26 = tpu.concatenate %22, %23, %24, %25 in 0 : vector<1x128x128xf32>, vector<1x128x128xf32>, vector<1x128x128xf32>, vector<1x128x128xf32> -> vector<4x128x128xf32>
    %27 = arith.truncf %26 : vector<4x128x128xf32> to vector<4x128x128xbf16>
    %28 = vector.extract_strided_slice %17 {offsets = [0, 256], sizes = [128, 128], strides = [1, 1]} : vector<256x768xf32> to vector<128x128xf32>
    %29 = vector.extract_strided_slice %17 {offsets = [0, 384], sizes = [128, 128], strides = [1, 1]} : vector<256x768xf32> to vector<128x128xf32>
    %30 = vector.extract_strided_slice %17 {offsets = [128, 256], sizes = [128, 128], strides = [1, 1]} : vector<256x768xf32> to vector<128x128xf32>
    %31 = vector.extract_strided_slice %17 {offsets = [128, 384], sizes = [128, 128], strides = [1, 1]} : vector<256x768xf32> to vector<128x128xf32>
    %32 = vector.shape_cast %28 : vector<128x128xf32> to vector<1x128x128xf32>
    %33 = vector.shape_cast %29 : vector<128x128xf32> to vector<1x128x128xf32>
    %34 = vector.shape_cast %30 : vector<128x128xf32> to vector<1x128x128xf32>
    %35 = vector.shape_cast %31 : vector<128x128xf32> to vector<1x128x128xf32>
    %36 = tpu.concatenate %32, %33, %34, %35 in 0 : vector<1x128x128xf32>, vector<1x128x128xf32>, vector<1x128x128xf32>, vector<1x128x128xf32> -> vector<4x128x128xf32>
    %37 = arith.truncf %36 : vector<4x128x128xf32> to vector<4x128x128xbf16>
    %38 = vector.extract_strided_slice %17 {offsets = [0, 512], sizes = [128, 128], strides = [1, 1]} : vector<256x768xf32> to vector<128x128xf32>
    %39 = vector.extract_strided_slice %17 {offsets = [0, 640], sizes = [128, 128], strides = [1, 1]} : vector<256x768xf32> to vector<128x128xf32>
    %40 = vector.extract_strided_slice %17 {offsets = [128, 512], sizes = [128, 128], strides = [1, 1]} : vector<256x768xf32> to vector<128x128xf32>
    %41 = vector.extract_strided_slice %17 {offsets = [128, 640], sizes = [128, 128], strides = [1, 1]} : vector<256x768xf32> to vector<128x128xf32>
    %42 = vector.shape_cast %38 : vector<128x128xf32> to vector<1x128x128xf32>
    %43 = vector.shape_cast %39 : vector<128x128xf32> to vector<1x128x128xf32>
    %44 = vector.shape_cast %40 : vector<128x128xf32> to vector<1x128x128xf32>
    %45 = vector.shape_cast %41 : vector<128x128xf32> to vector<1x128x128xf32>
    %46 = tpu.concatenate %42, %43, %44, %45 in 0 : vector<1x128x128xf32>, vector<1x128x128xf32>, vector<1x128x128xf32>, vector<1x128x128xf32> -> vector<4x128x128xf32>
    %47 = arith.truncf %46 : vector<4x128x128xf32> to vector<4x128x128xbf16>
    "tpu.trace_start"() <{level = 10 : i32, message = "hqd,hkd->hqk"}> : () -> ()
    %cst_9 = arith.constant dense<0.000000e+00> : vector<4x128x128xf32>
    %48 = tpu.matmul %27, %37, %cst_9 {dimension_numbers = #tpu.dot_dimension_numbers<[2], [2], [1], [1], [0, 0, 0, 1, 1, 1], [0], [0]>} : vector<4x128x128xbf16>, vector<4x128x128xbf16>, vector<4x128x128xf32> -> vector<4x128x128xf32>
    "tpu.trace_stop"() : () -> ()
    %49 = tpu.iota {dimensions = array<i32: 0>} : vector<128x128xi32>
    %50 = tpu.iota {dimensions = array<i32: 1>} : vector<128x128xi32>
    %51 = arith.cmpi sge, %49, %50 : vector<128x128xi32>
    %52 = vector.shape_cast %51 : vector<128x128xi1> to vector<1x128x128xi1>
    %cst_10 = arith.constant -1.000000e+30 : f32
    %53 = vector.shape_cast %52 : vector<1x128x128xi1> to vector<1x128x128xi1>
    %54 = vector.broadcast %53 : vector<1x128x128xi1> to vector<4x128x128xi1>
    %55 = vector.broadcast %cst_10 : f32 to vector<4x128x128xf32>
    %56 = arith.select %54, %48, %55 : vector<4x128x128xi1>, vector<4x128x128xf32>
    %cst_11 = arith.constant dense<0xFF800000> : vector<4x128xf32>
    %57 = vector.multi_reduction <maximumf>, %56, %cst_11 [2] : vector<4x128x128xf32> to vector<4x128xf32>
    %58 = vector.shape_cast %57 : vector<4x128xf32> to vector<4x128x1xf32>
    %59 = vector.broadcast %58 : vector<4x128x1xf32> to vector<4x128x128xf32>
    %60 = arith.subf %56, %59 : vector<4x128x128xf32>
    %61 = math.exp %60 : vector<4x128x128xf32>
    %cst_12 = arith.constant dense<0.000000e+00> : vector<4x128xf32>
    %62 = vector.multi_reduction <add>, %61, %cst_12 [2] : vector<4x128x128xf32> to vector<4x128xf32>
    %63 = vector.shape_cast %62 : vector<4x128xf32> to vector<4x128x1xf32>
    %64 = tpu.reciprocal %63 {approx = true} : vector<4x128x1xf32> -> vector<4x128x1xf32>
    %65 = vector.broadcast %64 : vector<4x128x1xf32> to vector<4x128x128xf32>
    %66 = arith.mulf %61, %65 : vector<4x128x128xf32>
    %67 = arith.truncf %66 : vector<4x128x128xf32> to vector<4x128x128xbf16>
    "tpu.trace_start"() <{level = 10 : i32, message = "hqk,hkd->hqd"}> : () -> ()
    %cst_13 = arith.constant dense<0.000000e+00> : vector<4x128x128xf32>
    %68 = tpu.matmul %67, %47, %cst_13 {dimension_numbers = #tpu.dot_dimension_numbers<[2], [1], [1], [2], [0, 0, 0, 1, 1, 2], [0], [0]>} : vector<4x128x128xbf16>, vector<4x128x128xbf16>, vector<4x128x128xf32> -> vector<4x128x128xf32>
    "tpu.trace_stop"() : () -> ()
    %69 = arith.truncf %68 : vector<4x128x128xf32> to vector<4x128x128xbf16>
    %70 = vector.extract_strided_slice %69 {offsets = [0, 0, 0], sizes = [1, 128, 128], strides = [1, 1, 1]} : vector<4x128x128xbf16> to vector<1x128x128xbf16>
    %71 = vector.shape_cast %70 : vector<1x128x128xbf16> to vector<128x128xbf16>
    %72 = vector.extract_strided_slice %69 {offsets = [1, 0, 0], sizes = [1, 128, 128], strides = [1, 1, 1]} : vector<4x128x128xbf16> to vector<1x128x128xbf16>
    %73 = vector.shape_cast %72 : vector<1x128x128xbf16> to vector<128x128xbf16>
    %74 = tpu.concatenate %71, %73 in 1 : vector<128x128xbf16>, vector<128x128xbf16> -> vector<128x256xbf16>
    %75 = vector.extract_strided_slice %69 {offsets = [2, 0, 0], sizes = [1, 128, 128], strides = [1, 1, 1]} : vector<4x128x128xbf16> to vector<1x128x128xbf16>
    %76 = vector.shape_cast %75 : vector<1x128x128xbf16> to vector<128x128xbf16>
    %77 = vector.extract_strided_slice %69 {offsets = [3, 0, 0], sizes = [1, 128, 128], strides = [1, 1, 1]} : vector<4x128x128xbf16> to vector<1x128x128xbf16>
    %78 = vector.shape_cast %77 : vector<1x128x128xbf16> to vector<128x128xbf16>
    %79 = tpu.concatenate %76, %78 in 1 : vector<128x128xbf16>, vector<128x128xbf16> -> vector<128x256xbf16>
    %80 = tpu.concatenate %74, %79 in 0 : vector<128x256xbf16>, vector<128x256xbf16> -> vector<256x256xbf16>
    %c0_14 = arith.constant 0 : index
    %c0_15 = arith.constant 0 : index
    %81 = vector.load %arg4[%c0_14, %c0_15] : memref<256x256xbf16, #tpu.memory_space<vmem>>, vector<256x256xbf16>
    %cst_16 = arith.constant dense<0.000000e+00> : vector<256x256xf32>
    %82 = tpu.matmul %80, %81, %cst_16 {dimension_numbers = #tpu.dot_dimension_numbers<[1], [0], [0], [1], [0, 0, 1, 1], [], []>} : vector<256x256xbf16>, vector<256x256xbf16>, vector<256x256xf32> -> vector<256x256xf32>
    %83 = arith.addf %1, %82 : vector<256x256xf32>
    %84 = arith.mulf %83, %83 : vector<256x256xf32>
    %cst_17 = arith.constant dense<0.000000e+00> : vector<256xf32>
    %85 = vector.multi_reduction <add>, %84, %cst_17 [1] : vector<256x256xf32> to vector<256xf32>
    %86 = vector.shape_cast %85 : vector<256xf32> to vector<256x1xf32>
    %cst_18 = arith.constant 2.560000e+02 : f32
    %87 = vector.broadcast %cst_18 : f32 to vector<256x1xf32>
    %88 = arith.divf %86, %87 : vector<256x1xf32>
    %cst_19 = arith.constant 9.99999997E-7 : f32
    %89 = vector.broadcast %cst_19 : f32 to vector<256x1xf32>
    %90 = arith.addf %88, %89 : vector<256x1xf32>
    %91 = math.rsqrt %90 : vector<256x1xf32>
    %92 = vector.broadcast %91 : vector<256x1xf32> to vector<256x256xf32>
    %93 = arith.mulf %83, %92 : vector<256x256xf32>
    %c0_20 = arith.constant 0 : index
    %c0_21 = arith.constant 0 : index
    %94 = vector.load %arg5[%c0_20, %c0_21] : memref<1x256xf32, #tpu.memory_space<vmem>>, vector<1x256xf32>
    %95 = vector.broadcast %94 : vector<1x256xf32> to vector<256x256xf32>
    %96 = arith.mulf %93, %95 : vector<256x256xf32>
    %97 = arith.truncf %96 : vector<256x256xf32> to vector<256x256xbf16>
    %c0_22 = arith.constant 0 : index
    %c0_23 = arith.constant 0 : index
    %98 = vector.load %arg6[%c0_22, %c0_23] : memref<256x1024xbf16, #tpu.memory_space<vmem>>, vector<256x1024xbf16>
    %cst_24 = arith.constant dense<0.000000e+00> : vector<256x1024xf32>
    %99 = tpu.matmul %97, %98, %cst_24 {dimension_numbers = #tpu.dot_dimension_numbers<[1], [0], [0], [1], [0, 0, 1, 1], [], []>} : vector<256x256xbf16>, vector<256x1024xbf16>, vector<256x1024xf32> -> vector<256x1024xf32>
    %100 = vector.extract_strided_slice %99 {offsets = [0, 0], sizes = [256, 512], strides = [1, 1]} : vector<256x1024xf32> to vector<256x512xf32>
    %101 = vector.extract_strided_slice %99 {offsets = [0, 512], sizes = [256, 512], strides = [1, 1]} : vector<256x1024xf32> to vector<256x512xf32>
    %102 = arith.negf %100 : vector<256x512xf32>
    %103 = math.exp %102 : vector<256x512xf32>
    %cst_25 = arith.constant 1.000000e+00 : f32
    %104 = vector.broadcast %cst_25 : f32 to vector<256x512xf32>
    %105 = arith.addf %104, %103 : vector<256x512xf32>
    %106 = arith.divf %104, %105 : vector<256x512xf32>
    %107 = arith.mulf %100, %106 : vector<256x512xf32>
    %108 = arith.mulf %107, %101 : vector<256x512xf32>
    %109 = arith.truncf %108 : vector<256x512xf32> to vector<256x512xbf16>
    %c0_26 = arith.constant 0 : index
    %c0_27 = arith.constant 0 : index
    %110 = vector.load %arg7[%c0_26, %c0_27] : memref<512x256xbf16, #tpu.memory_space<vmem>>, vector<512x256xbf16>
    %cst_28 = arith.constant dense<0.000000e+00> : vector<256x256xf32>
    %111 = tpu.matmul %109, %110, %cst_28 {dimension_numbers = #tpu.dot_dimension_numbers<[1], [0], [0], [1], [0, 0, 1, 1], [], []>} : vector<256x512xbf16>, vector<512x256xbf16>, vector<256x256xf32> -> vector<256x256xf32>
    %112 = arith.addf %83, %111 : vector<256x256xf32>
    %113 = vector.shape_cast %112 : vector<256x256xf32> to vector<2x128x256xf32>
    %c0_29 = arith.constant 0 : index
    %c0_30 = arith.constant 0 : index
    %c0_31 = arith.constant 0 : index
    %114 = vector.load %arg8[%c0_29, %c0_30, %c0_31] : memref<2x128x256xf32, #tpu.memory_space<vmem>>, vector<2x128x256xf32>
    tpu.vector_store %arg8[%c0_29, %c0_30, %c0_31], %113 {strides = array<i32>} : memref<2x128x256xf32, #tpu.memory_space<vmem>>, vector<2x128x256xf32>,
    return
  }
  func.func @transform_0(%arg0: i32) -> (i32, i32, i32) {
    %c0_i32 = arith.constant 0 : i32
    %c0_i32_0 = arith.constant 0 : i32
    %c0_i32_1 = arith.constant 0 : i32
    return %arg0, %c0_i32, %c0_i32_0 : i32, i32, i32
  }
  func.func @transform_1(%arg0: i32) -> (i32, i32) {
    %c0_i32 = arith.constant 0 : i32
    %c0_i32_0 = arith.constant 0 : i32
    %c0_i32_1 = arith.constant 0 : i32
    return %c0_i32, %c0_i32_0 : i32, i32
  }
  func.func @transform_2(%arg0: i32) -> (i32, i32) {
    %c0_i32 = arith.constant 0 : i32
    %c0_i32_0 = arith.constant 0 : i32
    %c0_i32_1 = arith.constant 0 : i32
    return %c0_i32, %c0_i32_0 : i32, i32
  }
  func.func @transform_3(%arg0: i32) -> (i32, i32) {
    %c0_i32 = arith.constant 0 : i32
    %c0_i32_0 = arith.constant 0 : i32
    %c0_i32_1 = arith.constant 0 : i32
    return %c0_i32, %c0_i32_0 : i32, i32
  }
  func.func @transform_4(%arg0: i32) -> (i32, i32) {
    %c0_i32 = arith.constant 0 : i32
    %c0_i32_0 = arith.constant 0 : i32
    %c0_i32_1 = arith.constant 0 : i32
    return %c0_i32, %c0_i32_0 : i32, i32
  }
  func.func @transform_5(%arg0: i32) -> (i32, i32) {
    %c0_i32 = arith.constant 0 : i32
    %c0_i32_0 = arith.constant 0 : i32
    %c0_i32_1 = arith.constant 0 : i32
    return %c0_i32, %c0_i32_0 : i32, i32
  }
  func.func @transform_6(%arg0: i32) -> (i32, i32) {
    %c0_i32 = arith.constant 0 : i32
    %c0_i32_0 = arith.constant 0 : i32
    %c0_i32_1 = arith.constant 0 : i32
    return %c0_i32, %c0_i32_0 : i32, i32
  }
  func.func @transform_7(%arg0: i32) -> (i32, i32, i32) {
    %c0_i32 = arith.constant 0 : i32
    %c0_i32_0 = arith.constant 0 : i32
    %c0_i32_1 = arith.constant 0 : i32
    return %arg0, %c0_i32, %c0_i32_0 : i32, i32, i32
  }
}

</mosaic_0001>

<llo_original>
// kernel: tpu_custom_call.1
$region0: #{tpu_custom_call.1}
  #allocation0 [shape = 'u32[]', space=smem, size = 0x4, offset = 0x4, fixed_abs, tag = 'smem constant byte address 0x4 - core index']
  #allocation1 [shape = 'u32[144,128]{1,0:T(1,128)}', space=vmem, size = 0x12000, scoped, tag = 'internal scratch']
  %s0 = inlined_call_operand.hbm [shape: f32[2,128,256], index: 0, kind: input, shape index: {}]
  %s1 = inlined_call_operand.vmem [shape: f32[1,256], index: 1, kind: input, shape index: {}]
  %s2 = inlined_call_operand.hbm [shape: bf16[256,768], index: 2, kind: input, shape index: {}]
  %s3 = inlined_call_operand.hbm [shape: bf16[256,256], index: 3, kind: input, shape index: {}]
  %s4 = inlined_call_operand.vmem [shape: f32[1,256], index: 4, kind: input, shape index: {}]
  %s5 = inlined_call_operand.hbm [shape: bf16[256,1024], index: 5, kind: input, shape index: {}]
  %s6 = inlined_call_operand.hbm [shape: bf16[512,256], index: 6, kind: input, shape index: {}]
  %s7 = inlined_call_operand.hbm [shape: f32[2,128,256], index: 7, kind: output, shape index: {}]
  %s8 = sld [smem:[#allocation0]]
  $region58: #{tpu_custom_call.1} parent=0
    _
  %s10 = ssub.s32 1, %s8
  %s11 = scalar_select 0, %s10, %s8
  $region1: #{tpu_custom_call.1} parent=0
    #allocation2 [shape = 'u8[262144]{0}', space=vmem, size = 0x40000, scoped, tag = 'input window, operand 0, single buffered']
    #allocation3 [shape = 's32[1]{0}', space=sflag, size = 0x4, scoped, tag = 'scoped memory for tpu_custom_call.1']
    #allocation4 [shape = 's32[1]{0}', space=sflag, size = 0x4, scoped, tag = 'scoped memory for tpu_custom_call.1']
    #allocation5 [shape = 'u8[393216]{0}', space=vmem, size = 0x60000, scoped, tag = 'input window, operand 2, single buffered']
    #allocation6 [shape = 's32[1]{0}', space=sflag, size = 0x4, scoped, tag = 'scoped memory for tpu_custom_call.1']
    #allocation7 [shape = 'u8[131072]{0}', space=vmem, size = 0x20000, scoped, tag = 'input window, operand 3, single buffered']
    #allocation8 [shape = 'u8[524288]{0}', space=vmem, size = 0x80000, scoped, tag = 'input window, operand 5, single buffered']
    #allocation9 [shape = 's32[1]{0}', space=sflag, size = 0x4, scoped, tag = 'scoped memory for tpu_custom_call.1']
    #allocation10 [shape = 'u8[262144]{0}', space=vmem, size = 0x40000, scoped, tag = 'input window, operand 6, single buffered']
    #allocation11 [shape = 'u8[262144]{0}', space=vmem, size = 0x40000, scoped, tag = 'output window, operand 0, single buffered']
    %12 = vsyncpa [#allocation3], 0
    %13 = vsyncpa [#allocation6], 0
    %14 = vsyncpa [#allocation9], 0
    %15 = vsyncpa [#allocation4], 0
    // Predicated region
    $region2: #{tpu_custom_call.1} parent=1 // pred_check
      _
    $region3: #{tpu_custom_call.1} parent=1 // pred_check_branch
      %17 = sbr.rel (0) target = $region5
    $region4: #{tpu_custom_call.1} parent=1 // pred_region
      %s19 = ssub.s32 8192, 8192
      %20 = vsyncadd [#allocation3], %s19
      %s21 = sshll.u32 [#allocation2], 4
      %s22 = int_to_ptr.vmem [resolvable:$true] %s21
      %27 = dma.hbm_to_vmem [thread:$0]  %s0, 8192, %s22, [#allocation3], 256, 256, 16
    $region5: #{tpu_custom_call.1} parent=1 // pred_fallthru
      _
    // Predicated region
    $region6: #{tpu_custom_call.1} parent=1 // pred_check
      _
    $region7: #{tpu_custom_call.1} parent=1 // pred_check_branch
      %29 = sbr.rel (0) target = $region9
    $region8: #{tpu_custom_call.1} parent=1 // pred_region
      _
    $region9: #{tpu_custom_call.1} parent=1 // pred_fallthru
      _
    // Predicated region
    $region10: #{tpu_custom_call.1} parent=1 // pred_check
      _
    $region11: #{tpu_custom_call.1} parent=1 // pred_check_branch
      %31 = sbr.rel (0) target = $region13
    $region12: #{tpu_custom_call.1} parent=1 // pred_region
      %s33 = ssub.s32 12288, 12288
      %34 = vsyncadd [#allocation6], %s33
      %s35 = sshll.u32 [#allocation5], 4
      %s36 = int_to_ptr.vmem [resolvable:$true] %s35
      %41 = dma.hbm_to_vmem [thread:$0]  %s2, 12288, %s36, [#allocation6], 384, 384, 24
    $region13: #{tpu_custom_call.1} parent=1 // pred_fallthru
      _
    // Predicated region
    $region14: #{tpu_custom_call.1} parent=1 // pred_check
      _
    $region15: #{tpu_custom_call.1} parent=1 // pred_check_branch
      %43 = sbr.rel (0) target = $region17
    $region16: #{tpu_custom_call.1} parent=1 // pred_region
      %s45 = ssub.s32 4096, 4096
      %46 = vsyncadd [#allocation6], %s45
      %s47 = sshll.u32 [#allocation7], 4
      %s48 = int_to_ptr.vmem [resolvable:$true] %s47
      %53 = dma.hbm_to_vmem [thread:$0]  %s3, 4096, %s48, [#allocation6], 128, 128, 8
    $region17: #{tpu_custom_call.1} parent=1 // pred_fallthru
      _
    // Predicated region
    $region18: #{tpu_custom_call.1} parent=1 // pred_check
      _
    $region19: #{tpu_custom_call.1} parent=1 // pred_check_branch
      %55 = sbr.rel (0) target = $region21
    $region20: #{tpu_custom_call.1} parent=1 // pred_region
      _
    $region21: #{tpu_custom_call.1} parent=1 // pred_fallthru
      _
    // Predicated region
    $region22: #{tpu_custom_call.1} parent=1 // pred_check
      _
    $region23: #{tpu_custom_call.1} parent=1 // pred_check_branch
      %57 = sbr.rel (0) target = $region25
    $region24: #{tpu_custom_call.1} parent=1 // pred_region
      %s59 = ssub.s32 16384, 16384
      %60 = vsyncadd [#allocation9], %s59
      %s61 = sshll.u32 [#allocation8], 4
      %s62 = int_to_ptr.vmem [resolvable:$true] %s61
      %67 = dma.hbm_to_vmem [thread:$0]  %s5, 16384, %s62, [#allocation9], 512, 512, 32
    $region25: #{tpu_custom_call.1} parent=1 // pred_fallthru
      _
    // Predicated region
    $region26: #{tpu_custom_call.1} parent=1 // pred_check
      _
    $region27: #{tpu_custom_call.1} parent=1 // pred_check_branch
      %69 = sbr.rel (0) target = $region29
    $region28: #{tpu_custom_call.1} parent=1 // pred_region
      %s71 = ssub.s32 8192, 8192
      %72 = vsyncadd [#allocation9], %s71
      %s73 = sshll.u32 [#allocation10], 4
      %s74 = int_to_ptr.vmem [resolvable:$true] %s73
      %79 = dma.hbm_to_vmem [thread:$0]  %s6, 8192, %s74, [#allocation9], 128, 128, 8
    $region29: #{tpu_custom_call.1} parent=1 // pred_fallthru
      _
    // Predicated region
    $region30: #{tpu_custom_call.1} parent=1 // pred_check
      _
    $region31: #{tpu_custom_call.1} parent=1 // pred_check_branch
      %81 = sbr.rel (0) target = $region33
    $region32: #{tpu_custom_call.1} parent=1 // pred_region
      %82 = dma.done [#allocation3], 8192
    $region33: #{tpu_custom_call.1} parent=1 // pred_fallthru
      _
    // Predicated region
    $region34: #{tpu_custom_call.1} parent=1 // pred_check
      _
    $region35: #{tpu_custom_call.1} parent=1 // pred_check_branch
      %84 = sbr.rel (0) target = $region37
    $region36: #{tpu_custom_call.1} parent=1 // pred_region
      %85 = dma.done [#allocation6], 12288
    $region37: #{tpu_custom_call.1} parent=1 // pred_fallthru
      _
    // Predicated region
    $region38: #{tpu_custom_call.1} parent=1 // pred_check
      _
    $region39: #{tpu_custom_call.1} parent=1 // pred_check_branch
      %87 = sbr.rel (0) target = $region41
    $region40: #{tpu_custom_call.1} parent=1 // pred_region
      %88 = dma.done [#allocation6], 4096
    $region41: #{tpu_custom_call.1} parent=1 // pred_fallthru
      _
    // Predicated region
    $region42: #{tpu_custom_call.1} parent=1 // pred_check
      _
    $region43: #{tpu_custom_call.1} parent=1 // pred_check_branch
      %90 = sbr.rel (0) target = $region45
    $region44: #{tpu_custom_call.1} parent=1 // pred_region
      %91 = dma.done [#allocation9], 16384
    $region45: #{tpu_custom_call.1} parent=1 // pred_fallthru
      _
    // Predicated region
    $region46: #{tpu_custom_call.1} parent=1 // pred_check
      _
    $region47: #{tpu_custom_call.1} parent=1 // pred_check_branch
      %93 = sbr.rel (0) target = $region49
    $region48: #{tpu_custom_call.1} parent=1 // pred_region
      %94 = dma.done [#allocation9], 8192
    $region49: #{tpu_custom_call.1} parent=1 // pred_fallthru
      _
    %v96 = vld [vmem:[#allocation2] sm:$0xff]
    %v97 = vld [vmem:[#allocation2 + $0x8] sm:$0xff]
    %v98 = vld [vmem:[#allocation2 + $0x10] sm:$0xff]
    %v99 = vld [vmem:[#allocation2 + $0x18] sm:$0xff]
    %v100 = vld [vmem:[#allocation2 + $0x20] sm:$0xff]
    %v101 = vld [vmem:[#allocation2 + $0x28] sm:$0xff]
    %v102 = vld [vmem:[#allocation2 + $0x30] sm:$0xff]
    %v103 = vld [vmem:[#allocation2 + $0x38] sm:$0xff]
    %v104 = vld [vmem:[#allocation2 + $0x40] sm:$0xff]
    %v105 = vld [vmem:[#allocation2 + $0x48] sm:$0xff]
    %v106 = vld [vmem:[#allocation2 + $0x50] sm:$0xff]
    %v107 = vld [vmem:[#allocation2 + $0x58] sm:$0xff]
    %v108 = vld [vmem:[#allocation2 + $0x60] sm:$0xff]
    %v109 = vld [vmem:[#allocation2 + $0x68] sm:$0xff]
    %v110 = vld [vmem:[#allocation2 + $0x70] sm:$0xff]
    %v111 = vld [vmem:[#allocation2 + $0x78] sm:$0xff]
    %v112 = vld [vmem:[#allocation2 + $0x80] sm:$0xff]
    %v113 = vld [vmem:[#allocation2 + $0x88] sm:$0xff]
    %v114 = vld [vmem:[#allocation2 + $0x90] sm:$0xff]
    %v115 = vld [vmem:[#allocation2 + $0x98] sm:$0xff]
    %v116 = vld [vmem:[#allocation2 + $0xa0] sm:$0xff]
    %v117 = vld [vmem:[#allocation2 + $0xa8] sm:$0xff]
    %v118 = vld [vmem:[#allocation2 + $0xb0] sm:$0xff]
    %v119 = vld [vmem:[#allocation2 + $0xb8] sm:$0xff]
    %v120 = vld [vmem:[#allocation2 + $0xc0] sm:$0xff]
    %v121 = vld [vmem:[#allocation2 + $0xc8] sm:$0xff]
    %v122 = vld [vmem:[#allocation2 + $0xd0] sm:$0xff]
    %v123 = vld [vmem:[#allocation2 + $0xd8] sm:$0xff]
    %v124 = vld [vmem:[#allocation2 + $0xe0] sm:$0xff]
    %v125 = vld [vmem:[#allocation2 + $0xe8] sm:$0xff]
    %v126 = vld [vmem:[#allocation2 + $0xf0] sm:$0xff]
    %v127 = vld [vmem:[#allocation2 + $0xf8] sm:$0xff]
    %v128 = vld [vmem:[#allocation2 + $0x100] sm:$0xff]
    %v129 = vld [vmem:[#allocation2 + $0x108] sm:$0xff]
    %v130 = vld [vmem:[#allocation2 + $0x110] sm:$0xff]
    %v131 = vld [vmem:[#allocation2 + $0x118] sm:$0xff]
    %v132 = vld [vmem:[#allocation2 + $0x120] sm:$0xff]
    %v133 = vld [vmem:[#allocation2 + $0x128] sm:$0xff]
    %v134 = vld [vmem:[#allocation2 + $0x130] sm:$0xff]
    %v135 = vld [vmem:[#allocation2 + $0x138] sm:$0xff]
    %v136 = vld [vmem:[#allocation2 + $0x140] sm:$0xff]
    %v137 = vld [vmem:[#allocation2 + $0x148] sm:$0xff]
    %v138 = vld [vmem:[#allocation2 + $0x150] sm:$0xff]
    %v139 = vld [vmem:[#allocation2 + $0x158] sm:$0xff]
    %v140 = vld [vmem:[#allocation2 + $0x160] sm:$0xff]
    %v141 = vld [vmem:[#allocation2 + $0x168] sm:$0xff]
    %v142 = vld [vmem:[#allocation2 + $0x170] sm:$0xff]
    %v143 = vld [vmem:[#allocation2 + $0x178] sm:$0xff]
    %v144 = vld [vmem:[#allocation2 + $0x180] sm:$0xff]
    %v145 = vld [vmem:[#allocation2 + $0x188] sm:$0xff]
    %v146 = vld [vmem:[#allocation2 + $0x190] sm:$0xff]
    %v147 = vld [vmem:[#allocation2 + $0x198] sm:$0xff]
    %v148 = vld [vmem:[#allocation2 + $0x1a0] sm:$0xff]
    %v149 = vld [vmem:[#allocation2 + $0x1a8] sm:$0xff]
    %v150 = vld [vmem:[#allocation2 + $0x1b0] sm:$0xff]
    %v151 = vld [vmem:[#allocation2 + $0x1b8] sm:$0xff]
    %v152 = vld [vmem:[#allocation2 + $0x1c0] sm:$0xff]
    %v153 = vld [vmem:[#allocation2 + $0x1c8] sm:$0xff]
    %v154 = vld [vmem:[#allocation2 + $0x1d0] sm:$0xff]
    %v155 = vld [vmem:[#allocation2 + $0x1d8] sm:$0xff]
    %v156 = vld [vmem:[#allocation2 + $0x1e0] sm:$0xff]
    %v157 = vld [vmem:[#allocation2 + $0x1e8] sm:$0xff]
    %v158 = vld [vmem:[#allocation2 + $0x1f0] sm:$0xff]
    %v159 = vld [vmem:[#allocation2 + $0x1f8] sm:$0xff]
    %v160 = vmul.f32 %v96, %v96
    %v161 = vmul.f32 %v97, %v97
    %v162 = vmul.f32 %v98, %v98
    %v163 = vmul.f32 %v99, %v99
    %v164 = vmul.f32 %v100, %v100
    %v165 = vmul.f32 %v101, %v101
    %v166 = vmul.f32 %v102, %v102
    %v167 = vmul.f32 %v103, %v103
    %v168 = vmul.f32 %v104, %v104
    %v169 = vmul.f32 %v105, %v105
    %v170 = vmul.f32 %v106, %v106
    %v171 = vmul.f32 %v107, %v107
    %v172 = vmul.f32 %v108, %v108
    %v173 = vmul.f32 %v109, %v109
    %v174 = vmul.f32 %v110, %v110
    %v175 = vmul.f32 %v111, %v111
    %v176 = vmul.f32 %v112, %v112
    %v177 = vmul.f32 %v113, %v113
    %v178 = vmul.f32 %v114, %v114
    %v179 = vmul.f32 %v115, %v115
    %v180 = vmul.f32 %v116, %v116
    %v181 = vmul.f32 %v117, %v117
    %v182 = vmul.f32 %v118, %v118
    %v183 = vmul.f32 %v119, %v119
    %v184 = vmul.f32 %v120, %v120
    %v185 = vmul.f32 %v121, %v121
    %v186 = vmul.f32 %v122, %v122
    %v187 = vmul.f32 %v123, %v123
    %v188 = vmul.f32 %v124, %v124
    %v189 = vmul.f32 %v125, %v125
    %v190 = vmul.f32 %v126, %v126
    %v191 = vmul.f32 %v127, %v127
    %v192 = vmul.f32 %v128, %v128
    %v193 = vmul.f32 %v129, %v129
    %v194 = vmul.f32 %v130, %v130
    %v195 = vmul.f32 %v131, %v131
    %v196 = vmul.f32 %v132, %v132
    %v197 = vmul.f32 %v133, %v133
    %v198 = vmul.f32 %v134, %v134
    %v199 = vmul.f32 %v135, %v135
    %v200 = vmul.f32 %v136, %v136
    %v201 = vmul.f32 %v137, %v137
    %v202 = vmul.f32 %v138, %v138
    %v203 = vmul.f32 %v139, %v139
    %v204 = vmul.f32 %v140, %v140
    %v205 = vmul.f32 %v141, %v141
    %v206 = vmul.f32 %v142, %v142
    %v207 = vmul.f32 %v143, %v143
    %v208 = vmul.f32 %v144, %v144
    %v209 = vmul.f32 %v145, %v145
    %v210 = vmul.f32 %v146, %v146
    %v211 = vmul.f32 %v147, %v147
    %v212 = vmul.f32 %v148, %v148
    %v213 = vmul.f32 %v149, %v149
    %v214 = vmul.f32 %v150, %v150
    %v215 = vmul.f32 %v151, %v151
    %v216 = vmul.f32 %v152, %v152
    %v217 = vmul.f32 %v153, %v153
    %v218 = vmul.f32 %v154, %v154
    %v219 = vmul.f32 %v155, %v155
    %v220 = vmul.f32 %v156, %v156
    %v221 = vmul.f32 %v157, %v157
    %v222 = vmul.f32 %v158, %v158
    %v223 = vmul.f32 %v159, %v159
    %v224 = vadd.f32 %v160, %v161
    %225 = vadd.xlane.f32.xlu0 %v224
    %v226 = vpop.xlane.xlu0 %225
    %v227 = vadd.f32 %v162, %v163
    %228 = vadd.xlane.f32.xlu0 %v227
    %v229 = vpop.xlane.xlu0 %228
    %v230 = vadd.f32 %v164, %v165
    %231 = vadd.xlane.f32.xlu0 %v230
    %v232 = vpop.xlane.xlu0 %231
    %v233 = vadd.f32 %v166, %v167
    %234 = vadd.xlane.f32.xlu0 %v233
    %v235 = vpop.xlane.xlu0 %234
    %v236 = vadd.f32 %v168, %v169
    %237 = vadd.xlane.f32.xlu0 %v236
    %v238 = vpop.xlane.xlu0 %237
    %v239 = vadd.f32 %v170, %v171
    %240 = vadd.xlane.f32.xlu0 %v239
    %v241 = vpop.xlane.xlu0 %240
    %v242 = vadd.f32 %v172, %v173
    %243 = vadd.xlane.f32.xlu0 %v242
    %v244 = vpop.xlane.xlu0 %243
    %v245 = vadd.f32 %v174, %v175
    %246 = vadd.xlane.f32.xlu0 %v245
    %v247 = vpop.xlane.xlu0 %246
    %v248 = vadd.f32 %v176, %v177
    %249 = vadd.xlane.f32.xlu0 %v248
    %v250 = vpop.xlane.xlu0 %249
    %v251 = vadd.f32 %v178, %v179
    %252 = vadd.xlane.f32.xlu0 %v251
    %v253 = vpop.xlane.xlu0 %252
    %v254 = vadd.f32 %v180, %v181
    %255 = vadd.xlane.f32.xlu0 %v254
    %v256 = vpop.xlane.xlu0 %255
    %v257 = vadd.f32 %v182, %v183
    %258 = vadd.xlane.f32.xlu0 %v257
    %v259 = vpop.xlane.xlu0 %258
    %v260 = vadd.f32 %v184, %v185
    %261 = vadd.xlane.f32.xlu0 %v260
    %v262 = vpop.xlane.xlu0 %261
    %v263 = vadd.f32 %v186, %v187
    %264 = vadd.xlane.f32.xlu0 %v263
    %v265 = vpop.xlane.xlu0 %264
    %v266 = vadd.f32 %v188, %v189
    %267 = vadd.xlane.f32.xlu0 %v266
    %v268 = vpop.xlane.xlu0 %267
    %v269 = vadd.f32 %v190, %v191
    %270 = vadd.xlane.f32.xlu0 %v269
    %v271 = vpop.xlane.xlu0 %270
    %v272 = vadd.f32 %v192, %v193
    %273 = vadd.xlane.f32.xlu0 %v272
    %v274 = vpop.xlane.xlu0 %273
    %v275 = vadd.f32 %v194, %v195
    %276 = vadd.xlane.f32.xlu0 %v275
    %v277 = vpop.xlane.xlu0 %276
    %v278 = vadd.f32 %v196, %v197
    %279 = vadd.xlane.f32.xlu0 %v278
    %v280 = vpop.xlane.xlu0 %279
    %v281 = vadd.f32 %v198, %v199
    %282 = vadd.xlane.f32.xlu0 %v281
    %v283 = vpop.xlane.xlu0 %282
    %v284 = vadd.f32 %v200, %v201
    %285 = vadd.xlane.f32.xlu0 %v284
    %v286 = vpop.xlane.xlu0 %285
    %v287 = vadd.f32 %v202, %v203
    %288 = vadd.xlane.f32.xlu0 %v287
    %v289 = vpop.xlane.xlu0 %288
    %v290 = vadd.f32 %v204, %v205
    %291 = vadd.xlane.f32.xlu0 %v290
    %v292 = vpop.xlane.xlu0 %291
    %v293 = vadd.f32 %v206, %v207
    %294 = vadd.xlane.f32.xlu0 %v293
    %v295 = vpop.xlane.xlu0 %294
    %v296 = vadd.f32 %v208, %v209
    %297 = vadd.xlane.f32.xlu0 %v296
    %v298 = vpop.xlane.xlu0 %297
    %v299 = vadd.f32 %v210, %v211
    %300 = vadd.xlane.f32.xlu0 %v299
    %v301 = vpop.xlane.xlu0 %300
    %v302 = vadd.f32 %v212, %v213
    %303 = vadd.xlane.f32.xlu0 %v302
    %v304 = vpop.xlane.xlu0 %303
    %v305 = vadd.f32 %v214, %v215
    %306 = vadd.xlane.f32.xlu0 %v305
    %v307 = vpop.xlane.xlu0 %306
    %v308 = vadd.f32 %v216, %v217
    %309 = vadd.xlane.f32.xlu0 %v308
    %v310 = vpop.xlane.xlu0 %309
    %v311 = vadd.f32 %v218, %v219
    %312 = vadd.xlane.f32.xlu0 %v311
    %v313 = vpop.xlane.xlu0 %312
    %v314 = vadd.f32 %v220, %v221
    %315 = vadd.xlane.f32.xlu0 %v314
    %v316 = vpop.xlane.xlu0 %315
    %v317 = vadd.f32 %v222, %v223
    %318 = vadd.xlane.f32.xlu0 %v317
    %v319 = vpop.xlane.xlu0 %318
    %v320 = vrcp.pop 256.0
    %v321 = vmul.f32 %v226, %v320
    %v322 = vmul.f32 %v229, %v320
    %v323 = vmul.f32 %v232, %v320
    %v324 = vmul.f32 %v235, %v320
    %v325 = vmul.f32 %v238, %v320
    %v326 = vmul.f32 %v241, %v320
    %v327 = vmul.f32 %v244, %v320
    %v328 = vmul.f32 %v247, %v320
    %v329 = vmul.f32 %v250, %v320
    %v330 = vmul.f32 %v253, %v320
    %v331 = vmul.f32 %v256, %v320
    %v332 = vmul.f32 %v259, %v320
    %v333 = vmul.f32 %v262, %v320
    %v334 = vmul.f32 %v265, %v320
    %v335 = vmul.f32 %v268, %v320
    %v336 = vmul.f32 %v271, %v320
    %v337 = vmul.f32 %v274, %v320
    %v338 = vmul.f32 %v277, %v320
    %v339 = vmul.f32 %v280, %v320
    %v340 = vmul.f32 %v283, %v320
    %v341 = vmul.f32 %v286, %v320
    %v342 = vmul.f32 %v289, %v320
    %v343 = vmul.f32 %v292, %v320
    %v344 = vmul.f32 %v295, %v320
    %v345 = vmul.f32 %v298, %v320
    %v346 = vmul.f32 %v301, %v320
    %v347 = vmul.f32 %v304, %v320
    %v348 = vmul.f32 %v307, %v320
    %v349 = vmul.f32 %v310, %v320
    %v350 = vmul.f32 %v313, %v320
    %v351 = vmul.f32 %v316, %v320
    %v352 = vmul.f32 %v319, %v320
    %v353 = vadd.f32 %v321, 1e-06
    %v354 = vadd.f32 %v322, 1e-06
    %v355 = vadd.f32 %v323, 1e-06
    %v356 = vadd.f32 %v324, 1e-06
    %v357 = vadd.f32 %v325, 1e-06
    %v358 = vadd.f32 %v326, 1e-06
    %v359 = vadd.f32 %v327, 1e-06
    %v360 = vadd.f32 %v328, 1e-06
    %v361 = vadd.f32 %v329, 1e-06
    %v362 = vadd.f32 %v330, 1e-06
    %v363 = vadd.f32 %v331, 1e-06
    %v364 = vadd.f32 %v332, 1e-06
    %v365 = vadd.f32 %v333, 1e-06
    %v366 = vadd.f32 %v334, 1e-06
    %v367 = vadd.f32 %v335, 1e-06
    %v368 = vadd.f32 %v336, 1e-06
    %v369 = vadd.f32 %v337, 1e-06
    %v370 = vadd.f32 %v338, 1e-06
    %v371 = vadd.f32 %v339, 1e-06
    %v372 = vadd.f32 %v340, 1e-06
    %v373 = vadd.f32 %v341, 1e-06
    %v374 = vadd.f32 %v342, 1e-06
    %v375 = vadd.f32 %v343, 1e-06
    %v376 = vadd.f32 %v344, 1e-06
    %v377 = vadd.f32 %v345, 1e-06
    %v378 = vadd.f32 %v346, 1e-06
    %v379 = vadd.f32 %v347, 1e-06
    %v380 = vadd.f32 %v348, 1e-06
    %v381 = vadd.f32 %v349, 1e-06
    %v382 = vadd.f32 %v350, 1e-06
    %v383 = vadd.f32 %v351, 1e-06
    %v384 = vadd.f32 %v352, 1e-06
    %v385 = vrsqrt.pop %v353
    %v386 = vrsqrt.pop %v354
    %v387 = vrsqrt.pop %v355
    %v388 = vrsqrt.pop %v356
    %v389 = vrsqrt.pop %v357
    %v390 = vrsqrt.pop %v358
    %v391 = vrsqrt.pop %v359
    %v392 = vrsqrt.pop %v360
    %v393 = vrsqrt.pop %v361
    %v394 = vrsqrt.pop %v362
    %v395 = vrsqrt.pop %v363
    %v396 = vrsqrt.pop %v364
    %v397 = vrsqrt.pop %v365
    %v398 = vrsqrt.pop %v366
    %v399 = vrsqrt.pop %v367
    %v400 = vrsqrt.pop %v368
    %v401 = vrsqrt.pop %v369
    %v402 = vrsqrt.pop %v370
    %v403 = vrsqrt.pop %v371
    %v404 = vrsqrt.pop %v372
    %v405 = vrsqrt.pop %v373
    %v406 = vrsqrt.pop %v374
    %v407 = vrsqrt.pop %v375
    %v408 = vrsqrt.pop %v376
    %v409 = vrsqrt.pop %v377
    %v410 = vrsqrt.pop %v378
    %v411 = vrsqrt.pop %v379
    %v412 = vrsqrt.pop %v380
    %v413 = vrsqrt.pop %v381
    %v414 = vrsqrt.pop %v382
    %v415 = vrsqrt.pop %v383
    %v416 = vrsqrt.pop %v384
    %v417 = vmul.f32 %v96, %v385
    %v418 = vmul.f32 %v97, %v385
    %v419 = vmul.f32 %v98, %v386
    %v420 = vmul.f32 %v99, %v386
    %v421 = vmul.f32 %v100, %v387
    %v422 = vmul.f32 %v101, %v387
    %v423 = vmul.f32 %v102, %v388
    %v424 = vmul.f32 %v103, %v388
    %v425 = vmul.f32 %v104, %v389
    %v426 = vmul.f32 %v105, %v389
    %v427 = vmul.f32 %v106, %v390
    %v428 = vmul.f32 %v107, %v390
    %v429 = vmul.f32 %v108, %v391
    %v430 = vmul.f32 %v109, %v391
    %v431 = vmul.f32 %v110, %v392
    %v432 = vmul.f32 %v111, %v392
    %v433 = vmul.f32 %v112, %v393
    %v434 = vmul.f32 %v113, %v393
    %v435 = vmul.f32 %v114, %v394
    %v436 = vmul.f32 %v115, %v394
    %v437 = vmul.f32 %v116, %v395
    %v438 = vmul.f32 %v117, %v395
    %v439 = vmul.f32 %v118, %v396
    %v440 = vmul.f32 %v119, %v396
    %v441 = vmul.f32 %v120, %v397
    %v442 = vmul.f32 %v121, %v397
    %v443 = vmul.f32 %v122, %v398
    %v444 = vmul.f32 %v123, %v398
    %v445 = vmul.f32 %v124, %v399
    %v446 = vmul.f32 %v125, %v399
    %v447 = vmul.f32 %v126, %v400
    %v448 = vmul.f32 %v127, %v400
    %v449 = vmul.f32 %v128, %v401
    %v450 = vmul.f32 %v129, %v401
    %v451 = vmul.f32 %v130, %v402
    %v452 = vmul.f32 %v131, %v402
    %v453 = vmul.f32 %v132, %v403
    %v454 = vmul.f32 %v133, %v403
    %v455 = vmul.f32 %v134, %v404
    %v456 = vmul.f32 %v135, %v404
    %v457 = vmul.f32 %v136, %v405
    %v458 = vmul.f32 %v137, %v405
    %v459 = vmul.f32 %v138, %v406
    %v460 = vmul.f32 %v139, %v406
    %v461 = vmul.f32 %v140, %v407
    %v462 = vmul.f32 %v141, %v407
    %v463 = vmul.f32 %v142, %v408
    %v464 = vmul.f32 %v143, %v408
    %v465 = vmul.f32 %v144, %v409
    %v466 = vmul.f32 %v145, %v409
    %v467 = vmul.f32 %v146, %v410
    %v468 = vmul.f32 %v147, %v410
    %v469 = vmul.f32 %v148, %v411
    %v470 = vmul.f32 %v149, %v411
    %v471 = vmul.f32 %v150, %v412
    %v472 = vmul.f32 %v151, %v412
    %v473 = vmul.f32 %v152, %v413
    %v474 = vmul.f32 %v153, %v413
    %v475 = vmul.f32 %v154, %v414
    %v476 = vmul.f32 %v155, %v414
    %v477 = vmul.f32 %v156, %v415
    %v478 = vmul.f32 %v157, %v415
    %v479 = vmul.f32 %v158, %v416
    %v480 = vmul.f32 %v159, %v416
    %v481 = vld [vmem:[%s1] sm:$0x3]
    %v483 = vlaneseq
    %v484 = vshrl.u32 %v483, 7
    %v485 = vsub.s32 0, %v484
    %v486 = vrot.slane %v481, %v485
    %v487 = vlaneseq
    %v488 = vshrl.u32 %v487, 7
    %v489 = vsub.s32 1, %v488
    %v490 = vrot.slane %v481, %v489
    %v493 = vmul.f32 %v417, %v486
    %v494 = vmul.f32 %v418, %v490
    %v495 = vmul.f32 %v419, %v486
    %v496 = vmul.f32 %v420, %v490
    %v497 = vmul.f32 %v421, %v486
    %v498 = vmul.f32 %v422, %v490
    %v499 = vmul.f32 %v423, %v486
    %v500 = vmul.f32 %v424, %v490
    %v501 = vmul.f32 %v425, %v486
    %v502 = vmul.f32 %v426, %v490
    %v503 = vmul.f32 %v427, %v486
    %v504 = vmul.f32 %v428, %v490
    %v505 = vmul.f32 %v429, %v486
    %v506 = vmul.f32 %v430, %v490
    %v507 = vmul.f32 %v431, %v486
    %v508 = vmul.f32 %v432, %v490
    %v509 = vmul.f32 %v433, %v486
    %v510 = vmul.f32 %v434, %v490
    %v511 = vmul.f32 %v435, %v486
    %v512 = vmul.f32 %v436, %v490
    %v513 = vmul.f32 %v437, %v486
    %v514 = vmul.f32 %v438, %v490
    %v515 = vmul.f32 %v439, %v486
    %v516 = vmul.f32 %v440, %v490
    %v517 = vmul.f32 %v441, %v486
    %v518 = vmul.f32 %v442, %v490
    %v519 = vmul.f32 %v443, %v486
    %v520 = vmul.f32 %v444, %v490
    %v521 = vmul.f32 %v445, %v486
    %v522 = vmul.f32 %v446, %v490
    %v523 = vmul.f32 %v447, %v486
    %v524 = vmul.f32 %v448, %v490
    %v525 = vmul.f32 %v449, %v486
    %v526 = vmul.f32 %v450, %v490
    %v527 = vmul.f32 %v451, %v486
    %v528 = vmul.f32 %v452, %v490
    %v529 = vmul.f32 %v453, %v486
    %v530 = vmul.f32 %v454, %v490
    %v531 = vmul.f32 %v455, %v486
    %v532 = vmul.f32 %v456, %v490
    %v533 = vmul.f32 %v457, %v486
    %v534 = vmul.f32 %v458, %v490
    %v535 = vmul.f32 %v459, %v486
    %v536 = vmul.f32 %v460, %v490
    %v537 = vmul.f32 %v461, %v486
    %v538 = vmul.f32 %v462, %v490
    %v539 = vmul.f32 %v463, %v486
    %v540 = vmul.f32 %v464, %v490
    %v541 = vmul.f32 %v465, %v486
    %v542 = vmul.f32 %v466, %v490
    %v543 = vmul.f32 %v467, %v486
    %v544 = vmul.f32 %v468, %v490
    %v545 = vmul.f32 %v469, %v486
    %v546 = vmul.f32 %v470, %v490
    %v547 = vmul.f32 %v471, %v486
    %v548 = vmul.f32 %v472, %v490
    %v549 = vmul.f32 %v473, %v486
    %v550 = vmul.f32 %v474, %v490
    %v551 = vmul.f32 %v475, %v486
    %v552 = vmul.f32 %v476, %v490
    %v553 = vmul.f32 %v477, %v486
    %v554 = vmul.f32 %v478, %v490
    %v555 = vmul.f32 %v479, %v486
    %v556 = vmul.f32 %v480, %v490
    %v557 = vpack.c.bf16 %v495, %v493
    %v558 = vpack.c.bf16 %v496, %v494
    %v559 = vpack.c.bf16 %v499, %v497
    %v560 = vpack.c.bf16 %v500, %v498
    %v561 = vpack.c.bf16 %v503, %v501
    %v562 = vpack.c.bf16 %v504, %v502
    %v563 = vpack.c.bf16 %v507, %v505
    %v564 = vpack.c.bf16 %v508, %v506
    %v565 = vpack.c.bf16 %v511, %v509
    %v566 = vpack.c.bf16 %v512, %v510
    %v567 = vpack.c.bf16 %v515, %v513
    %v568 = vpack.c.bf16 %v516, %v514
    %v569 = vpack.c.bf16 %v519, %v517
    %v570 = vpack.c.bf16 %v520, %v518
    %v571 = vpack.c.bf16 %v523, %v521
    %v572 = vpack.c.bf16 %v524, %v522
    %v573 = vpack.c.bf16 %v527, %v525
    %v574 = vpack.c.bf16 %v528, %v526
    %v575 = vpack.c.bf16 %v531, %v529
    %v576 = vpack.c.bf16 %v532, %v530
    %v577 = vpack.c.bf16 %v535, %v533
    %v578 = vpack.c.bf16 %v536, %v534
    %v579 = vpack.c.bf16 %v539, %v537
    %v580 = vpack.c.bf16 %v540, %v538
    %v581 = vpack.c.bf16 %v543, %v541
    %v582 = vpack.c.bf16 %v544, %v542
    %v583 = vpack.c.bf16 %v547, %v545
    %v584 = vpack.c.bf16 %v548, %v546
    %v585 = vpack.c.bf16 %v551, %v549
    %v586 = vpack.c.bf16 %v552, %v550
    %v587 = vpack.c.bf16 %v555, %v553
    %v588 = vpack.c.bf16 %v556, %v554
    %v589 = vld [vmem:[#allocation5] sm:$0xff]
    %v590 = vld [vmem:[#allocation5 + $0x8] sm:$0xff]
    %v591 = vld [vmem:[#allocation5 + $0x10] sm:$0xff]
    %v592 = vld [vmem:[#allocation5 + $0x18] sm:$0xff]
    %v593 = vld [vmem:[#allocation5 + $0x20] sm:$0xff]
    %v594 = vld [vmem:[#allocation5 + $0x28] sm:$0xff]
    %v595 = vld [vmem:[#allocation5 + $0x30] sm:$0xff]
    %v596 = vld [vmem:[#allocation5 + $0x38] sm:$0xff]
    %v597 = vld [vmem:[#allocation5 + $0x40] sm:$0xff]
    %v598 = vld [vmem:[#allocation5 + $0x48] sm:$0xff]
    %v599 = vld [vmem:[#allocation5 + $0x50] sm:$0xff]
    %v600 = vld [vmem:[#allocation5 + $0x58] sm:$0xff]
    %v601 = vld [vmem:[#allocation5 + $0x60] sm:$0xff]
    %v602 = vld [vmem:[#allocation5 + $0x68] sm:$0xff]
    %v603 = vld [vmem:[#allocation5 + $0x70] sm:$0xff]
    %v604 = vld [vmem:[#allocation5 + $0x78] sm:$0xff]
    %v605 = vld [vmem:[#allocation5 + $0x80] sm:$0xff]
    %v606 = vld [vmem:[#allocation5 + $0x88] sm:$0xff]
    %v607 = vld [vmem:[#allocation5 + $0x90] sm:$0xff]
    %v608 = vld [vmem:[#allocation5 + $0x98] sm:$0xff]
    %v609 = vld [vmem:[#allocation5 + $0xa0] sm:$0xff]
    %v610 = vld [vmem:[#allocation5 + $0xa8] sm:$0xff]
    %v611 = vld [vmem:[#allocation5 + $0xb0] sm:$0xff]
    %v612 = vld [vmem:[#allocation5 + $0xb8] sm:$0xff]
    %v613 = vld [vmem:[#allocation5 + $0xc0] sm:$0xff]
    %v614 = vld [vmem:[#allocation5 + $0xc8] sm:$0xff]
    %v615 = vld [vmem:[#allocation5 + $0xd0] sm:$0xff]
    %v616 = vld [vmem:[#allocation5 + $0xd8] sm:$0xff]
    %v617 = vld [vmem:[#allocation5 + $0xe0] sm:$0xff]
    %v618 = vld [vmem:[#allocation5 + $0xe8] sm:$0xff]
    %v619 = vld [vmem:[#allocation5 + $0xf0] sm:$0xff]
    %v620 = vld [vmem:[#allocation5 + $0xf8] sm:$0xff]
    %v621 = vld [vmem:[#allocation5 + $0x100] sm:$0xff]
    %v622 = vld [vmem:[#allocation5 + $0x108] sm:$0xff]
    %v623 = vld [vmem:[#allocation5 + $0x110] sm:$0xff]
    %v624 = vld [vmem:[#allocation5 + $0x118] sm:$0xff]
    %v625 = vld [vmem:[#allocation5 + $0x120] sm:$0xff]
    %v626 = vld [vmem:[#allocation5 + $0x128] sm:$0xff]
    %v627 = vld [vmem:[#allocation5 + $0x130] sm:$0xff]
    %v628 = vld [vmem:[#allocation5 + $0x138] sm:$0xff]
    %v629 = vld [vmem:[#allocation5 + $0x140] sm:$0xff]
    %v630 = vld [vmem:[#allocation5 + $0x148] sm:$0xff]
    %v631 = vld [vmem:[#allocation5 + $0x150] sm:$0xff]
    %v632 = vld [vmem:[#allocation5 + $0x158] sm:$0xff]
    %v633 = vld [vmem:[#allocation5 + $0x160] sm:$0xff]
    %v634 = vld [vmem:[#allocation5 + $0x168] sm:$0xff]
    %v635 = vld [vmem:[#allocation5 + $0x170] sm:$0xff]
    %v636 = vld [vmem:[#allocation5 + $0x178] sm:$0xff]
    %v637 = vld [vmem:[#allocation5 + $0x180] sm:$0xff]
    %v638 = vld [vmem:[#allocation5 + $0x188] sm:$0xff]
    %v639 = vld [vmem:[#allocation5 + $0x190] sm:$0xff]
    %v640 = vld [vmem:[#allocation5 + $0x198] sm:$0xff]
    %v641 = vld [vmem:[#allocation5 + $0x1a0] sm:$0xff]
    %v642 = vld [vmem:[#allocation5 + $0x1a8] sm:$0xff]
    %v643 = vld [vmem:[#allocation5 + $0x1b0] sm:$0xff]
    %v644 = vld [vmem:[#allocation5 + $0x1b8] sm:$0xff]
    %v645 = vld [vmem:[#allocation5 + $0x1c0] sm:$0xff]
    %v646 = vld [vmem:[#allocation5 + $0x1c8] sm:$0xff]
    %v647 = vld [vmem:[#allocation5 + $0x1d0] sm:$0xff]
    %v648 = vld [vmem:[#allocation5 + $0x1d8] sm:$0xff]
    %v649 = vld [vmem:[#allocation5 + $0x1e0] sm:$0xff]
    %v650 = vld [vmem:[#allocation5 + $0x1e8] sm:$0xff]
    %v651 = vld [vmem:[#allocation5 + $0x1f0] sm:$0xff]
    %v652 = vld [vmem:[#allocation5 + $0x1f8] sm:$0xff]
    %v653 = vld [vmem:[#allocation5 + $0x200] sm:$0xff]
    %v654 = vld [vmem:[#allocation5 + $0x208] sm:$0xff]
    %v655 = vld [vmem:[#allocation5 + $0x210] sm:$0xff]
    %v656 = vld [vmem:[#allocation5 + $0x218] sm:$0xff]
    %v657 = vld [vmem:[#allocation5 + $0x220] sm:$0xff]
    %v658 = vld [vmem:[#allocation5 + $0x228] sm:$0xff]
    %v659 = vld [vmem:[#allocation5 + $0x230] sm:$0xff]
    %v660 = vld [vmem:[#allocation5 + $0x238] sm:$0xff]
    %v661 = vld [vmem:[#allocation5 + $0x240] sm:$0xff]
    %v662 = vld [vmem:[#allocation5 + $0x248] sm:$0xff]
    %v663 = vld [vmem:[#allocation5 + $0x250] sm:$0xff]
    %v664 = vld [vmem:[#allocation5 + $0x258] sm:$0xff]
    %v665 = vld [vmem:[#allocation5 + $0x260] sm:$0xff]
    %v666 = vld [vmem:[#allocation5 + $0x268] sm:$0xff]
    %v667 = vld [vmem:[#allocation5 + $0x270] sm:$0xff]
    %v668 = vld [vmem:[#allocation5 + $0x278] sm:$0xff]
    %v669 = vld [vmem:[#allocation5 + $0x280] sm:$0xff]
    %v670 = vld [vmem:[#allocation5 + $0x288] sm:$0xff]
    %v671 = vld [vmem:[#allocation5 + $0x290] sm:$0xff]
    %v672 = vld [vmem:[#allocation5 + $0x298] sm:$0xff]
    %v673 = vld [vmem:[#allocation5 + $0x2a0] sm:$0xff]
    %v674 = vld [vmem:[#allocation5 + $0x2a8] sm:$0xff]
    %v675 = vld [vmem:[#allocation5 + $0x2b0] sm:$0xff]
    %v676 = vld [vmem:[#allocation5 + $0x2b8] sm:$0xff]
    %v677 = vld [vmem:[#allocation5 + $0x2c0] sm:$0xff]
    %v678 = vld [vmem:[#allocation5 + $0x2c8] sm:$0xff]
    %v679 = vld [vmem:[#allocation5 + $0x2d0] sm:$0xff]
    %v680 = vld [vmem:[#allocation5 + $0x2d8] sm:$0xff]
    %v681 = vld [vmem:[#allocation5 + $0x2e0] sm:$0xff]
    %v682 = vld [vmem:[#allocation5 + $0x2e8] sm:$0xff]
    %v683 = vld [vmem:[#allocation5 + $0x2f0] sm:$0xff]
    %v684 = vld [vmem:[#allocation5 + $0x2f8] sm:$0xff]
    %v781 = vunpack.c.l.b16 %v589
    %v782 = vunpack.c.h.b16 %v589
    %v783 = vunpack.c.l.b16 %v590
    %v784 = vunpack.c.h.b16 %v590
    %v785 = vunpack.c.l.b16 %v591
    %v786 = vunpack.c.h.b16 %v591
    %v787 = vunpack.c.l.b16 %v592
    %v788 = vunpack.c.h.b16 %v592
    %v789 = vunpack.c.l.b16 %v593
    %v790 = vunpack.c.h.b16 %v593
    %v791 = vunpack.c.l.b16 %v594
    %v792 = vunpack.c.h.b16 %v594
    %v793 = vunpack.c.l.b16 %v595
    %v794 = vunpack.c.h.b16 %v595
    %v795 = vunpack.c.l.b16 %v596
    %v796 = vunpack.c.h.b16 %v596
    %v797 = vunpack.c.l.b16 %v597
    %v798 = vunpack.c.h.b16 %v597
    %v799 = vunpack.c.l.b16 %v598
    %v800 = vunpack.c.h.b16 %v598
    %v801 = vunpack.c.l.b16 %v599
    %v802 = vunpack.c.h.b16 %v599
    %v803 = vunpack.c.l.b16 %v600
    %v804 = vunpack.c.h.b16 %v600
    %v805 = vunpack.c.l.b16 %v601
    %v806 = vunpack.c.h.b16 %v601
    %v807 = vunpack.c.l.b16 %v602
    %v808 = vunpack.c.h.b16 %v602
    %v809 = vunpack.c.l.b16 %v603
    %v810 = vunpack.c.h.b16 %v603
    %v811 = vunpack.c.l.b16 %v604
    %v812 = vunpack.c.h.b16 %v604
    %v813 = vunpack.c.l.b16 %v605
    %v814 = vunpack.c.h.b16 %v605
    %v815 = vunpack.c.l.b16 %v606
    %v816 = vunpack.c.h.b16 %v606
    %v817 = vunpack.c.l.b16 %v607
    %v818 = vunpack.c.h.b16 %v607
    %v819 = vunpack.c.l.b16 %v608
    %v820 = vunpack.c.h.b16 %v608
    %v821 = vunpack.c.l.b16 %v609
    %v822 = vunpack.c.h.b16 %v609
    %v823 = vunpack.c.l.b16 %v610
    %v824 = vunpack.c.h.b16 %v610
    %v825 = vunpack.c.l.b16 %v611
    %v826 = vunpack.c.h.b16 %v611
    %v827 = vunpack.c.l.b16 %v612
    %v828 = vunpack.c.h.b16 %v612
    %v829 = vunpack.c.l.b16 %v613
    %v830 = vunpack.c.h.b16 %v613
    %v831 = vunpack.c.l.b16 %v614
    %v832 = vunpack.c.h.b16 %v614
    %v833 = vunpack.c.l.b16 %v615
    %v834 = vunpack.c.h.b16 %v615
    %v835 = vunpack.c.l.b16 %v616
    %v836 = vunpack.c.h.b16 %v616
    %v837 = vunpack.c.l.b16 %v617
    %v838 = vunpack.c.h.b16 %v617
    %v839 = vunpack.c.l.b16 %v618
    %v840 = vunpack.c.h.b16 %v618
    %v841 = vunpack.c.l.b16 %v619
    %v842 = vunpack.c.h.b16 %v619
    %v843 = vunpack.c.l.b16 %v620
    %v844 = vunpack.c.h.b16 %v620
    %v845 = vunpack.c.l.b16 %v621
    %v846 = vunpack.c.h.b16 %v621
    %v847 = vunpack.c.l.b16 %v622
    %v848 = vunpack.c.h.b16 %v622
    %v849 = vunpack.c.l.b16 %v623
    %v850 = vunpack.c.h.b16 %v623
    %v851 = vunpack.c.l.b16 %v624
    %v852 = vunpack.c.h.b16 %v624
    %v853 = vunpack.c.l.b16 %v625
    %v854 = vunpack.c.h.b16 %v625
    %v855 = vunpack.c.l.b16 %v626
    %v856 = vunpack.c.h.b16 %v626
    %v857 = vunpack.c.l.b16 %v627
    %v858 = vunpack.c.h.b16 %v627
    %v859 = vunpack.c.l.b16 %v628
    %v860 = vunpack.c.h.b16 %v628
    %v861 = vunpack.c.l.b16 %v629
    %v862 = vunpack.c.h.b16 %v629
    %v863 = vunpack.c.l.b16 %v630
    %v864 = vunpack.c.h.b16 %v630
    %v865 = vunpack.c.l.b16 %v631
    %v866 = vunpack.c.h.b16 %v631
    %v867 = vunpack.c.l.b16 %v632
    %v868 = vunpack.c.h.b16 %v632
    %v869 = vunpack.c.l.b16 %v633
    %v870 = vunpack.c.h.b16 %v633
    %v871 = vunpack.c.l.b16 %v634
    %v872 = vunpack.c.h.b16 %v634
    %v873 = vunpack.c.l.b16 %v635
    %v874 = vunpack.c.h.b16 %v635
    %v875 = vunpack.c.l.b16 %v636
    %v876 = vunpack.c.h.b16 %v636
    %v877 = vunpack.c.l.b16 %v637
    %v878 = vunpack.c.h.b16 %v637
    %v879 = vunpack.c.l.b16 %v638
    %v880 = vunpack.c.h.b16 %v638
    %v881 = vunpack.c.l.b16 %v639
    %v882 = vunpack.c.h.b16 %v639
    %v883 = vunpack.c.l.b16 %v640
    %v884 = vunpack.c.h.b16 %v640
    %v885 = vunpack.c.l.b16 %v641
    %v886 = vunpack.c.h.b16 %v641
    %v887 = vunpack.c.l.b16 %v642
    %v888 = vunpack.c.h.b16 %v642
    %v889 = vunpack.c.l.b16 %v643
    %v890 = vunpack.c.h.b16 %v643
    %v891 = vunpack.c.l.b16 %v644
    %v892 = vunpack.c.h.b16 %v644
    %v893 = vunpack.c.l.b16 %v645
    %v894 = vunpack.c.h.b16 %v645
    %v895 = vunpack.c.l.b16 %v646
    %v896 = vunpack.c.h.b16 %v646
    %v897 = vunpack.c.l.b16 %v647
    %v898 = vunpack.c.h.b16 %v647
    %v899 = vunpack.c.l.b16 %v648
    %v900 = vunpack.c.h.b16 %v648
    %v901 = vunpack.c.l.b16 %v649
    %v902 = vunpack.c.h.b16 %v649
    %v903 = vunpack.c.l.b16 %v650
    %v904 = vunpack.c.h.b16 %v650
    %v905 = vunpack.c.l.b16 %v651
    %v906 = vunpack.c.h.b16 %v651
    %v907 = vunpack.c.l.b16 %v652
    %v908 = vunpack.c.h.b16 %v652
    %v909 = vunpack.c.l.b16 %v653
    %v910 = vunpack.c.h.b16 %v653
    %v911 = vunpack.c.l.b16 %v654
    %v912 = vunpack.c.h.b16 %v654
    %v913 = vunpack.c.l.b16 %v655
    %v914 = vunpack.c.h.b16 %v655
    %v915 = vunpack.c.l.b16 %v656
    %v916 = vunpack.c.h.b16 %v656
    %v917 = vunpack.c.l.b16 %v657
    %v918 = vunpack.c.h.b16 %v657
    %v919 = vunpack.c.l.b16 %v658
    %v920 = vunpack.c.h.b16 %v658
    %v921 = vunpack.c.l.b16 %v659
    %v922 = vunpack.c.h.b16 %v659
    %v923 = vunpack.c.l.b16 %v660
    %v924 = vunpack.c.h.b16 %v660
    %v925 = vunpack.c.l.b16 %v661
    %v926 = vunpack.c.h.b16 %v661
    %v927 = vunpack.c.l.b16 %v662
    %v928 = vunpack.c.h.b16 %v662
    %v929 = vunpack.c.l.b16 %v663
    %v930 = vunpack.c.h.b16 %v663
    %v931 = vunpack.c.l.b16 %v664
    %v932 = vunpack.c.h.b16 %v664
    %v933 = vunpack.c.l.b16 %v665
    %v934 = vunpack.c.h.b16 %v665
    %v935 = vunpack.c.l.b16 %v666
    %v936 = vunpack.c.h.b16 %v666
    %v937 = vunpack.c.l.b16 %v667
    %v938 = vunpack.c.h.b16 %v667
    %v939 = vunpack.c.l.b16 %v668
    %v940 = vunpack.c.h.b16 %v668
    %v941 = vunpack.c.l.b16 %v669
    %v942 = vunpack.c.h.b16 %v669
    %v943 = vunpack.c.l.b16 %v670
    %v944 = vunpack.c.h.b16 %v670
    %v945 = vunpack.c.l.b16 %v671
    %v946 = vunpack.c.h.b16 %v671
    %v947 = vunpack.c.l.b16 %v672
    %v948 = vunpack.c.h.b16 %v672
    %v949 = vunpack.c.l.b16 %v673
    %v950 = vunpack.c.h.b16 %v673
    %v951 = vunpack.c.l.b16 %v674
    %v952 = vunpack.c.h.b16 %v674
    %v953 = vunpack.c.l.b16 %v675
    %v954 = vunpack.c.h.b16 %v675
    %v955 = vunpack.c.l.b16 %v676
    %v956 = vunpack.c.h.b16 %v676
    %v957 = vunpack.c.l.b16 %v677
    %v958 = vunpack.c.h.b16 %v677
    %v959 = vunpack.c.l.b16 %v678
    %v960 = vunpack.c.h.b16 %v678
    %v961 = vunpack.c.l.b16 %v679
    %v962 = vunpack.c.h.b16 %v679
    %v963 = vunpack.c.l.b16 %v680
    %v964 = vunpack.c.h.b16 %v680
    %v965 = vunpack.c.l.b16 %v681
    %v966 = vunpack.c.h.b16 %v681
    %v967 = vunpack.c.l.b16 %v682
    %v968 = vunpack.c.h.b16 %v682
    %v969 = vunpack.c.l.b16 %v683
    %v970 = vunpack.c.h.b16 %v683
    %v971 = vunpack.c.l.b16 %v684
    %v972 = vunpack.c.h.b16 %v684
    %v973 = vpack.c.b16 %v787, %v781
    %v974 = vpack.c.b16 %v788, %v782
    %v975 = vpack.c.b16 %v789, %v783
    %v976 = vpack.c.b16 %v790, %v784
    %v977 = vpack.c.b16 %v791, %v785
    %v978 = vpack.c.b16 %v792, %v786
    %v979 = vpack.c.b16 %v799, %v793
    %v980 = vpack.c.b16 %v800, %v794
    %v981 = vpack.c.b16 %v801, %v795
    %v982 = vpack.c.b16 %v802, %v796
    %v983 = vpack.c.b16 %v803, %v797
    %v984 = vpack.c.b16 %v804, %v798
    %v985 = vpack.c.b16 %v811, %v805
    %v986 = vpack.c.b16 %v812, %v806
    %v987 = vpack.c.b16 %v813, %v807
    %v988 = vpack.c.b16 %v814, %v808
    %v989 = vpack.c.b16 %v815, %v809
    %v990 = vpack.c.b16 %v816, %v810
    %v991 = vpack.c.b16 %v823, %v817
    %v992 = vpack.c.b16 %v824, %v818
    %v993 = vpack.c.b16 %v825, %v819
    %v994 = vpack.c.b16 %v826, %v820
    %v995 = vpack.c.b16 %v827, %v821
    %v996 = vpack.c.b16 %v828, %v822
    %v997 = vpack.c.b16 %v835, %v829
    %v998 = vpack.c.b16 %v836, %v830
    %v999 = vpack.c.b16 %v837, %v831
    %v1000 = vpack.c.b16 %v838, %v832
    %v1001 = vpack.c.b16 %v839, %v833
    %v1002 = vpack.c.b16 %v840, %v834
    %v1003 = vpack.c.b16 %v847, %v841
    %v1004 = vpack.c.b16 %v848, %v842
    %v1005 = vpack.c.b16 %v849, %v843
    %v1006 = vpack.c.b16 %v850, %v844
    %v1007 = vpack.c.b16 %v851, %v845
    %v1008 = vpack.c.b16 %v852, %v846
    %v1009 = vpack.c.b16 %v859, %v853
    %v1010 = vpack.c.b16 %v860, %v854
    %v1011 = vpack.c.b16 %v861, %v855
    %v1012 = vpack.c.b16 %v862, %v856
    %v1013 = vpack.c.b16 %v863, %v857
    %v1014 = vpack.c.b16 %v864, %v858
    %v1015 = vpack.c.b16 %v871, %v865
    %v1016 = vpack.c.b16 %v872, %v866
    %v1017 = vpack.c.b16 %v873, %v867
    %v1018 = vpack.c.b16 %v874, %v868
    %v1019 = vpack.c.b16 %v875, %v869
    %v1020 = vpack.c.b16 %v876, %v870
    %v1021 = vpack.c.b16 %v883, %v877
    %v1022 = vpack.c.b16 %v884, %v878
    %v1023 = vpack.c.b16 %v885, %v879
    %v1024 = vpack.c.b16 %v886, %v880
    %v1025 = vpack.c.b16 %v887, %v881
    %v1026 = vpack.c.b16 %v888, %v882
    %v1027 = vpack.c.b16 %v895, %v889
    %v1028 = vpack.c.b16 %v896, %v890
    %v1029 = vpack.c.b16 %v897, %v891
    %v1030 = vpack.c.b16 %v898, %v892
    %v1031 = vpack.c.b16 %v899, %v893
    %v1032 = vpack.c.b16 %v900, %v894
    %v1033 = vpack.c.b16 %v907, %v901
    %v1034 = vpack.c.b16 %v908, %v902
    %v1035 = vpack.c.b16 %v909, %v903
    %v1036 = vpack.c.b16 %v910, %v904
    %v1037 = vpack.c.b16 %v911, %v905
    %v1038 = vpack.c.b16 %v912, %v906
    %v1039 = vpack.c.b16 %v919, %v913
    %v1040 = vpack.c.b16 %v920, %v914
    %v1041 = vpack.c.b16 %v921, %v915
    %v1042 = vpack.c.b16 %v922, %v916
    %v1043 = vpack.c.b16 %v923, %v917
    %v1044 = vpack.c.b16 %v924, %v918
    %v1045 = vpack.c.b16 %v931, %v925
    %v1046 = vpack.c.b16 %v932, %v926
    %v1047 = vpack.c.b16 %v933, %v927
    %v1048 = vpack.c.b16 %v934, %v928
    %v1049 = vpack.c.b16 %v935, %v929
    %v1050 = vpack.c.b16 %v936, %v930
    %v1051 = vpack.c.b16 %v943, %v937
    %v1052 = vpack.c.b16 %v944, %v938
    %v1053 = vpack.c.b16 %v945, %v939
    %v1054 = vpack.c.b16 %v946, %v940
    %v1055 = vpack.c.b16 %v947, %v941
    %v1056 = vpack.c.b16 %v948, %v942
    %v1057 = vpack.c.b16 %v955, %v949
    %v1058 = vpack.c.b16 %v956, %v950
    %v1059 = vpack.c.b16 %v957, %v951
    %v1060 = vpack.c.b16 %v958, %v952
    %v1061 = vpack.c.b16 %v959, %v953
    %v1062 = vpack.c.b16 %v960, %v954
    %v1063 = vpack.c.b16 %v967, %v961
    %v1064 = vpack.c.b16 %v968, %v962
    %v1065 = vpack.c.b16 %v969, %v963
    %v1066 = vpack.c.b16 %v970, %v964
    %v1067 = vpack.c.b16 %v971, %v965
    %v1068 = vpack.c.b16 %v972, %v966
    %1165 = vmatprep.subr.bf16.mxu0 %v974
    %1166 = vmatpush1.bf16.msra.mxu0 %v973
    %1167 = vmatprep.subr.bf16.mxu0 %v980
    %1168 = vmatpush1.bf16.msra.mxu0 %v979
    %1169 = vmatprep.subr.bf16.mxu0 %v986
    %1170 = vmatpush1.bf16.msra.mxu0 %v985
    %1171 = vmatprep.subr.bf16.mxu0 %v992
    %1172 = vmatpush1.bf16.msra.mxu0 %v991
    %1173 = vmatprep.subr.bf16.mxu0 %v998
    %1174 = vmatpush1.bf16.msra.mxu0 %v997
    %1175 = vmatprep.subr.bf16.mxu0 %v1004
    %1176 = vmatpush1.bf16.msra.mxu0 %v1003
    %1177 = vmatprep.subr.bf16.mxu0 %v1010
    %1178 = vmatpush1.bf16.msra.mxu0 %v1009
    %1179 = vmatprep.subr.bf16.mxu0 %v1016
    %1180 = vmatpush1.bf16.msra.mxu0 %v1015
    %1181 = vmatprep.subr.bf16.mxu0 %v1022
    %1182 = vmatpush1.bf16.msra.mxu0 %v1021
    %1183 = vmatprep.subr.bf16.mxu0 %v1028
    %1184 = vmatpush1.bf16.msra.mxu0 %v1027
    %1185 = vmatprep.subr.bf16.mxu0 %v1034
    %1186 = vmatpush1.bf16.msra.mxu0 %v1033
    %1187 = vmatprep.subr.bf16.mxu0 %v1040
    %1188 = vmatpush1.bf16.msra.mxu0 %v1039
    %1189 = vmatprep.subr.bf16.mxu0 %v1046
    %1190 = vmatpush1.bf16.msra.mxu0 %v1045
    %1191 = vmatprep.subr.bf16.mxu0 %v1052
    %1192 = vmatpush1.bf16.msra.mxu0 %v1051
    %1193 = vmatprep.subr.bf16.mxu0 %v1058
    %1194 = vmatpush1.bf16.msra.mxu0 %v1057
    %1195 = vmatprep.subr.bf16.mxu0 %v1064
    %1196 = vmatpush1.bf16.msra.mxu0 %v1063
    %1197 = vmatprep.mubr.bf16.mxu0 %v558
    %1198 = vmatmul.mubr.bf16.gmra.mrb[0].mxu0 %v557
    %v1199 = vpop.f32.mrb[0].mxu0
    %v1200 = vadd.f32 0.0, %v1199
    %v1201 = vpop.f32.mrb[0].mxu0
    %v1202 = vadd.f32 0.0, %v1201
    %v1203 = vpop.f32.mrb[0].mxu0
    %v1204 = vadd.f32 0.0, %v1203
    %v1205 = vpop.f32.mrb[0].mxu0
    %v1206 = vadd.f32 0.0, %v1205
    %1207 = vmatprep.mubr.bf16.mxu0 %v560
    %1208 = vmatmul.mubr.bf16.gmra.mrb[0].mxu0 %v559
    %v1209 = vpop.f32.mrb[0].mxu0
    %v1210 = vadd.f32 0.0, %v1209
    %v1211 = vpop.f32.mrb[0].mxu0
    %v1212 = vadd.f32 0.0, %v1211
    %v1213 = vpop.f32.mrb[0].mxu0
    %v1214 = vadd.f32 0.0, %v1213
    %v1215 = vpop.f32.mrb[0].mxu0
    %v1216 = vadd.f32 0.0, %v1215
    %1217 = vmatprep.mubr.bf16.mxu0 %v562
    %1218 = vmatmul.mubr.bf16.gmra.mrb[0].mxu0 %v561
    %v1219 = vpop.f32.mrb[0].mxu0
    %v1220 = vadd.f32 0.0, %v1219
    %v1221 = vpop.f32.mrb[0].mxu0
    %v1222 = vadd.f32 0.0, %v1221
    %v1223 = vpop.f32.mrb[0].mxu0
    %v1224 = vadd.f32 0.0, %v1223
    %v1225 = vpop.f32.mrb[0].mxu0
    %v1226 = vadd.f32 0.0, %v1225
    %1227 = vmatprep.mubr.bf16.mxu0 %v564
    %1228 = vmatmul.mubr.bf16.gmra.mrb[0].mxu0 %v563
    %v1229 = vpop.f32.mrb[0].mxu0
    %v1230 = vadd.f32 0.0, %v1229
    %v1231 = vpop.f32.mrb[0].mxu0
    %v1232 = vadd.f32 0.0, %v1231
    %v1233 = vpop.f32.mrb[0].mxu0
    %v1234 = vadd.f32 0.0, %v1233
    %v1235 = vpop.f32.mrb[0].mxu0
    %v1236 = vadd.f32 0.0, %v1235
    %1237 = vmatprep.mubr.bf16.mxu0 %v566
    %1238 = vmatmul.mubr.bf16.gmra.mrb[0].mxu0 %v565
    %v1239 = vpop.f32.mrb[0].mxu0
    %v1240 = vadd.f32 0.0, %v1239
    %v1241 = vpop.f32.mrb[0].mxu0
    %v1242 = vadd.f32 0.0, %v1241
    %v1243 = vpop.f32.mrb[0].mxu0
    %v1244 = vadd.f32 0.0, %v1243
    %v1245 = vpop.f32.mrb[0].mxu0
    %v1246 = vadd.f32 0.0, %v1245
    %1247 = vmatprep.mubr.bf16.mxu0 %v568
    %1248 = vmatmul.mubr.bf16.gmra.mrb[0].mxu0 %v567
    %v1249 = vpop.f32.mrb[0].mxu0
    %v1250 = vadd.f32 0.0, %v1249
    %v1251 = vpop.f32.mrb[0].mxu0
    %v1252 = vadd.f32 0.0, %v1251
    %v1253 = vpop.f32.mrb[0].mxu0
    %v1254 = vadd.f32 0.0, %v1253
    %v1255 = vpop.f32.mrb[0].mxu0
    %v1256 = vadd.f32 0.0, %v1255
    %1257 = vmatprep.mubr.bf16.mxu0 %v570
    %1258 = vmatmul.mubr.bf16.gmra.mrb[0].mxu0 %v569
    %v1259 = vpop.f32.mrb[0].mxu0
    %v1260 = vadd.f32 0.0, %v1259
    %v1261 = vpop.f32.mrb[0].mxu0
    %v1262 = vadd.f32 0.0, %v1261
    %v1263 = vpop.f32.mrb[0].mxu0
    %v1264 = vadd.f32 0.0, %v1263
    %v1265 = vpop.f32.mrb[0].mxu0
    %v1266 = vadd.f32 0.0, %v1265
    %1267 = vmatprep.mubr.bf16.mxu0 %v572
    %1268 = vmatmul.mubr.bf16.gmra.mrb[0].mxu0 %v571
    %v1269 = vpop.f32.mrb[0].mxu0
    %v1270 = vadd.f32 0.0, %v1269
    %v1271 = vpop.f32.mrb[0].mxu0
    %v1272 = vadd.f32 0.0, %v1271
    %v1273 = vpop.f32.mrb[0].mxu0
    %v1274 = vadd.f32 0.0, %v1273
    %v1275 = vpop.f32.mrb[0].mxu0
    %v1276 = vadd.f32 0.0, %v1275
    %1277 = vmatprep.mubr.bf16.mxu0 %v574
    %1278 = vmatmul.mubr.bf16.gmra.mrb[0].mxu0 %v573
    %v1279 = vpop.f32.mrb[0].mxu0
    %v1280 = vadd.f32 0.0, %v1279
    %v1281 = vpop.f32.mrb[0].mxu0
    %v1282 = vadd.f32 0.0, %v1281
    %v1283 = vpop.f32.mrb[0].mxu0
    %v1284 = vadd.f32 0.0, %v1283
    %v1285 = vpop.f32.mrb[0].mxu0
    %v1286 = vadd.f32 0.0, %v1285
    %1287 = vmatprep.mubr.bf16.mxu0 %v576
    %1288 = vmatmul.mubr.bf16.gmra.mrb[0].mxu0 %v575
    %v1289 = vpop.f32.mrb[0].mxu0
    %v1290 = vadd.f32 0.0, %v1289
    %v1291 = vpop.f32.mrb[0].mxu0
    %v1292 = vadd.f32 0.0, %v1291
    %v1293 = vpop.f32.mrb[0].mxu0
    %v1294 = vadd.f32 0.0, %v1293
    %v1295 = vpop.f32.mrb[0].mxu0
    %v1296 = vadd.f32 0.0, %v1295
    %1297 = vmatprep.mubr.bf16.mxu0 %v578
    %1298 = vmatmul.mubr.bf16.gmra.mrb[0].mxu0 %v577
    %v1299 = vpop.f32.mrb[0].mxu0
    %v1300 = vadd.f32 0.0, %v1299
    %v1301 = vpop.f32.mrb[0].mxu0
    %v1302 = vadd.f32 0.0, %v1301
    %v1303 = vpop.f32.mrb[0].mxu0
    %v1304 = vadd.f32 0.0, %v1303
    %v1305 = vpop.f32.mrb[0].mxu0
    %v1306 = vadd.f32 0.0, %v1305
    %1307 = vmatprep.mubr.bf16.mxu0 %v580
    %1308 = vmatmul.mubr.bf16.gmra.mrb[0].mxu0 %v579
    %v1309 = vpop.f32.mrb[0].mxu0
    %v1310 = vadd.f32 0.0, %v1309
    %v1311 = vpop.f32.mrb[0].mxu0
    %v1312 = vadd.f32 0.0, %v1311
    %v1313 = vpop.f32.mrb[0].mxu0
    %v1314 = vadd.f32 0.0, %v1313
    %v1315 = vpop.f32.mrb[0].mxu0
    %v1316 = vadd.f32 0.0, %v1315
    %1317 = vmatprep.mubr.bf16.mxu0 %v582
    %1318 = vmatmul.mubr.bf16.gmra.mrb[0].mxu0 %v581
    %v1319 = vpop.f32.mrb[0].mxu0
    %v1320 = vadd.f32 0.0, %v1319
    %v1321 = vpop.f32.mrb[0].mxu0
    %v1322 = vadd.f32 0.0, %v1321
    %v1323 = vpop.f32.mrb[0].mxu0
    %v1324 = vadd.f32 0.0, %v1323
    %v1325 = vpop.f32.mrb[0].mxu0
    %v1326 = vadd.f32 0.0, %v1325
    %1327 = vmatprep.mubr.bf16.mxu0 %v584
    %1328 = vmatmul.mubr.bf16.gmra.mrb[0].mxu0 %v583
    %v1329 = vpop.f32.mrb[0].mxu0
    %v1330 = vadd.f32 0.0, %v1329
    %v1331 = vpop.f32.mrb[0].mxu0
    %v1332 = vadd.f32 0.0, %v1331
    %v1333 = vpop.f32.mrb[0].mxu0
    %v1334 = vadd.f32 0.0, %v1333
    %v1335 = vpop.f32.mrb[0].mxu0
    %v1336 = vadd.f32 0.0, %v1335
    %1337 = vmatprep.mubr.bf16.mxu0 %v586
    %1338 = vmatmul.mubr.bf16.gmra.mrb[0].mxu0 %v585
    %v1339 = vpop.f32.mrb[0].mxu0
    %v1340 = vadd.f32 0.0, %v1339
    %v1341 = vpop.f32.mrb[0].mxu0
    %v1342 = vadd.f32 0.0, %v1341
    %v1343 = vpop.f32.mrb[0].mxu0
    %v1344 = vadd.f32 0.0, %v1343
    %v1345 = vpop.f32.mrb[0].mxu0
    %v1346 = vadd.f32 0.0, %v1345
    %1347 = vmatprep.mubr.bf16.mxu0 %v588
    %1348 = vmatmul.mubr.bf16.gmra.mrb[0].mxu0 %v587
    %v1349 = vpop.f32.mrb[0].mxu0
    %v1350 = vadd.f32 0.0, %v1349
    %v1351 = vpop.f32.mrb[0].mxu0
    %v1352 = vadd.f32 0.0, %v1351
    %v1353 = vpop.f32.mrb[0].mxu0
    %v1354 = vadd.f32 0.0, %v1353
    %v1355 = vpop.f32.mrb[0].mxu0
    %v1356 = vadd.f32 0.0, %v1355
    %1357 = vdwg.mxu0
    %1358 = vmatprep.subr.bf16.mxu0 %v976
    %1359 = vmatpush1.bf16.msra.mxu0 %v975
    %1360 = vmatprep.subr.bf16.mxu0 %v982
    %1361 = vmatpush1.bf16.msra.mxu0 %v981
    %1362 = vmatprep.subr.bf16.mxu0 %v988
    %1363 = vmatpush1.bf16.msra.mxu0 %v987
    %1364 = vmatprep.subr.bf16.mxu0 %v994
    %1365 = vmatpush1.bf16.msra.mxu0 %v993
    %1366 = vmatprep.subr.bf16.mxu0 %v1000
    %1367 = vmatpush1.bf16.msra.mxu0 %v999
    %1368 = vmatprep.subr.bf16.mxu0 %v1006
    %1369 = vmatpush1.bf16.msra.mxu0 %v1005
    %1370 = vmatprep.subr.bf16.mxu0 %v1012
    %1371 = vmatpush1.bf16.msra.mxu0 %v1011
    %1372 = vmatprep.subr.bf16.mxu0 %v1018
    %1373 = vmatpush1.bf16.msra.mxu0 %v1017
    %1374 = vmatprep.subr.bf16.mxu0 %v1024
    %1375 = vmatpush1.bf16.msra.mxu0 %v1023
    %1376 = vmatprep.subr.bf16.mxu0 %v1030
    %1377 = vmatpush1.bf16.msra.mxu0 %v1029
    %1378 = vmatprep.subr.bf16.mxu0 %v1036
    %1379 = vmatpush1.bf16.msra.mxu0 %v1035
    %1380 = vmatprep.subr.bf16.mxu0 %v1042
    %1381 = vmatpush1.bf16.msra.mxu0 %v1041
    %1382 = vmatprep.subr.bf16.mxu0 %v1048
    %1383 = vmatpush1.bf16.msra.mxu0 %v1047
    %1384 = vmatprep.subr.bf16.mxu0 %v1054
    %1385 = vmatpush1.bf16.msra.mxu0 %v1053
    %1386 = vmatprep.subr.bf16.mxu0 %v1060
    %1387 = vmatpush1.bf16.msra.mxu0 %v1059
    %1388 = vmatprep.subr.bf16.mxu0 %v1066
    %1389 = vmatpush1.bf16.msra.mxu0 %v1065
    %1390 = vmatprep.mubr.bf16.mxu0 %v558
    %1391 = vmatmul.mubr.bf16.gmra.mrb[0].mxu0 %v557
    %v1392 = vpop.f32.mrb[0].mxu0
    %v1393 = vadd.f32 0.0, %v1392
    %v1394 = vpop.f32.mrb[0].mxu0
    %v1395 = vadd.f32 0.0, %v1394
    %v1396 = vpop.f32.mrb[0].mxu0
    %v1397 = vadd.f32 0.0, %v1396
    %v1398 = vpop.f32.mrb[0].mxu0
    %v1399 = vadd.f32 0.0, %v1398
    %1400 = vmatprep.mubr.bf16.mxu0 %v560
    %1401 = vmatmul.mubr.bf16.gmra.mrb[0].mxu0 %v559
    %v1402 = vpop.f32.mrb[0].mxu0
    %v1403 = vadd.f32 0.0, %v1402
    %v1404 = vpop.f32.mrb[0].mxu0
    %v1405 = vadd.f32 0.0, %v1404
    %v1406 = vpop.f32.mrb[0].mxu0
    %v1407 = vadd.f32 0.0, %v1406
    %v1408 = vpop.f32.mrb[0].mxu0
    %v1409 = vadd.f32 0.0, %v1408
    %1410 = vmatprep.mubr.bf16.mxu0 %v562
    %1411 = vmatmul.mubr.bf16.gmra.mrb[0].mxu0 %v561
    %v1412 = vpop.f32.mrb[0].mxu0
    %v1413 = vadd.f32 0.0, %v1412
    %v1414 = vpop.f32.mrb[0].mxu0
    %v1415 = vadd.f32 0.0, %v1414
    %v1416 = vpop.f32.mrb[0].mxu0
    %v1417 = vadd.f32 0.0, %v1416
    %v1418 = vpop.f32.mrb[0].mxu0
    %v1419 = vadd.f32 0.0, %v1418
    %1420 = vmatprep.mubr.bf16.mxu0 %v564
    %1421 = vmatmul.mubr.bf16.gmra.mrb[0].mxu0 %v563
    %v1422 = vpop.f32.mrb[0].mxu0
    %v1423 = vadd.f32 0.0, %v1422
    %v1424 = vpop.f32.mrb[0].mxu0
    %v1425 = vadd.f32 0.0, %v1424
    %v1426 = vpop.f32.mrb[0].mxu0
    %v1427 = vadd.f32 0.0, %v1426
    %v1428 = vpop.f32.mrb[0].mxu0
    %v1429 = vadd.f32 0.0, %v1428
    %1430 = vmatprep.mubr.bf16.mxu0 %v566
    %1431 = vmatmul.mubr.bf16.gmra.mrb[0].mxu0 %v565
    %v1432 = vpop.f32.mrb[0].mxu0
    %v1433 = vadd.f32 0.0, %v1432
    %v1434 = vpop.f32.mrb[0].mxu0
    %v1435 = vadd.f32 0.0, %v1434
    %v1436 = vpop.f32.mrb[0].mxu0
    %v1437 = vadd.f32 0.0, %v1436
    %v1438 = vpop.f32.mrb[0].mxu0
    %v1439 = vadd.f32 0.0, %v1438
    %1440 = vmatprep.mubr.bf16.mxu0 %v568
    %1441 = vmatmul.mubr.bf16.gmra.mrb[0].mxu0 %v567
    %v1442 = vpop.f32.mrb[0].mxu0
    %v1443 = vadd.f32 0.0, %v1442
    %v1444 = vpop.f32.mrb[0].mxu0
    %v1445 = vadd.f32 0.0, %v1444
    %v1446 = vpop.f32.mrb[0].mxu0
    %v1447 = vadd.f32 0.0, %v1446
    %v1448 = vpop.f32.mrb[0].mxu0
    %v1449 = vadd.f32 0.0, %v1448
    %1450 = vmatprep.mubr.bf16.mxu0 %v570
    %1451 = vmatmul.mubr.bf16.gmra.mrb[0].mxu0 %v569
    %v1452 = vpop.f32.mrb[0].mxu0
    %v1453 = vadd.f32 0.0, %v1452
    %v1454 = vpop.f32.mrb[0].mxu0
    %v1455 = vadd.f32 0.0, %v1454
    %v1456 = vpop.f32.mrb[0].mxu0
    %v1457 = vadd.f32 0.0, %v1456
    %v1458 = vpop.f32.mrb[0].mxu0
    %v1459 = vadd.f32 0.0, %v1458
    %1460 = vmatprep.mubr.bf16.mxu0 %v572
    %1461 = vmatmul.mubr.bf16.gmra.mrb[0].mxu0 %v571
    %v1462 = vpop.f32.mrb[0].mxu0
    %v1463 = vadd.f32 0.0, %v1462
    %v1464 = vpop.f32.mrb[0].mxu0
    %v1465 = vadd.f32 0.0, %v1464
    %v1466 = vpop.f32.mrb[0].mxu0
    %v1467 = vadd.f32 0.0, %v1466
    %v1468 = vpop.f32.mrb[0].mxu0
    %v1469 = vadd.f32 0.0, %v1468
    %1470 = vmatprep.mubr.bf16.mxu0 %v574
    %1471 = vmatmul.mubr.bf16.gmra.mrb[0].mxu0 %v573
    %v1472 = vpop.f32.mrb[0].mxu0
    %v1473 = vadd.f32 0.0, %v1472
    %v1474 = vpop.f32.mrb[0].mxu0
    %v1475 = vadd.f32 0.0, %v1474
    %v1476 = vpop.f32.mrb[0].mxu0
    %v1477 = vadd.f32 0.0, %v1476
    %v1478 = vpop.f32.mrb[0].mxu0
    %v1479 = vadd.f32 0.0, %v1478
    %1480 = vmatprep.mubr.bf16.mxu0 %v576
    %1481 = vmatmul.mubr.bf16.gmra.mrb[0].mxu0 %v575
    %v1482 = vpop.f32.mrb[0].mxu0
    %v1483 = vadd.f32 0.0, %v1482
    %v1484 = vpop.f32.mrb[0].mxu0
    %v1485 = vadd.f32 0.0, %v1484
    %v1486 = vpop.f32.mrb[0].mxu0
    %v1487 = vadd.f32 0.0, %v1486
    %v1488 = vpop.f32.mrb[0].mxu0
    %v1489 = vadd.f32 0.0, %v1488
    %1490 = vmatprep.mubr.bf16.mxu0 %v578
    %1491 = vmatmul.mubr.bf16.gmra.mrb[0].mxu0 %v577
    %v1492 = vpop.f32.mrb[0].mxu0
    %v1493 = vadd.f32 0.0, %v1492
    %v1494 = vpop.f32.mrb[0].mxu0
    %v1495 = vadd.f32 0.0, %v1494
    %v1496 = vpop.f32.mrb[0].mxu0
    %v1497 = vadd.f32 0.0, %v1496
    %v1498 = vpop.f32.mrb[0].mxu0
    %v1499 = vadd.f32 0.0, %v1498
    %1500 = vmatprep.mubr.bf16.mxu0 %v580
    %1501 = vmatmul.mubr.bf16.gmra.mrb[0].mxu0 %v579
    %v1502 = vpop.f32.mrb[0].mxu0
    %v1503 = vadd.f32 0.0, %v1502
    %v1504 = vpop.f32.mrb[0].mxu0
    %v1505 = vadd.f32 0.0, %v1504
    %v1506 = vpop.f32.mrb[0].mxu0
    %v1507 = vadd.f32 0.0, %v1506
    %v1508 = vpop.f32.mrb[0].mxu0
    %v1509 = vadd.f32 0.0, %v1508
    %1510 = vmatprep.mubr.bf16.mxu0 %v582
    %1511 = vmatmul.mubr.bf16.gmra.mrb[0].mxu0 %v581
    %v1512 = vpop.f32.mrb[0].mxu0
    %v1513 = vadd.f32 0.0, %v1512
    %v1514 = vpop.f32.mrb[0].mxu0
    %v1515 = vadd.f32 0.0, %v1514
    %v1516 = vpop.f32.mrb[0].mxu0
    %v1517 = vadd.f32 0.0, %v1516
    %v1518 = vpop.f32.mrb[0].mxu0
    %v1519 = vadd.f32 0.0, %v1518
    %1520 = vmatprep.mubr.bf16.mxu0 %v584
    %1521 = vmatmul.mubr.bf16.gmra.mrb[0].mxu0 %v583
    %v1522 = vpop.f32.mrb[0].mxu0
    %v1523 = vadd.f32 0.0, %v1522
    %v1524 = vpop.f32.mrb[0].mxu0
    %v1525 = vadd.f32 0.0, %v1524
    %v1526 = vpop.f32.mrb[0].mxu0
    %v1527 = vadd.f32 0.0, %v1526
    %v1528 = vpop.f32.mrb[0].mxu0
    %v1529 = vadd.f32 0.0, %v1528
    %1530 = vmatprep.mubr.bf16.mxu0 %v586
    %1531 = vmatmul.mubr.bf16.gmra.mrb[0].mxu0 %v585
    %v1532 = vpop.f32.mrb[0].mxu0
    %v1533 = vadd.f32 0.0, %v1532
    %v1534 = vpop.f32.mrb[0].mxu0
    %v1535 = vadd.f32 0.0, %v1534
    %v1536 = vpop.f32.mrb[0].mxu0
    %v1537 = vadd.f32 0.0, %v1536
    %v1538 = vpop.f32.mrb[0].mxu0
    %v1539 = vadd.f32 0.0, %v1538
    %1540 = vmatprep.mubr.bf16.mxu0 %v588
    %1541 = vmatmul.mubr.bf16.gmra.mrb[0].mxu0 %v587
    %v1542 = vpop.f32.mrb[0].mxu0
    %v1543 = vadd.f32 0.0, %v1542
    %v1544 = vpop.f32.mrb[0].mxu0
    %v1545 = vadd.f32 0.0, %v1544
    %v1546 = vpop.f32.mrb[0].mxu0
    %v1547 = vadd.f32 0.0, %v1546
    %v1548 = vpop.f32.mrb[0].mxu0
    %v1549 = vadd.f32 0.0, %v1548
    %1550 = vdwg.mxu0
    %1551 = vmatprep.subr.bf16.mxu0 %v978
    %1552 = vmatpush1.bf16.msra.mxu0 %v977
    %1553 = vmatprep.subr.bf16.mxu0 %v984
    %1554 = vmatpush1.bf16.msra.mxu0 %v983
    %1555 = vmatprep.subr.bf16.mxu0 %v990
    %1556 = vmatpush1.bf16.msra.mxu0 %v989
    %1557 = vmatprep.subr.bf16.mxu0 %v996
    %1558 = vmatpush1.bf16.msra.mxu0 %v995
    %1559 = vmatprep.subr.bf16.mxu0 %v1002
    %1560 = vmatpush1.bf16.msra.mxu0 %v1001
    %1561 = vmatprep.subr.bf16.mxu0 %v1008
    %1562 = vmatpush1.bf16.msra.mxu0 %v1007
    %1563 = vmatprep.subr.bf16.mxu0 %v1014
    %1564 = vmatpush1.bf16.msra.mxu0 %v1013
    %1565 = vmatprep.subr.bf16.mxu0 %v1020
    %1566 = vmatpush1.bf16.msra.mxu0 %v1019
    %1567 = vmatprep.subr.bf16.mxu0 %v1026
    %1568 = vmatpush1.bf16.msra.mxu0 %v1025
    %1569 = vmatprep.subr.bf16.mxu0 %v1032
    %1570 = vmatpush1.bf16.msra.mxu0 %v1031
    %1571 = vmatprep.subr.bf16.mxu0 %v1038
    %1572 = vmatpush1.bf16.msra.mxu0 %v1037
    %1573 = vmatprep.subr.bf16.mxu0 %v1044
    %1574 = vmatpush1.bf16.msra.mxu0 %v1043
    %1575 = vmatprep.subr.bf16.mxu0 %v1050
    %1576 = vmatpush1.bf16.msra.mxu0 %v1049
    %1577 = vmatprep.subr.bf16.mxu0 %v1056
    %1578 = vmatpush1.bf16.msra.mxu0 %v1055
    %1579 = vmatprep.subr.bf16.mxu0 %v1062
    %1580 = vmatpush1.bf16.msra.mxu0 %v1061
    %1581 = vmatprep.subr.bf16.mxu0 %v1068
    %1582 = vmatpush1.bf16.msra.mxu0 %v1067
    %1583 = vmatprep.mubr.bf16.mxu0 %v558
    %1584 = vmatmul.mubr.bf16.gmra.mrb[0].mxu0 %v557
    %v1585 = vpop.f32.mrb[0].mxu0
    %v1586 = vadd.f32 0.0, %v1585
    %v1587 = vpop.f32.mrb[0].mxu0
    %v1588 = vadd.f32 0.0, %v1587
    %v1589 = vpop.f32.mrb[0].mxu0
    %v1590 = vadd.f32 0.0, %v1589
    %v1591 = vpop.f32.mrb[0].mxu0
    %v1592 = vadd.f32 0.0, %v1591
    %1593 = vmatprep.mubr.bf16.mxu0 %v560
    %1594 = vmatmul.mubr.bf16.gmra.mrb[0].mxu0 %v559
    %v1595 = vpop.f32.mrb[0].mxu0
    %v1596 = vadd.f32 0.0, %v1595
    %v1597 = vpop.f32.mrb[0].mxu0
    %v1598 = vadd.f32 0.0, %v1597
    %v1599 = vpop.f32.mrb[0].mxu0
    %v1600 = vadd.f32 0.0, %v1599
    %v1601 = vpop.f32.mrb[0].mxu0
    %v1602 = vadd.f32 0.0, %v1601
    %1603 = vmatprep.mubr.bf16.mxu0 %v562
    %1604 = vmatmul.mubr.bf16.gmra.mrb[0].mxu0 %v561
    %v1605 = vpop.f32.mrb[0].mxu0
    %v1606 = vadd.f32 0.0, %v1605
    %v1607 = vpop.f32.mrb[0].mxu0
    %v1608 = vadd.f32 0.0, %v1607
    %v1609 = vpop.f32.mrb[0].mxu0
    %v1610 = vadd.f32 0.0, %v1609
    %v1611 = vpop.f32.mrb[0].mxu0
    %v1612 = vadd.f32 0.0, %v1611
    %1613 = vmatprep.mubr.bf16.mxu0 %v564
    %1614 = vmatmul.mubr.bf16.gmra.mrb[0].mxu0 %v563
    %v1615 = vpop.f32.mrb[0].mxu0
    %v1616 = vadd.f32 0.0, %v1615
    %v1617 = vpop.f32.mrb[0].mxu0
    %v1618 = vadd.f32 0.0, %v1617
    %v1619 = vpop.f32.mrb[0].mxu0
    %v1620 = vadd.f32 0.0, %v1619
    %v1621 = vpop.f32.mrb[0].mxu0
    %v1622 = vadd.f32 0.0, %v1621
    %1623 = vmatprep.mubr.bf16.mxu0 %v566
    %1624 = vmatmul.mubr.bf16.gmra.mrb[0].mxu0 %v565
    %v1625 = vpop.f32.mrb[0].mxu0
    %v1626 = vadd.f32 0.0, %v1625
    %v1627 = vpop.f32.mrb[0].mxu0
    %v1628 = vadd.f32 0.0, %v1627
    %v1629 = vpop.f32.mrb[0].mxu0
    %v1630 = vadd.f32 0.0, %v1629
    %v1631 = vpop.f32.mrb[0].mxu0
    %v1632 = vadd.f32 0.0, %v1631
    %1633 = vmatprep.mubr.bf16.mxu0 %v568
    %1634 = vmatmul.mubr.bf16.gmra.mrb[0].mxu0 %v567
    %v1635 = vpop.f32.mrb[0].mxu0
    %v1636 = vadd.f32 0.0, %v1635
    %v1637 = vpop.f32.mrb[0].mxu0
    %v1638 = vadd.f32 0.0, %v1637
    %v1639 = vpop.f32.mrb[0].mxu0
    %v1640 = vadd.f32 0.0, %v1639
    %v1641 = vpop.f32.mrb[0].mxu0
    %v1642 = vadd.f32 0.0, %v1641
    %1643 = vmatprep.mubr.bf16.mxu0 %v570
    %1644 = vmatmul.mubr.bf16.gmra.mrb[0].mxu0 %v569
    %v1645 = vpop.f32.mrb[0].mxu0
    %v1646 = vadd.f32 0.0, %v1645
    %v1647 = vpop.f32.mrb[0].mxu0
    %v1648 = vadd.f32 0.0, %v1647
    %v1649 = vpop.f32.mrb[0].mxu0
    %v1650 = vadd.f32 0.0, %v1649
    %v1651 = vpop.f32.mrb[0].mxu0
    %v1652 = vadd.f32 0.0, %v1651
    %1653 = vmatprep.mubr.bf16.mxu0 %v572
    %1654 = vmatmul.mubr.bf16.gmra.mrb[0].mxu0 %v571
    %v1655 = vpop.f32.mrb[0].mxu0
    %v1656 = vadd.f32 0.0, %v1655
    %v1657 = vpop.f32.mrb[0].mxu0
    %v1658 = vadd.f32 0.0, %v1657
    %v1659 = vpop.f32.mrb[0].mxu0
    %v1660 = vadd.f32 0.0, %v1659
    %v1661 = vpop.f32.mrb[0].mxu0
    %v1662 = vadd.f32 0.0, %v1661
    %1663 = vmatprep.mubr.bf16.mxu0 %v574
    %1664 = vmatmul.mubr.bf16.gmra.mrb[0].mxu0 %v573
    %v1665 = vpop.f32.mrb[0].mxu0
    %v1666 = vadd.f32 0.0, %v1665
    %v1667 = vpop.f32.mrb[0].mxu0
    %v1668 = vadd.f32 0.0, %v1667
    %v1669 = vpop.f32.mrb[0].mxu0
    %v1670 = vadd.f32 0.0, %v1669
    %v1671 = vpop.f32.mrb[0].mxu0
    %v1672 = vadd.f32 0.0, %v1671
    %1673 = vmatprep.mubr.bf16.mxu0 %v576
    %1674 = vmatmul.mubr.bf16.gmra.mrb[0].mxu0 %v575
    %v1675 = vpop.f32.mrb[0].mxu0
    %v1676 = vadd.f32 0.0, %v1675
    %v1677 = vpop.f32.mrb[0].mxu0
    %v1678 = vadd.f32 0.0, %v1677
    %v1679 = vpop.f32.mrb[0].mxu0
    %v1680 = vadd.f32 0.0, %v1679
    %v1681 = vpop.f32.mrb[0].mxu0
    %v1682 = vadd.f32 0.0, %v1681
    %1683 = vmatprep.mubr.bf16.mxu0 %v578
    %1684 = vmatmul.mubr.bf16.gmra.mrb[0].mxu0 %v577
    %v1685 = vpop.f32.mrb[0].mxu0
    %v1686 = vadd.f32 0.0, %v1685
    %v1687 = vpop.f32.mrb[0].mxu0
    %v1688 = vadd.f32 0.0, %v1687
    %v1689 = vpop.f32.mrb[0].mxu0
    %v1690 = vadd.f32 0.0, %v1689
    %v1691 = vpop.f32.mrb[0].mxu0
    %v1692 = vadd.f32 0.0, %v1691
    %1693 = vmatprep.mubr.bf16.mxu0 %v580
    %1694 = vmatmul.mubr.bf16.gmra.mrb[0].mxu0 %v579
    %v1695 = vpop.f32.mrb[0].mxu0
    %v1696 = vadd.f32 0.0, %v1695
    %v1697 = vpop.f32.mrb[0].mxu0
    %v1698 = vadd.f32 0.0, %v1697
    %v1699 = vpop.f32.mrb[0].mxu0
    %v1700 = vadd.f32 0.0, %v1699
    %v1701 = vpop.f32.mrb[0].mxu0
    %v1702 = vadd.f32 0.0, %v1701
    %1703 = vmatprep.mubr.bf16.mxu0 %v582
    %1704 = vmatmul.mubr.bf16.gmra.mrb[0].mxu0 %v581
    %v1705 = vpop.f32.mrb[0].mxu0
    %v1706 = vadd.f32 0.0, %v1705
    %v1707 = vpop.f32.mrb[0].mxu0
    %v1708 = vadd.f32 0.0, %v1707
    %v1709 = vpop.f32.mrb[0].mxu0
    %v1710 = vadd.f32 0.0, %v1709
    %v1711 = vpop.f32.mrb[0].mxu0
    %v1712 = vadd.f32 0.0, %v1711
    %1713 = vmatprep.mubr.bf16.mxu0 %v584
    %1714 = vmatmul.mubr.bf16.gmra.mrb[0].mxu0 %v583
    %v1715 = vpop.f32.mrb[0].mxu0
    %v1716 = vadd.f32 0.0, %v1715
    %v1717 = vpop.f32.mrb[0].mxu0
    %v1718 = vadd.f32 0.0, %v1717
    %v1719 = vpop.f32.mrb[0].mxu0
    %v1720 = vadd.f32 0.0, %v1719
    %v1721 = vpop.f32.mrb[0].mxu0
    %v1722 = vadd.f32 0.0, %v1721
    %1723 = vmatprep.mubr.bf16.mxu0 %v586
    %1724 = vmatmul.mubr.bf16.gmra.mrb[0].mxu0 %v585
    %v1725 = vpop.f32.mrb[0].mxu0
    %v1726 = vadd.f32 0.0, %v1725
    %v1727 = vpop.f32.mrb[0].mxu0
    %v1728 = vadd.f32 0.0, %v1727
    %v1729 = vpop.f32.mrb[0].mxu0
    %v1730 = vadd.f32 0.0, %v1729
    %v1731 = vpop.f32.mrb[0].mxu0
    %v1732 = vadd.f32 0.0, %v1731
    %1733 = vmatprep.mubr.bf16.mxu0 %v588
    %1734 = vmatmul.mubr.bf16.gmra.mrb[0].mxu0 %v587
    %v1735 = vpop.f32.mrb[0].mxu0
    %v1736 = vadd.f32 0.0, %v1735
    %v1737 = vpop.f32.mrb[0].mxu0
    %v1738 = vadd.f32 0.0, %v1737
    %v1739 = vpop.f32.mrb[0].mxu0
    %v1740 = vadd.f32 0.0, %v1739
    %v1741 = vpop.f32.mrb[0].mxu0
    %v1742 = vadd.f32 0.0, %v1741
    %1743 = vdwg.mxu0
    %v1744 = vpack.c.bf16 %v1204, %v1200
    %v1745 = vpack.c.bf16 %v1214, %v1210
    %v1746 = vpack.c.bf16 %v1224, %v1220
    %v1747 = vpack.c.bf16 %v1234, %v1230
    %v1748 = vpack.c.bf16 %v1244, %v1240
    %v1749 = vpack.c.bf16 %v1254, %v1250
    %v1750 = vpack.c.bf16 %v1264, %v1260
    %v1751 = vpack.c.bf16 %v1274, %v1270
    %v1752 = vpack.c.bf16 %v1206, %v1202
    %v1753 = vpack.c.bf16 %v1216, %v1212
    %v1754 = vpack.c.bf16 %v1226, %v1222
    %v1755 = vpack.c.bf16 %v1236, %v1232
    %v1756 = vpack.c.bf16 %v1246, %v1242
    %v1757 = vpack.c.bf16 %v1256, %v1252
    %v1758 = vpack.c.bf16 %v1266, %v1262
    %v1759 = vpack.c.bf16 %v1276, %v1272
    %v1760 = vpack.c.bf16 %v1284, %v1280
    %v1761 = vpack.c.bf16 %v1294, %v1290
    %v1762 = vpack.c.bf16 %v1304, %v1300
    %v1763 = vpack.c.bf16 %v1314, %v1310
    %v1764 = vpack.c.bf16 %v1324, %v1320
    %v1765 = vpack.c.bf16 %v1334, %v1330
    %v1766 = vpack.c.bf16 %v1344, %v1340
    %v1767 = vpack.c.bf16 %v1354, %v1350
    %v1768 = vpack.c.bf16 %v1286, %v1282
    %v1769 = vpack.c.bf16 %v1296, %v1292
    %v1770 = vpack.c.bf16 %v1306, %v1302
    %v1771 = vpack.c.bf16 %v1316, %v1312
    %v1772 = vpack.c.bf16 %v1326, %v1322
    %v1773 = vpack.c.bf16 %v1336, %v1332
    %v1774 = vpack.c.bf16 %v1346, %v1342
    %v1775 = vpack.c.bf16 %v1356, %v1352
    %v1776 = vpack.c.bf16 %v1397, %v1393
    %v1777 = vpack.c.bf16 %v1407, %v1403
    %v1778 = vpack.c.bf16 %v1417, %v1413
    %v1779 = vpack.c.bf16 %v1427, %v1423
    %v1780 = vpack.c.bf16 %v1437, %v1433
    %v1781 = vpack.c.bf16 %v1447, %v1443
    %v1782 = vpack.c.bf16 %v1457, %v1453
    %v1783 = vpack.c.bf16 %v1467, %v1463
    %v1784 = vpack.c.bf16 %v1399, %v1395
    %v1785 = vpack.c.bf16 %v1409, %v1405
    %v1786 = vpack.c.bf16 %v1419, %v1415
    %v1787 = vpack.c.bf16 %v1429, %v1425
    %v1788 = vpack.c.bf16 %v1439, %v1435
    %v1789 = vpack.c.bf16 %v1449, %v1445
    %v1790 = vpack.c.bf16 %v1459, %v1455
    %v1791 = vpack.c.bf16 %v1469, %v1465
    %v1792 = vpack.c.bf16 %v1477, %v1473
    %v1793 = vpack.c.bf16 %v1487, %v1483
    %v1794 = vpack.c.bf16 %v1497, %v1493
    %v1795 = vpack.c.bf16 %v1507, %v1503
    %v1796 = vpack.c.bf16 %v1517, %v1513
    %v1797 = vpack.c.bf16 %v1527, %v1523
    %v1798 = vpack.c.bf16 %v1537, %v1533
    %v1799 = vpack.c.bf16 %v1547, %v1543
    %v1800 = vpack.c.bf16 %v1479, %v1475
    %v1801 = vpack.c.bf16 %v1489, %v1485
    %v1802 = vpack.c.bf16 %v1499, %v1495
    %v1803 = vpack.c.bf16 %v1509, %v1505
    %v1804 = vpack.c.bf16 %v1519, %v1515
    %v1805 = vpack.c.bf16 %v1529, %v1525
    %v1806 = vpack.c.bf16 %v1539, %v1535
    %v1807 = vpack.c.bf16 %v1549, %v1545
    %v1808 = vpack.c.bf16 %v1590, %v1586
    %v1809 = vpack.c.bf16 %v1600, %v1596
    %v1810 = vpack.c.bf16 %v1610, %v1606
    %v1811 = vpack.c.bf16 %v1620, %v1616
    %v1812 = vpack.c.bf16 %v1630, %v1626
    %v1813 = vpack.c.bf16 %v1640, %v1636
    %v1814 = vpack.c.bf16 %v1650, %v1646
    %v1815 = vpack.c.bf16 %v1660, %v1656
    %v1816 = vpack.c.bf16 %v1592, %v1588
    %v1817 = vpack.c.bf16 %v1602, %v1598
    %v1818 = vpack.c.bf16 %v1612, %v1608
    %v1819 = vpack.c.bf16 %v1622, %v1618
    %v1820 = vpack.c.bf16 %v1632, %v1628
    %v1821 = vpack.c.bf16 %v1642, %v1638
    %v1822 = vpack.c.bf16 %v1652, %v1648
    %v1823 = vpack.c.bf16 %v1662, %v1658
    %v1824 = vpack.c.bf16 %v1670, %v1666
    %v1825 = vpack.c.bf16 %v1680, %v1676
    %v1826 = vpack.c.bf16 %v1690, %v1686
    %v1827 = vpack.c.bf16 %v1700, %v1696
    %v1828 = vpack.c.bf16 %v1710, %v1706
    %v1829 = vpack.c.bf16 %v1720, %v1716
    %v1830 = vpack.c.bf16 %v1730, %v1726
    %v1831 = vpack.c.bf16 %v1740, %v1736
    %v1832 = vpack.c.bf16 %v1672, %v1668
    %v1833 = vpack.c.bf16 %v1682, %v1678
    %v1834 = vpack.c.bf16 %v1692, %v1688
    %v1835 = vpack.c.bf16 %v1702, %v1698
    %v1836 = vpack.c.bf16 %v1712, %v1708
    %v1837 = vpack.c.bf16 %v1722, %v1718
    %v1838 = vpack.c.bf16 %v1732, %v1728
    %v1839 = vpack.c.bf16 %v1742, %v1738
    %1840 = vmatprep.subr.bf16.mxu0 0
    %1841 = vmatpush1.bf16.xpose.msra.mxu0 %v1776
    %1842 = vmatprep.subr.bf16.mxu0 0
    %1843 = vmatpush1.bf16.xpose.msra.mxu0 %v1777
    %1844 = vmatprep.subr.bf16.mxu0 0
    %1845 = vmatpush1.bf16.xpose.msra.mxu0 %v1778
    %1846 = vmatprep.subr.bf16.mxu0 0
    %1847 = vmatpush1.bf16.xpose.msra.mxu0 %v1779
    %1848 = vmatprep.subr.bf16.mxu0 0
    %1849 = vmatpush1.bf16.xpose.msra.mxu0 %v1780
    %1850 = vmatprep.subr.bf16.mxu0 0
    %1851 = vmatpush1.bf16.xpose.msra.mxu0 %v1781
    %1852 = vmatprep.subr.bf16.mxu0 0
    %1853 = vmatpush1.bf16.xpose.msra.mxu0 %v1782
    %1854 = vmatprep.subr.bf16.mxu0 0
    %1855 = vmatpush1.bf16.xpose.msra.mxu0 %v1783
    %1856 = vmatprep.subr.bf16.mxu0 0
    %1857 = vmatpush1.bf16.xpose.msra.mxu0 0
    %1858 = vmatprep.subr.bf16.mxu0 0
    %1859 = vmatpush1.bf16.xpose.msra.mxu0 0
    %1860 = vmatprep.subr.bf16.mxu0 0
    %1861 = vmatpush1.bf16.xpose.msra.mxu0 0
    %1862 = vmatprep.subr.bf16.mxu0 0
    %1863 = vmatpush1.bf16.xpose.msra.mxu0 0
    %1864 = vmatprep.subr.bf16.mxu0 0
    %1865 = vmatpush1.bf16.xpose.msra.mxu0 0
    %1866 = vmatprep.subr.bf16.mxu0 0
    %1867 = vmatpush1.bf16.xpose.msra.mxu0 0
    %1868 = vmatprep.subr.bf16.mxu0 0
    %1869 = vmatpush1.bf16.xpose.msra.mxu0 0
    %1870 = vmatprep.subr.bf16.mxu0 0
    %1871 = vmatpush1.bf16.xpose.msra.mxu0 0
    %1872 = vmatprep.mubr.bf16.mxu0 0
    %1873 = vmatmul.mubr.bf16.gmra.mrb[0].mxu0 %v1744
    %v1874 = vpop.f32.mrb[0].mxu0
    %v1875 = vadd.f32 0.0, %v1874
    %v1876 = vpop.f32.mrb[0].mxu0
    %v1877 = vpop.f32.mrb[0].mxu0
    %v1878 = vadd.f32 0.0, %v1877
    %v1879 = vpop.f32.mrb[0].mxu0
    %1880 = vmatprep.mubr.bf16.mxu0 0
    %1881 = vmatmul.mubr.bf16.gmra.mrb[0].mxu0 %v1745
    %v1882 = vpop.f32.mrb[0].mxu0
    %v1883 = vadd.f32 0.0, %v1882
    %v1884 = vpop.f32.mrb[0].mxu0
    %v1885 = vpop.f32.mrb[0].mxu0
    %v1886 = vadd.f32 0.0, %v1885
    %v1887 = vpop.f32.mrb[0].mxu0
    %1888 = vmatprep.mubr.bf16.mxu0 0
    %1889 = vmatmul.mubr.bf16.gmra.mrb[0].mxu0 %v1746
    %v1890 = vpop.f32.mrb[0].mxu0
    %v1891 = vadd.f32 0.0, %v1890
    %v1892 = vpop.f32.mrb[0].mxu0
    %v1893 = vpop.f32.mrb[0].mxu0
    %v1894 = vadd.f32 0.0, %v1893
    %v1895 = vpop.f32.mrb[0].mxu0
    %1896 = vmatprep.mubr.bf16.mxu0 0
    %1897 = vmatmul.mubr.bf16.gmra.mrb[0].mxu0 %v1747
    %v1898 = vpop.f32.mrb[0].mxu0
    %v1899 = vadd.f32 0.0, %v1898
    %v1900 = vpop.f32.mrb[0].mxu0
    %v1901 = vpop.f32.mrb[0].mxu0
    %v1902 = vadd.f32 0.0, %v1901
    %v1903 = vpop.f32.mrb[0].mxu0
    %1904 = vmatprep.mubr.bf16.mxu0 0
    %1905 = vmatmul.mubr.bf16.gmra.mrb[0].mxu0 %v1748
    %v1906 = vpop.f32.mrb[0].mxu0
    %v1907 = vadd.f32 0.0, %v1906
    %v1908 = vpop.f32.mrb[0].mxu0
    %v1909 = vpop.f32.mrb[0].mxu0
    %v1910 = vadd.f32 0.0, %v1909
    %v1911 = vpop.f32.mrb[0].mxu0
    %1912 = vmatprep.mubr.bf16.mxu0 0
    %1913 = vmatmul.mubr.bf16.gmra.mrb[0].mxu0 %v1749
    %v1914 = vpop.f32.mrb[0].mxu0
    %v1915 = vadd.f32 0.0, %v1914
    %v1916 = vpop.f32.mrb[0].mxu0
    %v1917 = vpop.f32.mrb[0].mxu0
    %v1918 = vadd.f32 0.0, %v1917
    %v1919 = vpop.f32.mrb[0].mxu0
    %1920 = vmatprep.mubr.bf16.mxu0 0
    %1921 = vmatmul.mubr.bf16.gmra.mrb[0].mxu0 %v1750
    %v1922 = vpop.f32.mrb[0].mxu0
    %v1923 = vadd.f32 0.0, %v1922
    %v1924 = vpop.f32.mrb[0].mxu0
    %v1925 = vpop.f32.mrb[0].mxu0
    %v1926 = vadd.f32 0.0, %v1925
    %v1927 = vpop.f32.mrb[0].mxu0
    %1928 = vmatprep.mubr.bf16.mxu0 0
    %1929 = vmatmul.mubr.bf16.gmra.mrb[0].mxu0 %v1751
    %v1930 = vpop.f32.mrb[0].mxu0
    %v1931 = vadd.f32 0.0, %v1930
    %v1932 = vpop.f32.mrb[0].mxu0
    %v1933 = vpop.f32.mrb[0].mxu0
    %v1934 = vadd.f32 0.0, %v1933
    %v1935 = vpop.f32.mrb[0].mxu0
    %1936 = vdwg.mxu0
    %1937 = vmatprep.subr.bf16.mxu0 0
    %1938 = vmatpush1.bf16.xpose.msra.mxu0 %v1784
    %1939 = vmatprep.subr.bf16.mxu0 0
    %1940 = vmatpush1.bf16.xpose.msra.mxu0 %v1785
    %1941 = vmatprep.subr.bf16.mxu0 0
    %1942 = vmatpush1.bf16.xpose.msra.mxu0 %v1786
    %1943 = vmatprep.subr.bf16.mxu0 0
    %1944 = vmatpush1.bf16.xpose.msra.mxu0 %v1787
    %1945 = vmatprep.subr.bf16.mxu0 0
    %1946 = vmatpush1.bf16.xpose.msra.mxu0 %v1788
    %1947 = vmatprep.subr.bf16.mxu0 0
    %1948 = vmatpush1.bf16.xpose.msra.mxu0 %v1789
    %1949 = vmatprep.subr.bf16.mxu0 0
    %1950 = vmatpush1.bf16.xpose.msra.mxu0 %v1790
    %1951 = vmatprep.subr.bf16.mxu0 0
    %1952 = vmatpush1.bf16.xpose.msra.mxu0 %v1791
    %1953 = vmatprep.subr.bf16.mxu0 0
    %1954 = vmatpush1.bf16.xpose.msra.mxu0 0
    %1955 = vmatprep.subr.bf16.mxu0 0
    %1956 = vmatpush1.bf16.xpose.msra.mxu0 0
    %1957 = vmatprep.subr.bf16.mxu0 0
    %1958 = vmatpush1.bf16.xpose.msra.mxu0 0
    %1959 = vmatprep.subr.bf16.mxu0 0
    %1960 = vmatpush1.bf16.xpose.msra.mxu0 0
    %1961 = vmatprep.subr.bf16.mxu0 0
    %1962 = vmatpush1.bf16.xpose.msra.mxu0 0
    %1963 = vmatprep.subr.bf16.mxu0 0
    %1964 = vmatpush1.bf16.xpose.msra.mxu0 0
    %1965 = vmatprep.subr.bf16.mxu0 0
    %1966 = vmatpush1.bf16.xpose.msra.mxu0 0
    %1967 = vmatprep.subr.bf16.mxu0 0
    %1968 = vmatpush1.bf16.xpose.msra.mxu0 0
    %1969 = vmatprep.mubr.bf16.mxu0 0
    %1970 = vmatmul.mubr.bf16.gmra.mrb[0].mxu0 %v1752
    %v1971 = vpop.f32.mrb[0].mxu0
    %v1972 = vadd.f32 0.0, %v1971
    %v1973 = vpop.f32.mrb[0].mxu0
    %v1974 = vpop.f32.mrb[0].mxu0
    %v1975 = vadd.f32 0.0, %v1974
    %v1976 = vpop.f32.mrb[0].mxu0
    %1977 = vmatprep.mubr.bf16.mxu0 0
    %1978 = vmatmul.mubr.bf16.gmra.mrb[0].mxu0 %v1753
    %v1979 = vpop.f32.mrb[0].mxu0
    %v1980 = vadd.f32 0.0, %v1979
    %v1981 = vpop.f32.mrb[0].mxu0
    %v1982 = vpop.f32.mrb[0].mxu0
    %v1983 = vadd.f32 0.0, %v1982
    %v1984 = vpop.f32.mrb[0].mxu0
    %1985 = vmatprep.mubr.bf16.mxu0 0
    %1986 = vmatmul.mubr.bf16.gmra.mrb[0].mxu0 %v1754
    %v1987 = vpop.f32.mrb[0].mxu0
    %v1988 = vadd.f32 0.0, %v1987
    %v1989 = vpop.f32.mrb[0].mxu0
    %v1990 = vpop.f32.mrb[0].mxu0
    %v1991 = vadd.f32 0.0, %v1990
    %v1992 = vpop.f32.mrb[0].mxu0
    %1993 = vmatprep.mubr.bf16.mxu0 0
    %1994 = vmatmul.mubr.bf16.gmra.mrb[0].mxu0 %v1755
    %v1995 = vpop.f32.mrb[0].mxu0
    %v1996 = vadd.f32 0.0, %v1995
    %v1997 = vpop.f32.mrb[0].mxu0
    %v1998 = vpop.f32.mrb[0].mxu0
    %v1999 = vadd.f32 0.0, %v1998
    %v2000 = vpop.f32.mrb[0].mxu0
    %2001 = vmatprep.mubr.bf16.mxu0 0
    %2002 = vmatmul.mubr.bf16.gmra.mrb[0].mxu0 %v1756
    %v2003 = vpop.f32.mrb[0].mxu0
    %v2004 = vadd.f32 0.0, %v2003
    %v2005 = vpop.f32.mrb[0].mxu0
    %v2006 = vpop.f32.mrb[0].mxu0
    %v2007 = vadd.f32 0.0, %v2006
    %v2008 = vpop.f32.mrb[0].mxu0
    %2009 = vmatprep.mubr.bf16.mxu0 0
    %2010 = vmatmul.mubr.bf16.gmra.mrb[0].mxu0 %v1757
    %v2011 = vpop.f32.mrb[0].mxu0
    %v2012 = vadd.f32 0.0, %v2011
    %v2013 = vpop.f32.mrb[0].mxu0
    %v2014 = vpop.f32.mrb[0].mxu0
    %v2015 = vadd.f32 0.0, %v2014
    %v2016 = vpop.f32.mrb[0].mxu0
    %2017 = vmatprep.mubr.bf16.mxu0 0
    %2018 = vmatmul.mubr.bf16.gmra.mrb[0].mxu0 %v1758
    %v2019 = vpop.f32.mrb[0].mxu0
    %v2020 = vadd.f32 0.0, %v2019
    %v2021 = vpop.f32.mrb[0].mxu0
    %v2022 = vpop.f32.mrb[0].mxu0
    %v2023 = vadd.f32 0.0, %v2022
    %v2024 = vpop.f32.mrb[0].mxu0
    %2025 = vmatprep.mubr.bf16.mxu0 0
    %2026 = vmatmul.mubr.bf16.gmra.mrb[0].mxu0 %v1759
    %v2027 = vpop.f32.mrb[0].mxu0
    %v2028 = vadd.f32 0.0, %v2027
    %v2029 = vpop.f32.mrb[0].mxu0
    %v2030 = vpop.f32.mrb[0].mxu0
    %v2031 = vadd.f32 0.0, %v2030
    %v2032 = vpop.f32.mrb[0].mxu0
    %2033 = vdwg.mxu0
    %2034 = vmatprep.subr.bf16.mxu0 0
    %2035 = vmatpush1.bf16.xpose.msra.mxu0 %v1792
    %2036 = vmatprep.subr.bf16.mxu0 0
    %2037 = vmatpush1.bf16.xpose.msra.mxu0 %v1793
    %2038 = vmatprep.subr.bf16.mxu0 0
    %2039 = vmatpush1.bf16.xpose.msra.mxu0 %v1794
    %2040 = vmatprep.subr.bf16.mxu0 0
    %2041 = vmatpush1.bf16.xpose.msra.mxu0 %v1795
    %2042 = vmatprep.subr.bf16.mxu0 0
    %2043 = vmatpush1.bf16.xpose.msra.mxu0 %v1796
    %2044 = vmatprep.subr.bf16.mxu0 0
    %2045 = vmatpush1.bf16.xpose.msra.mxu0 %v1797
    %2046 = vmatprep.subr.bf16.mxu0 0
    %2047 = vmatpush1.bf16.xpose.msra.mxu0 %v1798
    %2048 = vmatprep.subr.bf16.mxu0 0
    %2049 = vmatpush1.bf16.xpose.msra.mxu0 %v1799
    %2050 = vmatprep.subr.bf16.mxu0 0
    %2051 = vmatpush1.bf16.xpose.msra.mxu0 0
    %2052 = vmatprep.subr.bf16.mxu0 0
    %2053 = vmatpush1.bf16.xpose.msra.mxu0 0
    %2054 = vmatprep.subr.bf16.mxu0 0
    %2055 = vmatpush1.bf16.xpose.msra.mxu0 0
    %2056 = vmatprep.subr.bf16.mxu0 0
    %2057 = vmatpush1.bf16.xpose.msra.mxu0 0
    %2058 = vmatprep.subr.bf16.mxu0 0
    %2059 = vmatpush1.bf16.xpose.msra.mxu0 0
    %2060 = vmatprep.subr.bf16.mxu0 0
    %2061 = vmatpush1.bf16.xpose.msra.mxu0 0
    %2062 = vmatprep.subr.bf16.mxu0 0
    %2063 = vmatpush1.bf16.xpose.msra.mxu0 0
    %2064 = vmatprep.subr.bf16.mxu0 0
    %2065 = vmatpush1.bf16.xpose.msra.mxu0 0
    %2066 = vmatprep.mubr.bf16.mxu0 0
    %2067 = vmatmul.mubr.bf16.gmra.mrb[0].mxu0 %v1760
    %v2068 = vpop.f32.mrb[0].mxu0
    %v2069 = vadd.f32 0.0, %v2068
    %v2070 = vpop.f32.mrb[0].mxu0
    %v2071 = vpop.f32.mrb[0].mxu0
    %v2072 = vadd.f32 0.0, %v2071
    %v2073 = vpop.f32.mrb[0].mxu0
    %2074 = vmatprep.mubr.bf16.mxu0 0
    %2075 = vmatmul.mubr.bf16.gmra.mrb[0].mxu0 %v1761
    %v2076 = vpop.f32.mrb[0].mxu0
    %v2077 = vadd.f32 0.0, %v2076
    %v2078 = vpop.f32.mrb[0].mxu0
    %v2079 = vpop.f32.mrb[0].mxu0
    %v2080 = vadd.f32 0.0, %v2079
    %v2081 = vpop.f32.mrb[0].mxu0
    %2082 = vmatprep.mubr.bf16.mxu0 0
    %2083 = vmatmul.mubr.bf16.gmra.mrb[0].mxu0 %v1762
    %v2084 = vpop.f32.mrb[0].mxu0
    %v2085 = vadd.f32 0.0, %v2084
    %v2086 = vpop.f32.mrb[0].mxu0
    %v2087 = vpop.f32.mrb[0].mxu0
    %v2088 = vadd.f32 0.0, %v2087
    %v2089 = vpop.f32.mrb[0].mxu0
    %2090 = vmatprep.mubr.bf16.mxu0 0
    %2091 = vmatmul.mubr.bf16.gmra.mrb[0].mxu0 %v1763
    %v2092 = vpop.f32.mrb[0].mxu0
    %v2093 = vadd.f32 0.0, %v2092
    %v2094 = vpop.f32.mrb[0].mxu0
    %v2095 = vpop.f32.mrb[0].mxu0
    %v2096 = vadd.f32 0.0, %v2095
    %v2097 = vpop.f32.mrb[0].mxu0
    %2098 = vmatprep.mubr.bf16.mxu0 0
    %2099 = vmatmul.mubr.bf16.gmra.mrb[0].mxu0 %v1764
    %v2100 = vpop.f32.mrb[0].mxu0
    %v2101 = vadd.f32 0.0, %v2100
    %v2102 = vpop.f32.mrb[0].mxu0
    %v2103 = vpop.f32.mrb[0].mxu0
    %v2104 = vadd.f32 0.0, %v2103
    %v2105 = vpop.f32.mrb[0].mxu0
    %2106 = vmatprep.mubr.bf16.mxu0 0
    %2107 = vmatmul.mubr.bf16.gmra.mrb[0].mxu0 %v1765
    %v2108 = vpop.f32.mrb[0].mxu0
    %v2109 = vadd.f32 0.0, %v2108
    %v2110 = vpop.f32.mrb[0].mxu0
    %v2111 = vpop.f32.mrb[0].mxu0
    %v2112 = vadd.f32 0.0, %v2111
    %v2113 = vpop.f32.mrb[0].mxu0
    %2114 = vmatprep.mubr.bf16.mxu0 0
    %2115 = vmatmul.mubr.bf16.gmra.mrb[0].mxu0 %v1766
    %v2116 = vpop.f32.mrb[0].mxu0
    %v2117 = vadd.f32 0.0, %v2116
    %v2118 = vpop.f32.mrb[0].mxu0
    %v2119 = vpop.f32.mrb[0].mxu0
    %v2120 = vadd.f32 0.0, %v2119
    %v2121 = vpop.f32.mrb[0].mxu0
    %2122 = vmatprep.mubr.bf16.mxu0 0
    %2123 = vmatmul.mubr.bf16.gmra.mrb[0].mxu0 %v1767
    %v2124 = vpop.f32.mrb[0].mxu0
    %v2125 = vadd.f32 0.0, %v2124
    %v2126 = vpop.f32.mrb[0].mxu0
    %v2127 = vpop.f32.mrb[0].mxu0
    %v2128 = vadd.f32 0.0, %v2127
    %v2129 = vpop.f32.mrb[0].mxu0
    %2130 = vdwg.mxu0
    %2131 = vmatprep.subr.bf16.mxu0 0
    %2132 = vmatpush1.bf16.xpose.msra.mxu0 %v1800
    %2133 = vmatprep.subr.bf16.mxu0 0
    %2134 = vmatpush1.bf16.xpose.msra.mxu0 %v1801
    %2135 = vmatprep.subr.bf16.mxu0 0
    %2136 = vmatpush1.bf16.xpose.msra.mxu0 %v1802
    %2137 = vmatprep.subr.bf16.mxu0 0
    %2138 = vmatpush1.bf16.xpose.msra.mxu0 %v1803
    %2139 = vmatprep.subr.bf16.mxu0 0
    %2140 = vmatpush1.bf16.xpose.msra.mxu0 %v1804
    %2141 = vmatprep.subr.bf16.mxu0 0
    %2142 = vmatpush1.bf16.xpose.msra.mxu0 %v1805
    %2143 = vmatprep.subr.bf16.mxu0 0
    %2144 = vmatpush1.bf16.xpose.msra.mxu0 %v1806
    %2145 = vmatprep.subr.bf16.mxu0 0
    %2146 = vmatpush1.bf16.xpose.msra.mxu0 %v1807
    %2147 = vmatprep.subr.bf16.mxu0 0
    %2148 = vmatpush1.bf16.xpose.msra.mxu0 0
    %2149 = vmatprep.subr.bf16.mxu0 0
    %2150 = vmatpush1.bf16.xpose.msra.mxu0 0
    %2151 = vmatprep.subr.bf16.mxu0 0
    %2152 = vmatpush1.bf16.xpose.msra.mxu0 0
    %2153 = vmatprep.subr.bf16.mxu0 0
    %2154 = vmatpush1.bf16.xpose.msra.mxu0 0
    %2155 = vmatprep.subr.bf16.mxu0 0
    %2156 = vmatpush1.bf16.xpose.msra.mxu0 0
    %2157 = vmatprep.subr.bf16.mxu0 0
    %2158 = vmatpush1.bf16.xpose.msra.mxu0 0
    %2159 = vmatprep.subr.bf16.mxu0 0
    %2160 = vmatpush1.bf16.xpose.msra.mxu0 0
    %2161 = vmatprep.subr.bf16.mxu0 0
    %2162 = vmatpush1.bf16.xpose.msra.mxu0 0
    %2163 = vmatprep.mubr.bf16.mxu0 0
    %2164 = vmatmul.mubr.bf16.gmra.mrb[0].mxu0 %v1768
    %v2165 = vpop.f32.mrb[0].mxu0
    %v2166 = vadd.f32 0.0, %v2165
    %v2167 = vpop.f32.mrb[0].mxu0
    %v2168 = vpop.f32.mrb[0].mxu0
    %v2169 = vadd.f32 0.0, %v2168
    %v2170 = vpop.f32.mrb[0].mxu0
    %2171 = vmatprep.mubr.bf16.mxu0 0
    %2172 = vmatmul.mubr.bf16.gmra.mrb[0].mxu0 %v1769
    %v2173 = vpop.f32.mrb[0].mxu0
    %v2174 = vadd.f32 0.0, %v2173
    %v2175 = vpop.f32.mrb[0].mxu0
    %v2176 = vpop.f32.mrb[0].mxu0
    %v2177 = vadd.f32 0.0, %v2176
    %v2178 = vpop.f32.mrb[0].mxu0
    %2179 = vmatprep.mubr.bf16.mxu0 0
    %2180 = vmatmul.mubr.bf16.gmra.mrb[0].mxu0 %v1770
    %v2181 = vpop.f32.mrb[0].mxu0
    %v2182 = vadd.f32 0.0, %v2181
    %v2183 = vpop.f32.mrb[0].mxu0
    %v2184 = vpop.f32.mrb[0].mxu0
    %v2185 = vadd.f32 0.0, %v2184
    %v2186 = vpop.f32.mrb[0].mxu0
    %2187 = vmatprep.mubr.bf16.mxu0 0
    %2188 = vmatmul.mubr.bf16.gmra.mrb[0].mxu0 %v1771
    %v2189 = vpop.f32.mrb[0].mxu0
    %v2190 = vadd.f32 0.0, %v2189
    %v2191 = vpop.f32.mrb[0].mxu0
    %v2192 = vpop.f32.mrb[0].mxu0
    %v2193 = vadd.f32 0.0, %v2192
    %v2194 = vpop.f32.mrb[0].mxu0
    %2195 = vmatprep.mubr.bf16.mxu0 0
    %2196 = vmatmul.mubr.bf16.gmra.mrb[0].mxu0 %v1772
    %v2197 = vpop.f32.mrb[0].mxu0
    %v2198 = vadd.f32 0.0, %v2197
    %v2199 = vpop.f32.mrb[0].mxu0
    %v2200 = vpop.f32.mrb[0].mxu0
    %v2201 = vadd.f32 0.0, %v2200
    %v2202 = vpop.f32.mrb[0].mxu0
    %2203 = vmatprep.mubr.bf16.mxu0 0
    %2204 = vmatmul.mubr.bf16.gmra.mrb[0].mxu0 %v1773
    %v2205 = vpop.f32.mrb[0].mxu0
    %v2206 = vadd.f32 0.0, %v2205
    %v2207 = vpop.f32.mrb[0].mxu0
    %v2208 = vpop.f32.mrb[0].mxu0
    %v2209 = vadd.f32 0.0, %v2208
    %v2210 = vpop.f32.mrb[0].mxu0
    %2211 = vmatprep.mubr.bf16.mxu0 0
    %2212 = vmatmul.mubr.bf16.gmra.mrb[0].mxu0 %v1774
    %v2213 = vpop.f32.mrb[0].mxu0
    %v2214 = vadd.f32 0.0, %v2213
    %v2215 = vpop.f32.mrb[0].mxu0
    %v2216 = vpop.f32.mrb[0].mxu0
    %v2217 = vadd.f32 0.0, %v2216
    %v2218 = vpop.f32.mrb[0].mxu0
    %2219 = vmatprep.mubr.bf16.mxu0 0
    %2220 = vmatmul.mubr.bf16.gmra.mrb[0].mxu0 %v1775
    %v2221 = vpop.f32.mrb[0].mxu0
    %v2222 = vadd.f32 0.0, %v2221
    %v2223 = vpop.f32.mrb[0].mxu0
    %v2224 = vpop.f32.mrb[0].mxu0
    %v2225 = vadd.f32 0.0, %v2224
    %v2226 = vpop.f32.mrb[0].mxu0
    %2227 = vdwg.mxu0
    %v2228 = vlaneseq
    %v2229 = vshrl.u32 %v2228, 7
    %v2230 = vadd.s32 %v2229, 8
    %v2231 = vadd.s32 %v2229, 16
    %v2232 = vadd.s32 %v2229, 24
    %v2233 = vadd.s32 %v2229, 32
    %v2234 = vadd.s32 %v2229, 40
    %v2235 = vadd.s32 %v2229, 48
    %v2236 = vadd.s32 %v2229, 56
    %v2237 = vadd.s32 %v2229, 64
    %v2238 = vadd.s32 %v2229, 72
    %v2239 = vadd.s32 %v2229, 80
    %v2240 = vadd.s32 %v2229, 88
    %v2241 = vadd.s32 %v2229, 96
    %v2242 = vadd.s32 %v2229, 104
    %v2243 = vadd.s32 %v2229, 112
    %v2244 = vadd.s32 %v2229, 120
    %v2245 = vlaneseq
    %v2246 = vand.u32 %v2245, 127
    %vm2247 = vcmp.ge.s32.totalorder %v2229, %v2246
    %vm2248 = vcmp.ge.s32.totalorder %v2230, %v2246
    %vm2249 = vcmp.ge.s32.totalorder %v2231, %v2246
    %vm2250 = vcmp.ge.s32.totalorder %v2232, %v2246
    %vm2251 = vcmp.ge.s32.totalorder %v2233, %v2246
    %vm2252 = vcmp.ge.s32.totalorder %v2234, %v2246
    %vm2253 = vcmp.ge.s32.totalorder %v2235, %v2246
    %vm2254 = vcmp.ge.s32.totalorder %v2236, %v2246
    %vm2255 = vcmp.ge.s32.totalorder %v2237, %v2246
    %vm2256 = vcmp.ge.s32.totalorder %v2238, %v2246
    %vm2257 = vcmp.ge.s32.totalorder %v2239, %v2246
    %vm2258 = vcmp.ge.s32.totalorder %v2240, %v2246
    %vm2259 = vcmp.ge.s32.totalorder %v2241, %v2246
    %vm2260 = vcmp.ge.s32.totalorder %v2242, %v2246
    %vm2261 = vcmp.ge.s32.totalorder %v2243, %v2246
    %vm2262 = vcmp.ge.s32.totalorder %v2244, %v2246
    %v2263 = vsel %vm2247, 1, 0
    %v2264 = vsel %vm2248, 1, 0
    %v2265 = vsel %vm2249, 1, 0
    %v2266 = vsel %vm2250, 1, 0
    %v2267 = vsel %vm2251, 1, 0
    %v2268 = vsel %vm2252, 1, 0
    %v2269 = vsel %vm2253, 1, 0
    %v2270 = vsel %vm2254, 1, 0
    %v2271 = vsel %vm2255, 1, 0
    %v2272 = vsel %vm2256, 1, 0
    %v2273 = vsel %vm2257, 1, 0
    %v2274 = vsel %vm2258, 1, 0
    %v2275 = vsel %vm2259, 1, 0
    %v2276 = vsel %vm2260, 1, 0
    %v2277 = vsel %vm2261, 1, 0
    %v2278 = vsel %vm2262, 1, 0
    %vm2279 = vcmp.eq.s32.totalorder %v2263, 1
    %vm2280 = vcmp.eq.s32.totalorder %v2264, 1
    %vm2281 = vcmp.eq.s32.totalorder %v2265, 1
    %vm2282 = vcmp.eq.s32.totalorder %v2266, 1
    %vm2283 = vcmp.eq.s32.totalorder %v2267, 1
    %vm2284 = vcmp.eq.s32.totalorder %v2268, 1
    %vm2285 = vcmp.eq.s32.totalorder %v2269, 1
    %vm2286 = vcmp.eq.s32.totalorder %v2270, 1
    %vm2287 = vcmp.eq.s32.totalorder %v2271, 1
    %vm2288 = vcmp.eq.s32.totalorder %v2272, 1
    %vm2289 = vcmp.eq.s32.totalorder %v2273, 1
    %vm2290 = vcmp.eq.s32.totalorder %v2274, 1
    %vm2291 = vcmp.eq.s32.totalorder %v2275, 1
    %vm2292 = vcmp.eq.s32.totalorder %v2276, 1
    %vm2293 = vcmp.eq.s32.totalorder %v2277, 1
    %vm2294 = vcmp.eq.s32.totalorder %v2278, 1
    %v2295 = vsel %vm2279, %v1875, -1e+30
    %v2296 = vsel %vm2280, %v1878, -1e+30
    %v2297 = vsel %vm2281, %v1883, -1e+30
    %v2298 = vsel %vm2282, %v1886, -1e+30
    %v2299 = vsel %vm2283, %v1891, -1e+30
    %v2300 = vsel %vm2284, %v1894, -1e+30
    %v2301 = vsel %vm2285, %v1899, -1e+30
    %v2302 = vsel %vm2286, %v1902, -1e+30
    %v2303 = vsel %vm2287, %v1907, -1e+30
    %v2304 = vsel %vm2288, %v1910, -1e+30
    %v2305 = vsel %vm2289, %v1915, -1e+30
    %v2306 = vsel %vm2290, %v1918, -1e+30
    %v2307 = vsel %vm2291, %v1923, -1e+30
    %v2308 = vsel %vm2292, %v1926, -1e+30
    %v2309 = vsel %vm2293, %v1931, -1e+30
    %v2310 = vsel %vm2294, %v1934, -1e+30
    %v2311 = vsel %vm2279, %v1972, -1e+30
    %v2312 = vsel %vm2280, %v1975, -1e+30
    %v2313 = vsel %vm2281, %v1980, -1e+30
    %v2314 = vsel %vm2282, %v1983, -1e+30
    %v2315 = vsel %vm2283, %v1988, -1e+30
    %v2316 = vsel %vm2284, %v1991, -1e+30
    %v2317 = vsel %vm2285, %v1996, -1e+30
    %v2318 = vsel %vm2286, %v1999, -1e+30
    %v2319 = vsel %vm2287, %v2004, -1e+30
    %v2320 = vsel %vm2288, %v2007, -1e+30
    %v2321 = vsel %vm2289, %v2012, -1e+30
    %v2322 = vsel %vm2290, %v2015, -1e+30
    %v2323 = vsel %vm2291, %v2020, -1e+30
    %v2324 = vsel %vm2292, %v2023, -1e+30
    %v2325 = vsel %vm2293, %v2028, -1e+30
    %v2326 = vsel %vm2294, %v2031, -1e+30
    %v2327 = vsel %vm2279, %v2069, -1e+30
    %v2328 = vsel %vm2280, %v2072, -1e+30
    %v2329 = vsel %vm2281, %v2077, -1e+30
    %v2330 = vsel %vm2282, %v2080, -1e+30
    %v2331 = vsel %vm2283, %v2085, -1e+30
    %v2332 = vsel %vm2284, %v2088, -1e+30
    %v2333 = vsel %vm2285, %v2093, -1e+30
    %v2334 = vsel %vm2286, %v2096, -1e+30
    %v2335 = vsel %vm2287, %v2101, -1e+30
    %v2336 = vsel %vm2288, %v2104, -1e+30
    %v2337 = vsel %vm2289, %v2109, -1e+30
    %v2338 = vsel %vm2290, %v2112, -1e+30
    %v2339 = vsel %vm2291, %v2117, -1e+30
    %v2340 = vsel %vm2292, %v2120, -1e+30
    %v2341 = vsel %vm2293, %v2125, -1e+30
    %v2342 = vsel %vm2294, %v2128, -1e+30
    %v2343 = vsel %vm2279, %v2166, -1e+30
    %v2344 = vsel %vm2280, %v2169, -1e+30
    %v2345 = vsel %vm2281, %v2174, -1e+30
    %v2346 = vsel %vm2282, %v2177, -1e+30
    %v2347 = vsel %vm2283, %v2182, -1e+30
    %v2348 = vsel %vm2284, %v2185, -1e+30
    %v2349 = vsel %vm2285, %v2190, -1e+30
    %v2350 = vsel %vm2286, %v2193, -1e+30
    %v2351 = vsel %vm2287, %v2198, -1e+30
    %v2352 = vsel %vm2288, %v2201, -1e+30
    %v2353 = vsel %vm2289, %v2206, -1e+30
    %v2354 = vsel %vm2290, %v2209, -1e+30
    %v2355 = vsel %vm2291, %v2214, -1e+30
    %v2356 = vsel %vm2292, %v2217, -1e+30
    %v2357 = vsel %vm2293, %v2222, -1e+30
    %v2358 = vsel %vm2294, %v2225, -1e+30
    %2359 = vmax.xlane.f32.xlu0 %v2295
    %v2360 = vpop.xlane.xlu0 %2359
    %2361 = vmax.xlane.f32.xlu0 %v2296
    %v2362 = vpop.xlane.xlu0 %2361
    %2363 = vmax.xlane.f32.xlu0 %v2297
    %v2364 = vpop.xlane.xlu0 %2363
    %2365 = vmax.xlane.f32.xlu0 %v2298
    %v2366 = vpop.xlane.xlu0 %2365
    %2367 = vmax.xlane.f32.xlu0 %v2299
    %v2368 = vpop.xlane.xlu0 %2367
    %2369 = vmax.xlane.f32.xlu0 %v2300
    %v2370 = vpop.xlane.xlu0 %2369
    %2371 = vmax.xlane.f32.xlu0 %v2301
    %v2372 = vpop.xlane.xlu0 %2371
    %2373 = vmax.xlane.f32.xlu0 %v2302
    %v2374 = vpop.xlane.xlu0 %2373
    %2375 = vmax.xlane.f32.xlu0 %v2303
    %v2376 = vpop.xlane.xlu0 %2375
    %2377 = vmax.xlane.f32.xlu0 %v2304
    %v2378 = vpop.xlane.xlu0 %2377
    %2379 = vmax.xlane.f32.xlu0 %v2305
    %v2380 = vpop.xlane.xlu0 %2379
    %2381 = vmax.xlane.f32.xlu0 %v2306
    %v2382 = vpop.xlane.xlu0 %2381
    %2383 = vmax.xlane.f32.xlu0 %v2307
    %v2384 = vpop.xlane.xlu0 %2383
    %2385 = vmax.xlane.f32.xlu0 %v2308
    %v2386 = vpop.xlane.xlu0 %2385
    %2387 = vmax.xlane.f32.xlu0 %v2309
    %v2388 = vpop.xlane.xlu0 %2387
    %2389 = vmax.xlane.f32.xlu0 %v2310
    %v2390 = vpop.xlane.xlu0 %2389
    %2391 = vmax.xlane.f32.xlu0 %v2311
    %v2392 = vpop.xlane.xlu0 %2391
    %2393 = vmax.xlane.f32.xlu0 %v2312
    %v2394 = vpop.xlane.xlu0 %2393
    %2395 = vmax.xlane.f32.xlu0 %v2313
    %v2396 = vpop.xlane.xlu0 %2395
    %2397 = vmax.xlane.f32.xlu0 %v2314
    %v2398 = vpop.xlane.xlu0 %2397
    %2399 = vmax.xlane.f32.xlu0 %v2315
    %v2400 = vpop.xlane.xlu0 %2399
    %2401 = vmax.xlane.f32.xlu0 %v2316
    %v2402 = vpop.xlane.xlu0 %2401
    %2403 = vmax.xlane.f32.xlu0 %v2317
    %v2404 = vpop.xlane.xlu0 %2403
    %2405 = vmax.xlane.f32.xlu0 %v2318
    %v2406 = vpop.xlane.xlu0 %2405
    %2407 = vmax.xlane.f32.xlu0 %v2319
    %v2408 = vpop.xlane.xlu0 %2407
    %2409 = vmax.xlane.f32.xlu0 %v2320
    %v2410 = vpop.xlane.xlu0 %2409
    %2411 = vmax.xlane.f32.xlu0 %v2321
    %v2412 = vpop.xlane.xlu0 %2411
    %2413 = vmax.xlane.f32.xlu0 %v2322
    %v2414 = vpop.xlane.xlu0 %2413
    %2415 = vmax.xlane.f32.xlu0 %v2323
    %v2416 = vpop.xlane.xlu0 %2415
    %2417 = vmax.xlane.f32.xlu0 %v2324
    %v2418 = vpop.xlane.xlu0 %2417
    %2419 = vmax.xlane.f32.xlu0 %v2325
    %v2420 = vpop.xlane.xlu0 %2419
    %2421 = vmax.xlane.f32.xlu0 %v2326
    %v2422 = vpop.xlane.xlu0 %2421
    %2423 = vmax.xlane.f32.xlu0 %v2327
    %v2424 = vpop.xlane.xlu0 %2423
    %2425 = vmax.xlane.f32.xlu0 %v2328
    %v2426 = vpop.xlane.xlu0 %2425
    %2427 = vmax.xlane.f32.xlu0 %v2329
    %v2428 = vpop.xlane.xlu0 %2427
    %2429 = vmax.xlane.f32.xlu0 %v2330
    %v2430 = vpop.xlane.xlu0 %2429
    %2431 = vmax.xlane.f32.xlu0 %v2331
    %v2432 = vpop.xlane.xlu0 %2431
    %2433 = vmax.xlane.f32.xlu0 %v2332
    %v2434 = vpop.xlane.xlu0 %2433
    %2435 = vmax.xlane.f32.xlu0 %v2333
    %v2436 = vpop.xlane.xlu0 %2435
    %2437 = vmax.xlane.f32.xlu0 %v2334
    %v2438 = vpop.xlane.xlu0 %2437
    %2439 = vmax.xlane.f32.xlu0 %v2335
    %v2440 = vpop.xlane.xlu0 %2439
    %2441 = vmax.xlane.f32.xlu0 %v2336
    %v2442 = vpop.xlane.xlu0 %2441
    %2443 = vmax.xlane.f32.xlu0 %v2337
    %v2444 = vpop.xlane.xlu0 %2443
    %2445 = vmax.xlane.f32.xlu0 %v2338
    %v2446 = vpop.xlane.xlu0 %2445
    %2447 = vmax.xlane.f32.xlu0 %v2339
    %v2448 = vpop.xlane.xlu0 %2447
    %2449 = vmax.xlane.f32.xlu0 %v2340
    %v2450 = vpop.xlane.xlu0 %2449
    %2451 = vmax.xlane.f32.xlu0 %v2341
    %v2452 = vpop.xlane.xlu0 %2451
    %2453 = vmax.xlane.f32.xlu0 %v2342
    %v2454 = vpop.xlane.xlu0 %2453
    %2455 = vmax.xlane.f32.xlu0 %v2343
    %v2456 = vpop.xlane.xlu0 %2455
    %2457 = vmax.xlane.f32.xlu0 %v2344
    %v2458 = vpop.xlane.xlu0 %2457
    %2459 = vmax.xlane.f32.xlu0 %v2345
    %v2460 = vpop.xlane.xlu0 %2459
    %2461 = vmax.xlane.f32.xlu0 %v2346
    %v2462 = vpop.xlane.xlu0 %2461
    %2463 = vmax.xlane.f32.xlu0 %v2347
    %v2464 = vpop.xlane.xlu0 %2463
    %2465 = vmax.xlane.f32.xlu0 %v2348
    %v2466 = vpop.xlane.xlu0 %2465
    %2467 = vmax.xlane.f32.xlu0 %v2349
    %v2468 = vpop.xlane.xlu0 %2467
    %2469 = vmax.xlane.f32.xlu0 %v2350
    %v2470 = vpop.xlane.xlu0 %2469
    %2471 = vmax.xlane.f32.xlu0 %v2351
    %v2472 = vpop.xlane.xlu0 %2471
    %2473 = vmax.xlane.f32.xlu0 %v2352
    %v2474 = vpop.xlane.xlu0 %2473
    %2475 = vmax.xlane.f32.xlu0 %v2353
    %v2476 = vpop.xlane.xlu0 %2475
    %2477 = vmax.xlane.f32.xlu0 %v2354
    %v2478 = vpop.xlane.xlu0 %2477
    %2479 = vmax.xlane.f32.xlu0 %v2355
    %v2480 = vpop.xlane.xlu0 %2479
    %2481 = vmax.xlane.f32.xlu0 %v2356
    %v2482 = vpop.xlane.xlu0 %2481
    %2483 = vmax.xlane.f32.xlu0 %v2357
    %v2484 = vpop.xlane.xlu0 %2483
    %2485 = vmax.xlane.f32.xlu0 %v2358
    %v2486 = vpop.xlane.xlu0 %2485
    %v2487 = vsub.f32 %v2295, %v2360
    %v2488 = vsub.f32 %v2296, %v2362
    %v2489 = vsub.f32 %v2297, %v2364
    %v2490 = vsub.f32 %v2298, %v2366
    %v2491 = vsub.f32 %v2299, %v2368
    %v2492 = vsub.f32 %v2300, %v2370
    %v2493 = vsub.f32 %v2301, %v2372
    %v2494 = vsub.f32 %v2302, %v2374
    %v2495 = vsub.f32 %v2303, %v2376
    %v2496 = vsub.f32 %v2304, %v2378
    %v2497 = vsub.f32 %v2305, %v2380
    %v2498 = vsub.f32 %v2306, %v2382
    %v2499 = vsub.f32 %v2307, %v2384
    %v2500 = vsub.f32 %v2308, %v2386
    %v2501 = vsub.f32 %v2309, %v2388
    %v2502 = vsub.f32 %v2310, %v2390
    %v2503 = vsub.f32 %v2311, %v2392
    %v2504 = vsub.f32 %v2312, %v2394
    %v2505 = vsub.f32 %v2313, %v2396
    %v2506 = vsub.f32 %v2314, %v2398
    %v2507 = vsub.f32 %v2315, %v2400
    %v2508 = vsub.f32 %v2316, %v2402
    %v2509 = vsub.f32 %v2317, %v2404
    %v2510 = vsub.f32 %v2318, %v2406
    %v2511 = vsub.f32 %v2319, %v2408
    %v2512 = vsub.f32 %v2320, %v2410
    %v2513 = vsub.f32 %v2321, %v2412
    %v2514 = vsub.f32 %v2322, %v2414
    %v2515 = vsub.f32 %v2323, %v2416
    %v2516 = vsub.f32 %v2324, %v2418
    %v2517 = vsub.f32 %v2325, %v2420
    %v2518 = vsub.f32 %v2326, %v2422
    %v2519 = vsub.f32 %v2327, %v2424
    %v2520 = vsub.f32 %v2328, %v2426
    %v2521 = vsub.f32 %v2329, %v2428
    %v2522 = vsub.f32 %v2330, %v2430
    %v2523 = vsub.f32 %v2331, %v2432
    %v2524 = vsub.f32 %v2332, %v2434
    %v2525 = vsub.f32 %v2333, %v2436
    %v2526 = vsub.f32 %v2334, %v2438
    %v2527 = vsub.f32 %v2335, %v2440
    %v2528 = vsub.f32 %v2336, %v2442
    %v2529 = vsub.f32 %v2337, %v2444
    %v2530 = vsub.f32 %v2338, %v2446
    %v2531 = vsub.f32 %v2339, %v2448
    %v2532 = vsub.f32 %v2340, %v2450
    %v2533 = vsub.f32 %v2341, %v2452
    %v2534 = vsub.f32 %v2342, %v2454
    %v2535 = vsub.f32 %v2343, %v2456
    %v2536 = vsub.f32 %v2344, %v2458
    %v2537 = vsub.f32 %v2345, %v2460
    %v2538 = vsub.f32 %v2346, %v2462
    %v2539 = vsub.f32 %v2347, %v2464
    %v2540 = vsub.f32 %v2348, %v2466
    %v2541 = vsub.f32 %v2349, %v2468
    %v2542 = vsub.f32 %v2350, %v2470
    %v2543 = vsub.f32 %v2351, %v2472
    %v2544 = vsub.f32 %v2352, %v2474
    %v2545 = vsub.f32 %v2353, %v2476
    %v2546 = vsub.f32 %v2354, %v2478
    %v2547 = vsub.f32 %v2355, %v2480
    %v2548 = vsub.f32 %v2356, %v2482
    %v2549 = vsub.f32 %v2357, %v2484
    %v2550 = vsub.f32 %v2358, %v2486
    %v2551 = vmul.f32 %v2487, 1.442695
    %v2552 = vpow.pop %v2551
    %v2553 = vmul.f32 %v2488, 1.442695
    %v2554 = vpow.pop %v2553
    %v2555 = vmul.f32 %v2489, 1.442695
    %v2556 = vpow.pop %v2555
    %v2557 = vmul.f32 %v2490, 1.442695
    %v2558 = vpow.pop %v2557
    %v2559 = vmul.f32 %v2491, 1.442695
    %v2560 = vpow.pop %v2559
    %v2561 = vmul.f32 %v2492, 1.442695
    %v2562 = vpow.pop %v2561
    %v2563 = vmul.f32 %v2493, 1.442695
    %v2564 = vpow.pop %v2563
    %v2565 = vmul.f32 %v2494, 1.442695
    %v2566 = vpow.pop %v2565
    %v2567 = vmul.f32 %v2495, 1.442695
    %v2568 = vpow.pop %v2567
    %v2569 = vmul.f32 %v2496, 1.442695
    %v2570 = vpow.pop %v2569
    %v2571 = vmul.f32 %v2497, 1.442695
    %v2572 = vpow.pop %v2571
    %v2573 = vmul.f32 %v2498, 1.442695
    %v2574 = vpow.pop %v2573
    %v2575 = vmul.f32 %v2499, 1.442695
    %v2576 = vpow.pop %v2575
    %v2577 = vmul.f32 %v2500, 1.442695
    %v2578 = vpow.pop %v2577
    %v2579 = vmul.f32 %v2501, 1.442695
    %v2580 = vpow.pop %v2579
    %v2581 = vmul.f32 %v2502, 1.442695
    %v2582 = vpow.pop %v2581
    %v2583 = vmul.f32 %v2503, 1.442695
    %v2584 = vpow.pop %v2583
    %v2585 = vmul.f32 %v2504, 1.442695
    %v2586 = vpow.pop %v2585
    %v2587 = vmul.f32 %v2505, 1.442695
    %v2588 = vpow.pop %v2587
    %v2589 = vmul.f32 %v2506, 1.442695
    %v2590 = vpow.pop %v2589
    %v2591 = vmul.f32 %v2507, 1.442695
    %v2592 = vpow.pop %v2591
    %v2593 = vmul.f32 %v2508, 1.442695
    %v2594 = vpow.pop %v2593
    %v2595 = vmul.f32 %v2509, 1.442695
    %v2596 = vpow.pop %v2595
    %v2597 = vmul.f32 %v2510, 1.442695
    %v2598 = vpow.pop %v2597
    %v2599 = vmul.f32 %v2511, 1.442695
    %v2600 = vpow.pop %v2599
    %v2601 = vmul.f32 %v2512, 1.442695
    %v2602 = vpow.pop %v2601
    %v2603 = vmul.f32 %v2513, 1.442695
    %v2604 = vpow.pop %v2603
    %v2605 = vmul.f32 %v2514, 1.442695
    %v2606 = vpow.pop %v2605
    %v2607 = vmul.f32 %v2515, 1.442695
    %v2608 = vpow.pop %v2607
    %v2609 = vmul.f32 %v2516, 1.442695
    %v2610 = vpow.pop %v2609
    %v2611 = vmul.f32 %v2517, 1.442695
    %v2612 = vpow.pop %v2611
    %v2613 = vmul.f32 %v2518, 1.442695
    %v2614 = vpow.pop %v2613
    %v2615 = vmul.f32 %v2519, 1.442695
    %v2616 = vpow.pop %v2615
    %v2617 = vmul.f32 %v2520, 1.442695
    %v2618 = vpow.pop %v2617
    %v2619 = vmul.f32 %v2521, 1.442695
    %v2620 = vpow.pop %v2619
    %v2621 = vmul.f32 %v2522, 1.442695
    %v2622 = vpow.pop %v2621
    %v2623 = vmul.f32 %v2523, 1.442695
    %v2624 = vpow.pop %v2623
    %v2625 = vmul.f32 %v2524, 1.442695
    %v2626 = vpow.pop %v2625
    %v2627 = vmul.f32 %v2525, 1.442695
    %v2628 = vpow.pop %v2627
    %v2629 = vmul.f32 %v2526, 1.442695
    %v2630 = vpow.pop %v2629
    %v2631 = vmul.f32 %v2527, 1.442695
    %v2632 = vpow.pop %v2631
    %v2633 = vmul.f32 %v2528, 1.442695
    %v2634 = vpow.pop %v2633
    %v2635 = vmul.f32 %v2529, 1.442695
    %v2636 = vpow.pop %v2635
    %v2637 = vmul.f32 %v2530, 1.442695
    %v2638 = vpow.pop %v2637
    %v2639 = vmul.f32 %v2531, 1.442695
    %v2640 = vpow.pop %v2639
    %v2641 = vmul.f32 %v2532, 1.442695
    %v2642 = vpow.pop %v2641
    %v2643 = vmul.f32 %v2533, 1.442695
    %v2644 = vpow.pop %v2643
    %v2645 = vmul.f32 %v2534, 1.442695
    %v2646 = vpow.pop %v2645
    %v2647 = vmul.f32 %v2535, 1.442695
    %v2648 = vpow.pop %v2647
    %v2649 = vmul.f32 %v2536, 1.442695
    %v2650 = vpow.pop %v2649
    %v2651 = vmul.f32 %v2537, 1.442695
    %v2652 = vpow.pop %v2651
    %v2653 = vmul.f32 %v2538, 1.442695
    %v2654 = vpow.pop %v2653
    %v2655 = vmul.f32 %v2539, 1.442695
    %v2656 = vpow.pop %v2655
    %v2657 = vmul.f32 %v2540, 1.442695
    %v2658 = vpow.pop %v2657
    %v2659 = vmul.f32 %v2541, 1.442695
    %v2660 = vpow.pop %v2659
    %v2661 = vmul.f32 %v2542, 1.442695
    %v2662 = vpow.pop %v2661
    %v2663 = vmul.f32 %v2543, 1.442695
    %v2664 = vpow.pop %v2663
    %v2665 = vmul.f32 %v2544, 1.442695
    %v2666 = vpow.pop %v2665
    %v2667 = vmul.f32 %v2545, 1.442695
    %v2668 = vpow.pop %v2667
    %v2669 = vmul.f32 %v2546, 1.442695
    %v2670 = vpow.pop %v2669
    %v2671 = vmul.f32 %v2547, 1.442695
    %v2672 = vpow.pop %v2671
    %v2673 = vmul.f32 %v2548, 1.442695
    %v2674 = vpow.pop %v2673
    %v2675 = vmul.f32 %v2549, 1.442695
    %v2676 = vpow.pop %v2675
    %v2677 = vmul.f32 %v2550, 1.442695
    %v2678 = vpow.pop %v2677
    %2679 = vadd.xlane.f32.xlu0 %v2552
    %v2680 = vpop.xlane.xlu0 %2679
    %2681 = vadd.xlane.f32.xlu0 %v2554
    %v2682 = vpop.xlane.xlu0 %2681
    %2683 = vadd.xlane.f32.xlu0 %v2556
    %v2684 = vpop.xlane.xlu0 %2683
    %2685 = vadd.xlane.f32.xlu0 %v2558
    %v2686 = vpop.xlane.xlu0 %2685
    %2687 = vadd.xlane.f32.xlu0 %v2560
    %v2688 = vpop.xlane.xlu0 %2687
    %2689 = vadd.xlane.f32.xlu0 %v2562
    %v2690 = vpop.xlane.xlu0 %2689
    %2691 = vadd.xlane.f32.xlu0 %v2564
    %v2692 = vpop.xlane.xlu0 %2691
    %2693 = vadd.xlane.f32.xlu0 %v2566
    %v2694 = vpop.xlane.xlu0 %2693
    %2695 = vadd.xlane.f32.xlu0 %v2568
    %v2696 = vpop.xlane.xlu0 %2695
    %2697 = vadd.xlane.f32.xlu0 %v2570
    %v2698 = vpop.xlane.xlu0 %2697
    %2699 = vadd.xlane.f32.xlu0 %v2572
    %v2700 = vpop.xlane.xlu0 %2699
    %2701 = vadd.xlane.f32.xlu0 %v2574
    %v2702 = vpop.xlane.xlu0 %2701
    %2703 = vadd.xlane.f32.xlu0 %v2576
    %v2704 = vpop.xlane.xlu0 %2703
    %2705 = vadd.xlane.f32.xlu0 %v2578
    %v2706 = vpop.xlane.xlu0 %2705
    %2707 = vadd.xlane.f32.xlu0 %v2580
    %v2708 = vpop.xlane.xlu0 %2707
    %2709 = vadd.xlane.f32.xlu0 %v2582
    %v2710 = vpop.xlane.xlu0 %2709
    %2711 = vadd.xlane.f32.xlu0 %v2584
    %v2712 = vpop.xlane.xlu0 %2711
    %2713 = vadd.xlane.f32.xlu0 %v2586
    %v2714 = vpop.xlane.xlu0 %2713
    %2715 = vadd.xlane.f32.xlu0 %v2588
    %v2716 = vpop.xlane.xlu0 %2715
    %2717 = vadd.xlane.f32.xlu0 %v2590
    %v2718 = vpop.xlane.xlu0 %2717
    %2719 = vadd.xlane.f32.xlu0 %v2592
    %v2720 = vpop.xlane.xlu0 %2719
    %2721 = vadd.xlane.f32.xlu0 %v2594
    %v2722 = vpop.xlane.xlu0 %2721
    %2723 = vadd.xlane.f32.xlu0 %v2596
    %v2724 = vpop.xlane.xlu0 %2723
    %2725 = vadd.xlane.f32.xlu0 %v2598
    %v2726 = vpop.xlane.xlu0 %2725
    %2727 = vadd.xlane.f32.xlu0 %v2600
    %v2728 = vpop.xlane.xlu0 %2727
    %2729 = vadd.xlane.f32.xlu0 %v2602
    %v2730 = vpop.xlane.xlu0 %2729
    %2731 = vadd.xlane.f32.xlu0 %v2604
    %v2732 = vpop.xlane.xlu0 %2731
    %2733 = vadd.xlane.f32.xlu0 %v2606
    %v2734 = vpop.xlane.xlu0 %2733
    %2735 = vadd.xlane.f32.xlu0 %v2608
    %v2736 = vpop.xlane.xlu0 %2735
    %2737 = vadd.xlane.f32.xlu0 %v2610
    %v2738 = vpop.xlane.xlu0 %2737
    %2739 = vadd.xlane.f32.xlu0 %v2612
    %v2740 = vpop.xlane.xlu0 %2739
    %2741 = vadd.xlane.f32.xlu0 %v2614
    %v2742 = vpop.xlane.xlu0 %2741
    %2743 = vadd.xlane.f32.xlu0 %v2616
    %v2744 = vpop.xlane.xlu0 %2743
    %2745 = vadd.xlane.f32.xlu0 %v2618
    %v2746 = vpop.xlane.xlu0 %2745
    %2747 = vadd.xlane.f32.xlu0 %v2620
    %v2748 = vpop.xlane.xlu0 %2747
    %2749 = vadd.xlane.f32.xlu0 %v2622
    %v2750 = vpop.xlane.xlu0 %2749
    %2751 = vadd.xlane.f32.xlu0 %v2624
    %v2752 = vpop.xlane.xlu0 %2751
    %2753 = vadd.xlane.f32.xlu0 %v2626
    %v2754 = vpop.xlane.xlu0 %2753
    %2755 = vadd.xlane.f32.xlu0 %v2628
    %v2756 = vpop.xlane.xlu0 %2755
    %2757 = vadd.xlane.f32.xlu0 %v2630
    %v2758 = vpop.xlane.xlu0 %2757
    %2759 = vadd.xlane.f32.xlu0 %v2632
    %v2760 = vpop.xlane.xlu0 %2759
    %2761 = vadd.xlane.f32.xlu0 %v2634
    %v2762 = vpop.xlane.xlu0 %2761
    %2763 = vadd.xlane.f32.xlu0 %v2636
    %v2764 = vpop.xlane.xlu0 %2763
    %2765 = vadd.xlane.f32.xlu0 %v2638
    %v2766 = vpop.xlane.xlu0 %2765
    %2767 = vadd.xlane.f32.xlu0 %v2640
    %v2768 = vpop.xlane.xlu0 %2767
    %2769 = vadd.xlane.f32.xlu0 %v2642
    %v2770 = vpop.xlane.xlu0 %2769
    %2771 = vadd.xlane.f32.xlu0 %v2644
    %v2772 = vpop.xlane.xlu0 %2771
    %2773 = vadd.xlane.f32.xlu0 %v2646
    %v2774 = vpop.xlane.xlu0 %2773
    %2775 = vadd.xlane.f32.xlu0 %v2648
    %v2776 = vpop.xlane.xlu0 %2775
    %2777 = vadd.xlane.f32.xlu0 %v2650
    %v2778 = vpop.xlane.xlu0 %2777
    %2779 = vadd.xlane.f32.xlu0 %v2652
    %v2780 = vpop.xlane.xlu0 %2779
    %2781 = vadd.xlane.f32.xlu0 %v2654
    %v2782 = vpop.xlane.xlu0 %2781
    %2783 = vadd.xlane.f32.xlu0 %v2656
    %v2784 = vpop.xlane.xlu0 %2783
    %2785 = vadd.xlane.f32.xlu0 %v2658
    %v2786 = vpop.xlane.xlu0 %2785
    %2787 = vadd.xlane.f32.xlu0 %v2660
    %v2788 = vpop.xlane.xlu0 %2787
    %2789 = vadd.xlane.f32.xlu0 %v2662
    %v2790 = vpop.xlane.xlu0 %2789
    %2791 = vadd.xlane.f32.xlu0 %v2664
    %v2792 = vpop.xlane.xlu0 %2791
    %2793 = vadd.xlane.f32.xlu0 %v2666
    %v2794 = vpop.xlane.xlu0 %2793
    %2795 = vadd.xlane.f32.xlu0 %v2668
    %v2796 = vpop.xlane.xlu0 %2795
    %2797 = vadd.xlane.f32.xlu0 %v2670
    %v2798 = vpop.xlane.xlu0 %2797
    %2799 = vadd.xlane.f32.xlu0 %v2672
    %v2800 = vpop.xlane.xlu0 %2799
    %2801 = vadd.xlane.f32.xlu0 %v2674
    %v2802 = vpop.xlane.xlu0 %2801
    %2803 = vadd.xlane.f32.xlu0 %v2676
    %v2804 = vpop.xlane.xlu0 %2803
    %2805 = vadd.xlane.f32.xlu0 %v2678
    %v2806 = vpop.xlane.xlu0 %2805
    %v2807 = vrcp.pop %v2680
    %v2808 = vrcp.pop %v2682
    %v2809 = vrcp.pop %v2684
    %v2810 = vrcp.pop %v2686
    %v2811 = vrcp.pop %v2688
    %v2812 = vrcp.pop %v2690
    %v2813 = vrcp.pop %v2692
    %v2814 = vrcp.pop %v2694
    %v2815 = vrcp.pop %v2696
    %v2816 = vrcp.pop %v2698
    %v2817 = vrcp.pop %v2700
    %v2818 = vrcp.pop %v2702
    %v2819 = vrcp.pop %v2704
    %v2820 = vrcp.pop %v2706
    %v2821 = vrcp.pop %v2708
    %v2822 = vrcp.pop %v2710
    %v2823 = vrcp.pop %v2712
    %v2824 = vrcp.pop %v2714
    %v2825 = vrcp.pop %v2716
    %v2826 = vrcp.pop %v2718
    %v2827 = vrcp.pop %v2720
    %v2828 = vrcp.pop %v2722
    %v2829 = vrcp.pop %v2724
    %v2830 = vrcp.pop %v2726
    %v2831 = vrcp.pop %v2728
    %v2832 = vrcp.pop %v2730
    %v2833 = vrcp.pop %v2732
    %v2834 = vrcp.pop %v2734
    %v2835 = vrcp.pop %v2736
    %v2836 = vrcp.pop %v2738
    %v2837 = vrcp.pop %v2740
    %v2838 = vrcp.pop %v2742
    %v2839 = vrcp.pop %v2744
    %v2840 = vrcp.pop %v2746
    %v2841 = vrcp.pop %v2748
    %v2842 = vrcp.pop %v2750
    %v2843 = vrcp.pop %v2752
    %v2844 = vrcp.pop %v2754
    %v2845 = vrcp.pop %v2756
    %v2846 = vrcp.pop %v2758
    %v2847 = vrcp.pop %v2760
    %v2848 = vrcp.pop %v2762
    %v2849 = vrcp.pop %v2764
    %v2850 = vrcp.pop %v2766
    %v2851 = vrcp.pop %v2768
    %v2852 = vrcp.pop %v2770
    %v2853 = vrcp.pop %v2772
    %v2854 = vrcp.pop %v2774
    %v2855 = vrcp.pop %v2776
    %v2856 = vrcp.pop %v2778
    %v2857 = vrcp.pop %v2780
    %v2858 = vrcp.pop %v2782
    %v2859 = vrcp.pop %v2784
    %v2860 = vrcp.pop %v2786
    %v2861 = vrcp.pop %v2788
    %v2862 = vrcp.pop %v2790
    %v2863 = vrcp.pop %v2792
    %v2864 = vrcp.pop %v2794
    %v2865 = vrcp.pop %v2796
    %v2866 = vrcp.pop %v2798
    %v2867 = vrcp.pop %v2800
    %v2868 = vrcp.pop %v2802
    %v2869 = vrcp.pop %v2804
    %v2870 = vrcp.pop %v2806
    %v2871 = vmul.f32 %v2552, %v2807
    %v2872 = vmul.f32 %v2554, %v2808
    %v2873 = vmul.f32 %v2556, %v2809
    %v2874 = vmul.f32 %v2558, %v2810
    %v2875 = vmul.f32 %v2560, %v2811
    %v2876 = vmul.f32 %v2562, %v2812
    %v2877 = vmul.f32 %v2564, %v2813
    %v2878 = vmul.f32 %v2566, %v2814
    %v2879 = vmul.f32 %v2568, %v2815
    %v2880 = vmul.f32 %v2570, %v2816
    %v2881 = vmul.f32 %v2572, %v2817
    %v2882 = vmul.f32 %v2574, %v2818
    %v2883 = vmul.f32 %v2576, %v2819
    %v2884 = vmul.f32 %v2578, %v2820
    %v2885 = vmul.f32 %v2580, %v2821
    %v2886 = vmul.f32 %v2582, %v2822
    %v2887 = vmul.f32 %v2584, %v2823
    %v2888 = vmul.f32 %v2586, %v2824
    %v2889 = vmul.f32 %v2588, %v2825
    %v2890 = vmul.f32 %v2590, %v2826
    %v2891 = vmul.f32 %v2592, %v2827
    %v2892 = vmul.f32 %v2594, %v2828
    %v2893 = vmul.f32 %v2596, %v2829
    %v2894 = vmul.f32 %v2598, %v2830
    %v2895 = vmul.f32 %v2600, %v2831
    %v2896 = vmul.f32 %v2602, %v2832
    %v2897 = vmul.f32 %v2604, %v2833
    %v2898 = vmul.f32 %v2606, %v2834
    %v2899 = vmul.f32 %v2608, %v2835
    %v2900 = vmul.f32 %v2610, %v2836
    %v2901 = vmul.f32 %v2612, %v2837
    %v2902 = vmul.f32 %v2614, %v2838
    %v2903 = vmul.f32 %v2616, %v2839
    %v2904 = vmul.f32 %v2618, %v2840
    %v2905 = vmul.f32 %v2620, %v2841
    %v2906 = vmul.f32 %v2622, %v2842
    %v2907 = vmul.f32 %v2624, %v2843
    %v2908 = vmul.f32 %v2626, %v2844
    %v2909 = vmul.f32 %v2628, %v2845
    %v2910 = vmul.f32 %v2630, %v2846
    %v2911 = vmul.f32 %v2632, %v2847
    %v2912 = vmul.f32 %v2634, %v2848
    %v2913 = vmul.f32 %v2636, %v2849
    %v2914 = vmul.f32 %v2638, %v2850
    %v2915 = vmul.f32 %v2640, %v2851
    %v2916 = vmul.f32 %v2642, %v2852
    %v2917 = vmul.f32 %v2644, %v2853
    %v2918 = vmul.f32 %v2646, %v2854
    %v2919 = vmul.f32 %v2648, %v2855
    %v2920 = vmul.f32 %v2650, %v2856
    %v2921 = vmul.f32 %v2652, %v2857
    %v2922 = vmul.f32 %v2654, %v2858
    %v2923 = vmul.f32 %v2656, %v2859
    %v2924 = vmul.f32 %v2658, %v2860
    %v2925 = vmul.f32 %v2660, %v2861
    %v2926 = vmul.f32 %v2662, %v2862
    %v2927 = vmul.f32 %v2664, %v2863
    %v2928 = vmul.f32 %v2666, %v2864
    %v2929 = vmul.f32 %v2668, %v2865
    %v2930 = vmul.f32 %v2670, %v2866
    %v2931 = vmul.f32 %v2672, %v2867
    %v2932 = vmul.f32 %v2674, %v2868
    %v2933 = vmul.f32 %v2676, %v2869
    %v2934 = vmul.f32 %v2678, %v2870
    %v2935 = vpack.c.bf16 %v2872, %v2871
    %v2936 = vpack.c.bf16 %v2874, %v2873
    %v2937 = vpack.c.bf16 %v2876, %v2875
    %v2938 = vpack.c.bf16 %v2878, %v2877
    %v2939 = vpack.c.bf16 %v2880, %v2879
    %v2940 = vpack.c.bf16 %v2882, %v2881
    %v2941 = vpack.c.bf16 %v2884, %v2883
    %v2942 = vpack.c.bf16 %v2886, %v2885
    %v2943 = vpack.c.bf16 %v2888, %v2887
    %v2944 = vpack.c.bf16 %v2890, %v2889
    %v2945 = vpack.c.bf16 %v2892, %v2891
    %v2946 = vpack.c.bf16 %v2894, %v2893
    %v2947 = vpack.c.bf16 %v2896, %v2895
    %v2948 = vpack.c.bf16 %v2898, %v2897
    %v2949 = vpack.c.bf16 %v2900, %v2899
    %v2950 = vpack.c.bf16 %v2902, %v2901
    %v2951 = vpack.c.bf16 %v2904, %v2903
    %v2952 = vpack.c.bf16 %v2906, %v2905
    %v2953 = vpack.c.bf16 %v2908, %v2907
    %v2954 = vpack.c.bf16 %v2910, %v2909
    %v2955 = vpack.c.bf16 %v2912, %v2911
    %v2956 = vpack.c.bf16 %v2914, %v2913
    %v2957 = vpack.c.bf16 %v2916, %v2915
    %v2958 = vpack.c.bf16 %v2918, %v2917
    %v2959 = vpack.c.bf16 %v2920, %v2919
    %v2960 = vpack.c.bf16 %v2922, %v2921
    %v2961 = vpack.c.bf16 %v2924, %v2923
    %v2962 = vpack.c.bf16 %v2926, %v2925
    %v2963 = vpack.c.bf16 %v2928, %v2927
    %v2964 = vpack.c.bf16 %v2930, %v2929
    %v2965 = vpack.c.bf16 %v2932, %v2931
    %v2966 = vpack.c.bf16 %v2934, %v2933
    %2967 = vmatprep.subr.bf16.mxu0 0
    %2968 = vmatpush1.bf16.msra.mxu0 %v1808
    %2969 = vmatprep.subr.bf16.mxu0 0
    %2970 = vmatpush1.bf16.msra.mxu0 %v1809
    %2971 = vmatprep.subr.bf16.mxu0 0
    %2972 = vmatpush1.bf16.msra.mxu0 %v1810
    %2973 = vmatprep.subr.bf16.mxu0 0
    %2974 = vmatpush1.bf16.msra.mxu0 %v1811
    %2975 = vmatprep.subr.bf16.mxu0 0
    %2976 = vmatpush1.bf16.msra.mxu0 %v1812
    %2977 = vmatprep.subr.bf16.mxu0 0
    %2978 = vmatpush1.bf16.msra.mxu0 %v1813
    %2979 = vmatprep.subr.bf16.mxu0 0
    %2980 = vmatpush1.bf16.msra.mxu0 %v1814
    %2981 = vmatprep.subr.bf16.mxu0 0
    %2982 = vmatpush1.bf16.msra.mxu0 %v1815
    %2983 = vmatprep.subr.bf16.mxu0 0
    %2984 = vmatpush1.bf16.msra.mxu0 0
    %2985 = vmatprep.subr.bf16.mxu0 0
    %2986 = vmatpush1.bf16.msra.mxu0 0
    %2987 = vmatprep.subr.bf16.mxu0 0
    %2988 = vmatpush1.bf16.msra.mxu0 0
    %2989 = vmatprep.subr.bf16.mxu0 0
    %2990 = vmatpush1.bf16.msra.mxu0 0
    %2991 = vmatprep.subr.bf16.mxu0 0
    %2992 = vmatpush1.bf16.msra.mxu0 0
    %2993 = vmatprep.subr.bf16.mxu0 0
    %2994 = vmatpush1.bf16.msra.mxu0 0
    %2995 = vmatprep.subr.bf16.mxu0 0
    %2996 = vmatpush1.bf16.msra.mxu0 0
    %2997 = vmatprep.subr.bf16.mxu0 0
    %2998 = vmatpush1.bf16.msra.mxu0 0
    %2999 = vmatprep.mubr.bf16.mxu0 0
    %3000 = vmatmul.mubr.bf16.gmra.mrb[0].mxu0 %v2935
    %v3001 = vpop.f32.mrb[0].mxu0
    %v3002 = vadd.f32 0.0, %v3001
    %v3003 = vpop.f32.mrb[0].mxu0
    %v3004 = vpop.f32.mrb[0].mxu0
    %v3005 = vadd.f32 0.0, %v3004
    %v3006 = vpop.f32.mrb[0].mxu0
    %3007 = vmatprep.mubr.bf16.mxu0 0
    %3008 = vmatmul.mubr.bf16.gmra.mrb[0].mxu0 %v2936
    %v3009 = vpop.f32.mrb[0].mxu0
    %v3010 = vadd.f32 0.0, %v3009
    %v3011 = vpop.f32.mrb[0].mxu0
    %v3012 = vpop.f32.mrb[0].mxu0
    %v3013 = vadd.f32 0.0, %v3012
    %v3014 = vpop.f32.mrb[0].mxu0
    %3015 = vmatprep.mubr.bf16.mxu0 0
    %3016 = vmatmul.mubr.bf16.gmra.mrb[0].mxu0 %v2937
    %v3017 = vpop.f32.mrb[0].mxu0
    %v3018 = vadd.f32 0.0, %v3017
    %v3019 = vpop.f32.mrb[0].mxu0
    %v3020 = vpop.f32.mrb[0].mxu0
    %v3021 = vadd.f32 0.0, %v3020
    %v3022 = vpop.f32.mrb[0].mxu0
    %3023 = vmatprep.mubr.bf16.mxu0 0
    %3024 = vmatmul.mubr.bf16.gmra.mrb[0].mxu0 %v2938
    %v3025 = vpop.f32.mrb[0].mxu0
    %v3026 = vadd.f32 0.0, %v3025
    %v3027 = vpop.f32.mrb[0].mxu0
    %v3028 = vpop.f32.mrb[0].mxu0
    %v3029 = vadd.f32 0.0, %v3028
    %v3030 = vpop.f32.mrb[0].mxu0
    %3031 = vmatprep.mubr.bf16.mxu0 0
    %3032 = vmatmul.mubr.bf16.gmra.mrb[0].mxu0 %v2939
    %v3033 = vpop.f32.mrb[0].mxu0
    %v3034 = vadd.f32 0.0, %v3033
    %v3035 = vpop.f32.mrb[0].mxu0
    %v3036 = vpop.f32.mrb[0].mxu0
    %v3037 = vadd.f32 0.0, %v3036
    %v3038 = vpop.f32.mrb[0].mxu0
    %3039 = vmatprep.mubr.bf16.mxu0 0
    %3040 = vmatmul.mubr.bf16.gmra.mrb[0].mxu0 %v2940
    %v3041 = vpop.f32.mrb[0].mxu0
    %v3042 = vadd.f32 0.0, %v3041
    %v3043 = vpop.f32.mrb[0].mxu0
    %v3044 = vpop.f32.mrb[0].mxu0
    %v3045 = vadd.f32 0.0, %v3044
    %v3046 = vpop.f32.mrb[0].mxu0
    %3047 = vmatprep.mubr.bf16.mxu0 0
    %3048 = vmatmul.mubr.bf16.gmra.mrb[0].mxu0 %v2941
    %v3049 = vpop.f32.mrb[0].mxu0
    %v3050 = vadd.f32 0.0, %v3049
    %v3051 = vpop.f32.mrb[0].mxu0
    %v3052 = vpop.f32.mrb[0].mxu0
    %v3053 = vadd.f32 0.0, %v3052
    %v3054 = vpop.f32.mrb[0].mxu0
    %3055 = vmatprep.mubr.bf16.mxu0 0
    %3056 = vmatmul.mubr.bf16.gmra.mrb[0].mxu0 %v2942
    %v3057 = vpop.f32.mrb[0].mxu0
    %v3058 = vadd.f32 0.0, %v3057
    %v3059 = vpop.f32.mrb[0].mxu0
    %v3060 = vpop.f32.mrb[0].mxu0
    %v3061 = vadd.f32 0.0, %v3060
    %v3062 = vpop.f32.mrb[0].mxu0
    %3063 = vdwg.mxu0
    %3064 = vmatprep.subr.bf16.mxu0 0
    %3065 = vmatpush1.bf16.msra.mxu0 %v1816
    %3066 = vmatprep.subr.bf16.mxu0 0
    %3067 = vmatpush1.bf16.msra.mxu0 %v1817
    %3068 = vmatprep.subr.bf16.mxu0 0
    %3069 = vmatpush1.bf16.msra.mxu0 %v1818
    %3070 = vmatprep.subr.bf16.mxu0 0
    %3071 = vmatpush1.bf16.msra.mxu0 %v1819
    %3072 = vmatprep.subr.bf16.mxu0 0
    %3073 = vmatpush1.bf16.msra.mxu0 %v1820
    %3074 = vmatprep.subr.bf16.mxu0 0
    %3075 = vmatpush1.bf16.msra.mxu0 %v1821
    %3076 = vmatprep.subr.bf16.mxu0 0
    %3077 = vmatpush1.bf16.msra.mxu0 %v1822
    %3078 = vmatprep.subr.bf16.mxu0 0
    %3079 = vmatpush1.bf16.msra.mxu0 %v1823
    %3080 = vmatprep.subr.bf16.mxu0 0
    %3081 = vmatpush1.bf16.msra.mxu0 0
    %3082 = vmatprep.subr.bf16.mxu0 0
    %3083 = vmatpush1.bf16.msra.mxu0 0
    %3084 = vmatprep.subr.bf16.mxu0 0
    %3085 = vmatpush1.bf16.msra.mxu0 0
    %3086 = vmatprep.subr.bf16.mxu0 0
    %3087 = vmatpush1.bf16.msra.mxu0 0
    %3088 = vmatprep.subr.bf16.mxu0 0
    %3089 = vmatpush1.bf16.msra.mxu0 0
    %3090 = vmatprep.subr.bf16.mxu0 0
    %3091 = vmatpush1.bf16.msra.mxu0 0
    %3092 = vmatprep.subr.bf16.mxu0 0
    %3093 = vmatpush1.bf16.msra.mxu0 0
    %3094 = vmatprep.subr.bf16.mxu0 0
    %3095 = vmatpush1.bf16.msra.mxu0 0
    %3096 = vmatprep.mubr.bf16.mxu0 0
    %3097 = vmatmul.mubr.bf16.gmra.mrb[0].mxu0 %v2943
    %v3098 = vpop.f32.mrb[0].mxu0
    %v3099 = vadd.f32 0.0, %v3098
    %v3100 = vpop.f32.mrb[0].mxu0
    %v3101 = vpop.f32.mrb[0].mxu0
    %v3102 = vadd.f32 0.0, %v3101
    %v3103 = vpop.f32.mrb[0].mxu0
    %3104 = vmatprep.mubr.bf16.mxu0 0
    %3105 = vmatmul.mubr.bf16.gmra.mrb[0].mxu0 %v2944
    %v3106 = vpop.f32.mrb[0].mxu0
    %v3107 = vadd.f32 0.0, %v3106
    %v3108 = vpop.f32.mrb[0].mxu0
    %v3109 = vpop.f32.mrb[0].mxu0
    %v3110 = vadd.f32 0.0, %v3109
    %v3111 = vpop.f32.mrb[0].mxu0
    %3112 = vmatprep.mubr.bf16.mxu0 0
    %3113 = vmatmul.mubr.bf16.gmra.mrb[0].mxu0 %v2945
    %v3114 = vpop.f32.mrb[0].mxu0
    %v3115 = vadd.f32 0.0, %v3114
    %v3116 = vpop.f32.mrb[0].mxu0
    %v3117 = vpop.f32.mrb[0].mxu0
    %v3118 = vadd.f32 0.0, %v3117
    %v3119 = vpop.f32.mrb[0].mxu0
    %3120 = vmatprep.mubr.bf16.mxu0 0
    %3121 = vmatmul.mubr.bf16.gmra.mrb[0].mxu0 %v2946
    %v3122 = vpop.f32.mrb[0].mxu0
    %v3123 = vadd.f32 0.0, %v3122
    %v3124 = vpop.f32.mrb[0].mxu0
    %v3125 = vpop.f32.mrb[0].mxu0
    %v3126 = vadd.f32 0.0, %v3125
    %v3127 = vpop.f32.mrb[0].mxu0
    %3128 = vmatprep.mubr.bf16.mxu0 0
    %3129 = vmatmul.mubr.bf16.gmra.mrb[0].mxu0 %v2947
    %v3130 = vpop.f32.mrb[0].mxu0
    %v3131 = vadd.f32 0.0, %v3130
    %v3132 = vpop.f32.mrb[0].mxu0
    %v3133 = vpop.f32.mrb[0].mxu0
    %v3134 = vadd.f32 0.0, %v3133
    %v3135 = vpop.f32.mrb[0].mxu0
    %3136 = vmatprep.mubr.bf16.mxu0 0
    %3137 = vmatmul.mubr.bf16.gmra.mrb[0].mxu0 %v2948
    %v3138 = vpop.f32.mrb[0].mxu0
    %v3139 = vadd.f32 0.0, %v3138
    %v3140 = vpop.f32.mrb[0].mxu0
    %v3141 = vpop.f32.mrb[0].mxu0
    %v3142 = vadd.f32 0.0, %v3141
    %v3143 = vpop.f32.mrb[0].mxu0
    %3144 = vmatprep.mubr.bf16.mxu0 0
    %3145 = vmatmul.mubr.bf16.gmra.mrb[0].mxu0 %v2949
    %v3146 = vpop.f32.mrb[0].mxu0
    %v3147 = vadd.f32 0.0, %v3146
    %v3148 = vpop.f32.mrb[0].mxu0
    %v3149 = vpop.f32.mrb[0].mxu0
    %v3150 = vadd.f32 0.0, %v3149
    %v3151 = vpop.f32.mrb[0].mxu0
    %3152 = vmatprep.mubr.bf16.mxu0 0
    %3153 = vmatmul.mubr.bf16.gmra.mrb[0].mxu0 %v2950
    %v3154 = vpop.f32.mrb[0].mxu0
    %v3155 = vadd.f32 0.0, %v3154
    %v3156 = vpop.f32.mrb[0].mxu0
    %v3157 = vpop.f32.mrb[0].mxu0
    %v3158 = vadd.f32 0.0, %v3157
    %v3159 = vpop.f32.mrb[0].mxu0
    %3160 = vdwg.mxu0
    %3161 = vmatprep.subr.bf16.mxu0 0
    %3162 = vmatpush1.bf16.msra.mxu0 %v1824
    %3163 = vmatprep.subr.bf16.mxu0 0
    %3164 = vmatpush1.bf16.msra.mxu0 %v1825
    %3165 = vmatprep.subr.bf16.mxu0 0
    %3166 = vmatpush1.bf16.msra.mxu0 %v1826
    %3167 = vmatprep.subr.bf16.mxu0 0
    %3168 = vmatpush1.bf16.msra.mxu0 %v1827
    %3169 = vmatprep.subr.bf16.mxu0 0
    %3170 = vmatpush1.bf16.msra.mxu0 %v1828
    %3171 = vmatprep.subr.bf16.mxu0 0
    %3172 = vmatpush1.bf16.msra.mxu0 %v1829
    %3173 = vmatprep.subr.bf16.mxu0 0
    %3174 = vmatpush1.bf16.msra.mxu0 %v1830
    %3175 = vmatprep.subr.bf16.mxu0 0
    %3176 = vmatpush1.bf16.msra.mxu0 %v1831
    %3177 = vmatprep.subr.bf16.mxu0 0
    %3178 = vmatpush1.bf16.msra.mxu0 0
    %3179 = vmatprep.subr.bf16.mxu0 0
    %3180 = vmatpush1.bf16.msra.mxu0 0
    %3181 = vmatprep.subr.bf16.mxu0 0
    %3182 = vmatpush1.bf16.msra.mxu0 0
    %3183 = vmatprep.subr.bf16.mxu0 0
    %3184 = vmatpush1.bf16.msra.mxu0 0
    %3185 = vmatprep.subr.bf16.mxu0 0
    %3186 = vmatpush1.bf16.msra.mxu0 0
    %3187 = vmatprep.subr.bf16.mxu0 0
    %3188 = vmatpush1.bf16.msra.mxu0 0
    %3189 = vmatprep.subr.bf16.mxu0 0
    %3190 = vmatpush1.bf16.msra.mxu0 0
    %3191 = vmatprep.subr.bf16.mxu0 0
    %3192 = vmatpush1.bf16.msra.mxu0 0
    %3193 = vmatprep.mubr.bf16.mxu0 0
    %3194 = vmatmul.mubr.bf16.gmra.mrb[0].mxu0 %v2951
    %v3195 = vpop.f32.mrb[0].mxu0
    %v3196 = vadd.f32 0.0, %v3195
    %v3197 = vpop.f32.mrb[0].mxu0
    %v3198 = vpop.f32.mrb[0].mxu0
    %v3199 = vadd.f32 0.0, %v3198
    %v3200 = vpop.f32.mrb[0].mxu0
    %3201 = vmatprep.mubr.bf16.mxu0 0
    %3202 = vmatmul.mubr.bf16.gmra.mrb[0].mxu0 %v2952
    %v3203 = vpop.f32.mrb[0].mxu0
    %v3204 = vadd.f32 0.0, %v3203
    %v3205 = vpop.f32.mrb[0].mxu0
    %v3206 = vpop.f32.mrb[0].mxu0
    %v3207 = vadd.f32 0.0, %v3206
    %v3208 = vpop.f32.mrb[0].mxu0
    %3209 = vmatprep.mubr.bf16.mxu0 0
    %3210 = vmatmul.mubr.bf16.gmra.mrb[0].mxu0 %v2953
    %v3211 = vpop.f32.mrb[0].mxu0
    %v3212 = vadd.f32 0.0, %v3211
    %v3213 = vpop.f32.mrb[0].mxu0
    %v3214 = vpop.f32.mrb[0].mxu0
    %v3215 = vadd.f32 0.0, %v3214
    %v3216 = vpop.f32.mrb[0].mxu0
    %3217 = vmatprep.mubr.bf16.mxu0 0
    %3218 = vmatmul.mubr.bf16.gmra.mrb[0].mxu0 %v2954
    %v3219 = vpop.f32.mrb[0].mxu0
    %v3220 = vadd.f32 0.0, %v3219
    %v3221 = vpop.f32.mrb[0].mxu0
    %v3222 = vpop.f32.mrb[0].mxu0
    %v3223 = vadd.f32 0.0, %v3222
    %v3224 = vpop.f32.mrb[0].mxu0
    %3225 = vmatprep.mubr.bf16.mxu0 0
    %3226 = vmatmul.mubr.bf16.gmra.mrb[0].mxu0 %v2955
    %v3227 = vpop.f32.mrb[0].mxu0
    %v3228 = vadd.f32 0.0, %v3227
    %v3229 = vpop.f32.mrb[0].mxu0
    %v3230 = vpop.f32.mrb[0].mxu0
    %v3231 = vadd.f32 0.0, %v3230
    %v3232 = vpop.f32.mrb[0].mxu0
    %3233 = vmatprep.mubr.bf16.mxu0 0
    %3234 = vmatmul.mubr.bf16.gmra.mrb[0].mxu0 %v2956
    %v3235 = vpop.f32.mrb[0].mxu0
    %v3236 = vadd.f32 0.0, %v3235
    %v3237 = vpop.f32.mrb[0].mxu0
    %v3238 = vpop.f32.mrb[0].mxu0
    %v3239 = vadd.f32 0.0, %v3238
    %v3240 = vpop.f32.mrb[0].mxu0
    %3241 = vmatprep.mubr.bf16.mxu0 0
    %3242 = vmatmul.mubr.bf16.gmra.mrb[0].mxu0 %v2957
    %v3243 = vpop.f32.mrb[0].mxu0
    %v3244 = vadd.f32 0.0, %v3243
    %v3245 = vpop.f32.mrb[0].mxu0
    %v3246 = vpop.f32.mrb[0].mxu0
    %v3247 = vadd.f32 0.0, %v3246
    %v3248 = vpop.f32.mrb[0].mxu0
    %3249 = vmatprep.mubr.bf16.mxu0 0
    %3250 = vmatmul.mubr.bf16.gmra.mrb[0].mxu0 %v2958
    %v3251 = vpop.f32.mrb[0].mxu0
    %v3252 = vadd.f32 0.0, %v3251
    %v3253 = vpop.f32.mrb[0].mxu0
    %v3254 = vpop.f32.mrb[0].mxu0
    %v3255 = vadd.f32 0.0, %v3254
    %v3256 = vpop.f32.mrb[0].mxu0
    %3257 = vdwg.mxu0
    %3258 = vmatprep.subr.bf16.mxu0 0
    %3259 = vmatpush1.bf16.msra.mxu0 %v1832
    %3260 = vmatprep.subr.bf16.mxu0 0
    %3261 = vmatpush1.bf16.msra.mxu0 %v1833
    %3262 = vmatprep.subr.bf16.mxu0 0
    %3263 = vmatpush1.bf16.msra.mxu0 %v1834
    %3264 = vmatprep.subr.bf16.mxu0 0
    %3265 = vmatpush1.bf16.msra.mxu0 %v1835
    %3266 = vmatprep.subr.bf16.mxu0 0
    %3267 = vmatpush1.bf16.msra.mxu0 %v1836
    %3268 = vmatprep.subr.bf16.mxu0 0
    %3269 = vmatpush1.bf16.msra.mxu0 %v1837
    %3270 = vmatprep.subr.bf16.mxu0 0
    %3271 = vmatpush1.bf16.msra.mxu0 %v1838
    %3272 = vmatprep.subr.bf16.mxu0 0
    %3273 = vmatpush1.bf16.msra.mxu0 %v1839
    %3274 = vmatprep.subr.bf16.mxu0 0
    %3275 = vmatpush1.bf16.msra.mxu0 0
    %3276 = vmatprep.subr.bf16.mxu0 0
    %3277 = vmatpush1.bf16.msra.mxu0 0
    %3278 = vmatprep.subr.bf16.mxu0 0
    %3279 = vmatpush1.bf16.msra.mxu0 0
    %3280 = vmatprep.subr.bf16.mxu0 0
    %3281 = vmatpush1.bf16.msra.mxu0 0
    %3282 = vmatprep.subr.bf16.mxu0 0
    %3283 = vmatpush1.bf16.msra.mxu0 0
    %3284 = vmatprep.subr.bf16.mxu0 0
    %3285 = vmatpush1.bf16.msra.mxu0 0
    %3286 = vmatprep.subr.bf16.mxu0 0
    %3287 = vmatpush1.bf16.msra.mxu0 0
    %3288 = vmatprep.subr.bf16.mxu0 0
    %3289 = vmatpush1.bf16.msra.mxu0 0
    %3290 = vmatprep.mubr.bf16.mxu0 0
    %3291 = vmatmul.mubr.bf16.gmra.mrb[0].mxu0 %v2959
    %v3292 = vpop.f32.mrb[0].mxu0
    %v3293 = vadd.f32 0.0, %v3292
    %v3294 = vpop.f32.mrb[0].mxu0
    %v3295 = vpop.f32.mrb[0].mxu0
    %v3296 = vadd.f32 0.0, %v3295
    %v3297 = vpop.f32.mrb[0].mxu0
    %3298 = vmatprep.mubr.bf16.mxu0 0
    %3299 = vmatmul.mubr.bf16.gmra.mrb[0].mxu0 %v2960
    %v3300 = vpop.f32.mrb[0].mxu0
    %v3301 = vadd.f32 0.0, %v3300
    %v3302 = vpop.f32.mrb[0].mxu0
    %v3303 = vpop.f32.mrb[0].mxu0
    %v3304 = vadd.f32 0.0, %v3303
    %v3305 = vpop.f32.mrb[0].mxu0
    %3306 = vmatprep.mubr.bf16.mxu0 0
    %3307 = vmatmul.mubr.bf16.gmra.mrb[0].mxu0 %v2961
    %v3308 = vpop.f32.mrb[0].mxu0
    %v3309 = vadd.f32 0.0, %v3308
    %v3310 = vpop.f32.mrb[0].mxu0
    %v3311 = vpop.f32.mrb[0].mxu0
    %v3312 = vadd.f32 0.0, %v3311
    %v3313 = vpop.f32.mrb[0].mxu0
    %3314 = vmatprep.mubr.bf16.mxu0 0
    %3315 = vmatmul.mubr.bf16.gmra.mrb[0].mxu0 %v2962
    %v3316 = vpop.f32.mrb[0].mxu0
    %v3317 = vadd.f32 0.0, %v3316
    %v3318 = vpop.f32.mrb[0].mxu0
    %v3319 = vpop.f32.mrb[0].mxu0
    %v3320 = vadd.f32 0.0, %v3319
    %v3321 = vpop.f32.mrb[0].mxu0
    %3322 = vmatprep.mubr.bf16.mxu0 0
    %3323 = vmatmul.mubr.bf16.gmra.mrb[0].mxu0 %v2963
    %v3324 = vpop.f32.mrb[0].mxu0
    %v3325 = vadd.f32 0.0, %v3324
    %v3326 = vpop.f32.mrb[0].mxu0
    %v3327 = vpop.f32.mrb[0].mxu0
    %v3328 = vadd.f32 0.0, %v3327
    %v3329 = vpop.f32.mrb[0].mxu0
    %3330 = vmatprep.mubr.bf16.mxu0 0
    %3331 = vmatmul.mubr.bf16.gmra.mrb[0].mxu0 %v2964
    %v3332 = vpop.f32.mrb[0].mxu0
    %v3333 = vadd.f32 0.0, %v3332
    %v3334 = vpop.f32.mrb[0].mxu0
    %v3335 = vpop.f32.mrb[0].mxu0
    %v3336 = vadd.f32 0.0, %v3335
    %v3337 = vpop.f32.mrb[0].mxu0
    %3338 = vmatprep.mubr.bf16.mxu0 0
    %3339 = vmatmul.mubr.bf16.gmra.mrb[0].mxu0 %v2965
    %v3340 = vpop.f32.mrb[0].mxu0
    %v3341 = vadd.f32 0.0, %v3340
    %v3342 = vpop.f32.mrb[0].mxu0
    %v3343 = vpop.f32.mrb[0].mxu0
    %v3344 = vadd.f32 0.0, %v3343
    %v3345 = vpop.f32.mrb[0].mxu0
    %3346 = vmatprep.mubr.bf16.mxu0 0
    %3347 = vmatmul.mubr.bf16.gmra.mrb[0].mxu0 %v2966
    %v3348 = vpop.f32.mrb[0].mxu0
    %v3349 = vadd.f32 0.0, %v3348
    %v3350 = vpop.f32.mrb[0].mxu0
    %v3351 = vpop.f32.mrb[0].mxu0
    %v3352 = vadd.f32 0.0, %v3351
    %v3353 = vpop.f32.mrb[0].mxu0
    %3354 = vdwg.mxu0
    %v3355 = vpack.c.bf16 %v3005, %v3002
    %v3356 = vpack.c.bf16 %v3013, %v3010
    %v3357 = vpack.c.bf16 %v3021, %v3018
    %v3358 = vpack.c.bf16 %v3029, %v3026
    %v3359 = vpack.c.bf16 %v3037, %v3034
    %v3360 = vpack.c.bf16 %v3045, %v3042
    %v3361 = vpack.c.bf16 %v3053, %v3050
    %v3362 = vpack.c.bf16 %v3061, %v3058
    %v3363 = vpack.c.bf16 %v3102, %v3099
    %v3364 = vpack.c.bf16 %v3110, %v3107
    %v3365 = vpack.c.bf16 %v3118, %v3115
    %v3366 = vpack.c.bf16 %v3126, %v3123
    %v3367 = vpack.c.bf16 %v3134, %v3131
    %v3368 = vpack.c.bf16 %v3142, %v3139
    %v3369 = vpack.c.bf16 %v3150, %v3147
    %v3370 = vpack.c.bf16 %v3158, %v3155
    %v3371 = vpack.c.bf16 %v3199, %v3196
    %v3372 = vpack.c.bf16 %v3207, %v3204
    %v3373 = vpack.c.bf16 %v3215, %v3212
    %v3374 = vpack.c.bf16 %v3223, %v3220
    %v3375 = vpack.c.bf16 %v3231, %v3228
    %v3376 = vpack.c.bf16 %v3239, %v3236
    %v3377 = vpack.c.bf16 %v3247, %v3244
    %v3378 = vpack.c.bf16 %v3255, %v3252
    %v3379 = vpack.c.bf16 %v3296, %v3293
    %v3380 = vpack.c.bf16 %v3304, %v3301
    %v3381 = vpack.c.bf16 %v3312, %v3309
    %v3382 = vpack.c.bf16 %v3320, %v3317
    %v3383 = vpack.c.bf16 %v3328, %v3325
    %v3384 = vpack.c.bf16 %v3336, %v3333
    %v3385 = vpack.c.bf16 %v3344, %v3341
    %v3386 = vpack.c.bf16 %v3352, %v3349
    %v3387 = vld [vmem:[#allocation7] sm:$0xff]
    %v3388 = vld [vmem:[#allocation7 + $0x8] sm:$0xff]
    %v3389 = vld [vmem:[#allocation7 + $0x10] sm:$0xff]
    %v3390 = vld [vmem:[#allocation7 + $0x18] sm:$0xff]
    %v3391 = vld [vmem:[#allocation7 + $0x20] sm:$0xff]
    %v3392 = vld [vmem:[#allocation7 + $0x28] sm:$0xff]
    %v3393 = vld [vmem:[#allocation7 + $0x30] sm:$0xff]
    %v3394 = vld [vmem:[#allocation7 + $0x38] sm:$0xff]
    %v3395 = vld [vmem:[#allocation7 + $0x40] sm:$0xff]
    %v3396 = vld [vmem:[#allocation7 + $0x48] sm:$0xff]
    %v3397 = vld [vmem:[#allocation7 + $0x50] sm:$0xff]
    %v3398 = vld [vmem:[#allocation7 + $0x58] sm:$0xff]
    %v3399 = vld [vmem:[#allocation7 + $0x60] sm:$0xff]
    %v3400 = vld [vmem:[#allocation7 + $0x68] sm:$0xff]
    %v3401 = vld [vmem:[#allocation7 + $0x70] sm:$0xff]
    %v3402 = vld [vmem:[#allocation7 + $0x78] sm:$0xff]
    %v3403 = vld [vmem:[#allocation7 + $0x80] sm:$0xff]
    %v3404 = vld [vmem:[#allocation7 + $0x88] sm:$0xff]
    %v3405 = vld [vmem:[#allocation7 + $0x90] sm:$0xff]
    %v3406 = vld [vmem:[#allocation7 + $0x98] sm:$0xff]
    %v3407 = vld [vmem:[#allocation7 + $0xa0] sm:$0xff]
    %v3408 = vld [vmem:[#allocation7 + $0xa8] sm:$0xff]
    %v3409 = vld [vmem:[#allocation7 + $0xb0] sm:$0xff]
    %v3410 = vld [vmem:[#allocation7 + $0xb8] sm:$0xff]
    %v3411 = vld [vmem:[#allocation7 + $0xc0] sm:$0xff]
    %v3412 = vld [vmem:[#allocation7 + $0xc8] sm:$0xff]
    %v3413 = vld [vmem:[#allocation7 + $0xd0] sm:$0xff]
    %v3414 = vld [vmem:[#allocation7 + $0xd8] sm:$0xff]
    %v3415 = vld [vmem:[#allocation7 + $0xe0] sm:$0xff]
    %v3416 = vld [vmem:[#allocation7 + $0xe8] sm:$0xff]
    %v3417 = vld [vmem:[#allocation7 + $0xf0] sm:$0xff]
    %v3418 = vld [vmem:[#allocation7 + $0xf8] sm:$0xff]
    %v3451 = vunpack.c.l.b16 %v3387
    %v3452 = vunpack.c.h.b16 %v3387
    %v3453 = vunpack.c.l.b16 %v3388
    %v3454 = vunpack.c.h.b16 %v3388
    %v3455 = vunpack.c.l.b16 %v3389
    %v3456 = vunpack.c.h.b16 %v3389
    %v3457 = vunpack.c.l.b16 %v3390
    %v3458 = vunpack.c.h.b16 %v3390
    %v3459 = vunpack.c.l.b16 %v3391
    %v3460 = vunpack.c.h.b16 %v3391
    %v3461 = vunpack.c.l.b16 %v3392
    %v3462 = vunpack.c.h.b16 %v3392
    %v3463 = vunpack.c.l.b16 %v3393
    %v3464 = vunpack.c.h.b16 %v3393
    %v3465 = vunpack.c.l.b16 %v3394
    %v3466 = vunpack.c.h.b16 %v3394
    %v3467 = vunpack.c.l.b16 %v3395
    %v3468 = vunpack.c.h.b16 %v3395
    %v3469 = vunpack.c.l.b16 %v3396
    %v3470 = vunpack.c.h.b16 %v3396
    %v3471 = vunpack.c.l.b16 %v3397
    %v3472 = vunpack.c.h.b16 %v3397
    %v3473 = vunpack.c.l.b16 %v3398
    %v3474 = vunpack.c.h.b16 %v3398
    %v3475 = vunpack.c.l.b16 %v3399
    %v3476 = vunpack.c.h.b16 %v3399
    %v3477 = vunpack.c.l.b16 %v3400
    %v3478 = vunpack.c.h.b16 %v3400
    %v3479 = vunpack.c.l.b16 %v3401
    %v3480 = vunpack.c.h.b16 %v3401
    %v3481 = vunpack.c.l.b16 %v3402
    %v3482 = vunpack.c.h.b16 %v3402
    %v3483 = vunpack.c.l.b16 %v3403
    %v3484 = vunpack.c.h.b16 %v3403
    %v3485 = vunpack.c.l.b16 %v3404
    %v3486 = vunpack.c.h.b16 %v3404
    %v3487 = vunpack.c.l.b16 %v3405
    %v3488 = vunpack.c.h.b16 %v3405
    %v3489 = vunpack.c.l.b16 %v3406
    %v3490 = vunpack.c.h.b16 %v3406
    %v3491 = vunpack.c.l.b16 %v3407
    %v3492 = vunpack.c.h.b16 %v3407
    %v3493 = vunpack.c.l.b16 %v3408
    %v3494 = vunpack.c.h.b16 %v3408
    %v3495 = vunpack.c.l.b16 %v3409
    %v3496 = vunpack.c.h.b16 %v3409
    %v3497 = vunpack.c.l.b16 %v3410
    %v3498 = vunpack.c.h.b16 %v3410
    %v3499 = vunpack.c.l.b16 %v3411
    %v3500 = vunpack.c.h.b16 %v3411
    %v3501 = vunpack.c.l.b16 %v3412
    %v3502 = vunpack.c.h.b16 %v3412
    %v3503 = vunpack.c.l.b16 %v3413
    %v3504 = vunpack.c.h.b16 %v3413
    %v3505 = vunpack.c.l.b16 %v3414
    %v3506 = vunpack.c.h.b16 %v3414
    %v3507 = vunpack.c.l.b16 %v3415
    %v3508 = vunpack.c.h.b16 %v3415
    %v3509 = vunpack.c.l.b16 %v3416
    %v3510 = vunpack.c.h.b16 %v3416
    %v3511 = vunpack.c.l.b16 %v3417
    %v3512 = vunpack.c.h.b16 %v3417
    %v3513 = vunpack.c.l.b16 %v3418
    %v3514 = vunpack.c.h.b16 %v3418
    %v3515 = vpack.c.b16 %v3453, %v3451
    %v3516 = vpack.c.b16 %v3454, %v3452
    %v3517 = vpack.c.b16 %v3457, %v3455
    %v3518 = vpack.c.b16 %v3458, %v3456
    %v3519 = vpack.c.b16 %v3461, %v3459
    %v3520 = vpack.c.b16 %v3462, %v3460
    %v3521 = vpack.c.b16 %v3465, %v3463
    %v3522 = vpack.c.b16 %v3466, %v3464
    %v3523 = vpack.c.b16 %v3469, %v3467
    %v3524 = vpack.c.b16 %v3470, %v3468
    %v3525 = vpack.c.b16 %v3473, %v3471
    %v3526 = vpack.c.b16 %v3474, %v3472
    %v3527 = vpack.c.b16 %v3477, %v3475
    %v3528 = vpack.c.b16 %v3478, %v3476
    %v3529 = vpack.c.b16 %v3481, %v3479
    %v3530 = vpack.c.b16 %v3482, %v3480
    %v3531 = vpack.c.b16 %v3485, %v3483
    %v3532 = vpack.c.b16 %v3486, %v3484
    %v3533 = vpack.c.b16 %v3489, %v3487
    %v3534 = vpack.c.b16 %v3490, %v3488
    %v3535 = vpack.c.b16 %v3493, %v3491
    %v3536 = vpack.c.b16 %v3494, %v3492
    %v3537 = vpack.c.b16 %v3497, %v3495
    %v3538 = vpack.c.b16 %v3498, %v3496
    %v3539 = vpack.c.b16 %v3501, %v3499
    %v3540 = vpack.c.b16 %v3502, %v3500
    %v3541 = vpack.c.b16 %v3505, %v3503
    %v3542 = vpack.c.b16 %v3506, %v3504
    %v3543 = vpack.c.b16 %v3509, %v3507
    %v3544 = vpack.c.b16 %v3510, %v3508
    %v3545 = vpack.c.b16 %v3513, %v3511
    %v3546 = vpack.c.b16 %v3514, %v3512
    %3579 = vmatprep.subr.bf16.mxu0 %v3516
    %3580 = vmatpush1.bf16.msra.mxu0 %v3515
    %3581 = vmatprep.subr.bf16.mxu0 %v3518
    %3582 = vmatpush1.bf16.msra.mxu0 %v3517
    %3583 = vmatprep.subr.bf16.mxu0 %v3520
    %3584 = vmatpush1.bf16.msra.mxu0 %v3519
    %3585 = vmatprep.subr.bf16.mxu0 %v3522
    %3586 = vmatpush1.bf16.msra.mxu0 %v3521
    %3587 = vmatprep.subr.bf16.mxu0 %v3524
    %3588 = vmatpush1.bf16.msra.mxu0 %v3523
    %3589 = vmatprep.subr.bf16.mxu0 %v3526
    %3590 = vmatpush1.bf16.msra.mxu0 %v3525
    %3591 = vmatprep.subr.bf16.mxu0 %v3528
    %3592 = vmatpush1.bf16.msra.mxu0 %v3527
    %3593 = vmatprep.subr.bf16.mxu0 %v3530
    %3594 = vmatpush1.bf16.msra.mxu0 %v3529
    %3595 = vmatprep.subr.bf16.mxu0 %v3532
    %3596 = vmatpush1.bf16.msra.mxu0 %v3531
    %3597 = vmatprep.subr.bf16.mxu0 %v3534
    %3598 = vmatpush1.bf16.msra.mxu0 %v3533
    %3599 = vmatprep.subr.bf16.mxu0 %v3536
    %3600 = vmatpush1.bf16.msra.mxu0 %v3535
    %3601 = vmatprep.subr.bf16.mxu0 %v3538
    %3602 = vmatpush1.bf16.msra.mxu0 %v3537
    %3603 = vmatprep.subr.bf16.mxu0 %v3540
    %3604 = vmatpush1.bf16.msra.mxu0 %v3539
    %3605 = vmatprep.subr.bf16.mxu0 %v3542
    %3606 = vmatpush1.bf16.msra.mxu0 %v3541
    %3607 = vmatprep.subr.bf16.mxu0 %v3544
    %3608 = vmatpush1.bf16.msra.mxu0 %v3543
    %3609 = vmatprep.subr.bf16.mxu0 %v3546
    %3610 = vmatpush1.bf16.msra.mxu0 %v3545
    %3611 = vmatprep.mubr.bf16.mxu0 %v3363
    %3612 = vmatmul.mubr.bf16.gmra.mrb[0].mxu0 %v3355
    %v3613 = vpop.f32.mrb[0].mxu0
    %v3614 = vadd.f32 0.0, %v3613
    %v3615 = vpop.f32.mrb[0].mxu0
    %v3616 = vadd.f32 0.0, %v3615
    %v3617 = vpop.f32.mrb[0].mxu0
    %v3618 = vadd.f32 0.0, %v3617
    %v3619 = vpop.f32.mrb[0].mxu0
    %v3620 = vadd.f32 0.0, %v3619
    %3621 = vmatprep.mubr.bf16.mxu0 %v3364
    %3622 = vmatmul.mubr.bf16.gmra.mrb[0].mxu0 %v3356
    %v3623 = vpop.f32.mrb[0].mxu0
    %v3624 = vadd.f32 0.0, %v3623
    %v3625 = vpop.f32.mrb[0].mxu0
    %v3626 = vadd.f32 0.0, %v3625
    %v3627 = vpop.f32.mrb[0].mxu0
    %v3628 = vadd.f32 0.0, %v3627
    %v3629 = vpop.f32.mrb[0].mxu0
    %v3630 = vadd.f32 0.0, %v3629
    %3631 = vmatprep.mubr.bf16.mxu0 %v3365
    %3632 = vmatmul.mubr.bf16.gmra.mrb[0].mxu0 %v3357
    %v3633 = vpop.f32.mrb[0].mxu0
    %v3634 = vadd.f32 0.0, %v3633
    %v3635 = vpop.f32.mrb[0].mxu0
    %v3636 = vadd.f32 0.0, %v3635
    %v3637 = vpop.f32.mrb[0].mxu0
    %v3638 = vadd.f32 0.0, %v3637
    %v3639 = vpop.f32.mrb[0].mxu0
    %v3640 = vadd.f32 0.0, %v3639
    %3641 = vmatprep.mubr.bf16.mxu0 %v3366
    %3642 = vmatmul.mubr.bf16.gmra.mrb[0].mxu0 %v3358
    %v3643 = vpop.f32.mrb[0].mxu0
    %v3644 = vadd.f32 0.0, %v3643
    %v3645 = vpop.f32.mrb[0].mxu0
    %v3646 = vadd.f32 0.0, %v3645
    %v3647 = vpop.f32.mrb[0].mxu0
    %v3648 = vadd.f32 0.0, %v3647
    %v3649 = vpop.f32.mrb[0].mxu0
    %v3650 = vadd.f32 0.0, %v3649
    %3651 = vmatprep.mubr.bf16.mxu0 %v3367
    %3652 = vmatmul.mubr.bf16.gmra.mrb[0].mxu0 %v3359
    %v3653 = vpop.f32.mrb[0].mxu0
    %v3654 = vadd.f32 0.0, %v3653
    %v3655 = vpop.f32.mrb[0].mxu0
    %v3656 = vadd.f32 0.0, %v3655
    %v3657 = vpop.f32.mrb[0].mxu0
    %v3658 = vadd.f32 0.0, %v3657
    %v3659 = vpop.f32.mrb[0].mxu0
    %v3660 = vadd.f32 0.0, %v3659
    %3661 = vmatprep.mubr.bf16.mxu0 %v3368
    %3662 = vmatmul.mubr.bf16.gmra.mrb[0].mxu0 %v3360
    %v3663 = vpop.f32.mrb[0].mxu0
    %v3664 = vadd.f32 0.0, %v3663
    %v3665 = vpop.f32.mrb[0].mxu0
    %v3666 = vadd.f32 0.0, %v3665
    %v3667 = vpop.f32.mrb[0].mxu0
    %v3668 = vadd.f32 0.0, %v3667
    %v3669 = vpop.f32.mrb[0].mxu0
    %v3670 = vadd.f32 0.0, %v3669
    %3671 = vmatprep.mubr.bf16.mxu0 %v3369
    %3672 = vmatmul.mubr.bf16.gmra.mrb[0].mxu0 %v3361
    %v3673 = vpop.f32.mrb[0].mxu0
    %v3674 = vadd.f32 0.0, %v3673
    %v3675 = vpop.f32.mrb[0].mxu0
    %v3676 = vadd.f32 0.0, %v3675
    %v3677 = vpop.f32.mrb[0].mxu0
    %v3678 = vadd.f32 0.0, %v3677
    %v3679 = vpop.f32.mrb[0].mxu0
    %v3680 = vadd.f32 0.0, %v3679
    %3681 = vmatprep.mubr.bf16.mxu0 %v3370
    %3682 = vmatmul.mubr.bf16.gmra.mrb[0].mxu0 %v3362
    %v3683 = vpop.f32.mrb[0].mxu0
    %v3684 = vadd.f32 0.0, %v3683
    %v3685 = vpop.f32.mrb[0].mxu0
    %v3686 = vadd.f32 0.0, %v3685
    %v3687 = vpop.f32.mrb[0].mxu0
    %v3688 = vadd.f32 0.0, %v3687
    %v3689 = vpop.f32.mrb[0].mxu0
    %v3690 = vadd.f32 0.0, %v3689
    %3691 = vmatprep.mubr.bf16.mxu0 %v3379
    %3692 = vmatmul.mubr.bf16.gmra.mrb[0].mxu0 %v3371
    %v3693 = vpop.f32.mrb[0].mxu0
    %v3694 = vadd.f32 0.0, %v3693
    %v3695 = vpop.f32.mrb[0].mxu0
    %v3696 = vadd.f32 0.0, %v3695
    %v3697 = vpop.f32.mrb[0].mxu0
    %v3698 = vadd.f32 0.0, %v3697
    %v3699 = vpop.f32.mrb[0].mxu0
    %v3700 = vadd.f32 0.0, %v3699
    %3701 = vmatprep.mubr.bf16.mxu0 %v3380
    %3702 = vmatmul.mubr.bf16.gmra.mrb[0].mxu0 %v3372
    %v3703 = vpop.f32.mrb[0].mxu0
    %v3704 = vadd.f32 0.0, %v3703
    %v3705 = vpop.f32.mrb[0].mxu0
    %v3706 = vadd.f32 0.0, %v3705
    %v3707 = vpop.f32.mrb[0].mxu0
    %v3708 = vadd.f32 0.0, %v3707
    %v3709 = vpop.f32.mrb[0].mxu0
    %v3710 = vadd.f32 0.0, %v3709
    %3711 = vmatprep.mubr.bf16.mxu0 %v3381
    %3712 = vmatmul.mubr.bf16.gmra.mrb[0].mxu0 %v3373
    %v3713 = vpop.f32.mrb[0].mxu0
    %v3714 = vadd.f32 0.0, %v3713
    %v3715 = vpop.f32.mrb[0].mxu0
    %v3716 = vadd.f32 0.0, %v3715
    %v3717 = vpop.f32.mrb[0].mxu0
    %v3718 = vadd.f32 0.0, %v3717
    %v3719 = vpop.f32.mrb[0].mxu0
    %v3720 = vadd.f32 0.0, %v3719
    %3721 = vmatprep.mubr.bf16.mxu0 %v3382
    %3722 = vmatmul.mubr.bf16.gmra.mrb[0].mxu0 %v3374
    %v3723 = vpop.f32.mrb[0].mxu0
    %v3724 = vadd.f32 0.0, %v3723
    %v3725 = vpop.f32.mrb[0].mxu0
    %v3726 = vadd.f32 0.0, %v3725
    %v3727 = vpop.f32.mrb[0].mxu0
    %v3728 = vadd.f32 0.0, %v3727
    %v3729 = vpop.f32.mrb[0].mxu0
    %v3730 = vadd.f32 0.0, %v3729
    %3731 = vmatprep.mubr.bf16.mxu0 %v3383
    %3732 = vmatmul.mubr.bf16.gmra.mrb[0].mxu0 %v3375
    %v3733 = vpop.f32.mrb[0].mxu0
    %v3734 = vadd.f32 0.0, %v3733
    %v3735 = vpop.f32.mrb[0].mxu0
    %v3736 = vadd.f32 0.0, %v3735
    %v3737 = vpop.f32.mrb[0].mxu0
    %v3738 = vadd.f32 0.0, %v3737
    %v3739 = vpop.f32.mrb[0].mxu0
    %v3740 = vadd.f32 0.0, %v3739
    %3741 = vmatprep.mubr.bf16.mxu0 %v3384
    %3742 = vmatmul.mubr.bf16.gmra.mrb[0].mxu0 %v3376
    %v3743 = vpop.f32.mrb[0].mxu0
    %v3744 = vadd.f32 0.0, %v3743
    %v3745 = vpop.f32.mrb[0].mxu0
    %v3746 = vadd.f32 0.0, %v3745
    %v3747 = vpop.f32.mrb[0].mxu0
    %v3748 = vadd.f32 0.0, %v3747
    %v3749 = vpop.f32.mrb[0].mxu0
    %v3750 = vadd.f32 0.0, %v3749
    %3751 = vmatprep.mubr.bf16.mxu0 %v3385
    %3752 = vmatmul.mubr.bf16.gmra.mrb[0].mxu0 %v3377
    %v3753 = vpop.f32.mrb[0].mxu0
    %v3754 = vadd.f32 0.0, %v3753
    %v3755 = vpop.f32.mrb[0].mxu0
    %v3756 = vadd.f32 0.0, %v3755
    %v3757 = vpop.f32.mrb[0].mxu0
    %v3758 = vadd.f32 0.0, %v3757
    %v3759 = vpop.f32.mrb[0].mxu0
    %v3760 = vadd.f32 0.0, %v3759
    %3761 = vmatprep.mubr.bf16.mxu0 %v3386
    %3762 = vmatmul.mubr.bf16.gmra.mrb[0].mxu0 %v3378
    %v3763 = vpop.f32.mrb[0].mxu0
    %v3764 = vadd.f32 0.0, %v3763
    %v3765 = vpop.f32.mrb[0].mxu0
    %v3766 = vadd.f32 0.0, %v3765
    %v3767 = vpop.f32.mrb[0].mxu0
    %v3768 = vadd.f32 0.0, %v3767
    %v3769 = vpop.f32.mrb[0].mxu0
    %v3770 = vadd.f32 0.0, %v3769
    %3771 = vdwg.mxu0
    %v3772 = vadd.f32 %v96, %v3614
    %v3773 = vadd.f32 %v97, %v3616
    %v3774 = vadd.f32 %v98, %v3618
    %v3775 = vadd.f32 %v99, %v3620
    %v3776 = vadd.f32 %v100, %v3624
    %v3777 = vadd.f32 %v101, %v3626
    %v3778 = vadd.f32 %v102, %v3628
    %v3779 = vadd.f32 %v103, %v3630
    %v3780 = vadd.f32 %v104, %v3634
    %v3781 = vadd.f32 %v105, %v3636
    %v3782 = vadd.f32 %v106, %v3638
    %v3783 = vadd.f32 %v107, %v3640
    %v3784 = vadd.f32 %v108, %v3644
    %v3785 = vadd.f32 %v109, %v3646
    %v3786 = vadd.f32 %v110, %v3648
    %v3787 = vadd.f32 %v111, %v3650
    %v3788 = vadd.f32 %v112, %v3654
    %v3789 = vadd.f32 %v113, %v3656
    %v3790 = vadd.f32 %v114, %v3658
    %v3791 = vadd.f32 %v115, %v3660
    %v3792 = vadd.f32 %v116, %v3664
    %v3793 = vadd.f32 %v117, %v3666
    %v3794 = vadd.f32 %v118, %v3668
    %v3795 = vadd.f32 %v119, %v3670
    %v3796 = vadd.f32 %v120, %v3674
    %v3797 = vadd.f32 %v121, %v3676
    %v3798 = vadd.f32 %v122, %v3678
    %v3799 = vadd.f32 %v123, %v3680
    %v3800 = vadd.f32 %v124, %v3684
    %v3801 = vadd.f32 %v125, %v3686
    %v3802 = vadd.f32 %v126, %v3688
    %v3803 = vadd.f32 %v127, %v3690
    %v3804 = vadd.f32 %v128, %v3694
    %v3805 = vadd.f32 %v129, %v3696
    %v3806 = vadd.f32 %v130, %v3698
    %v3807 = vadd.f32 %v131, %v3700
    %v3808 = vadd.f32 %v132, %v3704
    %v3809 = vadd.f32 %v133, %v3706
    %v3810 = vadd.f32 %v134, %v3708
    %v3811 = vadd.f32 %v135, %v3710
    %v3812 = vadd.f32 %v136, %v3714
    %v3813 = vadd.f32 %v137, %v3716
    %v3814 = vadd.f32 %v138, %v3718
    %v3815 = vadd.f32 %v139, %v3720
    %v3816 = vadd.f32 %v140, %v3724
    %v3817 = vadd.f32 %v141, %v3726
    %v3818 = vadd.f32 %v142, %v3728
    %v3819 = vadd.f32 %v143, %v3730
    %v3820 = vadd.f32 %v144, %v3734
    %v3821 = vadd.f32 %v145, %v3736
    %v3822 = vadd.f32 %v146, %v3738
    %v3823 = vadd.f32 %v147, %v3740
    %v3824 = vadd.f32 %v148, %v3744
    %v3825 = vadd.f32 %v149, %v3746
    %v3826 = vadd.f32 %v150, %v3748
    %v3827 = vadd.f32 %v151, %v3750
    %v3828 = vadd.f32 %v152, %v3754
    %v3829 = vadd.f32 %v153, %v3756
    %v3830 = vadd.f32 %v154, %v3758
    %v3831 = vadd.f32 %v155, %v3760
    %v3832 = vadd.f32 %v156, %v3764
    %v3833 = vadd.f32 %v157, %v3766
    %v3834 = vadd.f32 %v158, %v3768
    %v3835 = vadd.f32 %v159, %v3770
    %v3836 = vmul.f32 %v3772, %v3772
    %v3837 = vmul.f32 %v3773, %v3773
    %v3838 = vmul.f32 %v3774, %v3774
    %v3839 = vmul.f32 %v3775, %v3775
    %v3840 = vmul.f32 %v3776, %v3776
    %v3841 = vmul.f32 %v3777, %v3777
    %v3842 = vmul.f32 %v3778, %v3778
    %v3843 = vmul.f32 %v3779, %v3779
    %v3844 = vmul.f32 %v3780, %v3780
    %v3845 = vmul.f32 %v3781, %v3781
    %v3846 = vmul.f32 %v3782, %v3782
    %v3847 = vmul.f32 %v3783, %v3783
    %v3848 = vmul.f32 %v3784, %v3784
    %v3849 = vmul.f32 %v3785, %v3785
    %v3850 = vmul.f32 %v3786, %v3786
    %v3851 = vmul.f32 %v3787, %v3787
    %v3852 = vmul.f32 %v3788, %v3788
    %v3853 = vmul.f32 %v3789, %v3789
    %v3854 = vmul.f32 %v3790, %v3790
    %v3855 = vmul.f32 %v3791, %v3791
    %v3856 = vmul.f32 %v3792, %v3792
    %v3857 = vmul.f32 %v3793, %v3793
    %v3858 = vmul.f32 %v3794, %v3794
    %v3859 = vmul.f32 %v3795, %v3795
    %v3860 = vmul.f32 %v3796, %v3796
    %v3861 = vmul.f32 %v3797, %v3797
    %v3862 = vmul.f32 %v3798, %v3798
    %v3863 = vmul.f32 %v3799, %v3799
    %v3864 = vmul.f32 %v3800, %v3800
    %v3865 = vmul.f32 %v3801, %v3801
    %v3866 = vmul.f32 %v3802, %v3802
    %v3867 = vmul.f32 %v3803, %v3803
    %v3868 = vmul.f32 %v3804, %v3804
    %v3869 = vmul.f32 %v3805, %v3805
    %v3870 = vmul.f32 %v3806, %v3806
    %v3871 = vmul.f32 %v3807, %v3807
    %v3872 = vmul.f32 %v3808, %v3808
    %v3873 = vmul.f32 %v3809, %v3809
    %v3874 = vmul.f32 %v3810, %v3810
    %v3875 = vmul.f32 %v3811, %v3811
    %v3876 = vmul.f32 %v3812, %v3812
    %v3877 = vmul.f32 %v3813, %v3813
    %v3878 = vmul.f32 %v3814, %v3814
    %v3879 = vmul.f32 %v3815, %v3815
    %v3880 = vmul.f32 %v3816, %v3816
    %v3881 = vmul.f32 %v3817, %v3817
    %v3882 = vmul.f32 %v3818, %v3818
    %v3883 = vmul.f32 %v3819, %v3819
    %v3884 = vmul.f32 %v3820, %v3820
    %v3885 = vmul.f32 %v3821, %v3821
    %v3886 = vmul.f32 %v3822, %v3822
    %v3887 = vmul.f32 %v3823, %v3823
    %v3888 = vmul.f32 %v3824, %v3824
    %v3889 = vmul.f32 %v3825, %v3825
    %v3890 = vmul.f32 %v3826, %v3826
    %v3891 = vmul.f32 %v3827, %v3827
    %v3892 = vmul.f32 %v3828, %v3828
    %v3893 = vmul.f32 %v3829, %v3829
    %v3894 = vmul.f32 %v3830, %v3830
    %v3895 = vmul.f32 %v3831, %v3831
    %v3896 = vmul.f32 %v3832, %v3832
    %v3897 = vmul.f32 %v3833, %v3833
    %v3898 = vmul.f32 %v3834, %v3834
    %v3899 = vmul.f32 %v3835, %v3835
    %v3900 = vadd.f32 %v3836, %v3837
    %3901 = vadd.xlane.f32.xlu0 %v3900
    %v3902 = vpop.xlane.xlu0 %3901
    %v3903 = vadd.f32 %v3838, %v3839
    %3904 = vadd.xlane.f32.xlu0 %v3903
    %v3905 = vpop.xlane.xlu0 %3904
    %v3906 = vadd.f32 %v3840, %v3841
    %3907 = vadd.xlane.f32.xlu0 %v3906
    %v3908 = vpop.xlane.xlu0 %3907
    %v3909 = vadd.f32 %v3842, %v3843
    %3910 = vadd.xlane.f32.xlu0 %v3909
    %v3911 = vpop.xlane.xlu0 %3910
    %v3912 = vadd.f32 %v3844, %v3845
    %3913 = vadd.xlane.f32.xlu0 %v3912
    %v3914 = vpop.xlane.xlu0 %3913
    %v3915 = vadd.f32 %v3846, %v3847
    %3916 = vadd.xlane.f32.xlu0 %v3915
    %v3917 = vpop.xlane.xlu0 %3916
    %v3918 = vadd.f32 %v3848, %v3849
    %3919 = vadd.xlane.f32.xlu0 %v3918
    %v3920 = vpop.xlane.xlu0 %3919
    %v3921 = vadd.f32 %v3850, %v3851
    %3922 = vadd.xlane.f32.xlu0 %v3921
    %v3923 = vpop.xlane.xlu0 %3922
    %v3924 = vadd.f32 %v3852, %v3853
    %3925 = vadd.xlane.f32.xlu0 %v3924
    %v3926 = vpop.xlane.xlu0 %3925
    %v3927 = vadd.f32 %v3854, %v3855
    %3928 = vadd.xlane.f32.xlu0 %v3927
    %v3929 = vpop.xlane.xlu0 %3928
    %v3930 = vadd.f32 %v3856, %v3857
    %3931 = vadd.xlane.f32.xlu0 %v3930
    %v3932 = vpop.xlane.xlu0 %3931
    %v3933 = vadd.f32 %v3858, %v3859
    %3934 = vadd.xlane.f32.xlu0 %v3933
    %v3935 = vpop.xlane.xlu0 %3934
    %v3936 = vadd.f32 %v3860, %v3861
    %3937 = vadd.xlane.f32.xlu0 %v3936
    %v3938 = vpop.xlane.xlu0 %3937
    %v3939 = vadd.f32 %v3862, %v3863
    %3940 = vadd.xlane.f32.xlu0 %v3939
    %v3941 = vpop.xlane.xlu0 %3940
    %v3942 = vadd.f32 %v3864, %v3865
    %3943 = vadd.xlane.f32.xlu0 %v3942
    %v3944 = vpop.xlane.xlu0 %3943
    %v3945 = vadd.f32 %v3866, %v3867
    %3946 = vadd.xlane.f32.xlu0 %v3945
    %v3947 = vpop.xlane.xlu0 %3946
    %v3948 = vadd.f32 %v3868, %v3869
    %3949 = vadd.xlane.f32.xlu0 %v3948
    %v3950 = vpop.xlane.xlu0 %3949
    %v3951 = vadd.f32 %v3870, %v3871
    %3952 = vadd.xlane.f32.xlu0 %v3951
    %v3953 = vpop.xlane.xlu0 %3952
    %v3954 = vadd.f32 %v3872, %v3873
    %3955 = vadd.xlane.f32.xlu0 %v3954
    %v3956 = vpop.xlane.xlu0 %3955
    %v3957 = vadd.f32 %v3874, %v3875
    %3958 = vadd.xlane.f32.xlu0 %v3957
    %v3959 = vpop.xlane.xlu0 %3958
    %v3960 = vadd.f32 %v3876, %v3877
    %3961 = vadd.xlane.f32.xlu0 %v3960
    %v3962 = vpop.xlane.xlu0 %3961
    %v3963 = vadd.f32 %v3878, %v3879
    %3964 = vadd.xlane.f32.xlu0 %v3963
    %v3965 = vpop.xlane.xlu0 %3964
    %v3966 = vadd.f32 %v3880, %v3881
    %3967 = vadd.xlane.f32.xlu0 %v3966
    %v3968 = vpop.xlane.xlu0 %3967
    %v3969 = vadd.f32 %v3882, %v3883
    %3970 = vadd.xlane.f32.xlu0 %v3969
    %v3971 = vpop.xlane.xlu0 %3970
    %v3972 = vadd.f32 %v3884, %v3885
    %3973 = vadd.xlane.f32.xlu0 %v3972
    %v3974 = vpop.xlane.xlu0 %3973
    %v3975 = vadd.f32 %v3886, %v3887
    %3976 = vadd.xlane.f32.xlu0 %v3975
    %v3977 = vpop.xlane.xlu0 %3976
    %v3978 = vadd.f32 %v3888, %v3889
    %3979 = vadd.xlane.f32.xlu0 %v3978
    %v3980 = vpop.xlane.xlu0 %3979
    %v3981 = vadd.f32 %v3890, %v3891
    %3982 = vadd.xlane.f32.xlu0 %v3981
    %v3983 = vpop.xlane.xlu0 %3982
    %v3984 = vadd.f32 %v3892, %v3893
    %3985 = vadd.xlane.f32.xlu0 %v3984
    %v3986 = vpop.xlane.xlu0 %3985
    %v3987 = vadd.f32 %v3894, %v3895
    %3988 = vadd.xlane.f32.xlu0 %v3987
    %v3989 = vpop.xlane.xlu0 %3988
    %v3990 = vadd.f32 %v3896, %v3897
    %3991 = vadd.xlane.f32.xlu0 %v3990
    %v3992 = vpop.xlane.xlu0 %3991
    %v3993 = vadd.f32 %v3898, %v3899
    %3994 = vadd.xlane.f32.xlu0 %v3993
    %v3995 = vpop.xlane.xlu0 %3994
    %v3996 = vmul.f32 %v3902, %v320
    %v3997 = vmul.f32 %v3905, %v320
    %v3998 = vmul.f32 %v3908, %v320
    %v3999 = vmul.f32 %v3911, %v320
    %v4000 = vmul.f32 %v3914, %v320
    %v4001 = vmul.f32 %v3917, %v320
    %v4002 = vmul.f32 %v3920, %v320
    %v4003 = vmul.f32 %v3923, %v320
    %v4004 = vmul.f32 %v3926, %v320
    %v4005 = vmul.f32 %v3929, %v320
    %v4006 = vmul.f32 %v3932, %v320
    %v4007 = vmul.f32 %v3935, %v320
    %v4008 = vmul.f32 %v3938, %v320
    %v4009 = vmul.f32 %v3941, %v320
    %v4010 = vmul.f32 %v3944, %v320
    %v4011 = vmul.f32 %v3947, %v320
    %v4012 = vmul.f32 %v3950, %v320
    %v4013 = vmul.f32 %v3953, %v320
    %v4014 = vmul.f32 %v3956, %v320
    %v4015 = vmul.f32 %v3959, %v320
    %v4016 = vmul.f32 %v3962, %v320
    %v4017 = vmul.f32 %v3965, %v320
    %v4018 = vmul.f32 %v3968, %v320
    %v4019 = vmul.f32 %v3971, %v320
    %v4020 = vmul.f32 %v3974, %v320
    %v4021 = vmul.f32 %v3977, %v320
    %v4022 = vmul.f32 %v3980, %v320
    %v4023 = vmul.f32 %v3983, %v320
    %v4024 = vmul.f32 %v3986, %v320
    %v4025 = vmul.f32 %v3989, %v320
    %v4026 = vmul.f32 %v3992, %v320
    %v4027 = vmul.f32 %v3995, %v320
    %v4028 = vadd.f32 %v3996, 1e-06
    %v4029 = vadd.f32 %v3997, 1e-06
    %v4030 = vadd.f32 %v3998, 1e-06
    %v4031 = vadd.f32 %v3999, 1e-06
    %v4032 = vadd.f32 %v4000, 1e-06
    %v4033 = vadd.f32 %v4001, 1e-06
    %v4034 = vadd.f32 %v4002, 1e-06
    %v4035 = vadd.f32 %v4003, 1e-06
    %v4036 = vadd.f32 %v4004, 1e-06
    %v4037 = vadd.f32 %v4005, 1e-06
    %v4038 = vadd.f32 %v4006, 1e-06
    %v4039 = vadd.f32 %v4007, 1e-06
    %v4040 = vadd.f32 %v4008, 1e-06
    %v4041 = vadd.f32 %v4009, 1e-06
    %v4042 = vadd.f32 %v4010, 1e-06
    %v4043 = vadd.f32 %v4011, 1e-06
    %v4044 = vadd.f32 %v4012, 1e-06
    %v4045 = vadd.f32 %v4013, 1e-06
    %v4046 = vadd.f32 %v4014, 1e-06
    %v4047 = vadd.f32 %v4015, 1e-06
    %v4048 = vadd.f32 %v4016, 1e-06
    %v4049 = vadd.f32 %v4017, 1e-06
    %v4050 = vadd.f32 %v4018, 1e-06
    %v4051 = vadd.f32 %v4019, 1e-06
    %v4052 = vadd.f32 %v4020, 1e-06
    %v4053 = vadd.f32 %v4021, 1e-06
    %v4054 = vadd.f32 %v4022, 1e-06
    %v4055 = vadd.f32 %v4023, 1e-06
    %v4056 = vadd.f32 %v4024, 1e-06
    %v4057 = vadd.f32 %v4025, 1e-06
    %v4058 = vadd.f32 %v4026, 1e-06
    %v4059 = vadd.f32 %v4027, 1e-06
    %v4060 = vrsqrt.pop %v4028
    %v4061 = vrsqrt.pop %v4029
    %v4062 = vrsqrt.pop %v4030
    %v4063 = vrsqrt.pop %v4031
    %v4064 = vrsqrt.pop %v4032
    %v4065 = vrsqrt.pop %v4033
    %v4066 = vrsqrt.pop %v4034
    %v4067 = vrsqrt.pop %v4035
    %v4068 = vrsqrt.pop %v4036
    %v4069 = vrsqrt.pop %v4037
    %v4070 = vrsqrt.pop %v4038
    %v4071 = vrsqrt.pop %v4039
    %v4072 = vrsqrt.pop %v4040
    %v4073 = vrsqrt.pop %v4041
    %v4074 = vrsqrt.pop %v4042
    %v4075 = vrsqrt.pop %v4043
    %v4076 = vrsqrt.pop %v4044
    %v4077 = vrsqrt.pop %v4045
    %v4078 = vrsqrt.pop %v4046
    %v4079 = vrsqrt.pop %v4047
    %v4080 = vrsqrt.pop %v4048
    %v4081 = vrsqrt.pop %v4049
    %v4082 = vrsqrt.pop %v4050
    %v4083 = vrsqrt.pop %v4051
    %v4084 = vrsqrt.pop %v4052
    %v4085 = vrsqrt.pop %v4053
    %v4086 = vrsqrt.pop %v4054
    %v4087 = vrsqrt.pop %v4055
    %v4088 = vrsqrt.pop %v4056
    %v4089 = vrsqrt.pop %v4057
    %v4090 = vrsqrt.pop %v4058
    %v4091 = vrsqrt.pop %v4059
    %v4092 = vmul.f32 %v3772, %v4060
    %v4093 = vmul.f32 %v3773, %v4060
    %v4094 = vmul.f32 %v3774, %v4061
    %v4095 = vmul.f32 %v3775, %v4061
    %v4096 = vmul.f32 %v3776, %v4062
    %v4097 = vmul.f32 %v3777, %v4062
    %v4098 = vmul.f32 %v3778, %v4063
    %v4099 = vmul.f32 %v3779, %v4063
    %v4100 = vmul.f32 %v3780, %v4064
    %v4101 = vmul.f32 %v3781, %v4064
    %v4102 = vmul.f32 %v3782, %v4065
    %v4103 = vmul.f32 %v3783, %v4065
    %v4104 = vmul.f32 %v3784, %v4066
    %v4105 = vmul.f32 %v3785, %v4066
    %v4106 = vmul.f32 %v3786, %v4067
    %v4107 = vmul.f32 %v3787, %v4067
    %v4108 = vmul.f32 %v3788, %v4068
    %v4109 = vmul.f32 %v3789, %v4068
    %v4110 = vmul.f32 %v3790, %v4069
    %v4111 = vmul.f32 %v3791, %v4069
    %v4112 = vmul.f32 %v3792, %v4070
    %v4113 = vmul.f32 %v3793, %v4070
    %v4114 = vmul.f32 %v3794, %v4071
    %v4115 = vmul.f32 %v3795, %v4071
    %v4116 = vmul.f32 %v3796, %v4072
    %v4117 = vmul.f32 %v3797, %v4072
    %v4118 = vmul.f32 %v3798, %v4073
    %v4119 = vmul.f32 %v3799, %v4073
    %v4120 = vmul.f32 %v3800, %v4074
    %v4121 = vmul.f32 %v3801, %v4074
    %v4122 = vmul.f32 %v3802, %v4075
    %v4123 = vmul.f32 %v3803, %v4075
    %v4124 = vmul.f32 %v3804, %v4076
    %v4125 = vmul.f32 %v3805, %v4076
    %v4126 = vmul.f32 %v3806, %v4077
    %v4127 = vmul.f32 %v3807, %v4077
    %v4128 = vmul.f32 %v3808, %v4078
    %v4129 = vmul.f32 %v3809, %v4078
    %v4130 = vmul.f32 %v3810, %v4079
    %v4131 = vmul.f32 %v3811, %v4079
    %v4132 = vmul.f32 %v3812, %v4080
    %v4133 = vmul.f32 %v3813, %v4080
    %v4134 = vmul.f32 %v3814, %v4081
    %v4135 = vmul.f32 %v3815, %v4081
    %v4136 = vmul.f32 %v3816, %v4082
    %v4137 = vmul.f32 %v3817, %v4082
    %v4138 = vmul.f32 %v3818, %v4083
    %v4139 = vmul.f32 %v3819, %v4083
    %v4140 = vmul.f32 %v3820, %v4084
    %v4141 = vmul.f32 %v3821, %v4084
    %v4142 = vmul.f32 %v3822, %v4085
    %v4143 = vmul.f32 %v3823, %v4085
    %v4144 = vmul.f32 %v3824, %v4086
    %v4145 = vmul.f32 %v3825, %v4086
    %v4146 = vmul.f32 %v3826, %v4087
    %v4147 = vmul.f32 %v3827, %v4087
    %v4148 = vmul.f32 %v3828, %v4088
    %v4149 = vmul.f32 %v3829, %v4088
    %v4150 = vmul.f32 %v3830, %v4089
    %v4151 = vmul.f32 %v3831, %v4089
    %v4152 = vmul.f32 %v3832, %v4090
    %v4153 = vmul.f32 %v3833, %v4090
    %v4154 = vmul.f32 %v3834, %v4091
    %v4155 = vmul.f32 %v3835, %v4091
    %v4156 = vld [vmem:[%s4] sm:$0x3]
    %v4158 = vlaneseq
    %v4159 = vshrl.u32 %v4158, 7
    %v4160 = vsub.s32 0, %v4159
    %v4161 = vrot.slane %v4156, %v4160
    %v4162 = vlaneseq
    %v4163 = vshrl.u32 %v4162, 7
    %v4164 = vsub.s32 1, %v4163
    %v4165 = vrot.slane %v4156, %v4164
    %v4168 = vmul.f32 %v4092, %v4161
    %v4169 = vmul.f32 %v4093, %v4165
    %v4170 = vmul.f32 %v4094, %v4161
    %v4171 = vmul.f32 %v4095, %v4165
    %v4172 = vmul.f32 %v4096, %v4161
    %v4173 = vmul.f32 %v4097, %v4165
    %v4174 = vmul.f32 %v4098, %v4161
    %v4175 = vmul.f32 %v4099, %v4165
    %v4176 = vmul.f32 %v4100, %v4161
    %v4177 = vmul.f32 %v4101, %v4165
    %v4178 = vmul.f32 %v4102, %v4161
    %v4179 = vmul.f32 %v4103, %v4165
    %v4180 = vmul.f32 %v4104, %v4161
    %v4181 = vmul.f32 %v4105, %v4165
    %v4182 = vmul.f32 %v4106, %v4161
    %v4183 = vmul.f32 %v4107, %v4165
    %v4184 = vmul.f32 %v4108, %v4161
    %v4185 = vmul.f32 %v4109, %v4165
    %v4186 = vmul.f32 %v4110, %v4161
    %v4187 = vmul.f32 %v4111, %v4165
    %v4188 = vmul.f32 %v4112, %v4161
    %v4189 = vmul.f32 %v4113, %v4165
    %v4190 = vmul.f32 %v4114, %v4161
    %v4191 = vmul.f32 %v4115, %v4165
    %v4192 = vmul.f32 %v4116, %v4161
    %v4193 = vmul.f32 %v4117, %v4165
    %v4194 = vmul.f32 %v4118, %v4161
    %v4195 = vmul.f32 %v4119, %v4165
    %v4196 = vmul.f32 %v4120, %v4161
    %v4197 = vmul.f32 %v4121, %v4165
    %v4198 = vmul.f32 %v4122, %v4161
    %v4199 = vmul.f32 %v4123, %v4165
    %v4200 = vmul.f32 %v4124, %v4161
    %v4201 = vmul.f32 %v4125, %v4165
    %v4202 = vmul.f32 %v4126, %v4161
    %v4203 = vmul.f32 %v4127, %v4165
    %v4204 = vmul.f32 %v4128, %v4161
    %v4205 = vmul.f32 %v4129, %v4165
    %v4206 = vmul.f32 %v4130, %v4161
    %v4207 = vmul.f32 %v4131, %v4165
    %v4208 = vmul.f32 %v4132, %v4161
    %v4209 = vmul.f32 %v4133, %v4165
    %v4210 = vmul.f32 %v4134, %v4161
    %v4211 = vmul.f32 %v4135, %v4165
    %v4212 = vmul.f32 %v4136, %v4161
    %v4213 = vmul.f32 %v4137, %v4165
    %v4214 = vmul.f32 %v4138, %v4161
    %v4215 = vmul.f32 %v4139, %v4165
    %v4216 = vmul.f32 %v4140, %v4161
    %v4217 = vmul.f32 %v4141, %v4165
    %v4218 = vmul.f32 %v4142, %v4161
    %v4219 = vmul.f32 %v4143, %v4165
    %v4220 = vmul.f32 %v4144, %v4161
    %v4221 = vmul.f32 %v4145, %v4165
    %v4222 = vmul.f32 %v4146, %v4161
    %v4223 = vmul.f32 %v4147, %v4165
    %v4224 = vmul.f32 %v4148, %v4161
    %v4225 = vmul.f32 %v4149, %v4165
    %v4226 = vmul.f32 %v4150, %v4161
    %v4227 = vmul.f32 %v4151, %v4165
    %v4228 = vmul.f32 %v4152, %v4161
    %v4229 = vmul.f32 %v4153, %v4165
    %v4230 = vmul.f32 %v4154, %v4161
    %v4231 = vmul.f32 %v4155, %v4165
    %v4232 = vpack.c.bf16 %v4170, %v4168
    %v4233 = vpack.c.bf16 %v4171, %v4169
    %v4234 = vpack.c.bf16 %v4174, %v4172
    %v4235 = vpack.c.bf16 %v4175, %v4173
    %v4236 = vpack.c.bf16 %v4178, %v4176
    %v4237 = vpack.c.bf16 %v4179, %v4177
    %v4238 = vpack.c.bf16 %v4182, %v4180
    %v4239 = vpack.c.bf16 %v4183, %v4181
    %v4240 = vpack.c.bf16 %v4186, %v4184
    %v4241 = vpack.c.bf16 %v4187, %v4185
    %v4242 = vpack.c.bf16 %v4190, %v4188
    %v4243 = vpack.c.bf16 %v4191, %v4189
    %v4244 = vpack.c.bf16 %v4194, %v4192
    %v4245 = vpack.c.bf16 %v4195, %v4193
    %v4246 = vpack.c.bf16 %v4198, %v4196
    %v4247 = vpack.c.bf16 %v4199, %v4197
    %v4248 = vpack.c.bf16 %v4202, %v4200
    %v4249 = vpack.c.bf16 %v4203, %v4201
    %v4250 = vpack.c.bf16 %v4206, %v4204
    %v4251 = vpack.c.bf16 %v4207, %v4205
    %v4252 = vpack.c.bf16 %v4210, %v4208
    %v4253 = vpack.c.bf16 %v4211, %v4209
    %v4254 = vpack.c.bf16 %v4214, %v4212
    %v4255 = vpack.c.bf16 %v4215, %v4213
    %v4256 = vpack.c.bf16 %v4218, %v4216
    %v4257 = vpack.c.bf16 %v4219, %v4217
    %v4258 = vpack.c.bf16 %v4222, %v4220
    %v4259 = vpack.c.bf16 %v4223, %v4221
    %v4260 = vpack.c.bf16 %v4226, %v4224
    %v4261 = vpack.c.bf16 %v4227, %v4225
    %v4262 = vpack.c.bf16 %v4230, %v4228
    %v4263 = vpack.c.bf16 %v4231, %v4229
    %v4264 = vld [vmem:[#allocation8] sm:$0xff]
    %v4265 = vld [vmem:[#allocation8 + $0x8] sm:$0xff]
    %v4266 = vld [vmem:[#allocation8 + $0x10] sm:$0xff]
    %v4267 = vld [vmem:[#allocation8 + $0x18] sm:$0xff]
    %v4268 = vld [vmem:[#allocation8 + $0x20] sm:$0xff]
    %v4269 = vld [vmem:[#allocation8 + $0x28] sm:$0xff]
    %v4270 = vld [vmem:[#allocation8 + $0x30] sm:$0xff]
    %v4271 = vld [vmem:[#allocation8 + $0x38] sm:$0xff]
    %v4272 = vld [vmem:[#allocation8 + $0x40] sm:$0xff]
    %v4273 = vld [vmem:[#allocation8 + $0x48] sm:$0xff]
    %v4274 = vld [vmem:[#allocation8 + $0x50] sm:$0xff]
    %v4275 = vld [vmem:[#allocation8 + $0x58] sm:$0xff]
    %v4276 = vld [vmem:[#allocation8 + $0x60] sm:$0xff]
    %v4277 = vld [vmem:[#allocation8 + $0x68] sm:$0xff]
    %v4278 = vld [vmem:[#allocation8 + $0x70] sm:$0xff]
    %v4279 = vld [vmem:[#allocation8 + $0x78] sm:$0xff]
    %v4280 = vld [vmem:[#allocation8 + $0x80] sm:$0xff]
    %v4281 = vld [vmem:[#allocation8 + $0x88] sm:$0xff]
    %v4282 = vld [vmem:[#allocation8 + $0x90] sm:$0xff]
    %v4283 = vld [vmem:[#allocation8 + $0x98] sm:$0xff]
    %v4284 = vld [vmem:[#allocation8 + $0xa0] sm:$0xff]
    %v4285 = vld [vmem:[#allocation8 + $0xa8] sm:$0xff]
    %v4286 = vld [vmem:[#allocation8 + $0xb0] sm:$0xff]
    %v4287 = vld [vmem:[#allocation8 + $0xb8] sm:$0xff]
    %v4288 = vld [vmem:[#allocation8 + $0xc0] sm:$0xff]
    %v4289 = vld [vmem:[#allocation8 + $0xc8] sm:$0xff]
    %v4290 = vld [vmem:[#allocation8 + $0xd0] sm:$0xff]
    %v4291 = vld [vmem:[#allocation8 + $0xd8] sm:$0xff]
    %v4292 = vld [vmem:[#allocation8 + $0xe0] sm:$0xff]
    %v4293 = vld [vmem:[#allocation8 + $0xe8] sm:$0xff]
    %v4294 = vld [vmem:[#allocation8 + $0xf0] sm:$0xff]
    %v4295 = vld [vmem:[#allocation8 + $0xf8] sm:$0xff]
    %v4296 = vld [vmem:[#allocation8 + $0x100] sm:$0xff]
    %v4297 = vld [vmem:[#allocation8 + $0x108] sm:$0xff]
    %v4298 = vld [vmem:[#allocation8 + $0x110] sm:$0xff]
    %v4299 = vld [vmem:[#allocation8 + $0x118] sm:$0xff]
    %v4300 = vld [vmem:[#allocation8 + $0x120] sm:$0xff]
    %v4301 = vld [vmem:[#allocation8 + $0x128] sm:$0xff]
    %v4302 = vld [vmem:[#allocation8 + $0x130] sm:$0xff]
    %v4303 = vld [vmem:[#allocation8 + $0x138] sm:$0xff]
    %v4304 = vld [vmem:[#allocation8 + $0x140] sm:$0xff]
    %v4305 = vld [vmem:[#allocation8 + $0x148] sm:$0xff]
    %v4306 = vld [vmem:[#allocation8 + $0x150] sm:$0xff]
    %v4307 = vld [vmem:[#allocation8 + $0x158] sm:$0xff]
    %v4308 = vld [vmem:[#allocation8 + $0x160] sm:$0xff]
    %v4309 = vld [vmem:[#allocation8 + $0x168] sm:$0xff]
    %v4310 = vld [vmem:[#allocation8 + $0x170] sm:$0xff]
    %v4311 = vld [vmem:[#allocation8 + $0x178] sm:$0xff]
    %v4312 = vld [vmem:[#allocation8 + $0x180] sm:$0xff]
    %v4313 = vld [vmem:[#allocation8 + $0x188] sm:$0xff]
    %v4314 = vld [vmem:[#allocation8 + $0x190] sm:$0xff]
    %v4315 = vld [vmem:[#allocation8 + $0x198] sm:$0xff]
    %v4316 = vld [vmem:[#allocation8 + $0x1a0] sm:$0xff]
    %v4317 = vld [vmem:[#allocation8 + $0x1a8] sm:$0xff]
    %v4318 = vld [vmem:[#allocation8 + $0x1b0] sm:$0xff]
    %v4319 = vld [vmem:[#allocation8 + $0x1b8] sm:$0xff]
    %v4320 = vld [vmem:[#allocation8 + $0x1c0] sm:$0xff]
    %v4321 = vld [vmem:[#allocation8 + $0x1c8] sm:$0xff]
    %v4322 = vld [vmem:[#allocation8 + $0x1d0] sm:$0xff]
    %v4323 = vld [vmem:[#allocation8 + $0x1d8] sm:$0xff]
    %v4324 = vld [vmem:[#allocation8 + $0x1e0] sm:$0xff]
    %v4325 = vld [vmem:[#allocation8 + $0x1e8] sm:$0xff]
    %v4326 = vld [vmem:[#allocation8 + $0x1f0] sm:$0xff]
    %v4327 = vld [vmem:[#allocation8 + $0x1f8] sm:$0xff]
    %v4328 = vld [vmem:[#allocation8 + $0x200] sm:$0xff]
    %v4329 = vld [vmem:[#allocation8 + $0x208] sm:$0xff]
    %v4330 = vld [vmem:[#allocation8 + $0x210] sm:$0xff]
    %v4331 = vld [vmem:[#allocation8 + $0x218] sm:$0xff]
    %v4332 = vld [vmem:[#allocation8 + $0x220] sm:$0xff]
    %v4333 = vld [vmem:[#allocation8 + $0x228] sm:$0xff]
    %v4334 = vld [vmem:[#allocation8 + $0x230] sm:$0xff]
    %v4335 = vld [vmem:[#allocation8 + $0x238] sm:$0xff]
    %v4336 = vld [vmem:[#allocation8 + $0x240] sm:$0xff]
    %v4337 = vld [vmem:[#allocation8 + $0x248] sm:$0xff]
    %v4338 = vld [vmem:[#allocation8 + $0x250] sm:$0xff]
    %v4339 = vld [vmem:[#allocation8 + $0x258] sm:$0xff]
    %v4340 = vld [vmem:[#allocation8 + $0x260] sm:$0xff]
    %v4341 = vld [vmem:[#allocation8 + $0x268] sm:$0xff]
    %v4342 = vld [vmem:[#allocation8 + $0x270] sm:$0xff]
    %v4343 = vld [vmem:[#allocation8 + $0x278] sm:$0xff]
    %v4344 = vld [vmem:[#allocation8 + $0x280] sm:$0xff]
    %v4345 = vld [vmem:[#allocation8 + $0x288] sm:$0xff]
    %v4346 = vld [vmem:[#allocation8 + $0x290] sm:$0xff]
    %v4347 = vld [vmem:[#allocation8 + $0x298] sm:$0xff]
    %v4348 = vld [vmem:[#allocation8 + $0x2a0] sm:$0xff]
    %v4349 = vld [vmem:[#allocation8 + $0x2a8] sm:$0xff]
    %v4350 = vld [vmem:[#allocation8 + $0x2b0] sm:$0xff]
    %v4351 = vld [vmem:[#allocation8 + $0x2b8] sm:$0xff]
    %v4352 = vld [vmem:[#allocation8 + $0x2c0] sm:$0xff]
    %v4353 = vld [vmem:[#allocation8 + $0x2c8] sm:$0xff]
    %v4354 = vld [vmem:[#allocation8 + $0x2d0] sm:$0xff]
    %v4355 = vld [vmem:[#allocation8 + $0x2d8] sm:$0xff]
    %v4356 = vld [vmem:[#allocation8 + $0x2e0] sm:$0xff]
    %v4357 = vld [vmem:[#allocation8 + $0x2e8] sm:$0xff]
    %v4358 = vld [vmem:[#allocation8 + $0x2f0] sm:$0xff]
    %v4359 = vld [vmem:[#allocation8 + $0x2f8] sm:$0xff]
    %v4360 = vld [vmem:[#allocation8 + $0x300] sm:$0xff]
    %v4361 = vld [vmem:[#allocation8 + $0x308] sm:$0xff]
    %v4362 = vld [vmem:[#allocation8 + $0x310] sm:$0xff]
    %v4363 = vld [vmem:[#allocation8 + $0x318] sm:$0xff]
    %v4364 = vld [vmem:[#allocation8 + $0x320] sm:$0xff]
    %v4365 = vld [vmem:[#allocation8 + $0x328] sm:$0xff]
    %v4366 = vld [vmem:[#allocation8 + $0x330] sm:$0xff]
    %v4367 = vld [vmem:[#allocation8 + $0x338] sm:$0xff]
    %v4368 = vld [vmem:[#allocation8 + $0x340] sm:$0xff]
    %v4369 = vld [vmem:[#allocation8 + $0x348] sm:$0xff]
    %v4370 = vld [vmem:[#allocation8 + $0x350] sm:$0xff]
    %v4371 = vld [vmem:[#allocation8 + $0x358] sm:$0xff]
    %v4372 = vld [vmem:[#allocation8 + $0x360] sm:$0xff]
    %v4373 = vld [vmem:[#allocation8 + $0x368] sm:$0xff]
    %v4374 = vld [vmem:[#allocation8 + $0x370] sm:$0xff]
    %v4375 = vld [vmem:[#allocation8 + $0x378] sm:$0xff]
    %v4376 = vld [vmem:[#allocation8 + $0x380] sm:$0xff]
    %v4377 = vld [vmem:[#allocation8 + $0x388] sm:$0xff]
    %v4378 = vld [vmem:[#allocation8 + $0x390] sm:$0xff]
    %v4379 = vld [vmem:[#allocation8 + $0x398] sm:$0xff]
    %v4380 = vld [vmem:[#allocation8 + $0x3a0] sm:$0xff]
    %v4381 = vld [vmem:[#allocation8 + $0x3a8] sm:$0xff]
    %v4382 = vld [vmem:[#allocation8 + $0x3b0] sm:$0xff]
    %v4383 = vld [vmem:[#allocation8 + $0x3b8] sm:$0xff]
    %v4384 = vld [vmem:[#allocation8 + $0x3c0] sm:$0xff]
    %v4385 = vld [vmem:[#allocation8 + $0x3c8] sm:$0xff]
    %v4386 = vld [vmem:[#allocation8 + $0x3d0] sm:$0xff]
    %v4387 = vld [vmem:[#allocation8 + $0x3d8] sm:$0xff]
    %v4388 = vld [vmem:[#allocation8 + $0x3e0] sm:$0xff]
    %v4389 = vld [vmem:[#allocation8 + $0x3e8] sm:$0xff]
    %v4390 = vld [vmem:[#allocation8 + $0x3f0] sm:$0xff]
    %v4391 = vld [vmem:[#allocation8 + $0x3f8] sm:$0xff]
    %v4520 = vunpack.c.l.b16 %v4264
    %v4521 = vunpack.c.h.b16 %v4264
    %v4522 = vunpack.c.l.b16 %v4265
    %v4523 = vunpack.c.h.b16 %v4265
    %v4524 = vunpack.c.l.b16 %v4266
    %v4525 = vunpack.c.h.b16 %v4266
    %v4526 = vunpack.c.l.b16 %v4267
    %v4527 = vunpack.c.h.b16 %v4267
    %v4528 = vunpack.c.l.b16 %v4268
    %v4529 = vunpack.c.h.b16 %v4268
    %v4530 = vunpack.c.l.b16 %v4269
    %v4531 = vunpack.c.h.b16 %v4269
    %v4532 = vunpack.c.l.b16 %v4270
    %v4533 = vunpack.c.h.b16 %v4270
    %v4534 = vunpack.c.l.b16 %v4271
    %v4535 = vunpack.c.h.b16 %v4271
    %v4536 = vunpack.c.l.b16 %v4272
    %v4537 = vunpack.c.h.b16 %v4272
    %v4538 = vunpack.c.l.b16 %v4273
    %v4539 = vunpack.c.h.b16 %v4273
    %v4540 = vunpack.c.l.b16 %v4274
    %v4541 = vunpack.c.h.b16 %v4274
    %v4542 = vunpack.c.l.b16 %v4275
    %v4543 = vunpack.c.h.b16 %v4275
    %v4544 = vunpack.c.l.b16 %v4276
    %v4545 = vunpack.c.h.b16 %v4276
    %v4546 = vunpack.c.l.b16 %v4277
    %v4547 = vunpack.c.h.b16 %v4277
    %v4548 = vunpack.c.l.b16 %v4278
    %v4549 = vunpack.c.h.b16 %v4278
    %v4550 = vunpack.c.l.b16 %v4279
    %v4551 = vunpack.c.h.b16 %v4279
    %v4552 = vunpack.c.l.b16 %v4280
    %v4553 = vunpack.c.h.b16 %v4280
    %v4554 = vunpack.c.l.b16 %v4281
    %v4555 = vunpack.c.h.b16 %v4281
    %v4556 = vunpack.c.l.b16 %v4282
    %v4557 = vunpack.c.h.b16 %v4282
    %v4558 = vunpack.c.l.b16 %v4283
    %v4559 = vunpack.c.h.b16 %v4283
    %v4560 = vunpack.c.l.b16 %v4284
    %v4561 = vunpack.c.h.b16 %v4284
    %v4562 = vunpack.c.l.b16 %v4285
    %v4563 = vunpack.c.h.b16 %v4285
    %v4564 = vunpack.c.l.b16 %v4286
    %v4565 = vunpack.c.h.b16 %v4286
    %v4566 = vunpack.c.l.b16 %v4287
    %v4567 = vunpack.c.h.b16 %v4287
    %v4568 = vunpack.c.l.b16 %v4288
    %v4569 = vunpack.c.h.b16 %v4288
    %v4570 = vunpack.c.l.b16 %v4289
    %v4571 = vunpack.c.h.b16 %v4289
    %v4572 = vunpack.c.l.b16 %v4290
    %v4573 = vunpack.c.h.b16 %v4290
    %v4574 = vunpack.c.l.b16 %v4291
    %v4575 = vunpack.c.h.b16 %v4291
    %v4576 = vunpack.c.l.b16 %v4292
    %v4577 = vunpack.c.h.b16 %v4292
    %v4578 = vunpack.c.l.b16 %v4293
    %v4579 = vunpack.c.h.b16 %v4293
    %v4580 = vunpack.c.l.b16 %v4294
    %v4581 = vunpack.c.h.b16 %v4294
    %v4582 = vunpack.c.l.b16 %v4295
    %v4583 = vunpack.c.h.b16 %v4295
    %v4584 = vunpack.c.l.b16 %v4296
    %v4585 = vunpack.c.h.b16 %v4296
    %v4586 = vunpack.c.l.b16 %v4297
    %v4587 = vunpack.c.h.b16 %v4297
    %v4588 = vunpack.c.l.b16 %v4298
    %v4589 = vunpack.c.h.b16 %v4298
    %v4590 = vunpack.c.l.b16 %v4299
    %v4591 = vunpack.c.h.b16 %v4299
    %v4592 = vunpack.c.l.b16 %v4300
    %v4593 = vunpack.c.h.b16 %v4300
    %v4594 = vunpack.c.l.b16 %v4301
    %v4595 = vunpack.c.h.b16 %v4301
    %v4596 = vunpack.c.l.b16 %v4302
    %v4597 = vunpack.c.h.b16 %v4302
    %v4598 = vunpack.c.l.b16 %v4303
    %v4599 = vunpack.c.h.b16 %v4303
    %v4600 = vunpack.c.l.b16 %v4304
    %v4601 = vunpack.c.h.b16 %v4304
    %v4602 = vunpack.c.l.b16 %v4305
    %v4603 = vunpack.c.h.b16 %v4305
    %v4604 = vunpack.c.l.b16 %v4306
    %v4605 = vunpack.c.h.b16 %v4306
    %v4606 = vunpack.c.l.b16 %v4307
    %v4607 = vunpack.c.h.b16 %v4307
    %v4608 = vunpack.c.l.b16 %v4308
    %v4609 = vunpack.c.h.b16 %v4308
    %v4610 = vunpack.c.l.b16 %v4309
    %v4611 = vunpack.c.h.b16 %v4309
    %v4612 = vunpack.c.l.b16 %v4310
    %v4613 = vunpack.c.h.b16 %v4310
    %v4614 = vunpack.c.l.b16 %v4311
    %v4615 = vunpack.c.h.b16 %v4311
    %v4616 = vunpack.c.l.b16 %v4312
    %v4617 = vunpack.c.h.b16 %v4312
    %v4618 = vunpack.c.l.b16 %v4313
    %v4619 = vunpack.c.h.b16 %v4313
    %v4620 = vunpack.c.l.b16 %v4314
    %v4621 = vunpack.c.h.b16 %v4314
    %v4622 = vunpack.c.l.b16 %v4315
    %v4623 = vunpack.c.h.b16 %v4315
    %v4624 = vunpack.c.l.b16 %v4316
    %v4625 = vunpack.c.h.b16 %v4316
    %v4626 = vunpack.c.l.b16 %v4317
    %v4627 = vunpack.c.h.b16 %v4317
    %v4628 = vunpack.c.l.b16 %v4318
    %v4629 = vunpack.c.h.b16 %v4318
    %v4630 = vunpack.c.l.b16 %v4319
    %v4631 = vunpack.c.h.b16 %v4319
    %v4632 = vunpack.c.l.b16 %v4320
    %v4633 = vunpack.c.h.b16 %v4320
    %v4634 = vunpack.c.l.b16 %v4321
    %v4635 = vunpack.c.h.b16 %v4321
    %v4636 = vunpack.c.l.b16 %v4322
    %v4637 = vunpack.c.h.b16 %v4322
    %v4638 = vunpack.c.l.b16 %v4323
    %v4639 = vunpack.c.h.b16 %v4323
    %v4640 = vunpack.c.l.b16 %v4324
    %v4641 = vunpack.c.h.b16 %v4324
    %v4642 = vunpack.c.l.b16 %v4325
    %v4643 = vunpack.c.h.b16 %v4325
    %v4644 = vunpack.c.l.b16 %v4326
    %v4645 = vunpack.c.h.b16 %v4326
    %v4646 = vunpack.c.l.b16 %v4327
    %v4647 = vunpack.c.h.b16 %v4327
    %v4648 = vunpack.c.l.b16 %v4328
    %v4649 = vunpack.c.h.b16 %v4328
    %v4650 = vunpack.c.l.b16 %v4329
    %v4651 = vunpack.c.h.b16 %v4329
    %v4652 = vunpack.c.l.b16 %v4330
    %v4653 = vunpack.c.h.b16 %v4330
    %v4654 = vunpack.c.l.b16 %v4331
    %v4655 = vunpack.c.h.b16 %v4331
    %v4656 = vunpack.c.l.b16 %v4332
    %v4657 = vunpack.c.h.b16 %v4332
    %v4658 = vunpack.c.l.b16 %v4333
    %v4659 = vunpack.c.h.b16 %v4333
    %v4660 = vunpack.c.l.b16 %v4334
    %v4661 = vunpack.c.h.b16 %v4334
    %v4662 = vunpack.c.l.b16 %v4335
    %v4663 = vunpack.c.h.b16 %v4335
    %v4664 = vunpack.c.l.b16 %v4336
    %v4665 = vunpack.c.h.b16 %v4336
    %v4666 = vunpack.c.l.b16 %v4337
    %v4667 = vunpack.c.h.b16 %v4337
    %v4668 = vunpack.c.l.b16 %v4338
    %v4669 = vunpack.c.h.b16 %v4338
    %v4670 = vunpack.c.l.b16 %v4339
    %v4671 = vunpack.c.h.b16 %v4339
    %v4672 = vunpack.c.l.b16 %v4340
    %v4673 = vunpack.c.h.b16 %v4340
    %v4674 = vunpack.c.l.b16 %v4341
    %v4675 = vunpack.c.h.b16 %v4341
    %v4676 = vunpack.c.l.b16 %v4342
    %v4677 = vunpack.c.h.b16 %v4342
    %v4678 = vunpack.c.l.b16 %v4343
    %v4679 = vunpack.c.h.b16 %v4343
    %v4680 = vunpack.c.l.b16 %v4344
    %v4681 = vunpack.c.h.b16 %v4344
    %v4682 = vunpack.c.l.b16 %v4345
    %v4683 = vunpack.c.h.b16 %v4345
    %v4684 = vunpack.c.l.b16 %v4346
    %v4685 = vunpack.c.h.b16 %v4346
    %v4686 = vunpack.c.l.b16 %v4347
    %v4687 = vunpack.c.h.b16 %v4347
    %v4688 = vunpack.c.l.b16 %v4348
    %v4689 = vunpack.c.h.b16 %v4348
    %v4690 = vunpack.c.l.b16 %v4349
    %v4691 = vunpack.c.h.b16 %v4349
    %v4692 = vunpack.c.l.b16 %v4350
    %v4693 = vunpack.c.h.b16 %v4350
    %v4694 = vunpack.c.l.b16 %v4351
    %v4695 = vunpack.c.h.b16 %v4351
    %v4696 = vunpack.c.l.b16 %v4352
    %v4697 = vunpack.c.h.b16 %v4352
    %v4698 = vunpack.c.l.b16 %v4353
    %v4699 = vunpack.c.h.b16 %v4353
    %v4700 = vunpack.c.l.b16 %v4354
    %v4701 = vunpack.c.h.b16 %v4354
    %v4702 = vunpack.c.l.b16 %v4355
    %v4703 = vunpack.c.h.b16 %v4355
    %v4704 = vunpack.c.l.b16 %v4356
    %v4705 = vunpack.c.h.b16 %v4356
    %v4706 = vunpack.c.l.b16 %v4357
    %v4707 = vunpack.c.h.b16 %v4357
    %v4708 = vunpack.c.l.b16 %v4358
    %v4709 = vunpack.c.h.b16 %v4358
    %v4710 = vunpack.c.l.b16 %v4359
    %v4711 = vunpack.c.h.b16 %v4359
    %v4712 = vunpack.c.l.b16 %v4360
    %v4713 = vunpack.c.h.b16 %v4360
    %v4714 = vunpack.c.l.b16 %v4361
    %v4715 = vunpack.c.h.b16 %v4361
    %v4716 = vunpack.c.l.b16 %v4362
    %v4717 = vunpack.c.h.b16 %v4362
    %v4718 = vunpack.c.l.b16 %v4363
    %v4719 = vunpack.c.h.b16 %v4363
    %v4720 = vunpack.c.l.b16 %v4364
    %v4721 = vunpack.c.h.b16 %v4364
    %v4722 = vunpack.c.l.b16 %v4365
    %v4723 = vunpack.c.h.b16 %v4365
    %v4724 = vunpack.c.l.b16 %v4366
    %v4725 = vunpack.c.h.b16 %v4366
    %v4726 = vunpack.c.l.b16 %v4367
    %v4727 = vunpack.c.h.b16 %v4367
    %v4728 = vunpack.c.l.b16 %v4368
    %v4729 = vunpack.c.h.b16 %v4368
    %v4730 = vunpack.c.l.b16 %v4369
    %v4731 = vunpack.c.h.b16 %v4369
    %v4732 = vunpack.c.l.b16 %v4370
    %v4733 = vunpack.c.h.b16 %v4370
    %v4734 = vunpack.c.l.b16 %v4371
    %v4735 = vunpack.c.h.b16 %v4371
    %v4736 = vunpack.c.l.b16 %v4372
    %v4737 = vunpack.c.h.b16 %v4372
    %v4738 = vunpack.c.l.b16 %v4373
    %v4739 = vunpack.c.h.b16 %v4373
    %v4740 = vunpack.c.l.b16 %v4374
    %v4741 = vunpack.c.h.b16 %v4374
    %v4742 = vunpack.c.l.b16 %v4375
    %v4743 = vunpack.c.h.b16 %v4375
    %v4744 = vunpack.c.l.b16 %v4376
    %v4745 = vunpack.c.h.b16 %v4376
    %v4746 = vunpack.c.l.b16 %v4377
    %v4747 = vunpack.c.h.b16 %v4377
    %v4748 = vunpack.c.l.b16 %v4378
    %v4749 = vunpack.c.h.b16 %v4378
    %v4750 = vunpack.c.l.b16 %v4379
    %v4751 = vunpack.c.h.b16 %v4379
    %v4752 = vunpack.c.l.b16 %v4380
    %v4753 = vunpack.c.h.b16 %v4380
    %v4754 = vunpack.c.l.b16 %v4381
    %v4755 = vunpack.c.h.b16 %v4381
    %v4756 = vunpack.c.l.b16 %v4382
    %v4757 = vunpack.c.h.b16 %v4382
    %v4758 = vunpack.c.l.b16 %v4383
    %v4759 = vunpack.c.h.b16 %v4383
    %v4760 = vunpack.c.l.b16 %v4384
    %v4761 = vunpack.c.h.b16 %v4384
    %v4762 = vunpack.c.l.b16 %v4385
    %v4763 = vunpack.c.h.b16 %v4385
    %v4764 = vunpack.c.l.b16 %v4386
    %v4765 = vunpack.c.h.b16 %v4386
    %v4766 = vunpack.c.l.b16 %v4387
    %v4767 = vunpack.c.h.b16 %v4387
    %v4768 = vunpack.c.l.b16 %v4388
    %v4769 = vunpack.c.h.b16 %v4388
    %v4770 = vunpack.c.l.b16 %v4389
    %v4771 = vunpack.c.h.b16 %v4389
    %v4772 = vunpack.c.l.b16 %v4390
    %v4773 = vunpack.c.h.b16 %v4390
    %v4774 = vunpack.c.l.b16 %v4391
    %v4775 = vunpack.c.h.b16 %v4391
    %v4776 = vpack.c.b16 %v4528, %v4520
    %v4777 = vpack.c.b16 %v4529, %v4521
    %v4778 = vpack.c.b16 %v4530, %v4522
    %v4779 = vpack.c.b16 %v4531, %v4523
    %v4780 = vpack.c.b16 %v4532, %v4524
    %v4781 = vpack.c.b16 %v4533, %v4525
    %v4782 = vpack.c.b16 %v4534, %v4526
    %v4783 = vpack.c.b16 %v4535, %v4527
    %v4784 = vpack.c.b16 %v4544, %v4536
    %v4785 = vpack.c.b16 %v4545, %v4537
    %v4786 = vpack.c.b16 %v4546, %v4538
    %v4787 = vpack.c.b16 %v4547, %v4539
    %v4788 = vpack.c.b16 %v4548, %v4540
    %v4789 = vpack.c.b16 %v4549, %v4541
    %v4790 = vpack.c.b16 %v4550, %v4542
    %v4791 = vpack.c.b16 %v4551, %v4543
    %v4792 = vpack.c.b16 %v4560, %v4552
    %v4793 = vpack.c.b16 %v4561, %v4553
    %v4794 = vpack.c.b16 %v4562, %v4554
    %v4795 = vpack.c.b16 %v4563, %v4555
    %v4796 = vpack.c.b16 %v4564, %v4556
    %v4797 = vpack.c.b16 %v4565, %v4557
    %v4798 = vpack.c.b16 %v4566, %v4558
    %v4799 = vpack.c.b16 %v4567, %v4559
    %v4800 = vpack.c.b16 %v4576, %v4568
    %v4801 = vpack.c.b16 %v4577, %v4569
    %v4802 = vpack.c.b16 %v4578, %v4570
    %v4803 = vpack.c.b16 %v4579, %v4571
    %v4804 = vpack.c.b16 %v4580, %v4572
    %v4805 = vpack.c.b16 %v4581, %v4573
    %v4806 = vpack.c.b16 %v4582, %v4574
    %v4807 = vpack.c.b16 %v4583, %v4575
    %v4808 = vpack.c.b16 %v4592, %v4584
    %v4809 = vpack.c.b16 %v4593, %v4585
    %v4810 = vpack.c.b16 %v4594, %v4586
    %v4811 = vpack.c.b16 %v4595, %v4587
    %v4812 = vpack.c.b16 %v4596, %v4588
    %v4813 = vpack.c.b16 %v4597, %v4589
    %v4814 = vpack.c.b16 %v4598, %v4590
    %v4815 = vpack.c.b16 %v4599, %v4591
    %v4816 = vpack.c.b16 %v4608, %v4600
    %v4817 = vpack.c.b16 %v4609, %v4601
    %v4818 = vpack.c.b16 %v4610, %v4602
    %v4819 = vpack.c.b16 %v4611, %v4603
    %v4820 = vpack.c.b16 %v4612, %v4604
    %v4821 = vpack.c.b16 %v4613, %v4605
    %v4822 = vpack.c.b16 %v4614, %v4606
    %v4823 = vpack.c.b16 %v4615, %v4607
    %v4824 = vpack.c.b16 %v4624, %v4616
    %v4825 = vpack.c.b16 %v4625, %v4617
    %v4826 = vpack.c.b16 %v4626, %v4618
    %v4827 = vpack.c.b16 %v4627, %v4619
    %v4828 = vpack.c.b16 %v4628, %v4620
    %v4829 = vpack.c.b16 %v4629, %v4621
    %v4830 = vpack.c.b16 %v4630, %v4622
    %v4831 = vpack.c.b16 %v4631, %v4623
    %v4832 = vpack.c.b16 %v4640, %v4632
    %v4833 = vpack.c.b16 %v4641, %v4633
    %v4834 = vpack.c.b16 %v4642, %v4634
    %v4835 = vpack.c.b16 %v4643, %v4635
    %v4836 = vpack.c.b16 %v4644, %v4636
    %v4837 = vpack.c.b16 %v4645, %v4637
    %v4838 = vpack.c.b16 %v4646, %v4638
    %v4839 = vpack.c.b16 %v4647, %v4639
    %v4840 = vpack.c.b16 %v4656, %v4648
    %v4841 = vpack.c.b16 %v4657, %v4649
    %v4842 = vpack.c.b16 %v4658, %v4650
    %v4843 = vpack.c.b16 %v4659, %v4651
    %v4844 = vpack.c.b16 %v4660, %v4652
    %v4845 = vpack.c.b16 %v4661, %v4653
    %v4846 = vpack.c.b16 %v4662, %v4654
    %v4847 = vpack.c.b16 %v4663, %v4655
    %v4848 = vpack.c.b16 %v4672, %v4664
    %v4849 = vpack.c.b16 %v4673, %v4665
    %v4850 = vpack.c.b16 %v4674, %v4666
    %v4851 = vpack.c.b16 %v4675, %v4667
    %v4852 = vpack.c.b16 %v4676, %v4668
    %v4853 = vpack.c.b16 %v4677, %v4669
    %v4854 = vpack.c.b16 %v4678, %v4670
    %v4855 = vpack.c.b16 %v4679, %v4671
    %v4856 = vpack.c.b16 %v4688, %v4680
    %v4857 = vpack.c.b16 %v4689, %v4681
    %v4858 = vpack.c.b16 %v4690, %v4682
    %v4859 = vpack.c.b16 %v4691, %v4683
    %v4860 = vpack.c.b16 %v4692, %v4684
    %v4861 = vpack.c.b16 %v4693, %v4685
    %v4862 = vpack.c.b16 %v4694, %v4686
    %v4863 = vpack.c.b16 %v4695, %v4687
    %v4864 = vpack.c.b16 %v4704, %v4696
    %v4865 = vpack.c.b16 %v4705, %v4697
    %v4866 = vpack.c.b16 %v4706, %v4698
    %v4867 = vpack.c.b16 %v4707, %v4699
    %v4868 = vpack.c.b16 %v4708, %v4700
    %v4869 = vpack.c.b16 %v4709, %v4701
    %v4870 = vpack.c.b16 %v4710, %v4702
    %v4871 = vpack.c.b16 %v4711, %v4703
    %v4872 = vpack.c.b16 %v4720, %v4712
    %v4873 = vpack.c.b16 %v4721, %v4713
    %v4874 = vpack.c.b16 %v4722, %v4714
    %v4875 = vpack.c.b16 %v4723, %v4715
    %v4876 = vpack.c.b16 %v4724, %v4716
    %v4877 = vpack.c.b16 %v4725, %v4717
    %v4878 = vpack.c.b16 %v4726, %v4718
    %v4879 = vpack.c.b16 %v4727, %v4719
    %v4880 = vpack.c.b16 %v4736, %v4728
    %v4881 = vpack.c.b16 %v4737, %v4729
    %v4882 = vpack.c.b16 %v4738, %v4730
    %v4883 = vpack.c.b16 %v4739, %v4731
    %v4884 = vpack.c.b16 %v4740, %v4732
    %v4885 = vpack.c.b16 %v4741, %v4733
    %v4886 = vpack.c.b16 %v4742, %v4734
    %v4887 = vpack.c.b16 %v4743, %v4735
    %v4888 = vpack.c.b16 %v4752, %v4744
    %v4889 = vpack.c.b16 %v4753, %v4745
    %v4890 = vpack.c.b16 %v4754, %v4746
    %v4891 = vpack.c.b16 %v4755, %v4747
    %v4892 = vpack.c.b16 %v4756, %v4748
    %v4893 = vpack.c.b16 %v4757, %v4749
    %v4894 = vpack.c.b16 %v4758, %v4750
    %v4895 = vpack.c.b16 %v4759, %v4751
    %v4896 = vpack.c.b16 %v4768, %v4760
    %v4897 = vpack.c.b16 %v4769, %v4761
    %v4898 = vpack.c.b16 %v4770, %v4762
    %v4899 = vpack.c.b16 %v4771, %v4763
    %v4900 = vpack.c.b16 %v4772, %v4764
    %v4901 = vpack.c.b16 %v4773, %v4765
    %v4902 = vpack.c.b16 %v4774, %v4766
    %v4903 = vpack.c.b16 %v4775, %v4767
    %5032 = vmatprep.subr.bf16.mxu0 %v4777
    %5033 = vmatpush1.bf16.msra.mxu0 %v4776
    %5034 = vmatprep.subr.bf16.mxu0 %v4785
    %5035 = vmatpush1.bf16.msra.mxu0 %v4784
    %5036 = vmatprep.subr.bf16.mxu0 %v4793
    %5037 = vmatpush1.bf16.msra.mxu0 %v4792
    %5038 = vmatprep.subr.bf16.mxu0 %v4801
    %5039 = vmatpush1.bf16.msra.mxu0 %v4800
    %5040 = vmatprep.subr.bf16.mxu0 %v4809
    %5041 = vmatpush1.bf16.msra.mxu0 %v4808
    %5042 = vmatprep.subr.bf16.mxu0 %v4817
    %5043 = vmatpush1.bf16.msra.mxu0 %v4816
    %5044 = vmatprep.subr.bf16.mxu0 %v4825
    %5045 = vmatpush1.bf16.msra.mxu0 %v4824
    %5046 = vmatprep.subr.bf16.mxu0 %v4833
    %5047 = vmatpush1.bf16.msra.mxu0 %v4832
    %5048 = vmatprep.subr.bf16.mxu0 %v4841
    %5049 = vmatpush1.bf16.msra.mxu0 %v4840
    %5050 = vmatprep.subr.bf16.mxu0 %v4849
    %5051 = vmatpush1.bf16.msra.mxu0 %v4848
    %5052 = vmatprep.subr.bf16.mxu0 %v4857
    %5053 = vmatpush1.bf16.msra.mxu0 %v4856
    %5054 = vmatprep.subr.bf16.mxu0 %v4865
    %5055 = vmatpush1.bf16.msra.mxu0 %v4864
    %5056 = vmatprep.subr.bf16.mxu0 %v4873
    %5057 = vmatpush1.bf16.msra.mxu0 %v4872
    %5058 = vmatprep.subr.bf16.mxu0 %v4881
    %5059 = vmatpush1.bf16.msra.mxu0 %v4880
    %5060 = vmatprep.subr.bf16.mxu0 %v4889
    %5061 = vmatpush1.bf16.msra.mxu0 %v4888
    %5062 = vmatprep.subr.bf16.mxu0 %v4897
    %5063 = vmatpush1.bf16.msra.mxu0 %v4896
    %5064 = vmatprep.mubr.bf16.mxu0 %v4233
    %5065 = vmatmul.mubr.bf16.gmra.mrb[0].mxu0 %v4232
    %v5066 = vpop.f32.mrb[0].mxu0
    %v5067 = vadd.f32 0.0, %v5066
    %v5068 = vpop.f32.mrb[0].mxu0
    %v5069 = vadd.f32 0.0, %v5068
    %v5070 = vpop.f32.mrb[0].mxu0
    %v5071 = vadd.f32 0.0, %v5070
    %v5072 = vpop.f32.mrb[0].mxu0
    %v5073 = vadd.f32 0.0, %v5072
    %5074 = vmatprep.mubr.bf16.mxu0 %v4235
    %5075 = vmatmul.mubr.bf16.gmra.mrb[0].mxu0 %v4234
    %v5076 = vpop.f32.mrb[0].mxu0
    %v5077 = vadd.f32 0.0, %v5076
    %v5078 = vpop.f32.mrb[0].mxu0
    %v5079 = vadd.f32 0.0, %v5078
    %v5080 = vpop.f32.mrb[0].mxu0
    %v5081 = vadd.f32 0.0, %v5080
    %v5082 = vpop.f32.mrb[0].mxu0
    %v5083 = vadd.f32 0.0, %v5082
    %5084 = vmatprep.mubr.bf16.mxu0 %v4237
    %5085 = vmatmul.mubr.bf16.gmra.mrb[0].mxu0 %v4236
    %v5086 = vpop.f32.mrb[0].mxu0
    %v5087 = vadd.f32 0.0, %v5086
    %v5088 = vpop.f32.mrb[0].mxu0
    %v5089 = vadd.f32 0.0, %v5088
    %v5090 = vpop.f32.mrb[0].mxu0
    %v5091 = vadd.f32 0.0, %v5090
    %v5092 = vpop.f32.mrb[0].mxu0
    %v5093 = vadd.f32 0.0, %v5092
    %5094 = vmatprep.mubr.bf16.mxu0 %v4239
    %5095 = vmatmul.mubr.bf16.gmra.mrb[0].mxu0 %v4238
    %v5096 = vpop.f32.mrb[0].mxu0
    %v5097 = vadd.f32 0.0, %v5096
    %v5098 = vpop.f32.mrb[0].mxu0
    %v5099 = vadd.f32 0.0, %v5098
    %v5100 = vpop.f32.mrb[0].mxu0
    %v5101 = vadd.f32 0.0, %v5100
    %v5102 = vpop.f32.mrb[0].mxu0
    %v5103 = vadd.f32 0.0, %v5102
    %5104 = vmatprep.mubr.bf16.mxu0 %v4241
    %5105 = vmatmul.mubr.bf16.gmra.mrb[0].mxu0 %v4240
    %v5106 = vpop.f32.mrb[0].mxu0
    %v5107 = vadd.f32 0.0, %v5106
    %v5108 = vpop.f32.mrb[0].mxu0
    %v5109 = vadd.f32 0.0, %v5108
    %v5110 = vpop.f32.mrb[0].mxu0
    %v5111 = vadd.f32 0.0, %v5110
    %v5112 = vpop.f32.mrb[0].mxu0
    %v5113 = vadd.f32 0.0, %v5112
    %5114 = vmatprep.mubr.bf16.mxu0 %v4243
    %5115 = vmatmul.mubr.bf16.gmra.mrb[0].mxu0 %v4242
    %v5116 = vpop.f32.mrb[0].mxu0
    %v5117 = vadd.f32 0.0, %v5116
    %v5118 = vpop.f32.mrb[0].mxu0
    %v5119 = vadd.f32 0.0, %v5118
    %v5120 = vpop.f32.mrb[0].mxu0
    %v5121 = vadd.f32 0.0, %v5120
    %v5122 = vpop.f32.mrb[0].mxu0
    %v5123 = vadd.f32 0.0, %v5122
    %5124 = vmatprep.mubr.bf16.mxu0 %v4245
    %5125 = vmatmul.mubr.bf16.gmra.mrb[0].mxu0 %v4244
    %v5126 = vpop.f32.mrb[0].mxu0
    %v5127 = vadd.f32 0.0, %v5126
    %v5128 = vpop.f32.mrb[0].mxu0
    %v5129 = vadd.f32 0.0, %v5128
    %v5130 = vpop.f32.mrb[0].mxu0
    %v5131 = vadd.f32 0.0, %v5130
    %v5132 = vpop.f32.mrb[0].mxu0
    %v5133 = vadd.f32 0.0, %v5132
    %5134 = vmatprep.mubr.bf16.mxu0 %v4247
    %5135 = vmatmul.mubr.bf16.gmra.mrb[0].mxu0 %v4246
    %v5136 = vpop.f32.mrb[0].mxu0
    %v5137 = vadd.f32 0.0, %v5136
    %v5138 = vpop.f32.mrb[0].mxu0
    %v5139 = vadd.f32 0.0, %v5138
    %v5140 = vpop.f32.mrb[0].mxu0
    %v5141 = vadd.f32 0.0, %v5140
    %v5142 = vpop.f32.mrb[0].mxu0
    %v5143 = vadd.f32 0.0, %v5142
    %5144 = vmatprep.mubr.bf16.mxu0 %v4249
    %5145 = vmatmul.mubr.bf16.gmra.mrb[0].mxu0 %v4248
    %v5146 = vpop.f32.mrb[0].mxu0
    %v5147 = vadd.f32 0.0, %v5146
    %v5148 = vpop.f32.mrb[0].mxu0
    %v5149 = vadd.f32 0.0, %v5148
    %v5150 = vpop.f32.mrb[0].mxu0
    %v5151 = vadd.f32 0.0, %v5150
    %v5152 = vpop.f32.mrb[0].mxu0
    %v5153 = vadd.f32 0.0, %v5152
    %5154 = vmatprep.mubr.bf16.mxu0 %v4251
    %5155 = vmatmul.mubr.bf16.gmra.mrb[0].mxu0 %v4250
    %v5156 = vpop.f32.mrb[0].mxu0
    %v5157 = vadd.f32 0.0, %v5156
    %v5158 = vpop.f32.mrb[0].mxu0
    %v5159 = vadd.f32 0.0, %v5158
    %v5160 = vpop.f32.mrb[0].mxu0
    %v5161 = vadd.f32 0.0, %v5160
    %v5162 = vpop.f32.mrb[0].mxu0
    %v5163 = vadd.f32 0.0, %v5162
    %5164 = vmatprep.mubr.bf16.mxu0 %v4253
    %5165 = vmatmul.mubr.bf16.gmra.mrb[0].mxu0 %v4252
    %v5166 = vpop.f32.mrb[0].mxu0
    %v5167 = vadd.f32 0.0, %v5166
    %v5168 = vpop.f32.mrb[0].mxu0
    %v5169 = vadd.f32 0.0, %v5168
    %v5170 = vpop.f32.mrb[0].mxu0
    %v5171 = vadd.f32 0.0, %v5170
    %v5172 = vpop.f32.mrb[0].mxu0
    %v5173 = vadd.f32 0.0, %v5172
    %5174 = vmatprep.mubr.bf16.mxu0 %v4255
    %5175 = vmatmul.mubr.bf16.gmra.mrb[0].mxu0 %v4254
    %v5176 = vpop.f32.mrb[0].mxu0
    %v5177 = vadd.f32 0.0, %v5176
    %v5178 = vpop.f32.mrb[0].mxu0
    %v5179 = vadd.f32 0.0, %v5178
    %v5180 = vpop.f32.mrb[0].mxu0
    %v5181 = vadd.f32 0.0, %v5180
    %v5182 = vpop.f32.mrb[0].mxu0
    %v5183 = vadd.f32 0.0, %v5182
    %5184 = vmatprep.mubr.bf16.mxu0 %v4257
    %5185 = vmatmul.mubr.bf16.gmra.mrb[0].mxu0 %v4256
    %v5186 = vpop.f32.mrb[0].mxu0
    %v5187 = vadd.f32 0.0, %v5186
    %v5188 = vpop.f32.mrb[0].mxu0
    %v5189 = vadd.f32 0.0, %v5188
    %v5190 = vpop.f32.mrb[0].mxu0
    %v5191 = vadd.f32 0.0, %v5190
    %v5192 = vpop.f32.mrb[0].mxu0
    %v5193 = vadd.f32 0.0, %v5192
    %5194 = vmatprep.mubr.bf16.mxu0 %v4259
    %5195 = vmatmul.mubr.bf16.gmra.mrb[0].mxu0 %v4258
    %v5196 = vpop.f32.mrb[0].mxu0
    %v5197 = vadd.f32 0.0, %v5196
    %v5198 = vpop.f32.mrb[0].mxu0
    %v5199 = vadd.f32 0.0, %v5198
    %v5200 = vpop.f32.mrb[0].mxu0
    %v5201 = vadd.f32 0.0, %v5200
    %v5202 = vpop.f32.mrb[0].mxu0
    %v5203 = vadd.f32 0.0, %v5202
    %5204 = vmatprep.mubr.bf16.mxu0 %v4261
    %5205 = vmatmul.mubr.bf16.gmra.mrb[0].mxu0 %v4260
    %v5206 = vpop.f32.mrb[0].mxu0
    %v5207 = vadd.f32 0.0, %v5206
    %v5208 = vpop.f32.mrb[0].mxu0
    %v5209 = vadd.f32 0.0, %v5208
    %v5210 = vpop.f32.mrb[0].mxu0
    %v5211 = vadd.f32 0.0, %v5210
    %v5212 = vpop.f32.mrb[0].mxu0
    %v5213 = vadd.f32 0.0, %v5212
    %5214 = vmatprep.mubr.bf16.mxu0 %v4263
    %5215 = vmatmul.mubr.bf16.gmra.mrb[0].mxu0 %v4262
    %v5216 = vpop.f32.mrb[0].mxu0
    %v5217 = vadd.f32 0.0, %v5216
    %v5218 = vpop.f32.mrb[0].mxu0
    %v5219 = vadd.f32 0.0, %v5218
    %v5220 = vpop.f32.mrb[0].mxu0
    %v5221 = vadd.f32 0.0, %v5220
    %v5222 = vpop.f32.mrb[0].mxu0
    %v5223 = vadd.f32 0.0, %v5222
    %5224 = vdwg.mxu0
    %5225 = vmatprep.subr.bf16.mxu0 %v4779
    %5226 = vmatpush1.bf16.msra.mxu0 %v4778
    %5227 = vmatprep.subr.bf16.mxu0 %v4787
    %5228 = vmatpush1.bf16.msra.mxu0 %v4786
    %5229 = vmatprep.subr.bf16.mxu0 %v4795
    %5230 = vmatpush1.bf16.msra.mxu0 %v4794
    %5231 = vmatprep.subr.bf16.mxu0 %v4803
    %5232 = vmatpush1.bf16.msra.mxu0 %v4802
    %5233 = vmatprep.subr.bf16.mxu0 %v4811
    %5234 = vmatpush1.bf16.msra.mxu0 %v4810
    %5235 = vmatprep.subr.bf16.mxu0 %v4819
    %5236 = vmatpush1.bf16.msra.mxu0 %v4818
    %5237 = vmatprep.subr.bf16.mxu0 %v4827
    %5238 = vmatpush1.bf16.msra.mxu0 %v4826
    %5239 = vmatprep.subr.bf16.mxu0 %v4835
    %5240 = vmatpush1.bf16.msra.mxu0 %v4834
    %5241 = vmatprep.subr.bf16.mxu0 %v4843
    %5242 = vmatpush1.bf16.msra.mxu0 %v4842
    %5243 = vmatprep.subr.bf16.mxu0 %v4851
    %5244 = vmatpush1.bf16.msra.mxu0 %v4850
    %5245 = vmatprep.subr.bf16.mxu0 %v4859
    %5246 = vmatpush1.bf16.msra.mxu0 %v4858
    %5247 = vmatprep.subr.bf16.mxu0 %v4867
    %5248 = vmatpush1.bf16.msra.mxu0 %v4866
    %5249 = vmatprep.subr.bf16.mxu0 %v4875
    %5250 = vmatpush1.bf16.msra.mxu0 %v4874
    %5251 = vmatprep.subr.bf16.mxu0 %v4883
    %5252 = vmatpush1.bf16.msra.mxu0 %v4882
    %5253 = vmatprep.subr.bf16.mxu0 %v4891
    %5254 = vmatpush1.bf16.msra.mxu0 %v4890
    %5255 = vmatprep.subr.bf16.mxu0 %v4899
    %5256 = vmatpush1.bf16.msra.mxu0 %v4898
    %5257 = vmatprep.mubr.bf16.mxu0 %v4233
    %5258 = vmatmul.mubr.bf16.gmra.mrb[0].mxu0 %v4232
    %v5259 = vpop.f32.mrb[0].mxu0
    %v5260 = vadd.f32 0.0, %v5259
    %v5261 = vpop.f32.mrb[0].mxu0
    %v5262 = vadd.f32 0.0, %v5261
    %v5263 = vpop.f32.mrb[0].mxu0
    %v5264 = vadd.f32 0.0, %v5263
    %v5265 = vpop.f32.mrb[0].mxu0
    %v5266 = vadd.f32 0.0, %v5265
    %5267 = vmatprep.mubr.bf16.mxu0 %v4235
    %5268 = vmatmul.mubr.bf16.gmra.mrb[0].mxu0 %v4234
    %v5269 = vpop.f32.mrb[0].mxu0
    %v5270 = vadd.f32 0.0, %v5269
    %v5271 = vpop.f32.mrb[0].mxu0
    %v5272 = vadd.f32 0.0, %v5271
    %v5273 = vpop.f32.mrb[0].mxu0
    %v5274 = vadd.f32 0.0, %v5273
    %v5275 = vpop.f32.mrb[0].mxu0
    %v5276 = vadd.f32 0.0, %v5275
    %5277 = vmatprep.mubr.bf16.mxu0 %v4237
    %5278 = vmatmul.mubr.bf16.gmra.mrb[0].mxu0 %v4236
    %v5279 = vpop.f32.mrb[0].mxu0
    %v5280 = vadd.f32 0.0, %v5279
    %v5281 = vpop.f32.mrb[0].mxu0
    %v5282 = vadd.f32 0.0, %v5281
    %v5283 = vpop.f32.mrb[0].mxu0
    %v5284 = vadd.f32 0.0, %v5283
    %v5285 = vpop.f32.mrb[0].mxu0
    %v5286 = vadd.f32 0.0, %v5285
    %5287 = vmatprep.mubr.bf16.mxu0 %v4239
    %5288 = vmatmul.mubr.bf16.gmra.mrb[0].mxu0 %v4238
    %v5289 = vpop.f32.mrb[0].mxu0
    %v5290 = vadd.f32 0.0, %v5289
    %v5291 = vpop.f32.mrb[0].mxu0
    %v5292 = vadd.f32 0.0, %v5291
    %v5293 = vpop.f32.mrb[0].mxu0
    %v5294 = vadd.f32 0.0, %v5293
    %v5295 = vpop.f32.mrb[0].mxu0
    %v5296 = vadd.f32 0.0, %v5295
    %5297 = vmatprep.mubr.bf16.mxu0 %v4241
    %5298 = vmatmul.mubr.bf16.gmra.mrb[0].mxu0 %v4240
    %v5299 = vpop.f32.mrb[0].mxu0
    %v5300 = vadd.f32 0.0, %v5299
    %v5301 = vpop.f32.mrb[0].mxu0
    %v5302 = vadd.f32 0.0, %v5301
    %v5303 = vpop.f32.mrb[0].mxu0
    %v5304 = vadd.f32 0.0, %v5303
    %v5305 = vpop.f32.mrb[0].mxu0
    %v5306 = vadd.f32 0.0, %v5305
    %5307 = vmatprep.mubr.bf16.mxu0 %v4243
    %5308 = vmatmul.mubr.bf16.gmra.mrb[0].mxu0 %v4242
    %v5309 = vpop.f32.mrb[0].mxu0
    %v5310 = vadd.f32 0.0, %v5309
    %v5311 = vpop.f32.mrb[0].mxu0
    %v5312 = vadd.f32 0.0, %v5311
    %v5313 = vpop.f32.mrb[0].mxu0
    %v5314 = vadd.f32 0.0, %v5313
    %v5315 = vpop.f32.mrb[0].mxu0
    %v5316 = vadd.f32 0.0, %v5315
    %5317 = vmatprep.mubr.bf16.mxu0 %v4245
    %5318 = vmatmul.mubr.bf16.gmra.mrb[0].mxu0 %v4244
    %v5319 = vpop.f32.mrb[0].mxu0
    %v5320 = vadd.f32 0.0, %v5319
    %v5321 = vpop.f32.mrb[0].mxu0
    %v5322 = vadd.f32 0.0, %v5321
    %v5323 = vpop.f32.mrb[0].mxu0
    %v5324 = vadd.f32 0.0, %v5323
    %v5325 = vpop.f32.mrb[0].mxu0
    %v5326 = vadd.f32 0.0, %v5325
    %5327 = vmatprep.mubr.bf16.mxu0 %v4247
    %5328 = vmatmul.mubr.bf16.gmra.mrb[0].mxu0 %v4246
    %v5329 = vpop.f32.mrb[0].mxu0
    %v5330 = vadd.f32 0.0, %v5329
    %v5331 = vpop.f32.mrb[0].mxu0
    %v5332 = vadd.f32 0.0, %v5331
    %v5333 = vpop.f32.mrb[0].mxu0
    %v5334 = vadd.f32 0.0, %v5333
    %v5335 = vpop.f32.mrb[0].mxu0
    %v5336 = vadd.f32 0.0, %v5335
    %5337 = vmatprep.mubr.bf16.mxu0 %v4249
    %5338 = vmatmul.mubr.bf16.gmra.mrb[0].mxu0 %v4248
    %v5339 = vpop.f32.mrb[0].mxu0
    %v5340 = vadd.f32 0.0, %v5339
    %v5341 = vpop.f32.mrb[0].mxu0
    %v5342 = vadd.f32 0.0, %v5341
    %v5343 = vpop.f32.mrb[0].mxu0
    %v5344 = vadd.f32 0.0, %v5343
    %v5345 = vpop.f32.mrb[0].mxu0
    %v5346 = vadd.f32 0.0, %v5345
    %5347 = vmatprep.mubr.bf16.mxu0 %v4251
    %5348 = vmatmul.mubr.bf16.gmra.mrb[0].mxu0 %v4250
    %v5349 = vpop.f32.mrb[0].mxu0
    %v5350 = vadd.f32 0.0, %v5349
    %v5351 = vpop.f32.mrb[0].mxu0
    %v5352 = vadd.f32 0.0, %v5351
    %v5353 = vpop.f32.mrb[0].mxu0
    %v5354 = vadd.f32 0.0, %v5353
    %v5355 = vpop.f32.mrb[0].mxu0
    %v5356 = vadd.f32 0.0, %v5355
    %5357 = vmatprep.mubr.bf16.mxu0 %v4253
    %5358 = vmatmul.mubr.bf16.gmra.mrb[0].mxu0 %v4252
    %v5359 = vpop.f32.mrb[0].mxu0
    %v5360 = vadd.f32 0.0, %v5359
    %v5361 = vpop.f32.mrb[0].mxu0
    %v5362 = vadd.f32 0.0, %v5361
    %v5363 = vpop.f32.mrb[0].mxu0
    %v5364 = vadd.f32 0.0, %v5363
    %v5365 = vpop.f32.mrb[0].mxu0
    %v5366 = vadd.f32 0.0, %v5365
    %5367 = vmatprep.mubr.bf16.mxu0 %v4255
    %5368 = vmatmul.mubr.bf16.gmra.mrb[0].mxu0 %v4254
    %v5369 = vpop.f32.mrb[0].mxu0
    %v5370 = vadd.f32 0.0, %v5369
    %v5371 = vpop.f32.mrb[0].mxu0
    %v5372 = vadd.f32 0.0, %v5371
    %v5373 = vpop.f32.mrb[0].mxu0
    %v5374 = vadd.f32 0.0, %v5373
    %v5375 = vpop.f32.mrb[0].mxu0
    %v5376 = vadd.f32 0.0, %v5375
    %5377 = vmatprep.mubr.bf16.mxu0 %v4257
    %5378 = vmatmul.mubr.bf16.gmra.mrb[0].mxu0 %v4256
    %v5379 = vpop.f32.mrb[0].mxu0
    %v5380 = vadd.f32 0.0, %v5379
    %v5381 = vpop.f32.mrb[0].mxu0
    %v5382 = vadd.f32 0.0, %v5381
    %v5383 = vpop.f32.mrb[0].mxu0
    %v5384 = vadd.f32 0.0, %v5383
    %v5385 = vpop.f32.mrb[0].mxu0
    %v5386 = vadd.f32 0.0, %v5385
    %5387 = vmatprep.mubr.bf16.mxu0 %v4259
    %5388 = vmatmul.mubr.bf16.gmra.mrb[0].mxu0 %v4258
    %v5389 = vpop.f32.mrb[0].mxu0
    %v5390 = vadd.f32 0.0, %v5389
    %v5391 = vpop.f32.mrb[0].mxu0
    %v5392 = vadd.f32 0.0, %v5391
    %v5393 = vpop.f32.mrb[0].mxu0
    %v5394 = vadd.f32 0.0, %v5393
    %v5395 = vpop.f32.mrb[0].mxu0
    %v5396 = vadd.f32 0.0, %v5395
    %5397 = vmatprep.mubr.bf16.mxu0 %v4261
    %5398 = vmatmul.mubr.bf16.gmra.mrb[0].mxu0 %v4260
    %v5399 = vpop.f32.mrb[0].mxu0
    %v5400 = vadd.f32 0.0, %v5399
    %v5401 = vpop.f32.mrb[0].mxu0
    %v5402 = vadd.f32 0.0, %v5401
    %v5403 = vpop.f32.mrb[0].mxu0
    %v5404 = vadd.f32 0.0, %v5403
    %v5405 = vpop.f32.mrb[0].mxu0
    %v5406 = vadd.f32 0.0, %v5405
    %5407 = vmatprep.mubr.bf16.mxu0 %v4263
    %5408 = vmatmul.mubr.bf16.gmra.mrb[0].mxu0 %v4262
    %v5409 = vpop.f32.mrb[0].mxu0
    %v5410 = vadd.f32 0.0, %v5409
    %v5411 = vpop.f32.mrb[0].mxu0
    %v5412 = vadd.f32 0.0, %v5411
    %v5413 = vpop.f32.mrb[0].mxu0
    %v5414 = vadd.f32 0.0, %v5413
    %v5415 = vpop.f32.mrb[0].mxu0
    %v5416 = vadd.f32 0.0, %v5415
    %5417 = vdwg.mxu0
    %5418 = vmatprep.subr.bf16.mxu0 %v4781
    %5419 = vmatpush1.bf16.msra.mxu0 %v4780
    %5420 = vmatprep.subr.bf16.mxu0 %v4789
    %5421 = vmatpush1.bf16.msra.mxu0 %v4788
    %5422 = vmatprep.subr.bf16.mxu0 %v4797
    %5423 = vmatpush1.bf16.msra.mxu0 %v4796
    %5424 = vmatprep.subr.bf16.mxu0 %v4805
    %5425 = vmatpush1.bf16.msra.mxu0 %v4804
    %5426 = vmatprep.subr.bf16.mxu0 %v4813
    %5427 = vmatpush1.bf16.msra.mxu0 %v4812
    %5428 = vmatprep.subr.bf16.mxu0 %v4821
    %5429 = vmatpush1.bf16.msra.mxu0 %v4820
    %5430 = vmatprep.subr.bf16.mxu0 %v4829
    %5431 = vmatpush1.bf16.msra.mxu0 %v4828
    %5432 = vmatprep.subr.bf16.mxu0 %v4837
    %5433 = vmatpush1.bf16.msra.mxu0 %v4836
    %5434 = vmatprep.subr.bf16.mxu0 %v4845
    %5435 = vmatpush1.bf16.msra.mxu0 %v4844
    %5436 = vmatprep.subr.bf16.mxu0 %v4853
    %5437 = vmatpush1.bf16.msra.mxu0 %v4852
    %5438 = vmatprep.subr.bf16.mxu0 %v4861
    %5439 = vmatpush1.bf16.msra.mxu0 %v4860
    %5440 = vmatprep.subr.bf16.mxu0 %v4869
    %5441 = vmatpush1.bf16.msra.mxu0 %v4868
    %5442 = vmatprep.subr.bf16.mxu0 %v4877
    %5443 = vmatpush1.bf16.msra.mxu0 %v4876
    %5444 = vmatprep.subr.bf16.mxu0 %v4885
    %5445 = vmatpush1.bf16.msra.mxu0 %v4884
    %5446 = vmatprep.subr.bf16.mxu0 %v4893
    %5447 = vmatpush1.bf16.msra.mxu0 %v4892
    %5448 = vmatprep.subr.bf16.mxu0 %v4901
    %5449 = vmatpush1.bf16.msra.mxu0 %v4900
    %5450 = vmatprep.mubr.bf16.mxu0 %v4233
    %5451 = vmatmul.mubr.bf16.gmra.mrb[0].mxu0 %v4232
    %v5452 = vpop.f32.mrb[0].mxu0
    %v5453 = vadd.f32 0.0, %v5452
    %v5454 = vpop.f32.mrb[0].mxu0
    %v5455 = vadd.f32 0.0, %v5454
    %v5456 = vpop.f32.mrb[0].mxu0
    %v5457 = vadd.f32 0.0, %v5456
    %v5458 = vpop.f32.mrb[0].mxu0
    %v5459 = vadd.f32 0.0, %v5458
    %5460 = vmatprep.mubr.bf16.mxu0 %v4235
    %5461 = vmatmul.mubr.bf16.gmra.mrb[0].mxu0 %v4234
    %v5462 = vpop.f32.mrb[0].mxu0
    %v5463 = vadd.f32 0.0, %v5462
    %v5464 = vpop.f32.mrb[0].mxu0
    %v5465 = vadd.f32 0.0, %v5464
    %v5466 = vpop.f32.mrb[0].mxu0
    %v5467 = vadd.f32 0.0, %v5466
    %v5468 = vpop.f32.mrb[0].mxu0
    %v5469 = vadd.f32 0.0, %v5468
    %5470 = vmatprep.mubr.bf16.mxu0 %v4237
    %5471 = vmatmul.mubr.bf16.gmra.mrb[0].mxu0 %v4236
    %v5472 = vpop.f32.mrb[0].mxu0
    %v5473 = vadd.f32 0.0, %v5472
    %v5474 = vpop.f32.mrb[0].mxu0
    %v5475 = vadd.f32 0.0, %v5474
    %v5476 = vpop.f32.mrb[0].mxu0
    %v5477 = vadd.f32 0.0, %v5476
    %v5478 = vpop.f32.mrb[0].mxu0
    %v5479 = vadd.f32 0.0, %v5478
    %5480 = vmatprep.mubr.bf16.mxu0 %v4239
    %5481 = vmatmul.mubr.bf16.gmra.mrb[0].mxu0 %v4238
    %v5482 = vpop.f32.mrb[0].mxu0
    %v5483 = vadd.f32 0.0, %v5482
    %v5484 = vpop.f32.mrb[0].mxu0
    %v5485 = vadd.f32 0.0, %v5484
    %v5486 = vpop.f32.mrb[0].mxu0
    %v5487 = vadd.f32 0.0, %v5486
    %v5488 = vpop.f32.mrb[0].mxu0
    %v5489 = vadd.f32 0.0, %v5488
    %5490 = vmatprep.mubr.bf16.mxu0 %v4241
    %5491 = vmatmul.mubr.bf16.gmra.mrb[0].mxu0 %v4240
    %v5492 = vpop.f32.mrb[0].mxu0
    %v5493 = vadd.f32 0.0, %v5492
    %v5494 = vpop.f32.mrb[0].mxu0
    %v5495 = vadd.f32 0.0, %v5494
    %v5496 = vpop.f32.mrb[0].mxu0
    %v5497 = vadd.f32 0.0, %v5496
    %v5498 = vpop.f32.mrb[0].mxu0
    %v5499 = vadd.f32 0.0, %v5498
    %5500 = vmatprep.mubr.bf16.mxu0 %v4243
    %5501 = vmatmul.mubr.bf16.gmra.mrb[0].mxu0 %v4242
    %v5502 = vpop.f32.mrb[0].mxu0
    %v5503 = vadd.f32 0.0, %v5502
    %v5504 = vpop.f32.mrb[0].mxu0
    %v5505 = vadd.f32 0.0, %v5504
    %v5506 = vpop.f32.mrb[0].mxu0
    %v5507 = vadd.f32 0.0, %v5506
    %v5508 = vpop.f32.mrb[0].mxu0
    %v5509 = vadd.f32 0.0, %v5508
    %5510 = vmatprep.mubr.bf16.mxu0 %v4245
    %5511 = vmatmul.mubr.bf16.gmra.mrb[0].mxu0 %v4244
    %v5512 = vpop.f32.mrb[0].mxu0
    %v5513 = vadd.f32 0.0, %v5512
    %v5514 = vpop.f32.mrb[0].mxu0
    %v5515 = vadd.f32 0.0, %v5514
    %v5516 = vpop.f32.mrb[0].mxu0
    %v5517 = vadd.f32 0.0, %v5516
    %v5518 = vpop.f32.mrb[0].mxu0
    %v5519 = vadd.f32 0.0, %v5518
    %5520 = vmatprep.mubr.bf16.mxu0 %v4247
    %5521 = vmatmul.mubr.bf16.gmra.mrb[0].mxu0 %v4246
    %v5522 = vpop.f32.mrb[0].mxu0
    %v5523 = vadd.f32 0.0, %v5522
    %v5524 = vpop.f32.mrb[0].mxu0
    %v5525 = vadd.f32 0.0, %v5524
    %v5526 = vpop.f32.mrb[0].mxu0
    %v5527 = vadd.f32 0.0, %v5526
    %v5528 = vpop.f32.mrb[0].mxu0
    %v5529 = vadd.f32 0.0, %v5528
    %5530 = vmatprep.mubr.bf16.mxu0 %v4249
    %5531 = vmatmul.mubr.bf16.gmra.mrb[0].mxu0 %v4248
    %v5532 = vpop.f32.mrb[0].mxu0
    %v5533 = vadd.f32 0.0, %v5532
    %v5534 = vpop.f32.mrb[0].mxu0
    %v5535 = vadd.f32 0.0, %v5534
    %v5536 = vpop.f32.mrb[0].mxu0
    %v5537 = vadd.f32 0.0, %v5536
    %v5538 = vpop.f32.mrb[0].mxu0
    %v5539 = vadd.f32 0.0, %v5538
    %5540 = vmatprep.mubr.bf16.mxu0 %v4251
    %5541 = vmatmul.mubr.bf16.gmra.mrb[0].mxu0 %v4250
    %v5542 = vpop.f32.mrb[0].mxu0
    %v5543 = vadd.f32 0.0, %v5542
    %v5544 = vpop.f32.mrb[0].mxu0
    %v5545 = vadd.f32 0.0, %v5544
    %v5546 = vpop.f32.mrb[0].mxu0
    %v5547 = vadd.f32 0.0, %v5546
    %v5548 = vpop.f32.mrb[0].mxu0
    %v5549 = vadd.f32 0.0, %v5548
    %5550 = vmatprep.mubr.bf16.mxu0 %v4253
    %5551 = vmatmul.mubr.bf16.gmra.mrb[0].mxu0 %v4252
    %v5552 = vpop.f32.mrb[0].mxu0
    %v5553 = vadd.f32 0.0, %v5552
    %v5554 = vpop.f32.mrb[0].mxu0
    %v5555 = vadd.f32 0.0, %v5554
    %v5556 = vpop.f32.mrb[0].mxu0
    %v5557 = vadd.f32 0.0, %v5556
    %v5558 = vpop.f32.mrb[0].mxu0
    %v5559 = vadd.f32 0.0, %v5558
    %5560 = vmatprep.mubr.bf16.mxu0 %v4255
    %5561 = vmatmul.mubr.bf16.gmra.mrb[0].mxu0 %v4254
    %v5562 = vpop.f32.mrb[0].mxu0
    %v5563 = vadd.f32 0.0, %v5562
    %v5564 = vpop.f32.mrb[0].mxu0
    %v5565 = vadd.f32 0.0, %v5564
    %v5566 = vpop.f32.mrb[0].mxu0
    %v5567 = vadd.f32 0.0, %v5566
    %v5568 = vpop.f32.mrb[0].mxu0
    %v5569 = vadd.f32 0.0, %v5568
    %5570 = vmatprep.mubr.bf16.mxu0 %v4257
    %5571 = vmatmul.mubr.bf16.gmra.mrb[0].mxu0 %v4256
    %v5572 = vpop.f32.mrb[0].mxu0
    %v5573 = vadd.f32 0.0, %v5572
    %v5574 = vpop.f32.mrb[0].mxu0
    %v5575 = vadd.f32 0.0, %v5574
    %v5576 = vpop.f32.mrb[0].mxu0
    %v5577 = vadd.f32 0.0, %v5576
    %v5578 = vpop.f32.mrb[0].mxu0
    %v5579 = vadd.f32 0.0, %v5578
    %5580 = vmatprep.mubr.bf16.mxu0 %v4259
    %5581 = vmatmul.mubr.bf16.gmra.mrb[0].mxu0 %v4258
    %v5582 = vpop.f32.mrb[0].mxu0
    %v5583 = vadd.f32 0.0, %v5582
    %v5584 = vpop.f32.mrb[0].mxu0
    %v5585 = vadd.f32 0.0, %v5584
    %v5586 = vpop.f32.mrb[0].mxu0
    %v5587 = vadd.f32 0.0, %v5586
    %v5588 = vpop.f32.mrb[0].mxu0
    %v5589 = vadd.f32 0.0, %v5588
    %5590 = vmatprep.mubr.bf16.mxu0 %v4261
    %5591 = vmatmul.mubr.bf16.gmra.mrb[0].mxu0 %v4260
    %v5592 = vpop.f32.mrb[0].mxu0
    %v5593 = vadd.f32 0.0, %v5592
    %v5594 = vpop.f32.mrb[0].mxu0
    %v5595 = vadd.f32 0.0, %v5594
    %v5596 = vpop.f32.mrb[0].mxu0
    %v5597 = vadd.f32 0.0, %v5596
    %v5598 = vpop.f32.mrb[0].mxu0
    %v5599 = vadd.f32 0.0, %v5598
    %5600 = vmatprep.mubr.bf16.mxu0 %v4263
    %5601 = vmatmul.mubr.bf16.gmra.mrb[0].mxu0 %v4262
    %v5602 = vpop.f32.mrb[0].mxu0
    %v5603 = vadd.f32 0.0, %v5602
    %v5604 = vpop.f32.mrb[0].mxu0
    %v5605 = vadd.f32 0.0, %v5604
    %v5606 = vpop.f32.mrb[0].mxu0
    %v5607 = vadd.f32 0.0, %v5606
    %v5608 = vpop.f32.mrb[0].mxu0
    %v5609 = vadd.f32 0.0, %v5608
    %5610 = vdwg.mxu0
    %5611 = vmatprep.subr.bf16.mxu0 %v4783
    %5612 = vmatpush1.bf16.msra.mxu0 %v4782
    %5613 = vmatprep.subr.bf16.mxu0 %v4791
    %5614 = vmatpush1.bf16.msra.mxu0 %v4790
    %5615 = vmatprep.subr.bf16.mxu0 %v4799
    %5616 = vmatpush1.bf16.msra.mxu0 %v4798
    %5617 = vmatprep.subr.bf16.mxu0 %v4807
    %5618 = vmatpush1.bf16.msra.mxu0 %v4806
    %5619 = vmatprep.subr.bf16.mxu0 %v4815
    %5620 = vmatpush1.bf16.msra.mxu0 %v4814
    %5621 = vmatprep.subr.bf16.mxu0 %v4823
    %5622 = vmatpush1.bf16.msra.mxu0 %v4822
    %5623 = vmatprep.subr.bf16.mxu0 %v4831
    %5624 = vmatpush1.bf16.msra.mxu0 %v4830
    %5625 = vmatprep.subr.bf16.mxu0 %v4839
    %5626 = vmatpush1.bf16.msra.mxu0 %v4838
    %5627 = vmatprep.subr.bf16.mxu0 %v4847
    %5628 = vmatpush1.bf16.msra.mxu0 %v4846
    %5629 = vmatprep.subr.bf16.mxu0 %v4855
    %5630 = vmatpush1.bf16.msra.mxu0 %v4854
    %5631 = vmatprep.subr.bf16.mxu0 %v4863
    %5632 = vmatpush1.bf16.msra.mxu0 %v4862
    %5633 = vmatprep.subr.bf16.mxu0 %v4871
    %5634 = vmatpush1.bf16.msra.mxu0 %v4870
    %5635 = vmatprep.subr.bf16.mxu0 %v4879
    %5636 = vmatpush1.bf16.msra.mxu0 %v4878
    %5637 = vmatprep.subr.bf16.mxu0 %v4887
    %5638 = vmatpush1.bf16.msra.mxu0 %v4886
    %5639 = vmatprep.subr.bf16.mxu0 %v4895
    %5640 = vmatpush1.bf16.msra.mxu0 %v4894
    %5641 = vmatprep.subr.bf16.mxu0 %v4903
    %5642 = vmatpush1.bf16.msra.mxu0 %v4902
    %5643 = vmatprep.mubr.bf16.mxu0 %v4233
    %5644 = vmatmul.mubr.bf16.gmra.mrb[0].mxu0 %v4232
    %v5645 = vpop.f32.mrb[0].mxu0
    %v5646 = vadd.f32 0.0, %v5645
    %v5647 = vpop.f32.mrb[0].mxu0
    %v5648 = vadd.f32 0.0, %v5647
    %v5649 = vpop.f32.mrb[0].mxu0
    %v5650 = vadd.f32 0.0, %v5649
    %v5651 = vpop.f32.mrb[0].mxu0
    %v5652 = vadd.f32 0.0, %v5651
    %5653 = vmatprep.mubr.bf16.mxu0 %v4235
    %5654 = vmatmul.mubr.bf16.gmra.mrb[0].mxu0 %v4234
    %v5655 = vpop.f32.mrb[0].mxu0
    %v5656 = vadd.f32 0.0, %v5655
    %v5657 = vpop.f32.mrb[0].mxu0
    %v5658 = vadd.f32 0.0, %v5657
    %v5659 = vpop.f32.mrb[0].mxu0
    %v5660 = vadd.f32 0.0, %v5659
    %v5661 = vpop.f32.mrb[0].mxu0
    %v5662 = vadd.f32 0.0, %v5661
    %5663 = vmatprep.mubr.bf16.mxu0 %v4237
    %5664 = vmatmul.mubr.bf16.gmra.mrb[0].mxu0 %v4236
    %v5665 = vpop.f32.mrb[0].mxu0
    %v5666 = vadd.f32 0.0, %v5665
    %v5667 = vpop.f32.mrb[0].mxu0
    %v5668 = vadd.f32 0.0, %v5667
    %v5669 = vpop.f32.mrb[0].mxu0
    %v5670 = vadd.f32 0.0, %v5669
    %v5671 = vpop.f32.mrb[0].mxu0
    %v5672 = vadd.f32 0.0, %v5671
    %5673 = vmatprep.mubr.bf16.mxu0 %v4239
    %5674 = vmatmul.mubr.bf16.gmra.mrb[0].mxu0 %v4238
    %v5675 = vpop.f32.mrb[0].mxu0
    %v5676 = vadd.f32 0.0, %v5675
    %v5677 = vpop.f32.mrb[0].mxu0
    %v5678 = vadd.f32 0.0, %v5677
    %v5679 = vpop.f32.mrb[0].mxu0
    %v5680 = vadd.f32 0.0, %v5679
    %v5681 = vpop.f32.mrb[0].mxu0
    %v5682 = vadd.f32 0.0, %v5681
    %5683 = vmatprep.mubr.bf16.mxu0 %v4241
    %5684 = vmatmul.mubr.bf16.gmra.mrb[0].mxu0 %v4240
    %v5685 = vpop.f32.mrb[0].mxu0
    %v5686 = vadd.f32 0.0, %v5685
    %v5687 = vpop.f32.mrb[0].mxu0
    %v5688 = vadd.f32 0.0, %v5687
    %v5689 = vpop.f32.mrb[0].mxu0
    %v5690 = vadd.f32 0.0, %v5689
    %v5691 = vpop.f32.mrb[0].mxu0
    %v5692 = vadd.f32 0.0, %v5691
    %5693 = vmatprep.mubr.bf16.mxu0 %v4243
    %5694 = vmatmul.mubr.bf16.gmra.mrb[0].mxu0 %v4242
    %v5695 = vpop.f32.mrb[0].mxu0
    %v5696 = vadd.f32 0.0, %v5695
    %v5697 = vpop.f32.mrb[0].mxu0
    %v5698 = vadd.f32 0.0, %v5697
    %v5699 = vpop.f32.mrb[0].mxu0
    %v5700 = vadd.f32 0.0, %v5699
    %v5701 = vpop.f32.mrb[0].mxu0
    %v5702 = vadd.f32 0.0, %v5701
    %5703 = vmatprep.mubr.bf16.mxu0 %v4245
    %5704 = vmatmul.mubr.bf16.gmra.mrb[0].mxu0 %v4244
    %v5705 = vpop.f32.mrb[0].mxu0
    %v5706 = vadd.f32 0.0, %v5705
    %v5707 = vpop.f32.mrb[0].mxu0
    %v5708 = vadd.f32 0.0, %v5707
    %v5709 = vpop.f32.mrb[0].mxu0
    %v5710 = vadd.f32 0.0, %v5709
    %v5711 = vpop.f32.mrb[0].mxu0
    %v5712 = vadd.f32 0.0, %v5711
    %5713 = vmatprep.mubr.bf16.mxu0 %v4247
    %5714 = vmatmul.mubr.bf16.gmra.mrb[0].mxu0 %v4246
    %v5715 = vpop.f32.mrb[0].mxu0
    %v5716 = vadd.f32 0.0, %v5715
    %v5717 = vpop.f32.mrb[0].mxu0
    %v5718 = vadd.f32 0.0, %v5717
    %v5719 = vpop.f32.mrb[0].mxu0
    %v5720 = vadd.f32 0.0, %v5719
    %v5721 = vpop.f32.mrb[0].mxu0
    %v5722 = vadd.f32 0.0, %v5721
    %5723 = vmatprep.mubr.bf16.mxu0 %v4249
    %5724 = vmatmul.mubr.bf16.gmra.mrb[0].mxu0 %v4248
    %v5725 = vpop.f32.mrb[0].mxu0
    %v5726 = vadd.f32 0.0, %v5725
    %v5727 = vpop.f32.mrb[0].mxu0
    %v5728 = vadd.f32 0.0, %v5727
    %v5729 = vpop.f32.mrb[0].mxu0
    %v5730 = vadd.f32 0.0, %v5729
    %v5731 = vpop.f32.mrb[0].mxu0
    %v5732 = vadd.f32 0.0, %v5731
    %5733 = vmatprep.mubr.bf16.mxu0 %v4251
    %5734 = vmatmul.mubr.bf16.gmra.mrb[0].mxu0 %v4250
    %v5735 = vpop.f32.mrb[0].mxu0
    %v5736 = vadd.f32 0.0, %v5735
    %v5737 = vpop.f32.mrb[0].mxu0
    %v5738 = vadd.f32 0.0, %v5737
    %v5739 = vpop.f32.mrb[0].mxu0
    %v5740 = vadd.f32 0.0, %v5739
    %v5741 = vpop.f32.mrb[0].mxu0
    %v5742 = vadd.f32 0.0, %v5741
    %5743 = vmatprep.mubr.bf16.mxu0 %v4253
    %5744 = vmatmul.mubr.bf16.gmra.mrb[0].mxu0 %v4252
    %v5745 = vpop.f32.mrb[0].mxu0
    %v5746 = vadd.f32 0.0, %v5745
    %v5747 = vpop.f32.mrb[0].mxu0
    %v5748 = vadd.f32 0.0, %v5747
    %v5749 = vpop.f32.mrb[0].mxu0
    %v5750 = vadd.f32 0.0, %v5749
    %v5751 = vpop.f32.mrb[0].mxu0
    %v5752 = vadd.f32 0.0, %v5751
    %5753 = vmatprep.mubr.bf16.mxu0 %v4255
    %5754 = vmatmul.mubr.bf16.gmra.mrb[0].mxu0 %v4254
    %v5755 = vpop.f32.mrb[0].mxu0
    %v5756 = vadd.f32 0.0, %v5755
    %v5757 = vpop.f32.mrb[0].mxu0
    %v5758 = vadd.f32 0.0, %v5757
    %v5759 = vpop.f32.mrb[0].mxu0
    %v5760 = vadd.f32 0.0, %v5759
    %v5761 = vpop.f32.mrb[0].mxu0
    %v5762 = vadd.f32 0.0, %v5761
    %5763 = vmatprep.mubr.bf16.mxu0 %v4257
    %5764 = vmatmul.mubr.bf16.gmra.mrb[0].mxu0 %v4256
    %v5765 = vpop.f32.mrb[0].mxu0
    %v5766 = vadd.f32 0.0, %v5765
    %v5767 = vpop.f32.mrb[0].mxu0
    %v5768 = vadd.f32 0.0, %v5767
    %v5769 = vpop.f32.mrb[0].mxu0
    %v5770 = vadd.f32 0.0, %v5769
    %v5771 = vpop.f32.mrb[0].mxu0
    %v5772 = vadd.f32 0.0, %v5771
    %5773 = vmatprep.mubr.bf16.mxu0 %v4259
    %5774 = vmatmul.mubr.bf16.gmra.mrb[0].mxu0 %v4258
    %v5775 = vpop.f32.mrb[0].mxu0
    %v5776 = vadd.f32 0.0, %v5775
    %v5777 = vpop.f32.mrb[0].mxu0
    %v5778 = vadd.f32 0.0, %v5777
    %v5779 = vpop.f32.mrb[0].mxu0
    %v5780 = vadd.f32 0.0, %v5779
    %v5781 = vpop.f32.mrb[0].mxu0
    %v5782 = vadd.f32 0.0, %v5781
    %5783 = vmatprep.mubr.bf16.mxu0 %v4261
    %5784 = vmatmul.mubr.bf16.gmra.mrb[0].mxu0 %v4260
    %v5785 = vpop.f32.mrb[0].mxu0
    %v5786 = vadd.f32 0.0, %v5785
    %v5787 = vpop.f32.mrb[0].mxu0
    %v5788 = vadd.f32 0.0, %v5787
    %v5789 = vpop.f32.mrb[0].mxu0
    %v5790 = vadd.f32 0.0, %v5789
    %v5791 = vpop.f32.mrb[0].mxu0
    %v5792 = vadd.f32 0.0, %v5791
    %5793 = vmatprep.mubr.bf16.mxu0 %v4263
    %5794 = vmatmul.mubr.bf16.gmra.mrb[0].mxu0 %v4262
    %v5795 = vpop.f32.mrb[0].mxu0
    %v5796 = vadd.f32 0.0, %v5795
    %v5797 = vpop.f32.mrb[0].mxu0
    %v5798 = vadd.f32 0.0, %v5797
    %v5799 = vpop.f32.mrb[0].mxu0
    %v5800 = vadd.f32 0.0, %v5799
    %v5801 = vpop.f32.mrb[0].mxu0
    %v5802 = vadd.f32 0.0, %v5801
    %5803 = vdwg.mxu0
    %v5804 = vxor.u32 %v5067, 2147483648
    %v5805 = vxor.u32 %v5069, 2147483648
    %v5806 = vxor.u32 %v5260, 2147483648
    %v5807 = vxor.u32 %v5262, 2147483648
    %v5808 = vxor.u32 %v5071, 2147483648
    %v5809 = vxor.u32 %v5073, 2147483648
    %v5810 = vxor.u32 %v5264, 2147483648
    %v5811 = vxor.u32 %v5266, 2147483648
    %v5812 = vxor.u32 %v5077, 2147483648
    %v5813 = vxor.u32 %v5079, 2147483648
    %v5814 = vxor.u32 %v5270, 2147483648
    %v5815 = vxor.u32 %v5272, 2147483648
    %v5816 = vxor.u32 %v5081, 2147483648
    %v5817 = vxor.u32 %v5083, 2147483648
    %v5818 = vxor.u32 %v5274, 2147483648
    %v5819 = vxor.u32 %v5276, 2147483648
    %v5820 = vxor.u32 %v5087, 2147483648
    %v5821 = vxor.u32 %v5089, 2147483648
    %v5822 = vxor.u32 %v5280, 2147483648
    %v5823 = vxor.u32 %v5282, 2147483648
    %v5824 = vxor.u32 %v5091, 2147483648
    %v5825 = vxor.u32 %v5093, 2147483648
    %v5826 = vxor.u32 %v5284, 2147483648
    %v5827 = vxor.u32 %v5286, 2147483648
    %v5828 = vxor.u32 %v5097, 2147483648
    %v5829 = vxor.u32 %v5099, 2147483648
    %v5830 = vxor.u32 %v5290, 2147483648
    %v5831 = vxor.u32 %v5292, 2147483648
    %v5832 = vxor.u32 %v5101, 2147483648
    %v5833 = vxor.u32 %v5103, 2147483648
    %v5834 = vxor.u32 %v5294, 2147483648
    %v5835 = vxor.u32 %v5296, 2147483648
    %v5836 = vxor.u32 %v5107, 2147483648
    %v5837 = vxor.u32 %v5109, 2147483648
    %v5838 = vxor.u32 %v5300, 2147483648
    %v5839 = vxor.u32 %v5302, 2147483648
    %v5840 = vxor.u32 %v5111, 2147483648
    %v5841 = vxor.u32 %v5113, 2147483648
    %v5842 = vxor.u32 %v5304, 2147483648
    %v5843 = vxor.u32 %v5306, 2147483648
    %v5844 = vxor.u32 %v5117, 2147483648
    %v5845 = vxor.u32 %v5119, 2147483648
    %v5846 = vxor.u32 %v5310, 2147483648
    %v5847 = vxor.u32 %v5312, 2147483648
    %v5848 = vxor.u32 %v5121, 2147483648
    %v5849 = vxor.u32 %v5123, 2147483648
    %v5850 = vxor.u32 %v5314, 2147483648
    %v5851 = vxor.u32 %v5316, 2147483648
    %v5852 = vxor.u32 %v5127, 2147483648
    %v5853 = vxor.u32 %v5129, 2147483648
    %v5854 = vxor.u32 %v5320, 2147483648
    %v5855 = vxor.u32 %v5322, 2147483648
    %v5856 = vxor.u32 %v5131, 2147483648
    %v5857 = vxor.u32 %v5133, 2147483648
    %v5858 = vxor.u32 %v5324, 2147483648
    %v5859 = vxor.u32 %v5326, 2147483648
    %v5860 = vxor.u32 %v5137, 2147483648
    %v5861 = vxor.u32 %v5139, 2147483648
    %v5862 = vxor.u32 %v5330, 2147483648
    %v5863 = vxor.u32 %v5332, 2147483648
    %v5864 = vxor.u32 %v5141, 2147483648
    %v5865 = vxor.u32 %v5143, 2147483648
    %v5866 = vxor.u32 %v5334, 2147483648
    %v5867 = vxor.u32 %v5336, 2147483648
    %v5868 = vxor.u32 %v5147, 2147483648
    %v5869 = vxor.u32 %v5149, 2147483648
    %v5870 = vxor.u32 %v5340, 2147483648
    %v5871 = vxor.u32 %v5342, 2147483648
    %v5872 = vxor.u32 %v5151, 2147483648
    %v5873 = vxor.u32 %v5153, 2147483648
    %v5874 = vxor.u32 %v5344, 2147483648
    %v5875 = vxor.u32 %v5346, 2147483648
    %v5876 = vxor.u32 %v5157, 2147483648
    %v5877 = vxor.u32 %v5159, 2147483648
    %v5878 = vxor.u32 %v5350, 2147483648
    %v5879 = vxor.u32 %v5352, 2147483648
    %v5880 = vxor.u32 %v5161, 2147483648
    %v5881 = vxor.u32 %v5163, 2147483648
    %v5882 = vxor.u32 %v5354, 2147483648
    %v5883 = vxor.u32 %v5356, 2147483648
    %v5884 = vxor.u32 %v5167, 2147483648
    %v5885 = vxor.u32 %v5169, 2147483648
    %v5886 = vxor.u32 %v5360, 2147483648
    %v5887 = vxor.u32 %v5362, 2147483648
    %v5888 = vxor.u32 %v5171, 2147483648
    %v5889 = vxor.u32 %v5173, 2147483648
    %v5890 = vxor.u32 %v5364, 2147483648
    %v5891 = vxor.u32 %v5366, 2147483648
    %v5892 = vxor.u32 %v5177, 2147483648
    %v5893 = vxor.u32 %v5179, 2147483648
    %v5894 = vxor.u32 %v5370, 2147483648
    %v5895 = vxor.u32 %v5372, 2147483648
    %v5896 = vxor.u32 %v5181, 2147483648
    %v5897 = vxor.u32 %v5183, 2147483648
    %v5898 = vxor.u32 %v5374, 2147483648
    %v5899 = vxor.u32 %v5376, 2147483648
    %v5900 = vxor.u32 %v5187, 2147483648
    %v5901 = vxor.u32 %v5189, 2147483648
    %v5902 = vxor.u32 %v5380, 2147483648
    %v5903 = vxor.u32 %v5382, 2147483648
    %v5904 = vxor.u32 %v5191, 2147483648
    %v5905 = vxor.u32 %v5193, 2147483648
    %v5906 = vxor.u32 %v5384, 2147483648
    %v5907 = vxor.u32 %v5386, 2147483648
    %v5908 = vxor.u32 %v5197, 2147483648
    %v5909 = vxor.u32 %v5199, 2147483648
    %v5910 = vxor.u32 %v5390, 2147483648
    %v5911 = vxor.u32 %v5392, 2147483648
    %v5912 = vxor.u32 %v5201, 2147483648
    %v5913 = vxor.u32 %v5203, 2147483648
    %v5914 = vxor.u32 %v5394, 2147483648
    %v5915 = vxor.u32 %v5396, 2147483648
    %v5916 = vxor.u32 %v5207, 2147483648
    %v5917 = vxor.u32 %v5209, 2147483648
    %v5918 = vxor.u32 %v5400, 2147483648
    %v5919 = vxor.u32 %v5402, 2147483648
    %v5920 = vxor.u32 %v5211, 2147483648
    %v5921 = vxor.u32 %v5213, 2147483648
    %v5922 = vxor.u32 %v5404, 2147483648
    %v5923 = vxor.u32 %v5406, 2147483648
    %v5924 = vxor.u32 %v5217, 2147483648
    %v5925 = vxor.u32 %v5219, 2147483648
    %v5926 = vxor.u32 %v5410, 2147483648
    %v5927 = vxor.u32 %v5412, 2147483648
    %v5928 = vxor.u32 %v5221, 2147483648
    %v5929 = vxor.u32 %v5223, 2147483648
    %v5930 = vxor.u32 %v5414, 2147483648
    %v5931 = vxor.u32 %v5416, 2147483648
    %v5932 = vmul.f32 %v5804, 1.442695
    %v5933 = vpow.pop %v5932
    %v5934 = vmul.f32 %v5805, 1.442695
    %v5935 = vpow.pop %v5934
    %v5936 = vmul.f32 %v5806, 1.442695
    %v5937 = vpow.pop %v5936
    %v5938 = vmul.f32 %v5807, 1.442695
    %v5939 = vpow.pop %v5938
    %v5940 = vmul.f32 %v5808, 1.442695
    %v5941 = vpow.pop %v5940
    %v5942 = vmul.f32 %v5809, 1.442695
    %v5943 = vpow.pop %v5942
    %v5944 = vmul.f32 %v5810, 1.442695
    %v5945 = vpow.pop %v5944
    %v5946 = vmul.f32 %v5811, 1.442695
    %v5947 = vpow.pop %v5946
    %v5948 = vmul.f32 %v5812, 1.442695
    %v5949 = vpow.pop %v5948
    %v5950 = vmul.f32 %v5813, 1.442695
    %v5951 = vpow.pop %v5950
    %v5952 = vmul.f32 %v5814, 1.442695
    %v5953 = vpow.pop %v5952
    %v5954 = vmul.f32 %v5815, 1.442695
    %v5955 = vpow.pop %v5954
    %v5956 = vmul.f32 %v5816, 1.442695
    %v5957 = vpow.pop %v5956
    %v5958 = vmul.f32 %v5817, 1.442695
    %v5959 = vpow.pop %v5958
    %v5960 = vmul.f32 %v5818, 1.442695
    %v5961 = vpow.pop %v5960
    %v5962 = vmul.f32 %v5819, 1.442695
    %v5963 = vpow.pop %v5962
    %v5964 = vmul.f32 %v5820, 1.442695
    %v5965 = vpow.pop %v5964
    %v5966 = vmul.f32 %v5821, 1.442695
    %v5967 = vpow.pop %v5966
    %v5968 = vmul.f32 %v5822, 1.442695
    %v5969 = vpow.pop %v5968
    %v5970 = vmul.f32 %v5823, 1.442695
    %v5971 = vpow.pop %v5970
    %v5972 = vmul.f32 %v5824, 1.442695
    %v5973 = vpow.pop %v5972
    %v5974 = vmul.f32 %v5825, 1.442695
    %v5975 = vpow.pop %v5974
    %v5976 = vmul.f32 %v5826, 1.442695
    %v5977 = vpow.pop %v5976
    %v5978 = vmul.f32 %v5827, 1.442695
    %v5979 = vpow.pop %v5978
    %v5980 = vmul.f32 %v5828, 1.442695
    %v5981 = vpow.pop %v5980
    %v5982 = vmul.f32 %v5829, 1.442695
    %v5983 = vpow.pop %v5982
    %v5984 = vmul.f32 %v5830, 1.442695
    %v5985 = vpow.pop %v5984
    %v5986 = vmul.f32 %v5831, 1.442695
    %v5987 = vpow.pop %v5986
    %v5988 = vmul.f32 %v5832, 1.442695
    %v5989 = vpow.pop %v5988
    %v5990 = vmul.f32 %v5833, 1.442695
    %v5991 = vpow.pop %v5990
    %v5992 = vmul.f32 %v5834, 1.442695
    %v5993 = vpow.pop %v5992
    %v5994 = vmul.f32 %v5835, 1.442695
    %v5995 = vpow.pop %v5994
    %v5996 = vmul.f32 %v5836, 1.442695
    %v5997 = vpow.pop %v5996
    %v5998 = vmul.f32 %v5837, 1.442695
    %v5999 = vpow.pop %v5998
    %v6000 = vmul.f32 %v5838, 1.442695
    %v6001 = vpow.pop %v6000
    %v6002 = vmul.f32 %v5839, 1.442695
    %v6003 = vpow.pop %v6002
    %v6004 = vmul.f32 %v5840, 1.442695
    %v6005 = vpow.pop %v6004
    %v6006 = vmul.f32 %v5841, 1.442695
    %v6007 = vpow.pop %v6006
    %v6008 = vmul.f32 %v5842, 1.442695
    %v6009 = vpow.pop %v6008
    %v6010 = vmul.f32 %v5843, 1.442695
    %v6011 = vpow.pop %v6010
    %v6012 = vmul.f32 %v5844, 1.442695
    %v6013 = vpow.pop %v6012
    %v6014 = vmul.f32 %v5845, 1.442695
    %v6015 = vpow.pop %v6014
    %v6016 = vmul.f32 %v5846, 1.442695
    %v6017 = vpow.pop %v6016
    %v6018 = vmul.f32 %v5847, 1.442695
    %v6019 = vpow.pop %v6018
    %v6020 = vmul.f32 %v5848, 1.442695
    %v6021 = vpow.pop %v6020
    %v6022 = vmul.f32 %v5849, 1.442695
    %v6023 = vpow.pop %v6022
    %v6024 = vmul.f32 %v5850, 1.442695
    %v6025 = vpow.pop %v6024
    %v6026 = vmul.f32 %v5851, 1.442695
    %v6027 = vpow.pop %v6026
    %v6028 = vmul.f32 %v5852, 1.442695
    %v6029 = vpow.pop %v6028
    %v6030 = vmul.f32 %v5853, 1.442695
    %v6031 = vpow.pop %v6030
    %v6032 = vmul.f32 %v5854, 1.442695
    %v6033 = vpow.pop %v6032
    %v6034 = vmul.f32 %v5855, 1.442695
    %v6035 = vpow.pop %v6034
    %v6036 = vmul.f32 %v5856, 1.442695
    %v6037 = vpow.pop %v6036
    %v6038 = vmul.f32 %v5857, 1.442695
    %v6039 = vpow.pop %v6038
    %v6040 = vmul.f32 %v5858, 1.442695
    %v6041 = vpow.pop %v6040
    %v6042 = vmul.f32 %v5859, 1.442695
    %v6043 = vpow.pop %v6042
    %v6044 = vmul.f32 %v5860, 1.442695
    %v6045 = vpow.pop %v6044
    %v6046 = vmul.f32 %v5861, 1.442695
    %v6047 = vpow.pop %v6046
    %v6048 = vmul.f32 %v5862, 1.442695
    %v6049 = vpow.pop %v6048
    %v6050 = vmul.f32 %v5863, 1.442695
    %v6051 = vpow.pop %v6050
    %v6052 = vmul.f32 %v5864, 1.442695
    %v6053 = vpow.pop %v6052
    %v6054 = vmul.f32 %v5865, 1.442695
    %v6055 = vpow.pop %v6054
    %v6056 = vmul.f32 %v5866, 1.442695
    %v6057 = vpow.pop %v6056
    %v6058 = vmul.f32 %v5867, 1.442695
    %v6059 = vpow.pop %v6058
    %v6060 = vmul.f32 %v5868, 1.442695
    %v6061 = vpow.pop %v6060
    %v6062 = vmul.f32 %v5869, 1.442695
    %v6063 = vpow.pop %v6062
    %v6064 = vmul.f32 %v5870, 1.442695
    %v6065 = vpow.pop %v6064
    %v6066 = vmul.f32 %v5871, 1.442695
    %v6067 = vpow.pop %v6066
    %v6068 = vmul.f32 %v5872, 1.442695
    %v6069 = vpow.pop %v6068
    %v6070 = vmul.f32 %v5873, 1.442695
    %v6071 = vpow.pop %v6070
    %v6072 = vmul.f32 %v5874, 1.442695
    %v6073 = vpow.pop %v6072
    %v6074 = vmul.f32 %v5875, 1.442695
    %v6075 = vpow.pop %v6074
    %v6076 = vmul.f32 %v5876, 1.442695
    %v6077 = vpow.pop %v6076
    %v6078 = vmul.f32 %v5877, 1.442695
    %v6079 = vpow.pop %v6078
    %v6080 = vmul.f32 %v5878, 1.442695
    %v6081 = vpow.pop %v6080
    %v6082 = vmul.f32 %v5879, 1.442695
    %v6083 = vpow.pop %v6082
    %v6084 = vmul.f32 %v5880, 1.442695
    %v6085 = vpow.pop %v6084
    %v6086 = vmul.f32 %v5881, 1.442695
    %v6087 = vpow.pop %v6086
    %v6088 = vmul.f32 %v5882, 1.442695
    %v6089 = vpow.pop %v6088
    %v6090 = vmul.f32 %v5883, 1.442695
    %v6091 = vpow.pop %v6090
    %v6092 = vmul.f32 %v5884, 1.442695
    %v6093 = vpow.pop %v6092
    %v6094 = vmul.f32 %v5885, 1.442695
    %v6095 = vpow.pop %v6094
    %v6096 = vmul.f32 %v5886, 1.442695
    %v6097 = vpow.pop %v6096
    %v6098 = vmul.f32 %v5887, 1.442695
    %v6099 = vpow.pop %v6098
    %v6100 = vmul.f32 %v5888, 1.442695
    %v6101 = vpow.pop %v6100
    %v6102 = vmul.f32 %v5889, 1.442695
    %v6103 = vpow.pop %v6102
    %v6104 = vmul.f32 %v5890, 1.442695
    %v6105 = vpow.pop %v6104
    %v6106 = vmul.f32 %v5891, 1.442695
    %v6107 = vpow.pop %v6106
    %v6108 = vmul.f32 %v5892, 1.442695
    %v6109 = vpow.pop %v6108
    %v6110 = vmul.f32 %v5893, 1.442695
    %v6111 = vpow.pop %v6110
    %v6112 = vmul.f32 %v5894, 1.442695
    %v6113 = vpow.pop %v6112
    %v6114 = vmul.f32 %v5895, 1.442695
    %v6115 = vpow.pop %v6114
    %v6116 = vmul.f32 %v5896, 1.442695
    %v6117 = vpow.pop %v6116
    %v6118 = vmul.f32 %v5897, 1.442695
    %v6119 = vpow.pop %v6118
    %v6120 = vmul.f32 %v5898, 1.442695
    %v6121 = vpow.pop %v6120
    %v6122 = vmul.f32 %v5899, 1.442695
    %v6123 = vpow.pop %v6122
    %v6124 = vmul.f32 %v5900, 1.442695
    %v6125 = vpow.pop %v6124
    %v6126 = vmul.f32 %v5901, 1.442695
    %v6127 = vpow.pop %v6126
    %v6128 = vmul.f32 %v5902, 1.442695
    %v6129 = vpow.pop %v6128
    %v6130 = vmul.f32 %v5903, 1.442695
    %v6131 = vpow.pop %v6130
    %v6132 = vmul.f32 %v5904, 1.442695
    %v6133 = vpow.pop %v6132
    %v6134 = vmul.f32 %v5905, 1.442695
    %v6135 = vpow.pop %v6134
    %v6136 = vmul.f32 %v5906, 1.442695
    %v6137 = vpow.pop %v6136
    %v6138 = vmul.f32 %v5907, 1.442695
    %v6139 = vpow.pop %v6138
    %v6140 = vmul.f32 %v5908, 1.442695
    %v6141 = vpow.pop %v6140
    %v6142 = vmul.f32 %v5909, 1.442695
    %v6143 = vpow.pop %v6142
    %v6144 = vmul.f32 %v5910, 1.442695
    %v6145 = vpow.pop %v6144
    %v6146 = vmul.f32 %v5911, 1.442695
    %v6147 = vpow.pop %v6146
    %v6148 = vmul.f32 %v5912, 1.442695
    %v6149 = vpow.pop %v6148
    %v6150 = vmul.f32 %v5913, 1.442695
    %v6151 = vpow.pop %v6150
    %v6152 = vmul.f32 %v5914, 1.442695
    %v6153 = vpow.pop %v6152
    %v6154 = vmul.f32 %v5915, 1.442695
    %v6155 = vpow.pop %v6154
    %v6156 = vmul.f32 %v5916, 1.442695
    %v6157 = vpow.pop %v6156
    %v6158 = vmul.f32 %v5917, 1.442695
    %v6159 = vpow.pop %v6158
    %v6160 = vmul.f32 %v5918, 1.442695
    %v6161 = vpow.pop %v6160
    %v6162 = vmul.f32 %v5919, 1.442695
    %v6163 = vpow.pop %v6162
    %v6164 = vmul.f32 %v5920, 1.442695
    %v6165 = vpow.pop %v6164
    %v6166 = vmul.f32 %v5921, 1.442695
    %v6167 = vpow.pop %v6166
    %v6168 = vmul.f32 %v5922, 1.442695
    %v6169 = vpow.pop %v6168
    %v6170 = vmul.f32 %v5923, 1.442695
    %v6171 = vpow.pop %v6170
    %v6172 = vmul.f32 %v5924, 1.442695
    %v6173 = vpow.pop %v6172
    %v6174 = vmul.f32 %v5925, 1.442695
    %v6175 = vpow.pop %v6174
    %v6176 = vmul.f32 %v5926, 1.442695
    %v6177 = vpow.pop %v6176
    %v6178 = vmul.f32 %v5927, 1.442695
    %v6179 = vpow.pop %v6178
    %v6180 = vmul.f32 %v5928, 1.442695
    %v6181 = vpow.pop %v6180
    %v6182 = vmul.f32 %v5929, 1.442695
    %v6183 = vpow.pop %v6182
    %v6184 = vmul.f32 %v5930, 1.442695
    %v6185 = vpow.pop %v6184
    %v6186 = vmul.f32 %v5931, 1.442695
    %v6187 = vpow.pop %v6186
    %v6188 = vadd.f32 %v5933, 1.0
    %v6189 = vadd.f32 %v5935, 1.0
    %v6190 = vadd.f32 %v5937, 1.0
    %v6191 = vadd.f32 %v5939, 1.0
    %v6192 = vadd.f32 %v5941, 1.0
    %v6193 = vadd.f32 %v5943, 1.0
    %v6194 = vadd.f32 %v5945, 1.0
    %v6195 = vadd.f32 %v5947, 1.0
    %v6196 = vadd.f32 %v5949, 1.0
    %v6197 = vadd.f32 %v5951, 1.0
    %v6198 = vadd.f32 %v5953, 1.0
    %v6199 = vadd.f32 %v5955, 1.0
    %v6200 = vadd.f32 %v5957, 1.0
    %v6201 = vadd.f32 %v5959, 1.0
    %v6202 = vadd.f32 %v5961, 1.0
    %v6203 = vadd.f32 %v5963, 1.0
    %v6204 = vadd.f32 %v5965, 1.0
    %v6205 = vadd.f32 %v5967, 1.0
    %v6206 = vadd.f32 %v5969, 1.0
    %v6207 = vadd.f32 %v5971, 1.0
    %v6208 = vadd.f32 %v5973, 1.0
    %v6209 = vadd.f32 %v5975, 1.0
    %v6210 = vadd.f32 %v5977, 1.0
    %v6211 = vadd.f32 %v5979, 1.0
    %v6212 = vadd.f32 %v5981, 1.0
    %v6213 = vadd.f32 %v5983, 1.0
    %v6214 = vadd.f32 %v5985, 1.0
    %v6215 = vadd.f32 %v5987, 1.0
    %v6216 = vadd.f32 %v5989, 1.0
    %v6217 = vadd.f32 %v5991, 1.0
    %v6218 = vadd.f32 %v5993, 1.0
    %v6219 = vadd.f32 %v5995, 1.0
    %v6220 = vadd.f32 %v5997, 1.0
    %v6221 = vadd.f32 %v5999, 1.0
    %v6222 = vadd.f32 %v6001, 1.0
    %v6223 = vadd.f32 %v6003, 1.0
    %v6224 = vadd.f32 %v6005, 1.0
    %v6225 = vadd.f32 %v6007, 1.0
    %v6226 = vadd.f32 %v6009, 1.0
    %v6227 = vadd.f32 %v6011, 1.0
    %v6228 = vadd.f32 %v6013, 1.0
    %v6229 = vadd.f32 %v6015, 1.0
    %v6230 = vadd.f32 %v6017, 1.0
    %v6231 = vadd.f32 %v6019, 1.0
    %v6232 = vadd.f32 %v6021, 1.0
    %v6233 = vadd.f32 %v6023, 1.0
    %v6234 = vadd.f32 %v6025, 1.0
    %v6235 = vadd.f32 %v6027, 1.0
    %v6236 = vadd.f32 %v6029, 1.0
    %v6237 = vadd.f32 %v6031, 1.0
    %v6238 = vadd.f32 %v6033, 1.0
    %v6239 = vadd.f32 %v6035, 1.0
    %v6240 = vadd.f32 %v6037, 1.0
    %v6241 = vadd.f32 %v6039, 1.0
    %v6242 = vadd.f32 %v6041, 1.0
    %v6243 = vadd.f32 %v6043, 1.0
    %v6244 = vadd.f32 %v6045, 1.0
    %v6245 = vadd.f32 %v6047, 1.0
    %v6246 = vadd.f32 %v6049, 1.0
    %v6247 = vadd.f32 %v6051, 1.0
    %v6248 = vadd.f32 %v6053, 1.0
    %v6249 = vadd.f32 %v6055, 1.0
    %v6250 = vadd.f32 %v6057, 1.0
    %v6251 = vadd.f32 %v6059, 1.0
    %v6252 = vadd.f32 %v6061, 1.0
    %v6253 = vadd.f32 %v6063, 1.0
    %v6254 = vadd.f32 %v6065, 1.0
    %v6255 = vadd.f32 %v6067, 1.0
    %v6256 = vadd.f32 %v6069, 1.0
    %v6257 = vadd.f32 %v6071, 1.0
    %v6258 = vadd.f32 %v6073, 1.0
    %v6259 = vadd.f32 %v6075, 1.0
    %v6260 = vadd.f32 %v6077, 1.0
    %v6261 = vadd.f32 %v6079, 1.0
    %v6262 = vadd.f32 %v6081, 1.0
    %v6263 = vadd.f32 %v6083, 1.0
    %v6264 = vadd.f32 %v6085, 1.0
    %v6265 = vadd.f32 %v6087, 1.0
    %v6266 = vadd.f32 %v6089, 1.0
    %v6267 = vadd.f32 %v6091, 1.0
    %v6268 = vadd.f32 %v6093, 1.0
    %v6269 = vadd.f32 %v6095, 1.0
    %v6270 = vadd.f32 %v6097, 1.0
    %v6271 = vadd.f32 %v6099, 1.0
    %v6272 = vadd.f32 %v6101, 1.0
    %v6273 = vadd.f32 %v6103, 1.0
    %v6274 = vadd.f32 %v6105, 1.0
    %v6275 = vadd.f32 %v6107, 1.0
    %v6276 = vadd.f32 %v6109, 1.0
    %v6277 = vadd.f32 %v6111, 1.0
    %v6278 = vadd.f32 %v6113, 1.0
    %v6279 = vadd.f32 %v6115, 1.0
    %v6280 = vadd.f32 %v6117, 1.0
    %v6281 = vadd.f32 %v6119, 1.0
    %v6282 = vadd.f32 %v6121, 1.0
    %v6283 = vadd.f32 %v6123, 1.0
    %v6284 = vadd.f32 %v6125, 1.0
    %v6285 = vadd.f32 %v6127, 1.0
    %v6286 = vadd.f32 %v6129, 1.0
    %v6287 = vadd.f32 %v6131, 1.0
    %v6288 = vadd.f32 %v6133, 1.0
    %v6289 = vadd.f32 %v6135, 1.0
    %v6290 = vadd.f32 %v6137, 1.0
    %v6291 = vadd.f32 %v6139, 1.0
    %v6292 = vadd.f32 %v6141, 1.0
    %v6293 = vadd.f32 %v6143, 1.0
    %v6294 = vadd.f32 %v6145, 1.0
    %v6295 = vadd.f32 %v6147, 1.0
    %v6296 = vadd.f32 %v6149, 1.0
    %v6297 = vadd.f32 %v6151, 1.0
    %v6298 = vadd.f32 %v6153, 1.0
    %v6299 = vadd.f32 %v6155, 1.0
    %v6300 = vadd.f32 %v6157, 1.0
    %v6301 = vadd.f32 %v6159, 1.0
    %v6302 = vadd.f32 %v6161, 1.0
    %v6303 = vadd.f32 %v6163, 1.0
    %v6304 = vadd.f32 %v6165, 1.0
    %v6305 = vadd.f32 %v6167, 1.0
    %v6306 = vadd.f32 %v6169, 1.0
    %v6307 = vadd.f32 %v6171, 1.0
    %v6308 = vadd.f32 %v6173, 1.0
    %v6309 = vadd.f32 %v6175, 1.0
    %v6310 = vadd.f32 %v6177, 1.0
    %v6311 = vadd.f32 %v6179, 1.0
    %v6312 = vadd.f32 %v6181, 1.0
    %v6313 = vadd.f32 %v6183, 1.0
    %v6314 = vadd.f32 %v6185, 1.0
    %v6315 = vadd.f32 %v6187, 1.0
    %v6316 = vrcp.pop %v6188
    %v6317 = vmul.f32 1.0, %v6316
    %v6318 = vrcp.pop %v6189
    %v6319 = vmul.f32 1.0, %v6318
    %v6320 = vrcp.pop %v6190
    %v6321 = vmul.f32 1.0, %v6320
    %v6322 = vrcp.pop %v6191
    %v6323 = vmul.f32 1.0, %v6322
    %v6324 = vrcp.pop %v6192
    %v6325 = vmul.f32 1.0, %v6324
    %v6326 = vrcp.pop %v6193
    %v6327 = vmul.f32 1.0, %v6326
    %v6328 = vrcp.pop %v6194
    %v6329 = vmul.f32 1.0, %v6328
    %v6330 = vrcp.pop %v6195
    %v6331 = vmul.f32 1.0, %v6330
    %v6332 = vrcp.pop %v6196
    %v6333 = vmul.f32 1.0, %v6332
    %v6334 = vrcp.pop %v6197
    %v6335 = vmul.f32 1.0, %v6334
    %v6336 = vrcp.pop %v6198
    %v6337 = vmul.f32 1.0, %v6336
    %v6338 = vrcp.pop %v6199
    %v6339 = vmul.f32 1.0, %v6338
    %v6340 = vrcp.pop %v6200
    %v6341 = vmul.f32 1.0, %v6340
    %v6342 = vrcp.pop %v6201
    %v6343 = vmul.f32 1.0, %v6342
    %v6344 = vrcp.pop %v6202
    %v6345 = vmul.f32 1.0, %v6344
    %v6346 = vrcp.pop %v6203
    %v6347 = vmul.f32 1.0, %v6346
    %v6348 = vrcp.pop %v6204
    %v6349 = vmul.f32 1.0, %v6348
    %v6350 = vrcp.pop %v6205
    %v6351 = vmul.f32 1.0, %v6350
    %v6352 = vrcp.pop %v6206
    %v6353 = vmul.f32 1.0, %v6352
    %v6354 = vrcp.pop %v6207
    %v6355 = vmul.f32 1.0, %v6354
    %v6356 = vrcp.pop %v6208
    %v6357 = vmul.f32 1.0, %v6356
    %v6358 = vrcp.pop %v6209
    %v6359 = vmul.f32 1.0, %v6358
    %v6360 = vrcp.pop %v6210
    %v6361 = vmul.f32 1.0, %v6360
    %v6362 = vrcp.pop %v6211
    %v6363 = vmul.f32 1.0, %v6362
    %v6364 = vrcp.pop %v6212
    %v6365 = vmul.f32 1.0, %v6364
    %v6366 = vrcp.pop %v6213
    %v6367 = vmul.f32 1.0, %v6366
    %v6368 = vrcp.pop %v6214
    %v6369 = vmul.f32 1.0, %v6368
    %v6370 = vrcp.pop %v6215
    %v6371 = vmul.f32 1.0, %v6370
    %v6372 = vrcp.pop %v6216
    %v6373 = vmul.f32 1.0, %v6372
    %v6374 = vrcp.pop %v6217
    %v6375 = vmul.f32 1.0, %v6374
    %v6376 = vrcp.pop %v6218
    %v6377 = vmul.f32 1.0, %v6376
    %v6378 = vrcp.pop %v6219
    %v6379 = vmul.f32 1.0, %v6378
    %v6380 = vrcp.pop %v6220
    %v6381 = vmul.f32 1.0, %v6380
    %v6382 = vrcp.pop %v6221
    %v6383 = vmul.f32 1.0, %v6382
    %v6384 = vrcp.pop %v6222
    %v6385 = vmul.f32 1.0, %v6384
    %v6386 = vrcp.pop %v6223
    %v6387 = vmul.f32 1.0, %v6386
    %v6388 = vrcp.pop %v6224
    %v6389 = vmul.f32 1.0, %v6388
    %v6390 = vrcp.pop %v6225
    %v6391 = vmul.f32 1.0, %v6390
    %v6392 = vrcp.pop %v6226
    %v6393 = vmul.f32 1.0, %v6392
    %v6394 = vrcp.pop %v6227
    %v6395 = vmul.f32 1.0, %v6394
    %v6396 = vrcp.pop %v6228
    %v6397 = vmul.f32 1.0, %v6396
    %v6398 = vrcp.pop %v6229
    %v6399 = vmul.f32 1.0, %v6398
    %v6400 = vrcp.pop %v6230
    %v6401 = vmul.f32 1.0, %v6400
    %v6402 = vrcp.pop %v6231
    %v6403 = vmul.f32 1.0, %v6402
    %v6404 = vrcp.pop %v6232
    %v6405 = vmul.f32 1.0, %v6404
    %v6406 = vrcp.pop %v6233
    %v6407 = vmul.f32 1.0, %v6406
    %v6408 = vrcp.pop %v6234
    %v6409 = vmul.f32 1.0, %v6408
    %v6410 = vrcp.pop %v6235
    %v6411 = vmul.f32 1.0, %v6410
    %v6412 = vrcp.pop %v6236
    %v6413 = vmul.f32 1.0, %v6412
    %v6414 = vrcp.pop %v6237
    %v6415 = vmul.f32 1.0, %v6414
    %v6416 = vrcp.pop %v6238
    %v6417 = vmul.f32 1.0, %v6416
    %v6418 = vrcp.pop %v6239
    %v6419 = vmul.f32 1.0, %v6418
    %v6420 = vrcp.pop %v6240
    %v6421 = vmul.f32 1.0, %v6420
    %v6422 = vrcp.pop %v6241
    %v6423 = vmul.f32 1.0, %v6422
    %v6424 = vrcp.pop %v6242
    %v6425 = vmul.f32 1.0, %v6424
    %v6426 = vrcp.pop %v6243
    %v6427 = vmul.f32 1.0, %v6426
    %v6428 = vrcp.pop %v6244
    %v6429 = vmul.f32 1.0, %v6428
    %v6430 = vrcp.pop %v6245
    %v6431 = vmul.f32 1.0, %v6430
    %v6432 = vrcp.pop %v6246
    %v6433 = vmul.f32 1.0, %v6432
    %v6434 = vrcp.pop %v6247
    %v6435 = vmul.f32 1.0, %v6434
    %v6436 = vrcp.pop %v6248
    %v6437 = vmul.f32 1.0, %v6436
    %v6438 = vrcp.pop %v6249
    %v6439 = vmul.f32 1.0, %v6438
    %v6440 = vrcp.pop %v6250
    %v6441 = vmul.f32 1.0, %v6440
    %v6442 = vrcp.pop %v6251
    %v6443 = vmul.f32 1.0, %v6442
    %v6444 = vrcp.pop %v6252
    %v6445 = vmul.f32 1.0, %v6444
    %v6446 = vrcp.pop %v6253
    %v6447 = vmul.f32 1.0, %v6446
    %v6448 = vrcp.pop %v6254
    %v6449 = vmul.f32 1.0, %v6448
    %v6450 = vrcp.pop %v6255
    %v6451 = vmul.f32 1.0, %v6450
    %v6452 = vrcp.pop %v6256
    %v6453 = vmul.f32 1.0, %v6452
    %v6454 = vrcp.pop %v6257
    %v6455 = vmul.f32 1.0, %v6454
    %v6456 = vrcp.pop %v6258
    %v6457 = vmul.f32 1.0, %v6456
    %v6458 = vrcp.pop %v6259
    %v6459 = vmul.f32 1.0, %v6458
    %v6460 = vrcp.pop %v6260
    %v6461 = vmul.f32 1.0, %v6460
    %v6462 = vrcp.pop %v6261
    %v6463 = vmul.f32 1.0, %v6462
    %v6464 = vrcp.pop %v6262
    %v6465 = vmul.f32 1.0, %v6464
    %v6466 = vrcp.pop %v6263
    %v6467 = vmul.f32 1.0, %v6466
    %v6468 = vrcp.pop %v6264
    %v6469 = vmul.f32 1.0, %v6468
    %v6470 = vrcp.pop %v6265
    %v6471 = vmul.f32 1.0, %v6470
    %v6472 = vrcp.pop %v6266
    %v6473 = vmul.f32 1.0, %v6472
    %v6474 = vrcp.pop %v6267
    %v6475 = vmul.f32 1.0, %v6474
    %v6476 = vrcp.pop %v6268
    %v6477 = vmul.f32 1.0, %v6476
    %v6478 = vrcp.pop %v6269
    %v6479 = vmul.f32 1.0, %v6478
    %v6480 = vrcp.pop %v6270
    %v6481 = vmul.f32 1.0, %v6480
    %v6482 = vrcp.pop %v6271
    %v6483 = vmul.f32 1.0, %v6482
    %v6484 = vrcp.pop %v6272
    %v6485 = vmul.f32 1.0, %v6484
    %v6486 = vrcp.pop %v6273
    %v6487 = vmul.f32 1.0, %v6486
    %v6488 = vrcp.pop %v6274
    %v6489 = vmul.f32 1.0, %v6488
    %v6490 = vrcp.pop %v6275
    %v6491 = vmul.f32 1.0, %v6490
    %v6492 = vrcp.pop %v6276
    %v6493 = vmul.f32 1.0, %v6492
    %v6494 = vrcp.pop %v6277
    %v6495 = vmul.f32 1.0, %v6494
    %v6496 = vrcp.pop %v6278
    %v6497 = vmul.f32 1.0, %v6496
    %v6498 = vrcp.pop %v6279
    %v6499 = vmul.f32 1.0, %v6498
    %v6500 = vrcp.pop %v6280
    %v6501 = vmul.f32 1.0, %v6500
    %v6502 = vrcp.pop %v6281
    %v6503 = vmul.f32 1.0, %v6502
    %v6504 = vrcp.pop %v6282
    %v6505 = vmul.f32 1.0, %v6504
    %v6506 = vrcp.pop %v6283
    %v6507 = vmul.f32 1.0, %v6506
    %v6508 = vrcp.pop %v6284
    %v6509 = vmul.f32 1.0, %v6508
    %v6510 = vrcp.pop %v6285
    %v6511 = vmul.f32 1.0, %v6510
    %v6512 = vrcp.pop %v6286
    %v6513 = vmul.f32 1.0, %v6512
    %v6514 = vrcp.pop %v6287
    %v6515 = vmul.f32 1.0, %v6514
    %v6516 = vrcp.pop %v6288
    %v6517 = vmul.f32 1.0, %v6516
    %v6518 = vrcp.pop %v6289
    %v6519 = vmul.f32 1.0, %v6518
    %v6520 = vrcp.pop %v6290
    %v6521 = vmul.f32 1.0, %v6520
    %v6522 = vrcp.pop %v6291
    %v6523 = vmul.f32 1.0, %v6522
    %v6524 = vrcp.pop %v6292
    %v6525 = vmul.f32 1.0, %v6524
    %v6526 = vrcp.pop %v6293
    %v6527 = vmul.f32 1.0, %v6526
    %v6528 = vrcp.pop %v6294
    %v6529 = vmul.f32 1.0, %v6528
    %v6530 = vrcp.pop %v6295
    %v6531 = vmul.f32 1.0, %v6530
    %v6532 = vrcp.pop %v6296
    %v6533 = vmul.f32 1.0, %v6532
    %v6534 = vrcp.pop %v6297
    %v6535 = vmul.f32 1.0, %v6534
    %v6536 = vrcp.pop %v6298
    %v6537 = vmul.f32 1.0, %v6536
    %v6538 = vrcp.pop %v6299
    %v6539 = vmul.f32 1.0, %v6538
    %v6540 = vrcp.pop %v6300
    %v6541 = vmul.f32 1.0, %v6540
    %v6542 = vrcp.pop %v6301
    %v6543 = vmul.f32 1.0, %v6542
    %v6544 = vrcp.pop %v6302
    %v6545 = vmul.f32 1.0, %v6544
    %v6546 = vrcp.pop %v6303
    %v6547 = vmul.f32 1.0, %v6546
    %v6548 = vrcp.pop %v6304
    %v6549 = vmul.f32 1.0, %v6548
    %v6550 = vrcp.pop %v6305
    %v6551 = vmul.f32 1.0, %v6550
    %v6552 = vrcp.pop %v6306
    %v6553 = vmul.f32 1.0, %v6552
    %v6554 = vrcp.pop %v6307
    %v6555 = vmul.f32 1.0, %v6554
    %v6556 = vrcp.pop %v6308
    %v6557 = vmul.f32 1.0, %v6556
    %v6558 = vrcp.pop %v6309
    %v6559 = vmul.f32 1.0, %v6558
    %v6560 = vrcp.pop %v6310
    %v6561 = vmul.f32 1.0, %v6560
    %v6562 = vrcp.pop %v6311
    %v6563 = vmul.f32 1.0, %v6562
    %v6564 = vrcp.pop %v6312
    %v6565 = vmul.f32 1.0, %v6564
    %v6566 = vrcp.pop %v6313
    %v6567 = vmul.f32 1.0, %v6566
    %v6568 = vrcp.pop %v6314
    %v6569 = vmul.f32 1.0, %v6568
    %v6570 = vrcp.pop %v6315
    %v6571 = vmul.f32 1.0, %v6570
    %v6572 = vmul.f32 %v5067, %v6317
    %v6573 = vmul.f32 %v5069, %v6319
    %v6574 = vmul.f32 %v5260, %v6321
    %v6575 = vmul.f32 %v5262, %v6323
    %v6576 = vmul.f32 %v5071, %v6325
    %v6577 = vmul.f32 %v5073, %v6327
    %v6578 = vmul.f32 %v5264, %v6329
    %v6579 = vmul.f32 %v5266, %v6331
    %v6580 = vmul.f32 %v5077, %v6333
    %v6581 = vmul.f32 %v5079, %v6335
    %v6582 = vmul.f32 %v5270, %v6337
    %v6583 = vmul.f32 %v5272, %v6339
    %v6584 = vmul.f32 %v5081, %v6341
    %v6585 = vmul.f32 %v5083, %v6343
    %v6586 = vmul.f32 %v5274, %v6345
    %v6587 = vmul.f32 %v5276, %v6347
    %v6588 = vmul.f32 %v5087, %v6349
    %v6589 = vmul.f32 %v5089, %v6351
    %v6590 = vmul.f32 %v5280, %v6353
    %v6591 = vmul.f32 %v5282, %v6355
    %v6592 = vmul.f32 %v5091, %v6357
    %v6593 = vmul.f32 %v5093, %v6359
    %v6594 = vmul.f32 %v5284, %v6361
    %v6595 = vmul.f32 %v5286, %v6363
    %v6596 = vmul.f32 %v5097, %v6365
    %v6597 = vmul.f32 %v5099, %v6367
    %v6598 = vmul.f32 %v5290, %v6369
    %v6599 = vmul.f32 %v5292, %v6371
    %v6600 = vmul.f32 %v5101, %v6373
    %v6601 = vmul.f32 %v5103, %v6375
    %v6602 = vmul.f32 %v5294, %v6377
    %v6603 = vmul.f32 %v5296, %v6379
    %v6604 = vmul.f32 %v5107, %v6381
    %v6605 = vmul.f32 %v5109, %v6383
    %v6606 = vmul.f32 %v5300, %v6385
    %v6607 = vmul.f32 %v5302, %v6387
    %v6608 = vmul.f32 %v5111, %v6389
    %v6609 = vmul.f32 %v5113, %v6391
    %v6610 = vmul.f32 %v5304, %v6393
    %v6611 = vmul.f32 %v5306, %v6395
    %v6612 = vmul.f32 %v5117, %v6397
    %v6613 = vmul.f32 %v5119, %v6399
    %v6614 = vmul.f32 %v5310, %v6401
    %v6615 = vmul.f32 %v5312, %v6403
    %v6616 = vmul.f32 %v5121, %v6405
    %v6617 = vmul.f32 %v5123, %v6407
    %v6618 = vmul.f32 %v5314, %v6409
    %v6619 = vmul.f32 %v5316, %v6411
    %v6620 = vmul.f32 %v5127, %v6413
    %v6621 = vmul.f32 %v5129, %v6415
    %v6622 = vmul.f32 %v5320, %v6417
    %v6623 = vmul.f32 %v5322, %v6419
    %v6624 = vmul.f32 %v5131, %v6421
    %v6625 = vmul.f32 %v5133, %v6423
    %v6626 = vmul.f32 %v5324, %v6425
    %v6627 = vmul.f32 %v5326, %v6427
    %v6628 = vmul.f32 %v5137, %v6429
    %v6629 = vmul.f32 %v5139, %v6431
    %v6630 = vmul.f32 %v5330, %v6433
    %v6631 = vmul.f32 %v5332, %v6435
    %v6632 = vmul.f32 %v5141, %v6437
    %v6633 = vmul.f32 %v5143, %v6439
    %v6634 = vmul.f32 %v5334, %v6441
    %v6635 = vmul.f32 %v5336, %v6443
    %v6636 = vmul.f32 %v5147, %v6445
    %v6637 = vmul.f32 %v5149, %v6447
    %v6638 = vmul.f32 %v5340, %v6449
    %v6639 = vmul.f32 %v5342, %v6451
    %v6640 = vmul.f32 %v5151, %v6453
    %v6641 = vmul.f32 %v5153, %v6455
    %v6642 = vmul.f32 %v5344, %v6457
    %v6643 = vmul.f32 %v5346, %v6459
    %v6644 = vmul.f32 %v5157, %v6461
    %v6645 = vmul.f32 %v5159, %v6463
    %v6646 = vmul.f32 %v5350, %v6465
    %v6647 = vmul.f32 %v5352, %v6467
    %v6648 = vmul.f32 %v5161, %v6469
    %v6649 = vmul.f32 %v5163, %v6471
    %v6650 = vmul.f32 %v5354, %v6473
    %v6651 = vmul.f32 %v5356, %v6475
    %v6652 = vmul.f32 %v5167, %v6477
    %v6653 = vmul.f32 %v5169, %v6479
    %v6654 = vmul.f32 %v5360, %v6481
    %v6655 = vmul.f32 %v5362, %v6483
    %v6656 = vmul.f32 %v5171, %v6485
    %v6657 = vmul.f32 %v5173, %v6487
    %v6658 = vmul.f32 %v5364, %v6489
    %v6659 = vmul.f32 %v5366, %v6491
    %v6660 = vmul.f32 %v5177, %v6493
    %v6661 = vmul.f32 %v5179, %v6495
    %v6662 = vmul.f32 %v5370, %v6497
    %v6663 = vmul.f32 %v5372, %v6499
    %v6664 = vmul.f32 %v5181, %v6501
    %v6665 = vmul.f32 %v5183, %v6503
    %v6666 = vmul.f32 %v5374, %v6505
    %v6667 = vmul.f32 %v5376, %v6507
    %v6668 = vmul.f32 %v5187, %v6509
    %v6669 = vmul.f32 %v5189, %v6511
    %v6670 = vmul.f32 %v5380, %v6513
    %v6671 = vmul.f32 %v5382, %v6515
    %v6672 = vmul.f32 %v5191, %v6517
    %v6673 = vmul.f32 %v5193, %v6519
    %v6674 = vmul.f32 %v5384, %v6521
    %v6675 = vmul.f32 %v5386, %v6523
    %v6676 = vmul.f32 %v5197, %v6525
    %v6677 = vmul.f32 %v5199, %v6527
    %v6678 = vmul.f32 %v5390, %v6529
    %v6679 = vmul.f32 %v5392, %v6531
    %v6680 = vmul.f32 %v5201, %v6533
    %v6681 = vmul.f32 %v5203, %v6535
    %v6682 = vmul.f32 %v5394, %v6537
    %v6683 = vmul.f32 %v5396, %v6539
    %v6684 = vmul.f32 %v5207, %v6541
    %v6685 = vmul.f32 %v5209, %v6543
    %v6686 = vmul.f32 %v5400, %v6545
    %v6687 = vmul.f32 %v5402, %v6547
    %v6688 = vmul.f32 %v5211, %v6549
    %v6689 = vmul.f32 %v5213, %v6551
    %v6690 = vmul.f32 %v5404, %v6553
    %v6691 = vmul.f32 %v5406, %v6555
    %v6692 = vmul.f32 %v5217, %v6557
    %v6693 = vmul.f32 %v5219, %v6559
    %v6694 = vmul.f32 %v5410, %v6561
    %v6695 = vmul.f32 %v5412, %v6563
    %v6696 = vmul.f32 %v5221, %v6565
    %v6697 = vmul.f32 %v5223, %v6567
    %v6698 = vmul.f32 %v5414, %v6569
    %v6699 = vmul.f32 %v5416, %v6571
    %v6700 = vmul.f32 %v6572, %v5453
    %v6701 = vmul.f32 %v6573, %v5455
    %v6702 = vmul.f32 %v6574, %v5646
    %v6703 = vmul.f32 %v6575, %v5648
    %v6704 = vmul.f32 %v6576, %v5457
    %v6705 = vmul.f32 %v6577, %v5459
    %v6706 = vmul.f32 %v6578, %v5650
    %v6707 = vmul.f32 %v6579, %v5652
    %v6708 = vmul.f32 %v6580, %v5463
    %v6709 = vmul.f32 %v6581, %v5465
    %v6710 = vmul.f32 %v6582, %v5656
    %v6711 = vmul.f32 %v6583, %v5658
    %v6712 = vmul.f32 %v6584, %v5467
    %v6713 = vmul.f32 %v6585, %v5469
    %v6714 = vmul.f32 %v6586, %v5660
    %v6715 = vmul.f32 %v6587, %v5662
    %v6716 = vmul.f32 %v6588, %v5473
    %v6717 = vmul.f32 %v6589, %v5475
    %v6718 = vmul.f32 %v6590, %v5666
    %v6719 = vmul.f32 %v6591, %v5668
    %v6720 = vmul.f32 %v6592, %v5477
    %v6721 = vmul.f32 %v6593, %v5479
    %v6722 = vmul.f32 %v6594, %v5670
    %v6723 = vmul.f32 %v6595, %v5672
    %v6724 = vmul.f32 %v6596, %v5483
    %v6725 = vmul.f32 %v6597, %v5485
    %v6726 = vmul.f32 %v6598, %v5676
    %v6727 = vmul.f32 %v6599, %v5678
    %v6728 = vmul.f32 %v6600, %v5487
    %v6729 = vmul.f32 %v6601, %v5489
    %v6730 = vmul.f32 %v6602, %v5680
    %v6731 = vmul.f32 %v6603, %v5682
    %v6732 = vmul.f32 %v6604, %v5493
    %v6733 = vmul.f32 %v6605, %v5495
    %v6734 = vmul.f32 %v6606, %v5686
    %v6735 = vmul.f32 %v6607, %v5688
    %v6736 = vmul.f32 %v6608, %v5497
    %v6737 = vmul.f32 %v6609, %v5499
    %v6738 = vmul.f32 %v6610, %v5690
    %v6739 = vmul.f32 %v6611, %v5692
    %v6740 = vmul.f32 %v6612, %v5503
    %v6741 = vmul.f32 %v6613, %v5505
    %v6742 = vmul.f32 %v6614, %v5696
    %v6743 = vmul.f32 %v6615, %v5698
    %v6744 = vmul.f32 %v6616, %v5507
    %v6745 = vmul.f32 %v6617, %v5509
    %v6746 = vmul.f32 %v6618, %v5700
    %v6747 = vmul.f32 %v6619, %v5702
    %v6748 = vmul.f32 %v6620, %v5513
    %v6749 = vmul.f32 %v6621, %v5515
    %v6750 = vmul.f32 %v6622, %v5706
    %v6751 = vmul.f32 %v6623, %v5708
    %v6752 = vmul.f32 %v6624, %v5517
    %v6753 = vmul.f32 %v6625, %v5519
    %v6754 = vmul.f32 %v6626, %v5710
    %v6755 = vmul.f32 %v6627, %v5712
    %v6756 = vmul.f32 %v6628, %v5523
    %v6757 = vmul.f32 %v6629, %v5525
    %v6758 = vmul.f32 %v6630, %v5716
    %v6759 = vmul.f32 %v6631, %v5718
    %v6760 = vmul.f32 %v6632, %v5527
    %v6761 = vmul.f32 %v6633, %v5529
    %v6762 = vmul.f32 %v6634, %v5720
    %v6763 = vmul.f32 %v6635, %v5722
    %v6764 = vmul.f32 %v6636, %v5533
    %v6765 = vmul.f32 %v6637, %v5535
    %v6766 = vmul.f32 %v6638, %v5726
    %v6767 = vmul.f32 %v6639, %v5728
    %v6768 = vmul.f32 %v6640, %v5537
    %v6769 = vmul.f32 %v6641, %v5539
    %v6770 = vmul.f32 %v6642, %v5730
    %v6771 = vmul.f32 %v6643, %v5732
    %v6772 = vmul.f32 %v6644, %v5543
    %v6773 = vmul.f32 %v6645, %v5545
    %v6774 = vmul.f32 %v6646, %v5736
    %v6775 = vmul.f32 %v6647, %v5738
    %v6776 = vmul.f32 %v6648, %v5547
    %v6777 = vmul.f32 %v6649, %v5549
    %v6778 = vmul.f32 %v6650, %v5740
    %v6779 = vmul.f32 %v6651, %v5742
    %v6780 = vmul.f32 %v6652, %v5553
    %v6781 = vmul.f32 %v6653, %v5555
    %v6782 = vmul.f32 %v6654, %v5746
    %v6783 = vmul.f32 %v6655, %v5748
    %v6784 = vmul.f32 %v6656, %v5557
    %v6785 = vmul.f32 %v6657, %v5559
    %v6786 = vmul.f32 %v6658, %v5750
    %v6787 = vmul.f32 %v6659, %v5752
    %v6788 = vmul.f32 %v6660, %v5563
    %v6789 = vmul.f32 %v6661, %v5565
    %v6790 = vmul.f32 %v6662, %v5756
    %v6791 = vmul.f32 %v6663, %v5758
    %v6792 = vmul.f32 %v6664, %v5567
    %v6793 = vmul.f32 %v6665, %v5569
    %v6794 = vmul.f32 %v6666, %v5760
    %v6795 = vmul.f32 %v6667, %v5762
    %v6796 = vmul.f32 %v6668, %v5573
    %v6797 = vmul.f32 %v6669, %v5575
    %v6798 = vmul.f32 %v6670, %v5766
    %v6799 = vmul.f32 %v6671, %v5768
    %v6800 = vmul.f32 %v6672, %v5577
    %v6801 = vmul.f32 %v6673, %v5579
    %v6802 = vmul.f32 %v6674, %v5770
    %v6803 = vmul.f32 %v6675, %v5772
    %v6804 = vmul.f32 %v6676, %v5583
    %v6805 = vmul.f32 %v6677, %v5585
    %v6806 = vmul.f32 %v6678, %v5776
    %v6807 = vmul.f32 %v6679, %v5778
    %v6808 = vmul.f32 %v6680, %v5587
    %v6809 = vmul.f32 %v6681, %v5589
    %v6810 = vmul.f32 %v6682, %v5780
    %v6811 = vmul.f32 %v6683, %v5782
    %v6812 = vmul.f32 %v6684, %v5593
    %v6813 = vmul.f32 %v6685, %v5595
    %v6814 = vmul.f32 %v6686, %v5786
    %v6815 = vmul.f32 %v6687, %v5788
    %v6816 = vmul.f32 %v6688, %v5597
    %v6817 = vmul.f32 %v6689, %v5599
    %v6818 = vmul.f32 %v6690, %v5790
    %v6819 = vmul.f32 %v6691, %v5792
    %v6820 = vmul.f32 %v6692, %v5603
    %v6821 = vmul.f32 %v6693, %v5605
    %v6822 = vmul.f32 %v6694, %v5796
    %v6823 = vmul.f32 %v6695, %v5798
    %v6824 = vmul.f32 %v6696, %v5607
    %v6825 = vmul.f32 %v6697, %v5609
    %v6826 = vmul.f32 %v6698, %v5800
    %v6827 = vmul.f32 %v6699, %v5802
    %v6828 = vpack.c.bf16 %v6704, %v6700
    %v6829 = vpack.c.bf16 %v6705, %v6701
    %v6830 = vpack.c.bf16 %v6706, %v6702
    %v6831 = vpack.c.bf16 %v6707, %v6703
    %v6832 = vpack.c.bf16 %v6712, %v6708
    %v6833 = vpack.c.bf16 %v6713, %v6709
    %v6834 = vpack.c.bf16 %v6714, %v6710
    %v6835 = vpack.c.bf16 %v6715, %v6711
    %v6836 = vpack.c.bf16 %v6720, %v6716
    %v6837 = vpack.c.bf16 %v6721, %v6717
    %v6838 = vpack.c.bf16 %v6722, %v6718
    %v6839 = vpack.c.bf16 %v6723, %v6719
    %v6840 = vpack.c.bf16 %v6728, %v6724
    %v6841 = vpack.c.bf16 %v6729, %v6725
    %v6842 = vpack.c.bf16 %v6730, %v6726
    %v6843 = vpack.c.bf16 %v6731, %v6727
    %v6844 = vpack.c.bf16 %v6736, %v6732
    %v6845 = vpack.c.bf16 %v6737, %v6733
    %v6846 = vpack.c.bf16 %v6738, %v6734
    %v6847 = vpack.c.bf16 %v6739, %v6735
    %v6848 = vpack.c.bf16 %v6744, %v6740
    %v6849 = vpack.c.bf16 %v6745, %v6741
    %v6850 = vpack.c.bf16 %v6746, %v6742
    %v6851 = vpack.c.bf16 %v6747, %v6743
    %v6852 = vpack.c.bf16 %v6752, %v6748
    %v6853 = vpack.c.bf16 %v6753, %v6749
    %v6854 = vpack.c.bf16 %v6754, %v6750
    %v6855 = vpack.c.bf16 %v6755, %v6751
    %v6856 = vpack.c.bf16 %v6760, %v6756
    %v6857 = vpack.c.bf16 %v6761, %v6757
    %v6858 = vpack.c.bf16 %v6762, %v6758
    %v6859 = vpack.c.bf16 %v6763, %v6759
    %v6860 = vpack.c.bf16 %v6768, %v6764
    %v6861 = vpack.c.bf16 %v6769, %v6765
    %v6862 = vpack.c.bf16 %v6770, %v6766
    %v6863 = vpack.c.bf16 %v6771, %v6767
    %v6864 = vpack.c.bf16 %v6776, %v6772
    %v6865 = vpack.c.bf16 %v6777, %v6773
    %v6866 = vpack.c.bf16 %v6778, %v6774
    %v6867 = vpack.c.bf16 %v6779, %v6775
    %v6868 = vpack.c.bf16 %v6784, %v6780
    %v6869 = vpack.c.bf16 %v6785, %v6781
    %v6870 = vpack.c.bf16 %v6786, %v6782
    %v6871 = vpack.c.bf16 %v6787, %v6783
    %v6872 = vpack.c.bf16 %v6792, %v6788
    %v6873 = vpack.c.bf16 %v6793, %v6789
    %v6874 = vpack.c.bf16 %v6794, %v6790
    %v6875 = vpack.c.bf16 %v6795, %v6791
    %v6876 = vpack.c.bf16 %v6800, %v6796
    %v6877 = vpack.c.bf16 %v6801, %v6797
    %v6878 = vpack.c.bf16 %v6802, %v6798
    %v6879 = vpack.c.bf16 %v6803, %v6799
    %v6880 = vpack.c.bf16 %v6808, %v6804
    %v6881 = vpack.c.bf16 %v6809, %v6805
    %v6882 = vpack.c.bf16 %v6810, %v6806
    %v6883 = vpack.c.bf16 %v6811, %v6807
    %v6884 = vpack.c.bf16 %v6816, %v6812
    %v6885 = vpack.c.bf16 %v6817, %v6813
    %v6886 = vpack.c.bf16 %v6818, %v6814
    %v6887 = vpack.c.bf16 %v6819, %v6815
    %v6888 = vpack.c.bf16 %v6824, %v6820
    %v6889 = vpack.c.bf16 %v6825, %v6821
    %v6890 = vpack.c.bf16 %v6826, %v6822
    %v6891 = vpack.c.bf16 %v6827, %v6823
    %v6892 = vld [vmem:[#allocation10] sm:$0xff]
    %v6893 = vld [vmem:[#allocation10 + $0x8] sm:$0xff]
    %v6894 = vld [vmem:[#allocation10 + $0x10] sm:$0xff]
    %v6895 = vld [vmem:[#allocation10 + $0x18] sm:$0xff]
    %v6896 = vld [vmem:[#allocation10 + $0x20] sm:$0xff]
    %v6897 = vld [vmem:[#allocation10 + $0x28] sm:$0xff]
    %v6898 = vld [vmem:[#allocation10 + $0x30] sm:$0xff]
    %v6899 = vld [vmem:[#allocation10 + $0x38] sm:$0xff]
    %v6900 = vld [vmem:[#allocation10 + $0x40] sm:$0xff]
    %v6901 = vld [vmem:[#allocation10 + $0x48] sm:$0xff]
    %v6902 = vld [vmem:[#allocation10 + $0x50] sm:$0xff]
    %v6903 = vld [vmem:[#allocation10 + $0x58] sm:$0xff]
    %v6904 = vld [vmem:[#allocation10 + $0x60] sm:$0xff]
    %v6905 = vld [vmem:[#allocation10 + $0x68] sm:$0xff]
    %v6906 = vld [vmem:[#allocation10 + $0x70] sm:$0xff]
    %v6907 = vld [vmem:[#allocation10 + $0x78] sm:$0xff]
    %v6908 = vld [vmem:[#allocation10 + $0x80] sm:$0xff]
    %v6909 = vld [vmem:[#allocation10 + $0x88] sm:$0xff]
    %v6910 = vld [vmem:[#allocation10 + $0x90] sm:$0xff]
    %v6911 = vld [vmem:[#allocation10 + $0x98] sm:$0xff]
    %v6912 = vld [vmem:[#allocation10 + $0xa0] sm:$0xff]
    %v6913 = vld [vmem:[#allocation10 + $0xa8] sm:$0xff]
    %v6914 = vld [vmem:[#allocation10 + $0xb0] sm:$0xff]
    %v6915 = vld [vmem:[#allocation10 + $0xb8] sm:$0xff]
    %v6916 = vld [vmem:[#allocation10 + $0xc0] sm:$0xff]
    %v6917 = vld [vmem:[#allocation10 + $0xc8] sm:$0xff]
    %v6918 = vld [vmem:[#allocation10 + $0xd0] sm:$0xff]
    %v6919 = vld [vmem:[#allocation10 + $0xd8] sm:$0xff]
    %v6920 = vld [vmem:[#allocation10 + $0xe0] sm:$0xff]
    %v6921 = vld [vmem:[#allocation10 + $0xe8] sm:$0xff]
    %v6922 = vld [vmem:[#allocation10 + $0xf0] sm:$0xff]
    %v6923 = vld [vmem:[#allocation10 + $0xf8] sm:$0xff]
    %v6924 = vld [vmem:[#allocation10 + $0x100] sm:$0xff]
    %v6925 = vld [vmem:[#allocation10 + $0x108] sm:$0xff]
    %v6926 = vld [vmem:[#allocation10 + $0x110] sm:$0xff]
    %v6927 = vld [vmem:[#allocation10 + $0x118] sm:$0xff]
    %v6928 = vld [vmem:[#allocation10 + $0x120] sm:$0xff]
    %v6929 = vld [vmem:[#allocation10 + $0x128] sm:$0xff]
    %v6930 = vld [vmem:[#allocation10 + $0x130] sm:$0xff]
    %v6931 = vld [vmem:[#allocation10 + $0x138] sm:$0xff]
    %v6932 = vld [vmem:[#allocation10 + $0x140] sm:$0xff]
    %v6933 = vld [vmem:[#allocation10 + $0x148] sm:$0xff]
    %v6934 = vld [vmem:[#allocation10 + $0x150] sm:$0xff]
    %v6935 = vld [vmem:[#allocation10 + $0x158] sm:$0xff]
    %v6936 = vld [vmem:[#allocation10 + $0x160] sm:$0xff]
    %v6937 = vld [vmem:[#allocation10 + $0x168] sm:$0xff]
    %v6938 = vld [vmem:[#allocation10 + $0x170] sm:$0xff]
    %v6939 = vld [vmem:[#allocation10 + $0x178] sm:$0xff]
    %v6940 = vld [vmem:[#allocation10 + $0x180] sm:$0xff]
    %v6941 = vld [vmem:[#allocation10 + $0x188] sm:$0xff]
    %v6942 = vld [vmem:[#allocation10 + $0x190] sm:$0xff]
    %v6943 = vld [vmem:[#allocation10 + $0x198] sm:$0xff]
    %v6944 = vld [vmem:[#allocation10 + $0x1a0] sm:$0xff]
    %v6945 = vld [vmem:[#allocation10 + $0x1a8] sm:$0xff]
    %v6946 = vld [vmem:[#allocation10 + $0x1b0] sm:$0xff]
    %v6947 = vld [vmem:[#allocation10 + $0x1b8] sm:$0xff]
    %v6948 = vld [vmem:[#allocation10 + $0x1c0] sm:$0xff]
    %v6949 = vld [vmem:[#allocation10 + $0x1c8] sm:$0xff]
    %v6950 = vld [vmem:[#allocation10 + $0x1d0] sm:$0xff]
    %v6951 = vld [vmem:[#allocation10 + $0x1d8] sm:$0xff]
    %v6952 = vld [vmem:[#allocation10 + $0x1e0] sm:$0xff]
    %v6953 = vld [vmem:[#allocation10 + $0x1e8] sm:$0xff]
    %v6954 = vld [vmem:[#allocation10 + $0x1f0] sm:$0xff]
    %v6955 = vld [vmem:[#allocation10 + $0x1f8] sm:$0xff]
    %v7020 = vunpack.c.l.b16 %v6892
    %v7021 = vunpack.c.h.b16 %v6892
    %v7022 = vunpack.c.l.b16 %v6893
    %v7023 = vunpack.c.h.b16 %v6893
    %v7024 = vunpack.c.l.b16 %v6894
    %v7025 = vunpack.c.h.b16 %v6894
    %v7026 = vunpack.c.l.b16 %v6895
    %v7027 = vunpack.c.h.b16 %v6895
    %v7028 = vunpack.c.l.b16 %v6896
    %v7029 = vunpack.c.h.b16 %v6896
    %v7030 = vunpack.c.l.b16 %v6897
    %v7031 = vunpack.c.h.b16 %v6897
    %v7032 = vunpack.c.l.b16 %v6898
    %v7033 = vunpack.c.h.b16 %v6898
    %v7034 = vunpack.c.l.b16 %v6899
    %v7035 = vunpack.c.h.b16 %v6899
    %v7036 = vunpack.c.l.b16 %v6900
    %v7037 = vunpack.c.h.b16 %v6900
    %v7038 = vunpack.c.l.b16 %v6901
    %v7039 = vunpack.c.h.b16 %v6901
    %v7040 = vunpack.c.l.b16 %v6902
    %v7041 = vunpack.c.h.b16 %v6902
    %v7042 = vunpack.c.l.b16 %v6903
    %v7043 = vunpack.c.h.b16 %v6903
    %v7044 = vunpack.c.l.b16 %v6904
    %v7045 = vunpack.c.h.b16 %v6904
    %v7046 = vunpack.c.l.b16 %v6905
    %v7047 = vunpack.c.h.b16 %v6905
    %v7048 = vunpack.c.l.b16 %v6906
    %v7049 = vunpack.c.h.b16 %v6906
    %v7050 = vunpack.c.l.b16 %v6907
    %v7051 = vunpack.c.h.b16 %v6907
    %v7052 = vunpack.c.l.b16 %v6908
    %v7053 = vunpack.c.h.b16 %v6908
    %v7054 = vunpack.c.l.b16 %v6909
    %v7055 = vunpack.c.h.b16 %v6909
    %v7056 = vunpack.c.l.b16 %v6910
    %v7057 = vunpack.c.h.b16 %v6910
    %v7058 = vunpack.c.l.b16 %v6911
    %v7059 = vunpack.c.h.b16 %v6911
    %v7060 = vunpack.c.l.b16 %v6912
    %v7061 = vunpack.c.h.b16 %v6912
    %v7062 = vunpack.c.l.b16 %v6913
    %v7063 = vunpack.c.h.b16 %v6913
    %v7064 = vunpack.c.l.b16 %v6914
    %v7065 = vunpack.c.h.b16 %v6914
    %v7066 = vunpack.c.l.b16 %v6915
    %v7067 = vunpack.c.h.b16 %v6915
    %v7068 = vunpack.c.l.b16 %v6916
    %v7069 = vunpack.c.h.b16 %v6916
    %v7070 = vunpack.c.l.b16 %v6917
    %v7071 = vunpack.c.h.b16 %v6917
    %v7072 = vunpack.c.l.b16 %v6918
    %v7073 = vunpack.c.h.b16 %v6918
    %v7074 = vunpack.c.l.b16 %v6919
    %v7075 = vunpack.c.h.b16 %v6919
    %v7076 = vunpack.c.l.b16 %v6920
    %v7077 = vunpack.c.h.b16 %v6920
    %v7078 = vunpack.c.l.b16 %v6921
    %v7079 = vunpack.c.h.b16 %v6921
    %v7080 = vunpack.c.l.b16 %v6922
    %v7081 = vunpack.c.h.b16 %v6922
    %v7082 = vunpack.c.l.b16 %v6923
    %v7083 = vunpack.c.h.b16 %v6923
    %v7084 = vunpack.c.l.b16 %v6924
    %v7085 = vunpack.c.h.b16 %v6924
    %v7086 = vunpack.c.l.b16 %v6925
    %v7087 = vunpack.c.h.b16 %v6925
    %v7088 = vunpack.c.l.b16 %v6926
    %v7089 = vunpack.c.h.b16 %v6926
    %v7090 = vunpack.c.l.b16 %v6927
    %v7091 = vunpack.c.h.b16 %v6927
    %v7092 = vunpack.c.l.b16 %v6928
    %v7093 = vunpack.c.h.b16 %v6928
    %v7094 = vunpack.c.l.b16 %v6929
    %v7095 = vunpack.c.h.b16 %v6929
    %v7096 = vunpack.c.l.b16 %v6930
    %v7097 = vunpack.c.h.b16 %v6930
    %v7098 = vunpack.c.l.b16 %v6931
    %v7099 = vunpack.c.h.b16 %v6931
    %v7100 = vunpack.c.l.b16 %v6932
    %v7101 = vunpack.c.h.b16 %v6932
    %v7102 = vunpack.c.l.b16 %v6933
    %v7103 = vunpack.c.h.b16 %v6933
    %v7104 = vunpack.c.l.b16 %v6934
    %v7105 = vunpack.c.h.b16 %v6934
    %v7106 = vunpack.c.l.b16 %v6935
    %v7107 = vunpack.c.h.b16 %v6935
    %v7108 = vunpack.c.l.b16 %v6936
    %v7109 = vunpack.c.h.b16 %v6936
    %v7110 = vunpack.c.l.b16 %v6937
    %v7111 = vunpack.c.h.b16 %v6937
    %v7112 = vunpack.c.l.b16 %v6938
    %v7113 = vunpack.c.h.b16 %v6938
    %v7114 = vunpack.c.l.b16 %v6939
    %v7115 = vunpack.c.h.b16 %v6939
    %v7116 = vunpack.c.l.b16 %v6940
    %v7117 = vunpack.c.h.b16 %v6940
    %v7118 = vunpack.c.l.b16 %v6941
    %v7119 = vunpack.c.h.b16 %v6941
    %v7120 = vunpack.c.l.b16 %v6942
    %v7121 = vunpack.c.h.b16 %v6942
    %v7122 = vunpack.c.l.b16 %v6943
    %v7123 = vunpack.c.h.b16 %v6943
    %v7124 = vunpack.c.l.b16 %v6944
    %v7125 = vunpack.c.h.b16 %v6944
    %v7126 = vunpack.c.l.b16 %v6945
    %v7127 = vunpack.c.h.b16 %v6945
    %v7128 = vunpack.c.l.b16 %v6946
    %v7129 = vunpack.c.h.b16 %v6946
    %v7130 = vunpack.c.l.b16 %v6947
    %v7131 = vunpack.c.h.b16 %v6947
    %v7132 = vunpack.c.l.b16 %v6948
    %v7133 = vunpack.c.h.b16 %v6948
    %v7134 = vunpack.c.l.b16 %v6949
    %v7135 = vunpack.c.h.b16 %v6949
    %v7136 = vunpack.c.l.b16 %v6950
    %v7137 = vunpack.c.h.b16 %v6950
    %v7138 = vunpack.c.l.b16 %v6951
    %v7139 = vunpack.c.h.b16 %v6951
    %v7140 = vunpack.c.l.b16 %v6952
    %v7141 = vunpack.c.h.b16 %v6952
    %v7142 = vunpack.c.l.b16 %v6953
    %v7143 = vunpack.c.h.b16 %v6953
    %v7144 = vunpack.c.l.b16 %v6954
    %v7145 = vunpack.c.h.b16 %v6954
    %v7146 = vunpack.c.l.b16 %v6955
    %v7147 = vunpack.c.h.b16 %v6955
    %v7148 = vpack.c.b16 %v7022, %v7020
    %v7149 = vpack.c.b16 %v7023, %v7021
    %v7150 = vpack.c.b16 %v7026, %v7024
    %v7151 = vpack.c.b16 %v7027, %v7025
    %v7152 = vpack.c.b16 %v7030, %v7028
    %v7153 = vpack.c.b16 %v7031, %v7029
    %v7154 = vpack.c.b16 %v7034, %v7032
    %v7155 = vpack.c.b16 %v7035, %v7033
    %v7156 = vpack.c.b16 %v7038, %v7036
    %v7157 = vpack.c.b16 %v7039, %v7037
    %v7158 = vpack.c.b16 %v7042, %v7040
    %v7159 = vpack.c.b16 %v7043, %v7041
    %v7160 = vpack.c.b16 %v7046, %v7044
    %v7161 = vpack.c.b16 %v7047, %v7045
    %v7162 = vpack.c.b16 %v7050, %v7048
    %v7163 = vpack.c.b16 %v7051, %v7049
    %v7164 = vpack.c.b16 %v7054, %v7052
    %v7165 = vpack.c.b16 %v7055, %v7053
    %v7166 = vpack.c.b16 %v7058, %v7056
    %v7167 = vpack.c.b16 %v7059, %v7057
    %v7168 = vpack.c.b16 %v7062, %v7060
    %v7169 = vpack.c.b16 %v7063, %v7061
    %v7170 = vpack.c.b16 %v7066, %v7064
    %v7171 = vpack.c.b16 %v7067, %v7065
    %v7172 = vpack.c.b16 %v7070, %v7068
    %v7173 = vpack.c.b16 %v7071, %v7069
    %v7174 = vpack.c.b16 %v7074, %v7072
    %v7175 = vpack.c.b16 %v7075, %v7073
    %v7176 = vpack.c.b16 %v7078, %v7076
    %v7177 = vpack.c.b16 %v7079, %v7077
    %v7178 = vpack.c.b16 %v7082, %v7080
    %v7179 = vpack.c.b16 %v7083, %v7081
    %v7180 = vpack.c.b16 %v7086, %v7084
    %v7181 = vpack.c.b16 %v7087, %v7085
    %v7182 = vpack.c.b16 %v7090, %v7088
    %v7183 = vpack.c.b16 %v7091, %v7089
    %v7184 = vpack.c.b16 %v7094, %v7092
    %v7185 = vpack.c.b16 %v7095, %v7093
    %v7186 = vpack.c.b16 %v7098, %v7096
    %v7187 = vpack.c.b16 %v7099, %v7097
    %v7188 = vpack.c.b16 %v7102, %v7100
    %v7189 = vpack.c.b16 %v7103, %v7101
    %v7190 = vpack.c.b16 %v7106, %v7104
    %v7191 = vpack.c.b16 %v7107, %v7105
    %v7192 = vpack.c.b16 %v7110, %v7108
    %v7193 = vpack.c.b16 %v7111, %v7109
    %v7194 = vpack.c.b16 %v7114, %v7112
    %v7195 = vpack.c.b16 %v7115, %v7113
    %v7196 = vpack.c.b16 %v7118, %v7116
    %v7197 = vpack.c.b16 %v7119, %v7117
    %v7198 = vpack.c.b16 %v7122, %v7120
    %v7199 = vpack.c.b16 %v7123, %v7121
    %v7200 = vpack.c.b16 %v7126, %v7124
    %v7201 = vpack.c.b16 %v7127, %v7125
    %v7202 = vpack.c.b16 %v7130, %v7128
    %v7203 = vpack.c.b16 %v7131, %v7129
    %v7204 = vpack.c.b16 %v7134, %v7132
    %v7205 = vpack.c.b16 %v7135, %v7133
    %v7206 = vpack.c.b16 %v7138, %v7136
    %v7207 = vpack.c.b16 %v7139, %v7137
    %v7208 = vpack.c.b16 %v7142, %v7140
    %v7209 = vpack.c.b16 %v7143, %v7141
    %v7210 = vpack.c.b16 %v7146, %v7144
    %v7211 = vpack.c.b16 %v7147, %v7145
    %7276 = vmatprep.subr.bf16.mxu0 %v7149
    %7277 = vmatpush1.bf16.msra.mxu0 %v7148
    %7278 = vmatprep.subr.bf16.mxu0 %v7151
    %7279 = vmatpush1.bf16.msra.mxu0 %v7150
    %7280 = vmatprep.subr.bf16.mxu0 %v7153
    %7281 = vmatpush1.bf16.msra.mxu0 %v7152
    %7282 = vmatprep.subr.bf16.mxu0 %v7155
    %7283 = vmatpush1.bf16.msra.mxu0 %v7154
    %7284 = vmatprep.subr.bf16.mxu0 %v7157
    %7285 = vmatpush1.bf16.msra.mxu0 %v7156
    %7286 = vmatprep.subr.bf16.mxu0 %v7159
    %7287 = vmatpush1.bf16.msra.mxu0 %v7158
    %7288 = vmatprep.subr.bf16.mxu0 %v7161
    %7289 = vmatpush1.bf16.msra.mxu0 %v7160
    %7290 = vmatprep.subr.bf16.mxu0 %v7163
    %7291 = vmatpush1.bf16.msra.mxu0 %v7162
    %7292 = vmatprep.subr.bf16.mxu0 %v7165
    %7293 = vmatpush1.bf16.msra.mxu0 %v7164
    %7294 = vmatprep.subr.bf16.mxu0 %v7167
    %7295 = vmatpush1.bf16.msra.mxu0 %v7166
    %7296 = vmatprep.subr.bf16.mxu0 %v7169
    %7297 = vmatpush1.bf16.msra.mxu0 %v7168
    %7298 = vmatprep.subr.bf16.mxu0 %v7171
    %7299 = vmatpush1.bf16.msra.mxu0 %v7170
    %7300 = vmatprep.subr.bf16.mxu0 %v7173
    %7301 = vmatpush1.bf16.msra.mxu0 %v7172
    %7302 = vmatprep.subr.bf16.mxu0 %v7175
    %7303 = vmatpush1.bf16.msra.mxu0 %v7174
    %7304 = vmatprep.subr.bf16.mxu0 %v7177
    %7305 = vmatpush1.bf16.msra.mxu0 %v7176
    %7306 = vmatprep.subr.bf16.mxu0 %v7179
    %7307 = vmatpush1.bf16.msra.mxu0 %v7178
    %7308 = vmatprep.mubr.bf16.mxu0 %v6829
    %7309 = vmatmul.mubr.bf16.gmra.mrb[0].mxu0 %v6828
    %v7310 = vpop.f32.mrb[0].mxu0
    %v7311 = vadd.f32 0.0, %v7310
    %v7312 = vpop.f32.mrb[0].mxu0
    %v7313 = vadd.f32 0.0, %v7312
    %v7314 = vpop.f32.mrb[0].mxu0
    %v7315 = vadd.f32 0.0, %v7314
    %v7316 = vpop.f32.mrb[0].mxu0
    %v7317 = vadd.f32 0.0, %v7316
    %7318 = vmatprep.mubr.bf16.mxu0 %v6833
    %7319 = vmatmul.mubr.bf16.gmra.mrb[0].mxu0 %v6832
    %v7320 = vpop.f32.mrb[0].mxu0
    %v7321 = vadd.f32 0.0, %v7320
    %v7322 = vpop.f32.mrb[0].mxu0
    %v7323 = vadd.f32 0.0, %v7322
    %v7324 = vpop.f32.mrb[0].mxu0
    %v7325 = vadd.f32 0.0, %v7324
    %v7326 = vpop.f32.mrb[0].mxu0
    %v7327 = vadd.f32 0.0, %v7326
    %7328 = vmatprep.mubr.bf16.mxu0 %v6837
    %7329 = vmatmul.mubr.bf16.gmra.mrb[0].mxu0 %v6836
    %v7330 = vpop.f32.mrb[0].mxu0
    %v7331 = vadd.f32 0.0, %v7330
    %v7332 = vpop.f32.mrb[0].mxu0
    %v7333 = vadd.f32 0.0, %v7332
    %v7334 = vpop.f32.mrb[0].mxu0
    %v7335 = vadd.f32 0.0, %v7334
    %v7336 = vpop.f32.mrb[0].mxu0
    %v7337 = vadd.f32 0.0, %v7336
    %7338 = vmatprep.mubr.bf16.mxu0 %v6841
    %7339 = vmatmul.mubr.bf16.gmra.mrb[0].mxu0 %v6840
    %v7340 = vpop.f32.mrb[0].mxu0
    %v7341 = vadd.f32 0.0, %v7340
    %v7342 = vpop.f32.mrb[0].mxu0
    %v7343 = vadd.f32 0.0, %v7342
    %v7344 = vpop.f32.mrb[0].mxu0
    %v7345 = vadd.f32 0.0, %v7344
    %v7346 = vpop.f32.mrb[0].mxu0
    %v7347 = vadd.f32 0.0, %v7346
    %7348 = vmatprep.mubr.bf16.mxu0 %v6845
    %7349 = vmatmul.mubr.bf16.gmra.mrb[0].mxu0 %v6844
    %v7350 = vpop.f32.mrb[0].mxu0
    %v7351 = vadd.f32 0.0, %v7350
    %v7352 = vpop.f32.mrb[0].mxu0
    %v7353 = vadd.f32 0.0, %v7352
    %v7354 = vpop.f32.mrb[0].mxu0
    %v7355 = vadd.f32 0.0, %v7354
    %v7356 = vpop.f32.mrb[0].mxu0
    %v7357 = vadd.f32 0.0, %v7356
    %7358 = vmatprep.mubr.bf16.mxu0 %v6849
    %7359 = vmatmul.mubr.bf16.gmra.mrb[0].mxu0 %v6848
    %v7360 = vpop.f32.mrb[0].mxu0
    %v7361 = vadd.f32 0.0, %v7360
    %v7362 = vpop.f32.mrb[0].mxu0
    %v7363 = vadd.f32 0.0, %v7362
    %v7364 = vpop.f32.mrb[0].mxu0
    %v7365 = vadd.f32 0.0, %v7364
    %v7366 = vpop.f32.mrb[0].mxu0
    %v7367 = vadd.f32 0.0, %v7366
    %7368 = vmatprep.mubr.bf16.mxu0 %v6853
    %7369 = vmatmul.mubr.bf16.gmra.mrb[0].mxu0 %v6852
    %v7370 = vpop.f32.mrb[0].mxu0
    %v7371 = vadd.f32 0.0, %v7370
    %v7372 = vpop.f32.mrb[0].mxu0
    %v7373 = vadd.f32 0.0, %v7372
    %v7374 = vpop.f32.mrb[0].mxu0
    %v7375 = vadd.f32 0.0, %v7374
    %v7376 = vpop.f32.mrb[0].mxu0
    %v7377 = vadd.f32 0.0, %v7376
    %7378 = vmatprep.mubr.bf16.mxu0 %v6857
    %7379 = vmatmul.mubr.bf16.gmra.mrb[0].mxu0 %v6856
    %v7380 = vpop.f32.mrb[0].mxu0
    %v7381 = vadd.f32 0.0, %v7380
    %v7382 = vpop.f32.mrb[0].mxu0
    %v7383 = vadd.f32 0.0, %v7382
    %v7384 = vpop.f32.mrb[0].mxu0
    %v7385 = vadd.f32 0.0, %v7384
    %v7386 = vpop.f32.mrb[0].mxu0
    %v7387 = vadd.f32 0.0, %v7386
    %7388 = vmatprep.mubr.bf16.mxu0 %v6861
    %7389 = vmatmul.mubr.bf16.gmra.mrb[0].mxu0 %v6860
    %v7390 = vpop.f32.mrb[0].mxu0
    %v7391 = vadd.f32 0.0, %v7390
    %v7392 = vpop.f32.mrb[0].mxu0
    %v7393 = vadd.f32 0.0, %v7392
    %v7394 = vpop.f32.mrb[0].mxu0
    %v7395 = vadd.f32 0.0, %v7394
    %v7396 = vpop.f32.mrb[0].mxu0
    %v7397 = vadd.f32 0.0, %v7396
    %7398 = vmatprep.mubr.bf16.mxu0 %v6865
    %7399 = vmatmul.mubr.bf16.gmra.mrb[0].mxu0 %v6864
    %v7400 = vpop.f32.mrb[0].mxu0
    %v7401 = vadd.f32 0.0, %v7400
    %v7402 = vpop.f32.mrb[0].mxu0
    %v7403 = vadd.f32 0.0, %v7402
    %v7404 = vpop.f32.mrb[0].mxu0
    %v7405 = vadd.f32 0.0, %v7404
    %v7406 = vpop.f32.mrb[0].mxu0
    %v7407 = vadd.f32 0.0, %v7406
    %7408 = vmatprep.mubr.bf16.mxu0 %v6869
    %7409 = vmatmul.mubr.bf16.gmra.mrb[0].mxu0 %v6868
    %v7410 = vpop.f32.mrb[0].mxu0
    %v7411 = vadd.f32 0.0, %v7410
    %v7412 = vpop.f32.mrb[0].mxu0
    %v7413 = vadd.f32 0.0, %v7412
    %v7414 = vpop.f32.mrb[0].mxu0
    %v7415 = vadd.f32 0.0, %v7414
    %v7416 = vpop.f32.mrb[0].mxu0
    %v7417 = vadd.f32 0.0, %v7416
    %7418 = vmatprep.mubr.bf16.mxu0 %v6873
    %7419 = vmatmul.mubr.bf16.gmra.mrb[0].mxu0 %v6872
    %v7420 = vpop.f32.mrb[0].mxu0
    %v7421 = vadd.f32 0.0, %v7420
    %v7422 = vpop.f32.mrb[0].mxu0
    %v7423 = vadd.f32 0.0, %v7422
    %v7424 = vpop.f32.mrb[0].mxu0
    %v7425 = vadd.f32 0.0, %v7424
    %v7426 = vpop.f32.mrb[0].mxu0
    %v7427 = vadd.f32 0.0, %v7426
    %7428 = vmatprep.mubr.bf16.mxu0 %v6877
    %7429 = vmatmul.mubr.bf16.gmra.mrb[0].mxu0 %v6876
    %v7430 = vpop.f32.mrb[0].mxu0
    %v7431 = vadd.f32 0.0, %v7430
    %v7432 = vpop.f32.mrb[0].mxu0
    %v7433 = vadd.f32 0.0, %v7432
    %v7434 = vpop.f32.mrb[0].mxu0
    %v7435 = vadd.f32 0.0, %v7434
    %v7436 = vpop.f32.mrb[0].mxu0
    %v7437 = vadd.f32 0.0, %v7436
    %7438 = vmatprep.mubr.bf16.mxu0 %v6881
    %7439 = vmatmul.mubr.bf16.gmra.mrb[0].mxu0 %v6880
    %v7440 = vpop.f32.mrb[0].mxu0
    %v7441 = vadd.f32 0.0, %v7440
    %v7442 = vpop.f32.mrb[0].mxu0
    %v7443 = vadd.f32 0.0, %v7442
    %v7444 = vpop.f32.mrb[0].mxu0
    %v7445 = vadd.f32 0.0, %v7444
    %v7446 = vpop.f32.mrb[0].mxu0
    %v7447 = vadd.f32 0.0, %v7446
    %7448 = vmatprep.mubr.bf16.mxu0 %v6885
    %7449 = vmatmul.mubr.bf16.gmra.mrb[0].mxu0 %v6884
    %v7450 = vpop.f32.mrb[0].mxu0
    %v7451 = vadd.f32 0.0, %v7450
    %v7452 = vpop.f32.mrb[0].mxu0
    %v7453 = vadd.f32 0.0, %v7452
    %v7454 = vpop.f32.mrb[0].mxu0
    %v7455 = vadd.f32 0.0, %v7454
    %v7456 = vpop.f32.mrb[0].mxu0
    %v7457 = vadd.f32 0.0, %v7456
    %7458 = vmatprep.mubr.bf16.mxu0 %v6889
    %7459 = vmatmul.mubr.bf16.gmra.mrb[0].mxu0 %v6888
    %v7460 = vpop.f32.mrb[0].mxu0
    %v7461 = vadd.f32 0.0, %v7460
    %v7462 = vpop.f32.mrb[0].mxu0
    %v7463 = vadd.f32 0.0, %v7462
    %v7464 = vpop.f32.mrb[0].mxu0
    %v7465 = vadd.f32 0.0, %v7464
    %v7466 = vpop.f32.mrb[0].mxu0
    %v7467 = vadd.f32 0.0, %v7466
    %7468 = vdwg.mxu0
    %7469 = vmatprep.subr.bf16.mxu0 %v7181
    %7470 = vmatpush1.bf16.msra.mxu0 %v7180
    %7471 = vmatprep.subr.bf16.mxu0 %v7183
    %7472 = vmatpush1.bf16.msra.mxu0 %v7182
    %7473 = vmatprep.subr.bf16.mxu0 %v7185
    %7474 = vmatpush1.bf16.msra.mxu0 %v7184
    %7475 = vmatprep.subr.bf16.mxu0 %v7187
    %7476 = vmatpush1.bf16.msra.mxu0 %v7186
    %7477 = vmatprep.subr.bf16.mxu0 %v7189
    %7478 = vmatpush1.bf16.msra.mxu0 %v7188
    %7479 = vmatprep.subr.bf16.mxu0 %v7191
    %7480 = vmatpush1.bf16.msra.mxu0 %v7190
    %7481 = vmatprep.subr.bf16.mxu0 %v7193
    %7482 = vmatpush1.bf16.msra.mxu0 %v7192
    %7483 = vmatprep.subr.bf16.mxu0 %v7195
    %7484 = vmatpush1.bf16.msra.mxu0 %v7194
    %7485 = vmatprep.subr.bf16.mxu0 %v7197
    %7486 = vmatpush1.bf16.msra.mxu0 %v7196
    %7487 = vmatprep.subr.bf16.mxu0 %v7199
    %7488 = vmatpush1.bf16.msra.mxu0 %v7198
    %7489 = vmatprep.subr.bf16.mxu0 %v7201
    %7490 = vmatpush1.bf16.msra.mxu0 %v7200
    %7491 = vmatprep.subr.bf16.mxu0 %v7203
    %7492 = vmatpush1.bf16.msra.mxu0 %v7202
    %7493 = vmatprep.subr.bf16.mxu0 %v7205
    %7494 = vmatpush1.bf16.msra.mxu0 %v7204
    %7495 = vmatprep.subr.bf16.mxu0 %v7207
    %7496 = vmatpush1.bf16.msra.mxu0 %v7206
    %7497 = vmatprep.subr.bf16.mxu0 %v7209
    %7498 = vmatpush1.bf16.msra.mxu0 %v7208
    %7499 = vmatprep.subr.bf16.mxu0 %v7211
    %7500 = vmatpush1.bf16.msra.mxu0 %v7210
    %7501 = vmatprep.mubr.bf16.mxu0 %v6831
    %7502 = vmatmul.mubr.bf16.gmra.mrb[0].mxu0 %v6830
    %v7503 = vpop.f32.mrb[0].mxu0
    %v7504 = vadd.f32 %v7311, %v7503
    %v7505 = vpop.f32.mrb[0].mxu0
    %v7506 = vadd.f32 %v7313, %v7505
    %v7507 = vpop.f32.mrb[0].mxu0
    %v7508 = vadd.f32 %v7315, %v7507
    %v7509 = vpop.f32.mrb[0].mxu0
    %v7510 = vadd.f32 %v7317, %v7509
    %7511 = vmatprep.mubr.bf16.mxu0 %v6835
    %7512 = vmatmul.mubr.bf16.gmra.mrb[0].mxu0 %v6834
    %v7513 = vpop.f32.mrb[0].mxu0
    %v7514 = vadd.f32 %v7321, %v7513
    %v7515 = vpop.f32.mrb[0].mxu0
    %v7516 = vadd.f32 %v7323, %v7515
    %v7517 = vpop.f32.mrb[0].mxu0
    %v7518 = vadd.f32 %v7325, %v7517
    %v7519 = vpop.f32.mrb[0].mxu0
    %v7520 = vadd.f32 %v7327, %v7519
    %7521 = vmatprep.mubr.bf16.mxu0 %v6839
    %7522 = vmatmul.mubr.bf16.gmra.mrb[0].mxu0 %v6838
    %v7523 = vpop.f32.mrb[0].mxu0
    %v7524 = vadd.f32 %v7331, %v7523
    %v7525 = vpop.f32.mrb[0].mxu0
    %v7526 = vadd.f32 %v7333, %v7525
    %v7527 = vpop.f32.mrb[0].mxu0
    %v7528 = vadd.f32 %v7335, %v7527
    %v7529 = vpop.f32.mrb[0].mxu0
    %v7530 = vadd.f32 %v7337, %v7529
    %7531 = vmatprep.mubr.bf16.mxu0 %v6843
    %7532 = vmatmul.mubr.bf16.gmra.mrb[0].mxu0 %v6842
    %v7533 = vpop.f32.mrb[0].mxu0
    %v7534 = vadd.f32 %v7341, %v7533
    %v7535 = vpop.f32.mrb[0].mxu0
    %v7536 = vadd.f32 %v7343, %v7535
    %v7537 = vpop.f32.mrb[0].mxu0
    %v7538 = vadd.f32 %v7345, %v7537
    %v7539 = vpop.f32.mrb[0].mxu0
    %v7540 = vadd.f32 %v7347, %v7539
    %7541 = vmatprep.mubr.bf16.mxu0 %v6847
    %7542 = vmatmul.mubr.bf16.gmra.mrb[0].mxu0 %v6846
    %v7543 = vpop.f32.mrb[0].mxu0
    %v7544 = vadd.f32 %v7351, %v7543
    %v7545 = vpop.f32.mrb[0].mxu0
    %v7546 = vadd.f32 %v7353, %v7545
    %v7547 = vpop.f32.mrb[0].mxu0
    %v7548 = vadd.f32 %v7355, %v7547
    %v7549 = vpop.f32.mrb[0].mxu0
    %v7550 = vadd.f32 %v7357, %v7549
    %7551 = vmatprep.mubr.bf16.mxu0 %v6851
    %7552 = vmatmul.mubr.bf16.gmra.mrb[0].mxu0 %v6850
    %v7553 = vpop.f32.mrb[0].mxu0
    %v7554 = vadd.f32 %v7361, %v7553
    %v7555 = vpop.f32.mrb[0].mxu0
    %v7556 = vadd.f32 %v7363, %v7555
    %v7557 = vpop.f32.mrb[0].mxu0
    %v7558 = vadd.f32 %v7365, %v7557
    %v7559 = vpop.f32.mrb[0].mxu0
    %v7560 = vadd.f32 %v7367, %v7559
    %7561 = vmatprep.mubr.bf16.mxu0 %v6855
    %7562 = vmatmul.mubr.bf16.gmra.mrb[0].mxu0 %v6854
    %v7563 = vpop.f32.mrb[0].mxu0
    %v7564 = vadd.f32 %v7371, %v7563
    %v7565 = vpop.f32.mrb[0].mxu0
    %v7566 = vadd.f32 %v7373, %v7565
    %v7567 = vpop.f32.mrb[0].mxu0
    %v7568 = vadd.f32 %v7375, %v7567
    %v7569 = vpop.f32.mrb[0].mxu0
    %v7570 = vadd.f32 %v7377, %v7569
    %7571 = vmatprep.mubr.bf16.mxu0 %v6859
    %7572 = vmatmul.mubr.bf16.gmra.mrb[0].mxu0 %v6858
    %v7573 = vpop.f32.mrb[0].mxu0
    %v7574 = vadd.f32 %v7381, %v7573
    %v7575 = vpop.f32.mrb[0].mxu0
    %v7576 = vadd.f32 %v7383, %v7575
    %v7577 = vpop.f32.mrb[0].mxu0
    %v7578 = vadd.f32 %v7385, %v7577
    %v7579 = vpop.f32.mrb[0].mxu0
    %v7580 = vadd.f32 %v7387, %v7579
    %7581 = vmatprep.mubr.bf16.mxu0 %v6863
    %7582 = vmatmul.mubr.bf16.gmra.mrb[0].mxu0 %v6862
    %v7583 = vpop.f32.mrb[0].mxu0
    %v7584 = vadd.f32 %v7391, %v7583
    %v7585 = vpop.f32.mrb[0].mxu0
    %v7586 = vadd.f32 %v7393, %v7585
    %v7587 = vpop.f32.mrb[0].mxu0
    %v7588 = vadd.f32 %v7395, %v7587
    %v7589 = vpop.f32.mrb[0].mxu0
    %v7590 = vadd.f32 %v7397, %v7589
    %7591 = vmatprep.mubr.bf16.mxu0 %v6867
    %7592 = vmatmul.mubr.bf16.gmra.mrb[0].mxu0 %v6866
    %v7593 = vpop.f32.mrb[0].mxu0
    %v7594 = vadd.f32 %v7401, %v7593
    %v7595 = vpop.f32.mrb[0].mxu0
    %v7596 = vadd.f32 %v7403, %v7595
    %v7597 = vpop.f32.mrb[0].mxu0
    %v7598 = vadd.f32 %v7405, %v7597
    %v7599 = vpop.f32.mrb[0].mxu0
    %v7600 = vadd.f32 %v7407, %v7599
    %7601 = vmatprep.mubr.bf16.mxu0 %v6871
    %7602 = vmatmul.mubr.bf16.gmra.mrb[0].mxu0 %v6870
    %v7603 = vpop.f32.mrb[0].mxu0
    %v7604 = vadd.f32 %v7411, %v7603
    %v7605 = vpop.f32.mrb[0].mxu0
    %v7606 = vadd.f32 %v7413, %v7605
    %v7607 = vpop.f32.mrb[0].mxu0
    %v7608 = vadd.f32 %v7415, %v7607
    %v7609 = vpop.f32.mrb[0].mxu0
    %v7610 = vadd.f32 %v7417, %v7609
    %7611 = vmatprep.mubr.bf16.mxu0 %v6875
    %7612 = vmatmul.mubr.bf16.gmra.mrb[0].mxu0 %v6874
    %v7613 = vpop.f32.mrb[0].mxu0
    %v7614 = vadd.f32 %v7421, %v7613
    %v7615 = vpop.f32.mrb[0].mxu0
    %v7616 = vadd.f32 %v7423, %v7615
    %v7617 = vpop.f32.mrb[0].mxu0
    %v7618 = vadd.f32 %v7425, %v7617
    %v7619 = vpop.f32.mrb[0].mxu0
    %v7620 = vadd.f32 %v7427, %v7619
    %7621 = vmatprep.mubr.bf16.mxu0 %v6879
    %7622 = vmatmul.mubr.bf16.gmra.mrb[0].mxu0 %v6878
    %v7623 = vpop.f32.mrb[0].mxu0
    %v7624 = vadd.f32 %v7431, %v7623
    %v7625 = vpop.f32.mrb[0].mxu0
    %v7626 = vadd.f32 %v7433, %v7625
    %v7627 = vpop.f32.mrb[0].mxu0
    %v7628 = vadd.f32 %v7435, %v7627
    %v7629 = vpop.f32.mrb[0].mxu0
    %v7630 = vadd.f32 %v7437, %v7629
    %7631 = vmatprep.mubr.bf16.mxu0 %v6883
    %7632 = vmatmul.mubr.bf16.gmra.mrb[0].mxu0 %v6882
    %v7633 = vpop.f32.mrb[0].mxu0
    %v7634 = vadd.f32 %v7441, %v7633
    %v7635 = vpop.f32.mrb[0].mxu0
    %v7636 = vadd.f32 %v7443, %v7635
    %v7637 = vpop.f32.mrb[0].mxu0
    %v7638 = vadd.f32 %v7445, %v7637
    %v7639 = vpop.f32.mrb[0].mxu0
    %v7640 = vadd.f32 %v7447, %v7639
    %7641 = vmatprep.mubr.bf16.mxu0 %v6887
    %7642 = vmatmul.mubr.bf16.gmra.mrb[0].mxu0 %v6886
    %v7643 = vpop.f32.mrb[0].mxu0
    %v7644 = vadd.f32 %v7451, %v7643
    %v7645 = vpop.f32.mrb[0].mxu0
    %v7646 = vadd.f32 %v7453, %v7645
    %v7647 = vpop.f32.mrb[0].mxu0
    %v7648 = vadd.f32 %v7455, %v7647
    %v7649 = vpop.f32.mrb[0].mxu0
    %v7650 = vadd.f32 %v7457, %v7649
    %7651 = vmatprep.mubr.bf16.mxu0 %v6891
    %7652 = vmatmul.mubr.bf16.gmra.mrb[0].mxu0 %v6890
    %v7653 = vpop.f32.mrb[0].mxu0
    %v7654 = vadd.f32 %v7461, %v7653
    %v7655 = vpop.f32.mrb[0].mxu0
    %v7656 = vadd.f32 %v7463, %v7655
    %v7657 = vpop.f32.mrb[0].mxu0
    %v7658 = vadd.f32 %v7465, %v7657
    %v7659 = vpop.f32.mrb[0].mxu0
    %v7660 = vadd.f32 %v7467, %v7659
    %7661 = vdwg.mxu0
    %v7662 = vadd.f32 %v3772, %v7504
    %v7663 = vadd.f32 %v3773, %v7506
    %v7664 = vadd.f32 %v3774, %v7508
    %v7665 = vadd.f32 %v3775, %v7510
    %v7666 = vadd.f32 %v3776, %v7514
    %v7667 = vadd.f32 %v3777, %v7516
    %v7668 = vadd.f32 %v3778, %v7518
    %v7669 = vadd.f32 %v3779, %v7520
    %v7670 = vadd.f32 %v3780, %v7524
    %v7671 = vadd.f32 %v3781, %v7526
    %v7672 = vadd.f32 %v3782, %v7528
    %v7673 = vadd.f32 %v3783, %v7530
    %v7674 = vadd.f32 %v3784, %v7534
    %v7675 = vadd.f32 %v3785, %v7536
    %v7676 = vadd.f32 %v3786, %v7538
    %v7677 = vadd.f32 %v3787, %v7540
    %v7678 = vadd.f32 %v3788, %v7544
    %v7679 = vadd.f32 %v3789, %v7546
    %v7680 = vadd.f32 %v3790, %v7548
    %v7681 = vadd.f32 %v3791, %v7550
    %v7682 = vadd.f32 %v3792, %v7554
    %v7683 = vadd.f32 %v3793, %v7556
    %v7684 = vadd.f32 %v3794, %v7558
    %v7685 = vadd.f32 %v3795, %v7560
    %v7686 = vadd.f32 %v3796, %v7564
    %v7687 = vadd.f32 %v3797, %v7566
    %v7688 = vadd.f32 %v3798, %v7568
    %v7689 = vadd.f32 %v3799, %v7570
    %v7690 = vadd.f32 %v3800, %v7574
    %v7691 = vadd.f32 %v3801, %v7576
    %v7692 = vadd.f32 %v3802, %v7578
    %v7693 = vadd.f32 %v3803, %v7580
    %v7694 = vadd.f32 %v3804, %v7584
    %v7695 = vadd.f32 %v3805, %v7586
    %v7696 = vadd.f32 %v3806, %v7588
    %v7697 = vadd.f32 %v3807, %v7590
    %v7698 = vadd.f32 %v3808, %v7594
    %v7699 = vadd.f32 %v3809, %v7596
    %v7700 = vadd.f32 %v3810, %v7598
    %v7701 = vadd.f32 %v3811, %v7600
    %v7702 = vadd.f32 %v3812, %v7604
    %v7703 = vadd.f32 %v3813, %v7606
    %v7704 = vadd.f32 %v3814, %v7608
    %v7705 = vadd.f32 %v3815, %v7610
    %v7706 = vadd.f32 %v3816, %v7614
    %v7707 = vadd.f32 %v3817, %v7616
    %v7708 = vadd.f32 %v3818, %v7618
    %v7709 = vadd.f32 %v3819, %v7620
    %v7710 = vadd.f32 %v3820, %v7624
    %v7711 = vadd.f32 %v3821, %v7626
    %v7712 = vadd.f32 %v3822, %v7628
    %v7713 = vadd.f32 %v3823, %v7630
    %v7714 = vadd.f32 %v3824, %v7634
    %v7715 = vadd.f32 %v3825, %v7636
    %v7716 = vadd.f32 %v3826, %v7638
    %v7717 = vadd.f32 %v3827, %v7640
    %v7718 = vadd.f32 %v3828, %v7644
    %v7719 = vadd.f32 %v3829, %v7646
    %v7720 = vadd.f32 %v3830, %v7648
    %v7721 = vadd.f32 %v3831, %v7650
    %v7722 = vadd.f32 %v3832, %v7654
    %v7723 = vadd.f32 %v3833, %v7656
    %v7724 = vadd.f32 %v3834, %v7658
    %v7725 = vadd.f32 %v3835, %v7660
    %7726 = vst [vmem:[#allocation11] sm:$0xff] %v7662
    %7727 = vst [vmem:[#allocation11 + $0x8] sm:$0xff] %v7663
    %7728 = vst [vmem:[#allocation11 + $0x10] sm:$0xff] %v7664
    %7729 = vst [vmem:[#allocation11 + $0x18] sm:$0xff] %v7665
    %7730 = vst [vmem:[#allocation11 + $0x20] sm:$0xff] %v7666
    %7731 = vst [vmem:[#allocation11 + $0x28] sm:$0xff] %v7667
    %7732 = vst [vmem:[#allocation11 + $0x30] sm:$0xff] %v7668
    %7733 = vst [vmem:[#allocation11 + $0x38] sm:$0xff] %v7669
    %7734 = vst [vmem:[#allocation11 + $0x40] sm:$0xff] %v7670
    %7735 = vst [vmem:[#allocation11 + $0x48] sm:$0xff] %v7671
    %7736 = vst [vmem:[#allocation11 + $0x50] sm:$0xff] %v7672
    %7737 = vst [vmem:[#allocation11 + $0x58] sm:$0xff] %v7673
    %7738 = vst [vmem:[#allocation11 + $0x60] sm:$0xff] %v7674
    %7739 = vst [vmem:[#allocation11 + $0x68] sm:$0xff] %v7675
    %7740 = vst [vmem:[#allocation11 + $0x70] sm:$0xff] %v7676
    %7741 = vst [vmem:[#allocation11 + $0x78] sm:$0xff] %v7677
    %7742 = vst [vmem:[#allocation11 + $0x80] sm:$0xff] %v7678
    %7743 = vst [vmem:[#allocation11 + $0x88] sm:$0xff] %v7679
    %7744 = vst [vmem:[#allocation11 + $0x90] sm:$0xff] %v7680
    %7745 = vst [vmem:[#allocation11 + $0x98] sm:$0xff] %v7681
    %7746 = vst [vmem:[#allocation11 + $0xa0] sm:$0xff] %v7682
    %7747 = vst [vmem:[#allocation11 + $0xa8] sm:$0xff] %v7683
    %7748 = vst [vmem:[#allocation11 + $0xb0] sm:$0xff] %v7684
    %7749 = vst [vmem:[#allocation11 + $0xb8] sm:$0xff] %v7685
    %7750 = vst [vmem:[#allocation11 + $0xc0] sm:$0xff] %v7686
    %7751 = vst [vmem:[#allocation11 + $0xc8] sm:$0xff] %v7687
    %7752 = vst [vmem:[#allocation11 + $0xd0] sm:$0xff] %v7688
    %7753 = vst [vmem:[#allocation11 + $0xd8] sm:$0xff] %v7689
    %7754 = vst [vmem:[#allocation11 + $0xe0] sm:$0xff] %v7690
    %7755 = vst [vmem:[#allocation11 + $0xe8] sm:$0xff] %v7691
    %7756 = vst [vmem:[#allocation11 + $0xf0] sm:$0xff] %v7692
    %7757 = vst [vmem:[#allocation11 + $0xf8] sm:$0xff] %v7693
    %7758 = vst [vmem:[#allocation11 + $0x100] sm:$0xff] %v7694
    %7759 = vst [vmem:[#allocation11 + $0x108] sm:$0xff] %v7695
    %7760 = vst [vmem:[#allocation11 + $0x110] sm:$0xff] %v7696
    %7761 = vst [vmem:[#allocation11 + $0x118] sm:$0xff] %v7697
    %7762 = vst [vmem:[#allocation11 + $0x120] sm:$0xff] %v7698
    %7763 = vst [vmem:[#allocation11 + $0x128] sm:$0xff] %v7699
    %7764 = vst [vmem:[#allocation11 + $0x130] sm:$0xff] %v7700
    %7765 = vst [vmem:[#allocation11 + $0x138] sm:$0xff] %v7701
    %7766 = vst [vmem:[#allocation11 + $0x140] sm:$0xff] %v7702
    %7767 = vst [vmem:[#allocation11 + $0x148] sm:$0xff] %v7703
    %7768 = vst [vmem:[#allocation11 + $0x150] sm:$0xff] %v7704
    %7769 = vst [vmem:[#allocation11 + $0x158] sm:$0xff] %v7705
    %7770 = vst [vmem:[#allocation11 + $0x160] sm:$0xff] %v7706
    %7771 = vst [vmem:[#allocation11 + $0x168] sm:$0xff] %v7707
    %7772 = vst [vmem:[#allocation11 + $0x170] sm:$0xff] %v7708
    %7773 = vst [vmem:[#allocation11 + $0x178] sm:$0xff] %v7709
    %7774 = vst [vmem:[#allocation11 + $0x180] sm:$0xff] %v7710
    %7775 = vst [vmem:[#allocation11 + $0x188] sm:$0xff] %v7711
    %7776 = vst [vmem:[#allocation11 + $0x190] sm:$0xff] %v7712
    %7777 = vst [vmem:[#allocation11 + $0x198] sm:$0xff] %v7713
    %7778 = vst [vmem:[#allocation11 + $0x1a0] sm:$0xff] %v7714
    %7779 = vst [vmem:[#allocation11 + $0x1a8] sm:$0xff] %v7715
    %7780 = vst [vmem:[#allocation11 + $0x1b0] sm:$0xff] %v7716
    %7781 = vst [vmem:[#allocation11 + $0x1b8] sm:$0xff] %v7717
    %7782 = vst [vmem:[#allocation11 + $0x1c0] sm:$0xff] %v7718
    %7783 = vst [vmem:[#allocation11 + $0x1c8] sm:$0xff] %v7719
    %7784 = vst [vmem:[#allocation11 + $0x1d0] sm:$0xff] %v7720
    %7785 = vst [vmem:[#allocation11 + $0x1d8] sm:$0xff] %v7721
    %7786 = vst [vmem:[#allocation11 + $0x1e0] sm:$0xff] %v7722
    %7787 = vst [vmem:[#allocation11 + $0x1e8] sm:$0xff] %v7723
    %7788 = vst [vmem:[#allocation11 + $0x1f0] sm:$0xff] %v7724
    %7789 = vst [vmem:[#allocation11 + $0x1f8] sm:$0xff] %v7725
    // Predicated region
    $region50: #{tpu_custom_call.1} parent=1 // pred_check
      _
    $region51: #{tpu_custom_call.1} parent=1 // pred_check_branch
      %7791 = sbr.rel (0) target = $region53
    $region52: #{tpu_custom_call.1} parent=1 // pred_region
      %s7793 = ssub.s32 8192, 8192
      %7794 = vsyncadd [#allocation4], %s7793
      %s7795 = sshll.u32 [#allocation11], 4
      %s7796 = int_to_ptr.vmem [resolvable:$true] %s7795
      %7801 = dma.vmem_to_hbm [thread:$0]  %s7796, 8192, %s7, [#allocation4], 256, 256, 16
    $region53: #{tpu_custom_call.1} parent=1 // pred_fallthru
      _
    // Predicated region
    $region54: #{tpu_custom_call.1} parent=1 // pred_check
      _
    $region55: #{tpu_custom_call.1} parent=1 // pred_check_branch
      %7803 = sbr.rel (0) target = $region57
    $region56: #{tpu_custom_call.1} parent=1 // pred_region
      %7804 = dma.done [#allocation4], 8192
    $region57: #{tpu_custom_call.1} parent=1 // pred_fallthru
      _
    %7805 = vsyncpa [#allocation3], 1
    %7806 = vsyncpa [#allocation6], 1
    %7807 = vsyncpa [#allocation9], 1
    %7808 = vsyncpa [#allocation4], 1

</llo_original>
